<compile_context>
chip_gen: v7x
topology: tpu7x:2x2x1
jax: 0.10.0
libtpu: 0.0.40
codegen_flags: <defaults>
</compile_context>

<pallas_src>
import functools

import jax
import jax.numpy as jnp
from jax.experimental import pallas as pl
from jax.experimental.pallas import tpu as pltpu


def _round_up(x, m):
    return (x + m - 1) // m * m


def _pick_row_tile(ho, cap=8):
    # largest divisor of Ho that is <= cap (bounds in-kernel unroll, no padding)
    for th in range(min(cap, ho), 0, -1):
        if ho % th == 0:
            return th
    return 1


# ----------------------------------------------------------------------------
# Pallas kernel: fused stride-1 conv (kh x kw tap-matmuls) + bias + opt. ReLU
# ----------------------------------------------------------------------------
def _conv_tap_kernel(x_ref, w_ref, b_ref, o_ref, *, kh, kw, th, wo, apply_relu):
    # x_ref: (1, Hin, Win, Cz)  whole padded image, resident in VMEM
    # w_ref: (kh*kw, Cz, TN)    BN-folded taps (bf16)
    # b_ref: (1, TN)            folded conv-bias + BN shift (f32)
    # o_ref: (1, th, Wo, TN)
    t = pl.program_id(1)
    row0 = t * th
    bias = b_ref[...]                                          # (1, TN)
    for r in range(th):                                        # static unroll, th <= 8
        acc = None
        for dy in range(kh):
            for dx in range(kw):
                tap = x_ref[0, row0 + r + dy, pl.ds(dx, wo), :]    # (Wo, Cz) bf16
                part = jnp.dot(tap, w_ref[dy * kw + dx],
                               preferred_element_type=jnp.float32)  # (Wo, TN) f32
                acc = part if acc is None else acc + part
        y = acc + bias
        if apply_relu:
            y = jnp.maximum(y, 0.0)
        o_ref[0, r] = y.astype(o_ref.dtype)


# ----------------------------------------------------------------------------
# One Conv3x3 + BatchNorm2d (+ optional ReLU) stage
# ----------------------------------------------------------------------------
def conv_bn_act_stage(x_nhwc, sp):
    cin, cout, cpad = sp["cin"], sp["cout"], sp["cpad"]
    kh, kw, stride = sp["kh"], sp["kw"], sp["stride"]
    w_mat, bias = sp["w"], sp["b"]
    out_dtype = sp["out_dtype"]

    # Drop the previous stage's lane-padding channels BEFORE any HBM copy.
    x = x_nhwc[..., :cin].astype(jnp.bfloat16)
    N, H, W, _ = x.shape

    if stride == 2:
        # pad=1 + space-to-depth(2): 3x3/stride-2 conv -> 2x2/stride-1 conv
        eh = (H + 2) % 2
        ew = (W + 2) % 2
        xp = jnp.pad(x, ((0, 0), (1, 1 + eh), (1, 1 + ew), (0, 0)))
        Hp, Wp = H + 2 + eh, W + 2 + ew
        xp = xp.reshape(N, Hp // 2, 2, Wp // 2, 2, cin)
        xp = jnp.transpose(xp, (0, 1, 3, 2, 4, 5)).reshape(N, Hp // 2, Wp // 2, 4 * cin)
    else:
        xp = jnp.pad(x, ((0, 0), (1, 1), (1, 1), (0, 0)))

    _, Hin, Win, Cz = xp.shape
    assert Cz == w_mat.shape[1]
    Ho, Wo = Hin - kh + 1, Win - kw + 1

    th = _pick_row_tile(Ho, cap=8)
    gh = Ho // th

    # cout tiling: keep the weight block resident for the whole call when it is
    # small (fetched once); otherwise stream lane-dense 256/128-channel blocks.
    w_bytes = kh * kw * Cz * cpad * 2
    if cpad == 128 or w_bytes <= 8 * 1024 * 1024:
        tn = cpad
    elif cpad % 256 == 0:
        tn = 256
    else:
        tn = 128
    gn = cpad // tn

    out_itemsize = jnp.dtype(out_dtype).itemsize
    in_blk = Hin * Win * Cz * 2
    w_blk = kh * kw * Cz * tn * 2
    o_blk = th * Wo * tn * out_itemsize
    vmem_limit = int(min(40 * 1024 * 1024,
                         max(8 * 1024 * 1024,
                             3 * (in_blk + w_blk + o_blk) + tn * 4 + 2 * 1024 * 1024)))

    cost = pl.CostEstimate(
        flops=2 * N * Ho * Wo * (kh * kw * Cz) * cpad,
        transcendentals=0,
        bytes_accessed=int(N * in_blk + kh * kw * Cz * cpad * 2 + cpad * 4
                           + N * Ho * Wo * cpad * out_itemsize),
    )

    kern = functools.partial(_conv_tap_kernel, kh=kh, kw=kw, th=th, wo=Wo,
                             apply_relu=sp["relu"])

    out = pl.pallas_call(
        kern,
        out_shape=jax.ShapeDtypeStruct((N, Ho, Wo, cpad), out_dtype),
        grid=(N, gh, gn),
        in_specs=[
            pl.BlockSpec((1, Hin, Win, Cz), lambda n, t, j: (n, 0, 0, 0)),  # image, resident
            pl.BlockSpec((kh * kw, Cz, tn), lambda n, t, j: (0, 0, j)),     # taps
            pl.BlockSpec((1, tn), lambda n, t, j: (0, j)),                  # bias
        ],
        out_specs=pl.BlockSpec((1, th, Wo, tn), lambda n, t, j: (n, t, 0, j)),
        compiler_params=pltpu.CompilerParams(
            dimension_semantics=("parallel", "parallel", "arbitrary"),
            vmem_limit_bytes=vmem_limit,
        ),
        cost_estimate=cost,
    )(xp, w_mat, bias)
    return out


# ----------------------------------------------------------------------------
# Stem: 5 conv stages (strides 2,2,2,2,1); ReLU after the first 4 BNs only.
# ----------------------------------------------------------------------------
STRIDES = (2, 2, 2, 2, 1)
RELUS = (True, True, True, True, False)


def init_stem_params(key, in_dim, out_dim):
    chans = [in_dim, out_dim // 8, out_dim // 4, out_dim // 2, out_dim, out_dim]
    params = []
    for li in range(5):
        cin, cout = chans[li], chans[li + 1]
        key, kw_, kb_, kg_, kbeta_ = jax.random.split(key, 5)
        fan_in = cin * 9
        w = jax.random.normal(kw_, (cout, cin, 3, 3), jnp.float32) / jnp.sqrt(fan_in)
        b = 0.01 * jax.random.normal(kb_, (cout,), jnp.float32)
        gamma = 1.0 + 0.1 * jax.random.normal(kg_, (cout,), jnp.float32)
        beta = 0.1 * jax.random.normal(kbeta_, (cout,), jnp.float32)
        rmean = jnp.zeros((cout,), jnp.float32)   # eval-mode running stats
        rvar = jnp.ones((cout,), jnp.float32)
        params.append((w, b, gamma, beta, rmean, rvar))
    return params


def prepare_stem_params(params, eps=1e-5):
    """One-time inference prep: fold eval-mode BN into weights/bias, remap the
    taps for the space-to-depth stride-2 formulation, zero-pad cout to a
    lane-dense multiple of 128, and cast weights to bf16."""
    prepared = []
    n_stages = len(params)
    for li, ((w, b, gamma, beta, rmean, rvar), stride, relu) in enumerate(
            zip(params, STRIDES, RELUS)):
        cout, cin, _, _ = w.shape
        cpad = _round_up(cout, 128)
        scale = gamma / jnp.sqrt(rvar + eps)                    # (cout,)
        bias = (b - rmean) * scale + beta                       # (cout,)
        w_hwio = (jnp.transpose(w.astype(jnp.float32), (2, 3, 1, 0))
                  * scale[None, None, None, :])                 # (3,3,cin,cout)
        if stride == 2:
            # 3x3/stride-2 conv on the padded image == 2x2/stride-1 conv on its
            # space-to-depth(2) transform with (p, q, c)-ordered 4*cin channels.
            wk = jnp.zeros((2, 2, 2, 2, cin, cpad), jnp.float32)
            for di in range(2):
                for dj in range(2):
                    for p in range(2):
                        for q in range(2):
                            dy, dx = 2 * di + p, 2 * dj + q
                            if dy < 3 and dx < 3:
                                wk = wk.at[di, dj, p, q, :, :cout].set(w_hwio[dy, dx])
            w_mat = wk.reshape(2 * 2, 4 * cin, cpad)            # (tap, Cz, cpad)
            kh = kw = 2
        else:
            wk = jnp.zeros((3, 3, cin, cpad), jnp.float32)
            wk = wk.at[:, :, :, :cout].set(w_hwio)
            w_mat = wk.reshape(9, cin, cpad)
            kh = kw = 3
        bias_full = jnp.zeros((1, cpad), jnp.float32).at[0, :cout].set(bias)
        is_last = li == n_stages - 1
        prepared.append(dict(
            w=w_mat.astype(jnp.bfloat16), b=bias_full,
            cin=cin, cout=cout, cpad=cpad, kh=kh, kw=kw, stride=stride,
            relu=relu, out_dtype=jnp.float32 if is_last else jnp.bfloat16))
    return prepared


def stem_forward(x_nchw, prepared):
    x = jnp.transpose(x_nchw, (0, 2, 3, 1))          # NCHW -> NHWC
    for sp in prepared:
        x = conv_bn_act_stage(x, sp)
    x = x[..., :prepared[-1]["cout"]]                # drop lane-pad channels once
    return jnp.transpose(x, (0, 3, 1, 2))            # NHWC -> NCHW


# ----------------------------------------------------------------------------
# Pure-JAX reference (f32) for a tolerance check
# ----------------------------------------------------------------------------
def stem_reference(x_nchw, params, eps=1e-5):
    x = x_nchw
    for (w, b, gamma, beta, rmean, rvar), stride, relu in zip(params, STRIDES, RELUS):
        x = jax.lax.conv_general_dilated(
            x, w, window_strides=(stride, stride), padding=((1, 1), (1, 1)),
            dimension_numbers=("NCHW", "OIHW", "NCHW"))
        x = x + b[None, :, None, None]
        scale = gamma / jnp.sqrt(rvar + eps)
        x = ((x - rmean[None, :, None, None]) * scale[None, :, None, None]
             + beta[None, :, None, None])
        if relu:
            x = jnp.maximum(x, 0.0)
    return x


if __name__ == "__main__":
    key = jax.random.PRNGKey(0)
    k_x, k_p = jax.random.split(key)

    # Small shapes consistent with the module: img_size=16, in_dim=4, out_dim=32
    N, in_dim, img_size, out_dim = 2, 4, 16, 32
    x = jax.random.normal(k_x, (N, in_dim, img_size, img_size), jnp.float32)
    params = init_stem_params(k_p, in_dim, out_dim)

    prepared = prepare_stem_params(params)           # one-time inference prep (hoisted)
    fwd = jax.jit(lambda xx: stem_forward(xx, prepared))

    out = jax.block_until_ready(fwd(x))

    expected_hw = img_size // 16                      # four stride-2 convs, one stride-1
    assert out.shape == (N, out_dim, expected_hw, expected_hw), out.shape
    assert bool(jnp.all(jnp.isfinite(out)))

    ref = stem_reference(x, params)
    rel = float(jnp.linalg.norm(out - ref) / (jnp.linalg.norm(ref) + 1e-6))
    assert rel < 0.1, f"relative error too large: {rel}"
    print("KERNEL_OK")
</pallas_src>

<mosaic_0001>
module attributes {stable_mosaic.version = 11 : i64} {
  func.func @_conv_tap_kernel(%arg0: i32, %arg1: i32, %arg2: i32, %arg3: memref<1x9x9x16xbf16, #tpu.memory_space<vmem>>, %arg4: memref<4x16x128xbf16, #tpu.memory_space<vmem>>, %arg5: memref<1x128xf32, #tpu.memory_space<vmem>>, %arg6: memref<1x8x8x128xbf16, #tpu.memory_space<vmem>>) attributes {dimension_semantics = [#tpu.dimension_semantics<parallel>, #tpu.dimension_semantics<parallel>, #tpu.dimension_semantics<arbitrary>], iteration_bounds = array<i64: 2, 1, 1>, scalar_prefetch = 0 : i64, scratch_operands = 0 : i64, tpu.core_type = #tpu.core_type<tc>, window_params = [{transform_indices = @transform_0, window_bounds = array<i64: 1, 9, 9, 16>}, {transform_indices = @transform_1, window_bounds = array<i64: 4, 16, 128>}, {transform_indices = @transform_2, window_bounds = array<i64: 1, 128>}, {transform_indices = @transform_3, window_bounds = array<i64: 1, 8, 8, 128>}]} {
    %c8_i32 = arith.constant 8 : i32
    %0 = arith.muli %arg1, %c8_i32 : i32
    %c0 = arith.constant 0 : index
    %c0_0 = arith.constant 0 : index
    %1 = vector.load %arg5[%c0, %c0_0] : memref<1x128xf32, #tpu.memory_space<vmem>>, vector<1x128xf32>
    %c0_i32 = arith.constant 0 : i32
    %2 = arith.addi %0, %c0_i32 : i32
    %c0_i32_1 = arith.constant 0 : i32
    %3 = arith.addi %2, %c0_i32_1 : i32
    %c0_2 = arith.constant 0 : index
    %4 = arith.index_cast %3 : i32 to index
    %c0_3 = arith.constant 0 : index
    %c0_4 = arith.constant 0 : index
    %5 = vector.load %arg3[%c0_2, %4, %c0_3, %c0_4] : memref<1x9x9x16xbf16, #tpu.memory_space<vmem>>, vector<1x1x8x16xbf16>
    %6 = vector.shape_cast %5 : vector<1x1x8x16xbf16> to vector<8x16xbf16>
    %c0_5 = arith.constant 0 : index
    %c0_6 = arith.constant 0 : index
    %c0_7 = arith.constant 0 : index
    %7 = vector.load %arg4[%c0_5, %c0_6, %c0_7] : memref<4x16x128xbf16, #tpu.memory_space<vmem>>, vector<1x16x128xbf16>
    %8 = vector.shape_cast %7 : vector<1x16x128xbf16> to vector<16x128xbf16>
    %cst = arith.constant dense<0.000000e+00> : vector<8x128xf32>
    %9 = tpu.matmul %6, %8, %cst {dimension_numbers = #tpu.dot_dimension_numbers<[1], [0], [0], [1], [0, 0, 1, 1], [], []>} : vector<8x16xbf16>, vector<16x128xbf16>, vector<8x128xf32> -> vector<8x128xf32>
    %c0_i32_8 = arith.constant 0 : i32
    %10 = arith.addi %0, %c0_i32_8 : i32
    %c0_i32_9 = arith.constant 0 : i32
    %11 = arith.addi %10, %c0_i32_9 : i32
    %c0_10 = arith.constant 0 : index
    %12 = arith.index_cast %11 : i32 to index
    %c1 = arith.constant 1 : index
    %c0_11 = arith.constant 0 : index
    %13 = vector.load %arg3[%c0_10, %12, %c1, %c0_11] : memref<1x9x9x16xbf16, #tpu.memory_space<vmem>>, vector<1x1x8x16xbf16>
    %14 = vector.shape_cast %13 : vector<1x1x8x16xbf16> to vector<8x16xbf16>
    %c1_12 = arith.constant 1 : index
    %c0_13 = arith.constant 0 : index
    %c0_14 = arith.constant 0 : index
    %15 = vector.load %arg4[%c1_12, %c0_13, %c0_14] : memref<4x16x128xbf16, #tpu.memory_space<vmem>>, vector<1x16x128xbf16>
    %16 = vector.shape_cast %15 : vector<1x16x128xbf16> to vector<16x128xbf16>
    %cst_15 = arith.constant dense<0.000000e+00> : vector<8x128xf32>
    %17 = tpu.matmul %14, %16, %cst_15 {dimension_numbers = #tpu.dot_dimension_numbers<[1], [0], [0], [1], [0, 0, 1, 1], [], []>} : vector<8x16xbf16>, vector<16x128xbf16>, vector<8x128xf32> -> vector<8x128xf32>
    %18 = arith.addf %9, %17 : vector<8x128xf32>
    %c0_i32_16 = arith.constant 0 : i32
    %19 = arith.addi %0, %c0_i32_16 : i32
    %c1_i32 = arith.constant 1 : i32
    %20 = arith.addi %19, %c1_i32 : i32
    %c0_17 = arith.constant 0 : index
    %21 = arith.index_cast %20 : i32 to index
    %c0_18 = arith.constant 0 : index
    %c0_19 = arith.constant 0 : index
    %22 = vector.load %arg3[%c0_17, %21, %c0_18, %c0_19] : memref<1x9x9x16xbf16, #tpu.memory_space<vmem>>, vector<1x1x8x16xbf16>
    %23 = vector.shape_cast %22 : vector<1x1x8x16xbf16> to vector<8x16xbf16>
    %c2 = arith.constant 2 : index
    %c0_20 = arith.constant 0 : index
    %c0_21 = arith.constant 0 : index
    %24 = vector.load %arg4[%c2, %c0_20, %c0_21] : memref<4x16x128xbf16, #tpu.memory_space<vmem>>, vector<1x16x128xbf16>
    %25 = vector.shape_cast %24 : vector<1x16x128xbf16> to vector<16x128xbf16>
    %cst_22 = arith.constant dense<0.000000e+00> : vector<8x128xf32>
    %26 = tpu.matmul %23, %25, %cst_22 {dimension_numbers = #tpu.dot_dimension_numbers<[1], [0], [0], [1], [0, 0, 1, 1], [], []>} : vector<8x16xbf16>, vector<16x128xbf16>, vector<8x128xf32> -> vector<8x128xf32>
    %27 = arith.addf %18, %26 : vector<8x128xf32>
    %c0_i32_23 = arith.constant 0 : i32
    %28 = arith.addi %0, %c0_i32_23 : i32
    %c1_i32_24 = arith.constant 1 : i32
    %29 = arith.addi %28, %c1_i32_24 : i32
    %c0_25 = arith.constant 0 : index
    %30 = arith.index_cast %29 : i32 to index
    %c1_26 = arith.constant 1 : index
    %c0_27 = arith.constant 0 : index
    %31 = vector.load %arg3[%c0_25, %30, %c1_26, %c0_27] : memref<1x9x9x16xbf16, #tpu.memory_space<vmem>>, vector<1x1x8x16xbf16>
    %32 = vector.shape_cast %31 : vector<1x1x8x16xbf16> to vector<8x16xbf16>
    %c3 = arith.constant 3 : index
    %c0_28 = arith.constant 0 : index
    %c0_29 = arith.constant 0 : index
    %33 = vector.load %arg4[%c3, %c0_28, %c0_29] : memref<4x16x128xbf16, #tpu.memory_space<vmem>>, vector<1x16x128xbf16>
    %34 = vector.shape_cast %33 : vector<1x16x128xbf16> to vector<16x128xbf16>
    %cst_30 = arith.constant dense<0.000000e+00> : vector<8x128xf32>
    %35 = tpu.matmul %32, %34, %cst_30 {dimension_numbers = #tpu.dot_dimension_numbers<[1], [0], [0], [1], [0, 0, 1, 1], [], []>} : vector<8x16xbf16>, vector<16x128xbf16>, vector<8x128xf32> -> vector<8x128xf32>
    %36 = arith.addf %27, %35 : vector<8x128xf32>
    %37 = vector.broadcast %1 : vector<1x128xf32> to vector<8x128xf32>
    %38 = arith.addf %36, %37 : vector<8x128xf32>
    %cst_31 = arith.constant 0.000000e+00 : f32
    %39 = vector.broadcast %cst_31 : f32 to vector<8x128xf32>
    %40 = arith.maximumf %38, %39 : vector<8x128xf32>
    %41 = arith.truncf %40 : vector<8x128xf32> to vector<8x128xbf16>
    %c0_32 = arith.constant 0 : index
    %c0_33 = arith.constant 0 : index
    %c0_34 = arith.constant 0 : index
    %c0_35 = arith.constant 0 : index
    %42 = vector.load %arg6[%c0_32, %c0_33, %c0_34, %c0_35] : memref<1x8x8x128xbf16, #tpu.memory_space<vmem>>, vector<1x1x8x128xbf16>
    %43 = vector.shape_cast %42 : vector<1x1x8x128xbf16> to vector<8x128xbf16>
    %44 = vector.shape_cast %41 : vector<8x128xbf16> to vector<1x1x8x128xbf16>
    tpu.vector_store %arg6[%c0_32, %c0_33, %c0_34, %c0_35], %44 {strides = array<i32>} : memref<1x8x8x128xbf16, #tpu.memory_space<vmem>>, vector<1x1x8x128xbf16>,
    %c1_i32_36 = arith.constant 1 : i32
    %45 = arith.addi %0, %c1_i32_36 : i32
    %c0_i32_37 = arith.constant 0 : i32
    %46 = arith.addi %45, %c0_i32_37 : i32
    %c0_38 = arith.constant 0 : index
    %47 = arith.index_cast %46 : i32 to index
    %c0_39 = arith.constant 0 : index
    %c0_40 = arith.constant 0 : index
    %48 = vector.load %arg3[%c0_38, %47, %c0_39, %c0_40] : memref<1x9x9x16xbf16, #tpu.memory_space<vmem>>, vector<1x1x8x16xbf16>
    %49 = vector.shape_cast %48 : vector<1x1x8x16xbf16> to vector<8x16xbf16>
    %c0_41 = arith.constant 0 : index
    %c0_42 = arith.constant 0 : index
    %c0_43 = arith.constant 0 : index
    %50 = vector.load %arg4[%c0_41, %c0_42, %c0_43] : memref<4x16x128xbf16, #tpu.memory_space<vmem>>, vector<1x16x128xbf16>
    %51 = vector.shape_cast %50 : vector<1x16x128xbf16> to vector<16x128xbf16>
    %cst_44 = arith.constant dense<0.000000e+00> : vector<8x128xf32>
    %52 = tpu.matmul %49, %51, %cst_44 {dimension_numbers = #tpu.dot_dimension_numbers<[1], [0], [0], [1], [0, 0, 1, 1], [], []>} : vector<8x16xbf16>, vector<16x128xbf16>, vector<8x128xf32> -> vector<8x128xf32>
    %c1_i32_45 = arith.constant 1 : i32
    %53 = arith.addi %0, %c1_i32_45 : i32
    %c0_i32_46 = arith.constant 0 : i32
    %54 = arith.addi %53, %c0_i32_46 : i32
    %c0_47 = arith.constant 0 : index
    %55 = arith.index_cast %54 : i32 to index
    %c1_48 = arith.constant 1 : index
    %c0_49 = arith.constant 0 : index
    %56 = vector.load %arg3[%c0_47, %55, %c1_48, %c0_49] : memref<1x9x9x16xbf16, #tpu.memory_space<vmem>>, vector<1x1x8x16xbf16>
    %57 = vector.shape_cast %56 : vector<1x1x8x16xbf16> to vector<8x16xbf16>
    %c1_50 = arith.constant 1 : index
    %c0_51 = arith.constant 0 : index
    %c0_52 = arith.constant 0 : index
    %58 = vector.load %arg4[%c1_50, %c0_51, %c0_52] : memref<4x16x128xbf16, #tpu.memory_space<vmem>>, vector<1x16x128xbf16>
    %59 = vector.shape_cast %58 : vector<1x16x128xbf16> to vector<16x128xbf16>
    %cst_53 = arith.constant dense<0.000000e+00> : vector<8x128xf32>
    %60 = tpu.matmul %57, %59, %cst_53 {dimension_numbers = #tpu.dot_dimension_numbers<[1], [0], [0], [1], [0, 0, 1, 1], [], []>} : vector<8x16xbf16>, vector<16x128xbf16>, vector<8x128xf32> -> vector<8x128xf32>
    %61 = arith.addf %52, %60 : vector<8x128xf32>
    %c1_i32_54 = arith.constant 1 : i32
    %62 = arith.addi %0, %c1_i32_54 : i32
    %c1_i32_55 = arith.constant 1 : i32
    %63 = arith.addi %62, %c1_i32_55 : i32
    %c0_56 = arith.constant 0 : index
    %64 = arith.index_cast %63 : i32 to index
    %c0_57 = arith.constant 0 : index
    %c0_58 = arith.constant 0 : index
    %65 = vector.load %arg3[%c0_56, %64, %c0_57, %c0_58] : memref<1x9x9x16xbf16, #tpu.memory_space<vmem>>, vector<1x1x8x16xbf16>
    %66 = vector.shape_cast %65 : vector<1x1x8x16xbf16> to vector<8x16xbf16>
    %c2_59 = arith.constant 2 : index
    %c0_60 = arith.constant 0 : index
    %c0_61 = arith.constant 0 : index
    %67 = vector.load %arg4[%c2_59, %c0_60, %c0_61] : memref<4x16x128xbf16, #tpu.memory_space<vmem>>, vector<1x16x128xbf16>
    %68 = vector.shape_cast %67 : vector<1x16x128xbf16> to vector<16x128xbf16>
    %cst_62 = arith.constant dense<0.000000e+00> : vector<8x128xf32>
    %69 = tpu.matmul %66, %68, %cst_62 {dimension_numbers = #tpu.dot_dimension_numbers<[1], [0], [0], [1], [0, 0, 1, 1], [], []>} : vector<8x16xbf16>, vector<16x128xbf16>, vector<8x128xf32> -> vector<8x128xf32>
    %70 = arith.addf %61, %69 : vector<8x128xf32>
    %c1_i32_63 = arith.constant 1 : i32
    %71 = arith.addi %0, %c1_i32_63 : i32
    %c1_i32_64 = arith.constant 1 : i32
    %72 = arith.addi %71, %c1_i32_64 : i32
    %c0_65 = arith.constant 0 : index
    %73 = arith.index_cast %72 : i32 to index
    %c1_66 = arith.constant 1 : index
    %c0_67 = arith.constant 0 : index
    %74 = vector.load %arg3[%c0_65, %73, %c1_66, %c0_67] : memref<1x9x9x16xbf16, #tpu.memory_space<vmem>>, vector<1x1x8x16xbf16>
    %75 = vector.shape_cast %74 : vector<1x1x8x16xbf16> to vector<8x16xbf16>
    %c3_68 = arith.constant 3 : index
    %c0_69 = arith.constant 0 : index
    %c0_70 = arith.constant 0 : index
    %76 = vector.load %arg4[%c3_68, %c0_69, %c0_70] : memref<4x16x128xbf16, #tpu.memory_space<vmem>>, vector<1x16x128xbf16>
    %77 = vector.shape_cast %76 : vector<1x16x128xbf16> to vector<16x128xbf16>
    %cst_71 = arith.constant dense<0.000000e+00> : vector<8x128xf32>
    %78 = tpu.matmul %75, %77, %cst_71 {dimension_numbers = #tpu.dot_dimension_numbers<[1], [0], [0], [1], [0, 0, 1, 1], [], []>} : vector<8x16xbf16>, vector<16x128xbf16>, vector<8x128xf32> -> vector<8x128xf32>
    %79 = arith.addf %70, %78 : vector<8x128xf32>
    %80 = vector.broadcast %1 : vector<1x128xf32> to vector<8x128xf32>
    %81 = arith.addf %79, %80 : vector<8x128xf32>
    %cst_72 = arith.constant 0.000000e+00 : f32
    %82 = vector.broadcast %cst_72 : f32 to vector<8x128xf32>
    %83 = arith.maximumf %81, %82 : vector<8x128xf32>
    %84 = arith.truncf %83 : vector<8x128xf32> to vector<8x128xbf16>
    %c0_73 = arith.constant 0 : index
    %c1_74 = arith.constant 1 : index
    %c0_75 = arith.constant 0 : index
    %c0_76 = arith.constant 0 : index
    %85 = vector.load %arg6[%c0_73, %c1_74, %c0_75, %c0_76] : memref<1x8x8x128xbf16, #tpu.memory_space<vmem>>, vector<1x1x8x128xbf16>
    %86 = vector.shape_cast %85 : vector<1x1x8x128xbf16> to vector<8x128xbf16>
    %87 = vector.shape_cast %84 : vector<8x128xbf16> to vector<1x1x8x128xbf16>
    tpu.vector_store %arg6[%c0_73, %c1_74, %c0_75, %c0_76], %87 {strides = array<i32>} : memref<1x8x8x128xbf16, #tpu.memory_space<vmem>>, vector<1x1x8x128xbf16>,
    %c2_i32 = arith.constant 2 : i32
    %88 = arith.addi %0, %c2_i32 : i32
    %c0_i32_77 = arith.constant 0 : i32
    %89 = arith.addi %88, %c0_i32_77 : i32
    %c0_78 = arith.constant 0 : index
    %90 = arith.index_cast %89 : i32 to index
    %c0_79 = arith.constant 0 : index
    %c0_80 = arith.constant 0 : index
    %91 = vector.load %arg3[%c0_78, %90, %c0_79, %c0_80] : memref<1x9x9x16xbf16, #tpu.memory_space<vmem>>, vector<1x1x8x16xbf16>
    %92 = vector.shape_cast %91 : vector<1x1x8x16xbf16> to vector<8x16xbf16>
    %c0_81 = arith.constant 0 : index
    %c0_82 = arith.constant 0 : index
    %c0_83 = arith.constant 0 : index
    %93 = vector.load %arg4[%c0_81, %c0_82, %c0_83] : memref<4x16x128xbf16, #tpu.memory_space<vmem>>, vector<1x16x128xbf16>
    %94 = vector.shape_cast %93 : vector<1x16x128xbf16> to vector<16x128xbf16>
    %cst_84 = arith.constant dense<0.000000e+00> : vector<8x128xf32>
    %95 = tpu.matmul %92, %94, %cst_84 {dimension_numbers = #tpu.dot_dimension_numbers<[1], [0], [0], [1], [0, 0, 1, 1], [], []>} : vector<8x16xbf16>, vector<16x128xbf16>, vector<8x128xf32> -> vector<8x128xf32>
    %c2_i32_85 = arith.constant 2 : i32
    %96 = arith.addi %0, %c2_i32_85 : i32
    %c0_i32_86 = arith.constant 0 : i32
    %97 = arith.addi %96, %c0_i32_86 : i32
    %c0_87 = arith.constant 0 : index
    %98 = arith.index_cast %97 : i32 to index
    %c1_88 = arith.constant 1 : index
    %c0_89 = arith.constant 0 : index
    %99 = vector.load %arg3[%c0_87, %98, %c1_88, %c0_89] : memref<1x9x9x16xbf16, #tpu.memory_space<vmem>>, vector<1x1x8x16xbf16>
    %100 = vector.shape_cast %99 : vector<1x1x8x16xbf16> to vector<8x16xbf16>
    %c1_90 = arith.constant 1 : index
    %c0_91 = arith.constant 0 : index
    %c0_92 = arith.constant 0 : index
    %101 = vector.load %arg4[%c1_90, %c0_91, %c0_92] : memref<4x16x128xbf16, #tpu.memory_space<vmem>>, vector<1x16x128xbf16>
    %102 = vector.shape_cast %101 : vector<1x16x128xbf16> to vector<16x128xbf16>
    %cst_93 = arith.constant dense<0.000000e+00> : vector<8x128xf32>
    %103 = tpu.matmul %100, %102, %cst_93 {dimension_numbers = #tpu.dot_dimension_numbers<[1], [0], [0], [1], [0, 0, 1, 1], [], []>} : vector<8x16xbf16>, vector<16x128xbf16>, vector<8x128xf32> -> vector<8x128xf32>
    %104 = arith.addf %95, %103 : vector<8x128xf32>
    %c2_i32_94 = arith.constant 2 : i32
    %105 = arith.addi %0, %c2_i32_94 : i32
    %c1_i32_95 = arith.constant 1 : i32
    %106 = arith.addi %105, %c1_i32_95 : i32
    %c0_96 = arith.constant 0 : index
    %107 = arith.index_cast %106 : i32 to index
    %c0_97 = arith.constant 0 : index
    %c0_98 = arith.constant 0 : index
    %108 = vector.load %arg3[%c0_96, %107, %c0_97, %c0_98] : memref<1x9x9x16xbf16, #tpu.memory_space<vmem>>, vector<1x1x8x16xbf16>
    %109 = vector.shape_cast %108 : vector<1x1x8x16xbf16> to vector<8x16xbf16>
    %c2_99 = arith.constant 2 : index
    %c0_100 = arith.constant 0 : index
    %c0_101 = arith.constant 0 : index
    %110 = vector.load %arg4[%c2_99, %c0_100, %c0_101] : memref<4x16x128xbf16, #tpu.memory_space<vmem>>, vector<1x16x128xbf16>
    %111 = vector.shape_cast %110 : vector<1x16x128xbf16> to vector<16x128xbf16>
    %cst_102 = arith.constant dense<0.000000e+00> : vector<8x128xf32>
    %112 = tpu.matmul %109, %111, %cst_102 {dimension_numbers = #tpu.dot_dimension_numbers<[1], [0], [0], [1], [0, 0, 1, 1], [], []>} : vector<8x16xbf16>, vector<16x128xbf16>, vector<8x128xf32> -> vector<8x128xf32>
    %113 = arith.addf %104, %112 : vector<8x128xf32>
    %c2_i32_103 = arith.constant 2 : i32
    %114 = arith.addi %0, %c2_i32_103 : i32
    %c1_i32_104 = arith.constant 1 : i32
    %115 = arith.addi %114, %c1_i32_104 : i32
    %c0_105 = arith.constant 0 : index
    %116 = arith.index_cast %115 : i32 to index
    %c1_106 = arith.constant 1 : index
    %c0_107 = arith.constant 0 : index
    %117 = vector.load %arg3[%c0_105, %116, %c1_106, %c0_107] : memref<1x9x9x16xbf16, #tpu.memory_space<vmem>>, vector<1x1x8x16xbf16>
    %118 = vector.shape_cast %117 : vector<1x1x8x16xbf16> to vector<8x16xbf16>
    %c3_108 = arith.constant 3 : index
    %c0_109 = arith.constant 0 : index
    %c0_110 = arith.constant 0 : index
    %119 = vector.load %arg4[%c3_108, %c0_109, %c0_110] : memref<4x16x128xbf16, #tpu.memory_space<vmem>>, vector<1x16x128xbf16>
    %120 = vector.shape_cast %119 : vector<1x16x128xbf16> to vector<16x128xbf16>
    %cst_111 = arith.constant dense<0.000000e+00> : vector<8x128xf32>
    %121 = tpu.matmul %118, %120, %cst_111 {dimension_numbers = #tpu.dot_dimension_numbers<[1], [0], [0], [1], [0, 0, 1, 1], [], []>} : vector<8x16xbf16>, vector<16x128xbf16>, vector<8x128xf32> -> vector<8x128xf32>
    %122 = arith.addf %113, %121 : vector<8x128xf32>
    %123 = vector.broadcast %1 : vector<1x128xf32> to vector<8x128xf32>
    %124 = arith.addf %122, %123 : vector<8x128xf32>
    %cst_112 = arith.constant 0.000000e+00 : f32
    %125 = vector.broadcast %cst_112 : f32 to vector<8x128xf32>
    %126 = arith.maximumf %124, %125 : vector<8x128xf32>
    %127 = arith.truncf %126 : vector<8x128xf32> to vector<8x128xbf16>
    %c0_113 = arith.constant 0 : index
    %c2_114 = arith.constant 2 : index
    %c0_115 = arith.constant 0 : index
    %c0_116 = arith.constant 0 : index
    %128 = vector.load %arg6[%c0_113, %c2_114, %c0_115, %c0_116] : memref<1x8x8x128xbf16, #tpu.memory_space<vmem>>, vector<1x1x8x128xbf16>
    %129 = vector.shape_cast %128 : vector<1x1x8x128xbf16> to vector<8x128xbf16>
    %130 = vector.shape_cast %127 : vector<8x128xbf16> to vector<1x1x8x128xbf16>
    tpu.vector_store %arg6[%c0_113, %c2_114, %c0_115, %c0_116], %130 {strides = array<i32>} : memref<1x8x8x128xbf16, #tpu.memory_space<vmem>>, vector<1x1x8x128xbf16>,
    %c3_i32 = arith.constant 3 : i32
    %131 = arith.addi %0, %c3_i32 : i32
    %c0_i32_117 = arith.constant 0 : i32
    %132 = arith.addi %131, %c0_i32_117 : i32
    %c0_118 = arith.constant 0 : index
    %133 = arith.index_cast %132 : i32 to index
    %c0_119 = arith.constant 0 : index
    %c0_120 = arith.constant 0 : index
    %134 = vector.load %arg3[%c0_118, %133, %c0_119, %c0_120] : memref<1x9x9x16xbf16, #tpu.memory_space<vmem>>, vector<1x1x8x16xbf16>
    %135 = vector.shape_cast %134 : vector<1x1x8x16xbf16> to vector<8x16xbf16>
    %c0_121 = arith.constant 0 : index
    %c0_122 = arith.constant 0 : index
    %c0_123 = arith.constant 0 : index
    %136 = vector.load %arg4[%c0_121, %c0_122, %c0_123] : memref<4x16x128xbf16, #tpu.memory_space<vmem>>, vector<1x16x128xbf16>
    %137 = vector.shape_cast %136 : vector<1x16x128xbf16> to vector<16x128xbf16>
    %cst_124 = arith.constant dense<0.000000e+00> : vector<8x128xf32>
    %138 = tpu.matmul %135, %137, %cst_124 {dimension_numbers = #tpu.dot_dimension_numbers<[1], [0], [0], [1], [0, 0, 1, 1], [], []>} : vector<8x16xbf16>, vector<16x128xbf16>, vector<8x128xf32> -> vector<8x128xf32>
    %c3_i32_125 = arith.constant 3 : i32
    %139 = arith.addi %0, %c3_i32_125 : i32
    %c0_i32_126 = arith.constant 0 : i32
    %140 = arith.addi %139, %c0_i32_126 : i32
    %c0_127 = arith.constant 0 : index
    %141 = arith.index_cast %140 : i32 to index
    %c1_128 = arith.constant 1 : index
    %c0_129 = arith.constant 0 : index
    %142 = vector.load %arg3[%c0_127, %141, %c1_128, %c0_129] : memref<1x9x9x16xbf16, #tpu.memory_space<vmem>>, vector<1x1x8x16xbf16>
    %143 = vector.shape_cast %142 : vector<1x1x8x16xbf16> to vector<8x16xbf16>
    %c1_130 = arith.constant 1 : index
    %c0_131 = arith.constant 0 : index
    %c0_132 = arith.constant 0 : index
    %144 = vector.load %arg4[%c1_130, %c0_131, %c0_132] : memref<4x16x128xbf16, #tpu.memory_space<vmem>>, vector<1x16x128xbf16>
    %145 = vector.shape_cast %144 : vector<1x16x128xbf16> to vector<16x128xbf16>
    %cst_133 = arith.constant dense<0.000000e+00> : vector<8x128xf32>
    %146 = tpu.matmul %143, %145, %cst_133 {dimension_numbers = #tpu.dot_dimension_numbers<[1], [0], [0], [1], [0, 0, 1, 1], [], []>} : vector<8x16xbf16>, vector<16x128xbf16>, vector<8x128xf32> -> vector<8x128xf32>
    %147 = arith.addf %138, %146 : vector<8x128xf32>
    %c3_i32_134 = arith.constant 3 : i32
    %148 = arith.addi %0, %c3_i32_134 : i32
    %c1_i32_135 = arith.constant 1 : i32
    %149 = arith.addi %148, %c1_i32_135 : i32
    %c0_136 = arith.constant 0 : index
    %150 = arith.index_cast %149 : i32 to index
    %c0_137 = arith.constant 0 : index
    %c0_138 = arith.constant 0 : index
    %151 = vector.load %arg3[%c0_136, %150, %c0_137, %c0_138] : memref<1x9x9x16xbf16, #tpu.memory_space<vmem>>, vector<1x1x8x16xbf16>
    %152 = vector.shape_cast %151 : vector<1x1x8x16xbf16> to vector<8x16xbf16>
    %c2_139 = arith.constant 2 : index
    %c0_140 = arith.constant 0 : index
    %c0_141 = arith.constant 0 : index
    %153 = vector.load %arg4[%c2_139, %c0_140, %c0_141] : memref<4x16x128xbf16, #tpu.memory_space<vmem>>, vector<1x16x128xbf16>
    %154 = vector.shape_cast %153 : vector<1x16x128xbf16> to vector<16x128xbf16>
    %cst_142 = arith.constant dense<0.000000e+00> : vector<8x128xf32>
    %155 = tpu.matmul %152, %154, %cst_142 {dimension_numbers = #tpu.dot_dimension_numbers<[1], [0], [0], [1], [0, 0, 1, 1], [], []>} : vector<8x16xbf16>, vector<16x128xbf16>, vector<8x128xf32> -> vector<8x128xf32>
    %156 = arith.addf %147, %155 : vector<8x128xf32>
    %c3_i32_143 = arith.constant 3 : i32
    %157 = arith.addi %0, %c3_i32_143 : i32
    %c1_i32_144 = arith.constant 1 : i32
    %158 = arith.addi %157, %c1_i32_144 : i32
    %c0_145 = arith.constant 0 : index
    %159 = arith.index_cast %158 : i32 to index
    %c1_146 = arith.constant 1 : index
    %c0_147 = arith.constant 0 : index
    %160 = vector.load %arg3[%c0_145, %159, %c1_146, %c0_147] : memref<1x9x9x16xbf16, #tpu.memory_space<vmem>>, vector<1x1x8x16xbf16>
    %161 = vector.shape_cast %160 : vector<1x1x8x16xbf16> to vector<8x16xbf16>
    %c3_148 = arith.constant 3 : index
    %c0_149 = arith.constant 0 : index
    %c0_150 = arith.constant 0 : index
    %162 = vector.load %arg4[%c3_148, %c0_149, %c0_150] : memref<4x16x128xbf16, #tpu.memory_space<vmem>>, vector<1x16x128xbf16>
    %163 = vector.shape_cast %162 : vector<1x16x128xbf16> to vector<16x128xbf16>
    %cst_151 = arith.constant dense<0.000000e+00> : vector<8x128xf32>
    %164 = tpu.matmul %161, %163, %cst_151 {dimension_numbers = #tpu.dot_dimension_numbers<[1], [0], [0], [1], [0, 0, 1, 1], [], []>} : vector<8x16xbf16>, vector<16x128xbf16>, vector<8x128xf32> -> vector<8x128xf32>
    %165 = arith.addf %156, %164 : vector<8x128xf32>
    %166 = vector.broadcast %1 : vector<1x128xf32> to vector<8x128xf32>
    %167 = arith.addf %165, %166 : vector<8x128xf32>
    %cst_152 = arith.constant 0.000000e+00 : f32
    %168 = vector.broadcast %cst_152 : f32 to vector<8x128xf32>
    %169 = arith.maximumf %167, %168 : vector<8x128xf32>
    %170 = arith.truncf %169 : vector<8x128xf32> to vector<8x128xbf16>
    %c0_153 = arith.constant 0 : index
    %c3_154 = arith.constant 3 : index
    %c0_155 = arith.constant 0 : index
    %c0_156 = arith.constant 0 : index
    %171 = vector.load %arg6[%c0_153, %c3_154, %c0_155, %c0_156] : memref<1x8x8x128xbf16, #tpu.memory_space<vmem>>, vector<1x1x8x128xbf16>
    %172 = vector.shape_cast %171 : vector<1x1x8x128xbf16> to vector<8x128xbf16>
    %173 = vector.shape_cast %170 : vector<8x128xbf16> to vector<1x1x8x128xbf16>
    tpu.vector_store %arg6[%c0_153, %c3_154, %c0_155, %c0_156], %173 {strides = array<i32>} : memref<1x8x8x128xbf16, #tpu.memory_space<vmem>>, vector<1x1x8x128xbf16>,
    %c4_i32 = arith.constant 4 : i32
    %174 = arith.addi %0, %c4_i32 : i32
    %c0_i32_157 = arith.constant 0 : i32
    %175 = arith.addi %174, %c0_i32_157 : i32
    %c0_158 = arith.constant 0 : index
    %176 = arith.index_cast %175 : i32 to index
    %c0_159 = arith.constant 0 : index
    %c0_160 = arith.constant 0 : index
    %177 = vector.load %arg3[%c0_158, %176, %c0_159, %c0_160] : memref<1x9x9x16xbf16, #tpu.memory_space<vmem>>, vector<1x1x8x16xbf16>
    %178 = vector.shape_cast %177 : vector<1x1x8x16xbf16> to vector<8x16xbf16>
    %c0_161 = arith.constant 0 : index
    %c0_162 = arith.constant 0 : index
    %c0_163 = arith.constant 0 : index
    %179 = vector.load %arg4[%c0_161, %c0_162, %c0_163] : memref<4x16x128xbf16, #tpu.memory_space<vmem>>, vector<1x16x128xbf16>
    %180 = vector.shape_cast %179 : vector<1x16x128xbf16> to vector<16x128xbf16>
    %cst_164 = arith.constant dense<0.000000e+00> : vector<8x128xf32>
    %181 = tpu.matmul %178, %180, %cst_164 {dimension_numbers = #tpu.dot_dimension_numbers<[1], [0], [0], [1], [0, 0, 1, 1], [], []>} : vector<8x16xbf16>, vector<16x128xbf16>, vector<8x128xf32> -> vector<8x128xf32>
    %c4_i32_165 = arith.constant 4 : i32
    %182 = arith.addi %0, %c4_i32_165 : i32
    %c0_i32_166 = arith.constant 0 : i32
    %183 = arith.addi %182, %c0_i32_166 : i32
    %c0_167 = arith.constant 0 : index
    %184 = arith.index_cast %183 : i32 to index
    %c1_168 = arith.constant 1 : index
    %c0_169 = arith.constant 0 : index
    %185 = vector.load %arg3[%c0_167, %184, %c1_168, %c0_169] : memref<1x9x9x16xbf16, #tpu.memory_space<vmem>>, vector<1x1x8x16xbf16>
    %186 = vector.shape_cast %185 : vector<1x1x8x16xbf16> to vector<8x16xbf16>
    %c1_170 = arith.constant 1 : index
    %c0_171 = arith.constant 0 : index
    %c0_172 = arith.constant 0 : index
    %187 = vector.load %arg4[%c1_170, %c0_171, %c0_172] : memref<4x16x128xbf16, #tpu.memory_space<vmem>>, vector<1x16x128xbf16>
    %188 = vector.shape_cast %187 : vector<1x16x128xbf16> to vector<16x128xbf16>
    %cst_173 = arith.constant dense<0.000000e+00> : vector<8x128xf32>
    %189 = tpu.matmul %186, %188, %cst_173 {dimension_numbers = #tpu.dot_dimension_numbers<[1], [0], [0], [1], [0, 0, 1, 1], [], []>} : vector<8x16xbf16>, vector<16x128xbf16>, vector<8x128xf32> -> vector<8x128xf32>
    %190 = arith.addf %181, %189 : vector<8x128xf32>
    %c4_i32_174 = arith.constant 4 : i32
    %191 = arith.addi %0, %c4_i32_174 : i32
    %c1_i32_175 = arith.constant 1 : i32
    %192 = arith.addi %191, %c1_i32_175 : i32
    %c0_176 = arith.constant 0 : index
    %193 = arith.index_cast %192 : i32 to index
    %c0_177 = arith.constant 0 : index
    %c0_178 = arith.constant 0 : index
    %194 = vector.load %arg3[%c0_176, %193, %c0_177, %c0_178] : memref<1x9x9x16xbf16, #tpu.memory_space<vmem>>, vector<1x1x8x16xbf16>
    %195 = vector.shape_cast %194 : vector<1x1x8x16xbf16> to vector<8x16xbf16>
    %c2_179 = arith.constant 2 : index
    %c0_180 = arith.constant 0 : index
    %c0_181 = arith.constant 0 : index
    %196 = vector.load %arg4[%c2_179, %c0_180, %c0_181] : memref<4x16x128xbf16, #tpu.memory_space<vmem>>, vector<1x16x128xbf16>
    %197 = vector.shape_cast %196 : vector<1x16x128xbf16> to vector<16x128xbf16>
    %cst_182 = arith.constant dense<0.000000e+00> : vector<8x128xf32>
    %198 = tpu.matmul %195, %197, %cst_182 {dimension_numbers = #tpu.dot_dimension_numbers<[1], [0], [0], [1], [0, 0, 1, 1], [], []>} : vector<8x16xbf16>, vector<16x128xbf16>, vector<8x128xf32> -> vector<8x128xf32>
    %199 = arith.addf %190, %198 : vector<8x128xf32>
    %c4_i32_183 = arith.constant 4 : i32
    %200 = arith.addi %0, %c4_i32_183 : i32
    %c1_i32_184 = arith.constant 1 : i32
    %201 = arith.addi %200, %c1_i32_184 : i32
    %c0_185 = arith.constant 0 : index
    %202 = arith.index_cast %201 : i32 to index
    %c1_186 = arith.constant 1 : index
    %c0_187 = arith.constant 0 : index
    %203 = vector.load %arg3[%c0_185, %202, %c1_186, %c0_187] : memref<1x9x9x16xbf16, #tpu.memory_space<vmem>>, vector<1x1x8x16xbf16>
    %204 = vector.shape_cast %203 : vector<1x1x8x16xbf16> to vector<8x16xbf16>
    %c3_188 = arith.constant 3 : index
    %c0_189 = arith.constant 0 : index
    %c0_190 = arith.constant 0 : index
    %205 = vector.load %arg4[%c3_188, %c0_189, %c0_190] : memref<4x16x128xbf16, #tpu.memory_space<vmem>>, vector<1x16x128xbf16>
    %206 = vector.shape_cast %205 : vector<1x16x128xbf16> to vector<16x128xbf16>
    %cst_191 = arith.constant dense<0.000000e+00> : vector<8x128xf32>
    %207 = tpu.matmul %204, %206, %cst_191 {dimension_numbers = #tpu.dot_dimension_numbers<[1], [0], [0], [1], [0, 0, 1, 1], [], []>} : vector<8x16xbf16>, vector<16x128xbf16>, vector<8x128xf32> -> vector<8x128xf32>
    %208 = arith.addf %199, %207 : vector<8x128xf32>
    %209 = vector.broadcast %1 : vector<1x128xf32> to vector<8x128xf32>
    %210 = arith.addf %208, %209 : vector<8x128xf32>
    %cst_192 = arith.constant 0.000000e+00 : f32
    %211 = vector.broadcast %cst_192 : f32 to vector<8x128xf32>
    %212 = arith.maximumf %210, %211 : vector<8x128xf32>
    %213 = arith.truncf %212 : vector<8x128xf32> to vector<8x128xbf16>
    %c0_193 = arith.constant 0 : index
    %c4 = arith.constant 4 : index
    %c0_194 = arith.constant 0 : index
    %c0_195 = arith.constant 0 : index
    %214 = vector.load %arg6[%c0_193, %c4, %c0_194, %c0_195] : memref<1x8x8x128xbf16, #tpu.memory_space<vmem>>, vector<1x1x8x128xbf16>
    %215 = vector.shape_cast %214 : vector<1x1x8x128xbf16> to vector<8x128xbf16>
    %216 = vector.shape_cast %213 : vector<8x128xbf16> to vector<1x1x8x128xbf16>
    tpu.vector_store %arg6[%c0_193, %c4, %c0_194, %c0_195], %216 {strides = array<i32>} : memref<1x8x8x128xbf16, #tpu.memory_space<vmem>>, vector<1x1x8x128xbf16>,
    %c5_i32 = arith.constant 5 : i32
    %217 = arith.addi %0, %c5_i32 : i32
    %c0_i32_196 = arith.constant 0 : i32
    %218 = arith.addi %217, %c0_i32_196 : i32
    %c0_197 = arith.constant 0 : index
    %219 = arith.index_cast %218 : i32 to index
    %c0_198 = arith.constant 0 : index
    %c0_199 = arith.constant 0 : index
    %220 = vector.load %arg3[%c0_197, %219, %c0_198, %c0_199] : memref<1x9x9x16xbf16, #tpu.memory_space<vmem>>, vector<1x1x8x16xbf16>
    %221 = vector.shape_cast %220 : vector<1x1x8x16xbf16> to vector<8x16xbf16>
    %c0_200 = arith.constant 0 : index
    %c0_201 = arith.constant 0 : index
    %c0_202 = arith.constant 0 : index
    %222 = vector.load %arg4[%c0_200, %c0_201, %c0_202] : memref<4x16x128xbf16, #tpu.memory_space<vmem>>, vector<1x16x128xbf16>
    %223 = vector.shape_cast %222 : vector<1x16x128xbf16> to vector<16x128xbf16>
    %cst_203 = arith.constant dense<0.000000e+00> : vector<8x128xf32>
    %224 = tpu.matmul %221, %223, %cst_203 {dimension_numbers = #tpu.dot_dimension_numbers<[1], [0], [0], [1], [0, 0, 1, 1], [], []>} : vector<8x16xbf16>, vector<16x128xbf16>, vector<8x128xf32> -> vector<8x128xf32>
    %c5_i32_204 = arith.constant 5 : i32
    %225 = arith.addi %0, %c5_i32_204 : i32
    %c0_i32_205 = arith.constant 0 : i32
    %226 = arith.addi %225, %c0_i32_205 : i32
    %c0_206 = arith.constant 0 : index
    %227 = arith.index_cast %226 : i32 to index
    %c1_207 = arith.constant 1 : index
    %c0_208 = arith.constant 0 : index
    %228 = vector.load %arg3[%c0_206, %227, %c1_207, %c0_208] : memref<1x9x9x16xbf16, #tpu.memory_space<vmem>>, vector<1x1x8x16xbf16>
    %229 = vector.shape_cast %228 : vector<1x1x8x16xbf16> to vector<8x16xbf16>
    %c1_209 = arith.constant 1 : index
    %c0_210 = arith.constant 0 : index
    %c0_211 = arith.constant 0 : index
    %230 = vector.load %arg4[%c1_209, %c0_210, %c0_211] : memref<4x16x128xbf16, #tpu.memory_space<vmem>>, vector<1x16x128xbf16>
    %231 = vector.shape_cast %230 : vector<1x16x128xbf16> to vector<16x128xbf16>
    %cst_212 = arith.constant dense<0.000000e+00> : vector<8x128xf32>
    %232 = tpu.matmul %229, %231, %cst_212 {dimension_numbers = #tpu.dot_dimension_numbers<[1], [0], [0], [1], [0, 0, 1, 1], [], []>} : vector<8x16xbf16>, vector<16x128xbf16>, vector<8x128xf32> -> vector<8x128xf32>
    %233 = arith.addf %224, %232 : vector<8x128xf32>
    %c5_i32_213 = arith.constant 5 : i32
    %234 = arith.addi %0, %c5_i32_213 : i32
    %c1_i32_214 = arith.constant 1 : i32
    %235 = arith.addi %234, %c1_i32_214 : i32
    %c0_215 = arith.constant 0 : index
    %236 = arith.index_cast %235 : i32 to index
    %c0_216 = arith.constant 0 : index
    %c0_217 = arith.constant 0 : index
    %237 = vector.load %arg3[%c0_215, %236, %c0_216, %c0_217] : memref<1x9x9x16xbf16, #tpu.memory_space<vmem>>, vector<1x1x8x16xbf16>
    %238 = vector.shape_cast %237 : vector<1x1x8x16xbf16> to vector<8x16xbf16>
    %c2_218 = arith.constant 2 : index
    %c0_219 = arith.constant 0 : index
    %c0_220 = arith.constant 0 : index
    %239 = vector.load %arg4[%c2_218, %c0_219, %c0_220] : memref<4x16x128xbf16, #tpu.memory_space<vmem>>, vector<1x16x128xbf16>
    %240 = vector.shape_cast %239 : vector<1x16x128xbf16> to vector<16x128xbf16>
    %cst_221 = arith.constant dense<0.000000e+00> : vector<8x128xf32>
    %241 = tpu.matmul %238, %240, %cst_221 {dimension_numbers = #tpu.dot_dimension_numbers<[1], [0], [0], [1], [0, 0, 1, 1], [], []>} : vector<8x16xbf16>, vector<16x128xbf16>, vector<8x128xf32> -> vector<8x128xf32>
    %242 = arith.addf %233, %241 : vector<8x128xf32>
    %c5_i32_222 = arith.constant 5 : i32
    %243 = arith.addi %0, %c5_i32_222 : i32
    %c1_i32_223 = arith.constant 1 : i32
    %244 = arith.addi %243, %c1_i32_223 : i32
    %c0_224 = arith.constant 0 : index
    %245 = arith.index_cast %244 : i32 to index
    %c1_225 = arith.constant 1 : index
    %c0_226 = arith.constant 0 : index
    %246 = vector.load %arg3[%c0_224, %245, %c1_225, %c0_226] : memref<1x9x9x16xbf16, #tpu.memory_space<vmem>>, vector<1x1x8x16xbf16>
    %247 = vector.shape_cast %246 : vector<1x1x8x16xbf16> to vector<8x16xbf16>
    %c3_227 = arith.constant 3 : index
    %c0_228 = arith.constant 0 : index
    %c0_229 = arith.constant 0 : index
    %248 = vector.load %arg4[%c3_227, %c0_228, %c0_229] : memref<4x16x128xbf16, #tpu.memory_space<vmem>>, vector<1x16x128xbf16>
    %249 = vector.shape_cast %248 : vector<1x16x128xbf16> to vector<16x128xbf16>
    %cst_230 = arith.constant dense<0.000000e+00> : vector<8x128xf32>
    %250 = tpu.matmul %247, %249, %cst_230 {dimension_numbers = #tpu.dot_dimension_numbers<[1], [0], [0], [1], [0, 0, 1, 1], [], []>} : vector<8x16xbf16>, vector<16x128xbf16>, vector<8x128xf32> -> vector<8x128xf32>
    %251 = arith.addf %242, %250 : vector<8x128xf32>
    %252 = vector.broadcast %1 : vector<1x128xf32> to vector<8x128xf32>
    %253 = arith.addf %251, %252 : vector<8x128xf32>
    %cst_231 = arith.constant 0.000000e+00 : f32
    %254 = vector.broadcast %cst_231 : f32 to vector<8x128xf32>
    %255 = arith.maximumf %253, %254 : vector<8x128xf32>
    %256 = arith.truncf %255 : vector<8x128xf32> to vector<8x128xbf16>
    %c0_232 = arith.constant 0 : index
    %c5 = arith.constant 5 : index
    %c0_233 = arith.constant 0 : index
    %c0_234 = arith.constant 0 : index
    %257 = vector.load %arg6[%c0_232, %c5, %c0_233, %c0_234] : memref<1x8x8x128xbf16, #tpu.memory_space<vmem>>, vector<1x1x8x128xbf16>
    %258 = vector.shape_cast %257 : vector<1x1x8x128xbf16> to vector<8x128xbf16>
    %259 = vector.shape_cast %256 : vector<8x128xbf16> to vector<1x1x8x128xbf16>
    tpu.vector_store %arg6[%c0_232, %c5, %c0_233, %c0_234], %259 {strides = array<i32>} : memref<1x8x8x128xbf16, #tpu.memory_space<vmem>>, vector<1x1x8x128xbf16>,
    %c6_i32 = arith.constant 6 : i32
    %260 = arith.addi %0, %c6_i32 : i32
    %c0_i32_235 = arith.constant 0 : i32
    %261 = arith.addi %260, %c0_i32_235 : i32
    %c0_236 = arith.constant 0 : index
    %262 = arith.index_cast %261 : i32 to index
    %c0_237 = arith.constant 0 : index
    %c0_238 = arith.constant 0 : index
    %263 = vector.load %arg3[%c0_236, %262, %c0_237, %c0_238] : memref<1x9x9x16xbf16, #tpu.memory_space<vmem>>, vector<1x1x8x16xbf16>
    %264 = vector.shape_cast %263 : vector<1x1x8x16xbf16> to vector<8x16xbf16>
    %c0_239 = arith.constant 0 : index
    %c0_240 = arith.constant 0 : index
    %c0_241 = arith.constant 0 : index
    %265 = vector.load %arg4[%c0_239, %c0_240, %c0_241] : memref<4x16x128xbf16, #tpu.memory_space<vmem>>, vector<1x16x128xbf16>
    %266 = vector.shape_cast %265 : vector<1x16x128xbf16> to vector<16x128xbf16>
    %cst_242 = arith.constant dense<0.000000e+00> : vector<8x128xf32>
    %267 = tpu.matmul %264, %266, %cst_242 {dimension_numbers = #tpu.dot_dimension_numbers<[1], [0], [0], [1], [0, 0, 1, 1], [], []>} : vector<8x16xbf16>, vector<16x128xbf16>, vector<8x128xf32> -> vector<8x128xf32>
    %c6_i32_243 = arith.constant 6 : i32
    %268 = arith.addi %0, %c6_i32_243 : i32
    %c0_i32_244 = arith.constant 0 : i32
    %269 = arith.addi %268, %c0_i32_244 : i32
    %c0_245 = arith.constant 0 : index
    %270 = arith.index_cast %269 : i32 to index
    %c1_246 = arith.constant 1 : index
    %c0_247 = arith.constant 0 : index
    %271 = vector.load %arg3[%c0_245, %270, %c1_246, %c0_247] : memref<1x9x9x16xbf16, #tpu.memory_space<vmem>>, vector<1x1x8x16xbf16>
    %272 = vector.shape_cast %271 : vector<1x1x8x16xbf16> to vector<8x16xbf16>
    %c1_248 = arith.constant 1 : index
    %c0_249 = arith.constant 0 : index
    %c0_250 = arith.constant 0 : index
    %273 = vector.load %arg4[%c1_248, %c0_249, %c0_250] : memref<4x16x128xbf16, #tpu.memory_space<vmem>>, vector<1x16x128xbf16>
    %274 = vector.shape_cast %273 : vector<1x16x128xbf16> to vector<16x128xbf16>
    %cst_251 = arith.constant dense<0.000000e+00> : vector<8x128xf32>
    %275 = tpu.matmul %272, %274, %cst_251 {dimension_numbers = #tpu.dot_dimension_numbers<[1], [0], [0], [1], [0, 0, 1, 1], [], []>} : vector<8x16xbf16>, vector<16x128xbf16>, vector<8x128xf32> -> vector<8x128xf32>
    %276 = arith.addf %267, %275 : vector<8x128xf32>
    %c6_i32_252 = arith.constant 6 : i32
    %277 = arith.addi %0, %c6_i32_252 : i32
    %c1_i32_253 = arith.constant 1 : i32
    %278 = arith.addi %277, %c1_i32_253 : i32
    %c0_254 = arith.constant 0 : index
    %279 = arith.index_cast %278 : i32 to index
    %c0_255 = arith.constant 0 : index
    %c0_256 = arith.constant 0 : index
    %280 = vector.load %arg3[%c0_254, %279, %c0_255, %c0_256] : memref<1x9x9x16xbf16, #tpu.memory_space<vmem>>, vector<1x1x8x16xbf16>
    %281 = vector.shape_cast %280 : vector<1x1x8x16xbf16> to vector<8x16xbf16>
    %c2_257 = arith.constant 2 : index
    %c0_258 = arith.constant 0 : index
    %c0_259 = arith.constant 0 : index
    %282 = vector.load %arg4[%c2_257, %c0_258, %c0_259] : memref<4x16x128xbf16, #tpu.memory_space<vmem>>, vector<1x16x128xbf16>
    %283 = vector.shape_cast %282 : vector<1x16x128xbf16> to vector<16x128xbf16>
    %cst_260 = arith.constant dense<0.000000e+00> : vector<8x128xf32>
    %284 = tpu.matmul %281, %283, %cst_260 {dimension_numbers = #tpu.dot_dimension_numbers<[1], [0], [0], [1], [0, 0, 1, 1], [], []>} : vector<8x16xbf16>, vector<16x128xbf16>, vector<8x128xf32> -> vector<8x128xf32>
    %285 = arith.addf %276, %284 : vector<8x128xf32>
    %c6_i32_261 = arith.constant 6 : i32
    %286 = arith.addi %0, %c6_i32_261 : i32
    %c1_i32_262 = arith.constant 1 : i32
    %287 = arith.addi %286, %c1_i32_262 : i32
    %c0_263 = arith.constant 0 : index
    %288 = arith.index_cast %287 : i32 to index
    %c1_264 = arith.constant 1 : index
    %c0_265 = arith.constant 0 : index
    %289 = vector.load %arg3[%c0_263, %288, %c1_264, %c0_265] : memref<1x9x9x16xbf16, #tpu.memory_space<vmem>>, vector<1x1x8x16xbf16>
    %290 = vector.shape_cast %289 : vector<1x1x8x16xbf16> to vector<8x16xbf16>
    %c3_266 = arith.constant 3 : index
    %c0_267 = arith.constant 0 : index
    %c0_268 = arith.constant 0 : index
    %291 = vector.load %arg4[%c3_266, %c0_267, %c0_268] : memref<4x16x128xbf16, #tpu.memory_space<vmem>>, vector<1x16x128xbf16>
    %292 = vector.shape_cast %291 : vector<1x16x128xbf16> to vector<16x128xbf16>
    %cst_269 = arith.constant dense<0.000000e+00> : vector<8x128xf32>
    %293 = tpu.matmul %290, %292, %cst_269 {dimension_numbers = #tpu.dot_dimension_numbers<[1], [0], [0], [1], [0, 0, 1, 1], [], []>} : vector<8x16xbf16>, vector<16x128xbf16>, vector<8x128xf32> -> vector<8x128xf32>
    %294 = arith.addf %285, %293 : vector<8x128xf32>
    %295 = vector.broadcast %1 : vector<1x128xf32> to vector<8x128xf32>
    %296 = arith.addf %294, %295 : vector<8x128xf32>
    %cst_270 = arith.constant 0.000000e+00 : f32
    %297 = vector.broadcast %cst_270 : f32 to vector<8x128xf32>
    %298 = arith.maximumf %296, %297 : vector<8x128xf32>
    %299 = arith.truncf %298 : vector<8x128xf32> to vector<8x128xbf16>
    %c0_271 = arith.constant 0 : index
    %c6 = arith.constant 6 : index
    %c0_272 = arith.constant 0 : index
    %c0_273 = arith.constant 0 : index
    %300 = vector.load %arg6[%c0_271, %c6, %c0_272, %c0_273] : memref<1x8x8x128xbf16, #tpu.memory_space<vmem>>, vector<1x1x8x128xbf16>
    %301 = vector.shape_cast %300 : vector<1x1x8x128xbf16> to vector<8x128xbf16>
    %302 = vector.shape_cast %299 : vector<8x128xbf16> to vector<1x1x8x128xbf16>
    tpu.vector_store %arg6[%c0_271, %c6, %c0_272, %c0_273], %302 {strides = array<i32>} : memref<1x8x8x128xbf16, #tpu.memory_space<vmem>>, vector<1x1x8x128xbf16>,
    %c7_i32 = arith.constant 7 : i32
    %303 = arith.addi %0, %c7_i32 : i32
    %c0_i32_274 = arith.constant 0 : i32
    %304 = arith.addi %303, %c0_i32_274 : i32
    %c0_275 = arith.constant 0 : index
    %305 = arith.index_cast %304 : i32 to index
    %c0_276 = arith.constant 0 : index
    %c0_277 = arith.constant 0 : index
    %306 = vector.load %arg3[%c0_275, %305, %c0_276, %c0_277] : memref<1x9x9x16xbf16, #tpu.memory_space<vmem>>, vector<1x1x8x16xbf16>
    %307 = vector.shape_cast %306 : vector<1x1x8x16xbf16> to vector<8x16xbf16>
    %c0_278 = arith.constant 0 : index
    %c0_279 = arith.constant 0 : index
    %c0_280 = arith.constant 0 : index
    %308 = vector.load %arg4[%c0_278, %c0_279, %c0_280] : memref<4x16x128xbf16, #tpu.memory_space<vmem>>, vector<1x16x128xbf16>
    %309 = vector.shape_cast %308 : vector<1x16x128xbf16> to vector<16x128xbf16>
    %cst_281 = arith.constant dense<0.000000e+00> : vector<8x128xf32>
    %310 = tpu.matmul %307, %309, %cst_281 {dimension_numbers = #tpu.dot_dimension_numbers<[1], [0], [0], [1], [0, 0, 1, 1], [], []>} : vector<8x16xbf16>, vector<16x128xbf16>, vector<8x128xf32> -> vector<8x128xf32>
    %c7_i32_282 = arith.constant 7 : i32
    %311 = arith.addi %0, %c7_i32_282 : i32
    %c0_i32_283 = arith.constant 0 : i32
    %312 = arith.addi %311, %c0_i32_283 : i32
    %c0_284 = arith.constant 0 : index
    %313 = arith.index_cast %312 : i32 to index
    %c1_285 = arith.constant 1 : index
    %c0_286 = arith.constant 0 : index
    %314 = vector.load %arg3[%c0_284, %313, %c1_285, %c0_286] : memref<1x9x9x16xbf16, #tpu.memory_space<vmem>>, vector<1x1x8x16xbf16>
    %315 = vector.shape_cast %314 : vector<1x1x8x16xbf16> to vector<8x16xbf16>
    %c1_287 = arith.constant 1 : index
    %c0_288 = arith.constant 0 : index
    %c0_289 = arith.constant 0 : index
    %316 = vector.load %arg4[%c1_287, %c0_288, %c0_289] : memref<4x16x128xbf16, #tpu.memory_space<vmem>>, vector<1x16x128xbf16>
    %317 = vector.shape_cast %316 : vector<1x16x128xbf16> to vector<16x128xbf16>
    %cst_290 = arith.constant dense<0.000000e+00> : vector<8x128xf32>
    %318 = tpu.matmul %315, %317, %cst_290 {dimension_numbers = #tpu.dot_dimension_numbers<[1], [0], [0], [1], [0, 0, 1, 1], [], []>} : vector<8x16xbf16>, vector<16x128xbf16>, vector<8x128xf32> -> vector<8x128xf32>
    %319 = arith.addf %310, %318 : vector<8x128xf32>
    %c7_i32_291 = arith.constant 7 : i32
    %320 = arith.addi %0, %c7_i32_291 : i32
    %c1_i32_292 = arith.constant 1 : i32
    %321 = arith.addi %320, %c1_i32_292 : i32
    %c0_293 = arith.constant 0 : index
    %322 = arith.index_cast %321 : i32 to index
    %c0_294 = arith.constant 0 : index
    %c0_295 = arith.constant 0 : index
    %323 = vector.load %arg3[%c0_293, %322, %c0_294, %c0_295] : memref<1x9x9x16xbf16, #tpu.memory_space<vmem>>, vector<1x1x8x16xbf16>
    %324 = vector.shape_cast %323 : vector<1x1x8x16xbf16> to vector<8x16xbf16>
    %c2_296 = arith.constant 2 : index
    %c0_297 = arith.constant 0 : index
    %c0_298 = arith.constant 0 : index
    %325 = vector.load %arg4[%c2_296, %c0_297, %c0_298] : memref<4x16x128xbf16, #tpu.memory_space<vmem>>, vector<1x16x128xbf16>
    %326 = vector.shape_cast %325 : vector<1x16x128xbf16> to vector<16x128xbf16>
    %cst_299 = arith.constant dense<0.000000e+00> : vector<8x128xf32>
    %327 = tpu.matmul %324, %326, %cst_299 {dimension_numbers = #tpu.dot_dimension_numbers<[1], [0], [0], [1], [0, 0, 1, 1], [], []>} : vector<8x16xbf16>, vector<16x128xbf16>, vector<8x128xf32> -> vector<8x128xf32>
    %328 = arith.addf %319, %327 : vector<8x128xf32>
    %c7_i32_300 = arith.constant 7 : i32
    %329 = arith.addi %0, %c7_i32_300 : i32
    %c1_i32_301 = arith.constant 1 : i32
    %330 = arith.addi %329, %c1_i32_301 : i32
    %c0_302 = arith.constant 0 : index
    %331 = arith.index_cast %330 : i32 to index
    %c1_303 = arith.constant 1 : index
    %c0_304 = arith.constant 0 : index
    %332 = vector.load %arg3[%c0_302, %331, %c1_303, %c0_304] : memref<1x9x9x16xbf16, #tpu.memory_space<vmem>>, vector<1x1x8x16xbf16>
    %333 = vector.shape_cast %332 : vector<1x1x8x16xbf16> to vector<8x16xbf16>
    %c3_305 = arith.constant 3 : index
    %c0_306 = arith.constant 0 : index
    %c0_307 = arith.constant 0 : index
    %334 = vector.load %arg4[%c3_305, %c0_306, %c0_307] : memref<4x16x128xbf16, #tpu.memory_space<vmem>>, vector<1x16x128xbf16>
    %335 = vector.shape_cast %334 : vector<1x16x128xbf16> to vector<16x128xbf16>
    %cst_308 = arith.constant dense<0.000000e+00> : vector<8x128xf32>
    %336 = tpu.matmul %333, %335, %cst_308 {dimension_numbers = #tpu.dot_dimension_numbers<[1], [0], [0], [1], [0, 0, 1, 1], [], []>} : vector<8x16xbf16>, vector<16x128xbf16>, vector<8x128xf32> -> vector<8x128xf32>
    %337 = arith.addf %328, %336 : vector<8x128xf32>
    %338 = vector.broadcast %1 : vector<1x128xf32> to vector<8x128xf32>
    %339 = arith.addf %337, %338 : vector<8x128xf32>
    %cst_309 = arith.constant 0.000000e+00 : f32
    %340 = vector.broadcast %cst_309 : f32 to vector<8x128xf32>
    %341 = arith.maximumf %339, %340 : vector<8x128xf32>
    %342 = arith.truncf %341 : vector<8x128xf32> to vector<8x128xbf16>
    %c0_310 = arith.constant 0 : index
    %c7 = arith.constant 7 : index
    %c0_311 = arith.constant 0 : index
    %c0_312 = arith.constant 0 : index
    %343 = vector.load %arg6[%c0_310, %c7, %c0_311, %c0_312] : memref<1x8x8x128xbf16, #tpu.memory_space<vmem>>, vector<1x1x8x128xbf16>
    %344 = vector.shape_cast %343 : vector<1x1x8x128xbf16> to vector<8x128xbf16>
    %345 = vector.shape_cast %342 : vector<8x128xbf16> to vector<1x1x8x128xbf16>
    tpu.vector_store %arg6[%c0_310, %c7, %c0_311, %c0_312], %345 {strides = array<i32>} : memref<1x8x8x128xbf16, #tpu.memory_space<vmem>>, vector<1x1x8x128xbf16>,
    return
  }
  func.func @transform_0(%arg0: i32, %arg1: i32, %arg2: i32) -> (i32, i32, i32, i32) {
    %c0_i32 = arith.constant 0 : i32
    %c0_i32_0 = arith.constant 0 : i32
    %c0_i32_1 = arith.constant 0 : i32
    %c0_i32_2 = arith.constant 0 : i32
    return %arg0, %c0_i32, %c0_i32_0, %c0_i32_1 : i32, i32, i32, i32
  }
  func.func @transform_1(%arg0: i32, %arg1: i32, %arg2: i32) -> (i32, i32, i32) {
    %c0_i32 = arith.constant 0 : i32
    %c0_i32_0 = arith.constant 0 : i32
    %c0_i32_1 = arith.constant 0 : i32
    return %c0_i32, %c0_i32_0, %arg2 : i32, i32, i32
  }
  func.func @transform_2(%arg0: i32, %arg1: i32, %arg2: i32) -> (i32, i32) {
    %c0_i32 = arith.constant 0 : i32
    %c0_i32_0 = arith.constant 0 : i32
    return %c0_i32, %arg2 : i32, i32
  }
  func.func @transform_3(%arg0: i32, %arg1: i32, %arg2: i32) -> (i32, i32, i32, i32) {
    %c0_i32 = arith.constant 0 : i32
    %c0_i32_0 = arith.constant 0 : i32
    return %arg0, %arg1, %c0_i32, %arg2 : i32, i32, i32, i32
  }
}

module attributes {stable_mosaic.version = 11 : i64} {
  func.func @_conv_tap_kernel(%arg0: i32, %arg1: i32, %arg2: i32, %arg3: memref<1x5x5x16xbf16, #tpu.memory_space<vmem>>, %arg4: memref<4x16x128xbf16, #tpu.memory_space<vmem>>, %arg5: memref<1x128xf32, #tpu.memory_space<vmem>>, %arg6: memref<1x4x4x128xbf16, #tpu.memory_space<vmem>>) attributes {dimension_semantics = [#tpu.dimension_semantics<parallel>, #tpu.dimension_semantics<parallel>, #tpu.dimension_semantics<arbitrary>], iteration_bounds = array<i64: 2, 1, 1>, scalar_prefetch = 0 : i64, scratch_operands = 0 : i64, tpu.core_type = #tpu.core_type<tc>, window_params = [{transform_indices = @transform_0, window_bounds = array<i64: 1, 5, 5, 16>}, {transform_indices = @transform_1, window_bounds = array<i64: 4, 16, 128>}, {transform_indices = @transform_2, window_bounds = array<i64: 1, 128>}, {transform_indices = @transform_3, window_bounds = array<i64: 1, 4, 4, 128>}]} {
    %c4_i32 = arith.constant 4 : i32
    %0 = arith.muli %arg1, %c4_i32 : i32
    %c0 = arith.constant 0 : index
    %c0_0 = arith.constant 0 : index
    %1 = vector.load %arg5[%c0, %c0_0] : memref<1x128xf32, #tpu.memory_space<vmem>>, vector<1x128xf32>
    %c0_i32 = arith.constant 0 : i32
    %2 = arith.addi %0, %c0_i32 : i32
    %c0_i32_1 = arith.constant 0 : i32
    %3 = arith.addi %2, %c0_i32_1 : i32
    %c0_2 = arith.constant 0 : index
    %4 = arith.index_cast %3 : i32 to index
    %c0_3 = arith.constant 0 : index
    %c0_4 = arith.constant 0 : index
    %5 = vector.load %arg3[%c0_2, %4, %c0_3, %c0_4] : memref<1x5x5x16xbf16, #tpu.memory_space<vmem>>, vector<1x1x4x16xbf16>
    %6 = vector.shape_cast %5 : vector<1x1x4x16xbf16> to vector<4x16xbf16>
    %c0_5 = arith.constant 0 : index
    %c0_6 = arith.constant 0 : index
    %c0_7 = arith.constant 0 : index
    %7 = vector.load %arg4[%c0_5, %c0_6, %c0_7] : memref<4x16x128xbf16, #tpu.memory_space<vmem>>, vector<1x16x128xbf16>
    %8 = vector.shape_cast %7 : vector<1x16x128xbf16> to vector<16x128xbf16>
    %cst = arith.constant dense<0.000000e+00> : vector<4x128xf32>
    %9 = tpu.matmul %6, %8, %cst {dimension_numbers = #tpu.dot_dimension_numbers<[1], [0], [0], [1], [0, 0, 1, 1], [], []>} : vector<4x16xbf16>, vector<16x128xbf16>, vector<4x128xf32> -> vector<4x128xf32>
    %c0_i32_8 = arith.constant 0 : i32
    %10 = arith.addi %0, %c0_i32_8 : i32
    %c0_i32_9 = arith.constant 0 : i32
    %11 = arith.addi %10, %c0_i32_9 : i32
    %c0_10 = arith.constant 0 : index
    %12 = arith.index_cast %11 : i32 to index
    %c1 = arith.constant 1 : index
    %c0_11 = arith.constant 0 : index
    %13 = vector.load %arg3[%c0_10, %12, %c1, %c0_11] : memref<1x5x5x16xbf16, #tpu.memory_space<vmem>>, vector<1x1x4x16xbf16>
    %14 = vector.shape_cast %13 : vector<1x1x4x16xbf16> to vector<4x16xbf16>
    %c1_12 = arith.constant 1 : index
    %c0_13 = arith.constant 0 : index
    %c0_14 = arith.constant 0 : index
    %15 = vector.load %arg4[%c1_12, %c0_13, %c0_14] : memref<4x16x128xbf16, #tpu.memory_space<vmem>>, vector<1x16x128xbf16>
    %16 = vector.shape_cast %15 : vector<1x16x128xbf16> to vector<16x128xbf16>
    %cst_15 = arith.constant dense<0.000000e+00> : vector<4x128xf32>
    %17 = tpu.matmul %14, %16, %cst_15 {dimension_numbers = #tpu.dot_dimension_numbers<[1], [0], [0], [1], [0, 0, 1, 1], [], []>} : vector<4x16xbf16>, vector<16x128xbf16>, vector<4x128xf32> -> vector<4x128xf32>
    %18 = arith.addf %9, %17 : vector<4x128xf32>
    %c0_i32_16 = arith.constant 0 : i32
    %19 = arith.addi %0, %c0_i32_16 : i32
    %c1_i32 = arith.constant 1 : i32
    %20 = arith.addi %19, %c1_i32 : i32
    %c0_17 = arith.constant 0 : index
    %21 = arith.index_cast %20 : i32 to index
    %c0_18 = arith.constant 0 : index
    %c0_19 = arith.constant 0 : index
    %22 = vector.load %arg3[%c0_17, %21, %c0_18, %c0_19] : memref<1x5x5x16xbf16, #tpu.memory_space<vmem>>, vector<1x1x4x16xbf16>
    %23 = vector.shape_cast %22 : vector<1x1x4x16xbf16> to vector<4x16xbf16>
    %c2 = arith.constant 2 : index
    %c0_20 = arith.constant 0 : index
    %c0_21 = arith.constant 0 : index
    %24 = vector.load %arg4[%c2, %c0_20, %c0_21] : memref<4x16x128xbf16, #tpu.memory_space<vmem>>, vector<1x16x128xbf16>
    %25 = vector.shape_cast %24 : vector<1x16x128xbf16> to vector<16x128xbf16>
    %cst_22 = arith.constant dense<0.000000e+00> : vector<4x128xf32>
    %26 = tpu.matmul %23, %25, %cst_22 {dimension_numbers = #tpu.dot_dimension_numbers<[1], [0], [0], [1], [0, 0, 1, 1], [], []>} : vector<4x16xbf16>, vector<16x128xbf16>, vector<4x128xf32> -> vector<4x128xf32>
    %27 = arith.addf %18, %26 : vector<4x128xf32>
    %c0_i32_23 = arith.constant 0 : i32
    %28 = arith.addi %0, %c0_i32_23 : i32
    %c1_i32_24 = arith.constant 1 : i32
    %29 = arith.addi %28, %c1_i32_24 : i32
    %c0_25 = arith.constant 0 : index
    %30 = arith.index_cast %29 : i32 to index
    %c1_26 = arith.constant 1 : index
    %c0_27 = arith.constant 0 : index
    %31 = vector.load %arg3[%c0_25, %30, %c1_26, %c0_27] : memref<1x5x5x16xbf16, #tpu.memory_space<vmem>>, vector<1x1x4x16xbf16>
    %32 = vector.shape_cast %31 : vector<1x1x4x16xbf16> to vector<4x16xbf16>
    %c3 = arith.constant 3 : index
    %c0_28 = arith.constant 0 : index
    %c0_29 = arith.constant 0 : index
    %33 = vector.load %arg4[%c3, %c0_28, %c0_29] : memref<4x16x128xbf16, #tpu.memory_space<vmem>>, vector<1x16x128xbf16>
    %34 = vector.shape_cast %33 : vector<1x16x128xbf16> to vector<16x128xbf16>
    %cst_30 = arith.constant dense<0.000000e+00> : vector<4x128xf32>
    %35 = tpu.matmul %32, %34, %cst_30 {dimension_numbers = #tpu.dot_dimension_numbers<[1], [0], [0], [1], [0, 0, 1, 1], [], []>} : vector<4x16xbf16>, vector<16x128xbf16>, vector<4x128xf32> -> vector<4x128xf32>
    %36 = arith.addf %27, %35 : vector<4x128xf32>
    %37 = vector.broadcast %1 : vector<1x128xf32> to vector<4x128xf32>
    %38 = arith.addf %36, %37 : vector<4x128xf32>
    %cst_31 = arith.constant 0.000000e+00 : f32
    %39 = vector.broadcast %cst_31 : f32 to vector<4x128xf32>
    %40 = arith.maximumf %38, %39 : vector<4x128xf32>
    %41 = arith.truncf %40 : vector<4x128xf32> to vector<4x128xbf16>
    %c0_32 = arith.constant 0 : index
    %c0_33 = arith.constant 0 : index
    %c0_34 = arith.constant 0 : index
    %c0_35 = arith.constant 0 : index
    %42 = vector.load %arg6[%c0_32, %c0_33, %c0_34, %c0_35] : memref<1x4x4x128xbf16, #tpu.memory_space<vmem>>, vector<1x1x4x128xbf16>
    %43 = vector.shape_cast %42 : vector<1x1x4x128xbf16> to vector<4x128xbf16>
    %44 = vector.shape_cast %41 : vector<4x128xbf16> to vector<1x1x4x128xbf16>
    tpu.vector_store %arg6[%c0_32, %c0_33, %c0_34, %c0_35], %44 {strides = array<i32>} : memref<1x4x4x128xbf16, #tpu.memory_space<vmem>>, vector<1x1x4x128xbf16>,
    %c1_i32_36 = arith.constant 1 : i32
    %45 = arith.addi %0, %c1_i32_36 : i32
    %c0_i32_37 = arith.constant 0 : i32
    %46 = arith.addi %45, %c0_i32_37 : i32
    %c0_38 = arith.constant 0 : index
    %47 = arith.index_cast %46 : i32 to index
    %c0_39 = arith.constant 0 : index
    %c0_40 = arith.constant 0 : index
    %48 = vector.load %arg3[%c0_38, %47, %c0_39, %c0_40] : memref<1x5x5x16xbf16, #tpu.memory_space<vmem>>, vector<1x1x4x16xbf16>
    %49 = vector.shape_cast %48 : vector<1x1x4x16xbf16> to vector<4x16xbf16>
    %c0_41 = arith.constant 0 : index
    %c0_42 = arith.constant 0 : index
    %c0_43 = arith.constant 0 : index
    %50 = vector.load %arg4[%c0_41, %c0_42, %c0_43] : memref<4x16x128xbf16, #tpu.memory_space<vmem>>, vector<1x16x128xbf16>
    %51 = vector.shape_cast %50 : vector<1x16x128xbf16> to vector<16x128xbf16>
    %cst_44 = arith.constant dense<0.000000e+00> : vector<4x128xf32>
    %52 = tpu.matmul %49, %51, %cst_44 {dimension_numbers = #tpu.dot_dimension_numbers<[1], [0], [0], [1], [0, 0, 1, 1], [], []>} : vector<4x16xbf16>, vector<16x128xbf16>, vector<4x128xf32> -> vector<4x128xf32>
    %c1_i32_45 = arith.constant 1 : i32
    %53 = arith.addi %0, %c1_i32_45 : i32
    %c0_i32_46 = arith.constant 0 : i32
    %54 = arith.addi %53, %c0_i32_46 : i32
    %c0_47 = arith.constant 0 : index
    %55 = arith.index_cast %54 : i32 to index
    %c1_48 = arith.constant 1 : index
    %c0_49 = arith.constant 0 : index
    %56 = vector.load %arg3[%c0_47, %55, %c1_48, %c0_49] : memref<1x5x5x16xbf16, #tpu.memory_space<vmem>>, vector<1x1x4x16xbf16>
    %57 = vector.shape_cast %56 : vector<1x1x4x16xbf16> to vector<4x16xbf16>
    %c1_50 = arith.constant 1 : index
    %c0_51 = arith.constant 0 : index
    %c0_52 = arith.constant 0 : index
    %58 = vector.load %arg4[%c1_50, %c0_51, %c0_52] : memref<4x16x128xbf16, #tpu.memory_space<vmem>>, vector<1x16x128xbf16>
    %59 = vector.shape_cast %58 : vector<1x16x128xbf16> to vector<16x128xbf16>
    %cst_53 = arith.constant dense<0.000000e+00> : vector<4x128xf32>
    %60 = tpu.matmul %57, %59, %cst_53 {dimension_numbers = #tpu.dot_dimension_numbers<[1], [0], [0], [1], [0, 0, 1, 1], [], []>} : vector<4x16xbf16>, vector<16x128xbf16>, vector<4x128xf32> -> vector<4x128xf32>
    %61 = arith.addf %52, %60 : vector<4x128xf32>
    %c1_i32_54 = arith.constant 1 : i32
    %62 = arith.addi %0, %c1_i32_54 : i32
    %c1_i32_55 = arith.constant 1 : i32
    %63 = arith.addi %62, %c1_i32_55 : i32
    %c0_56 = arith.constant 0 : index
    %64 = arith.index_cast %63 : i32 to index
    %c0_57 = arith.constant 0 : index
    %c0_58 = arith.constant 0 : index
    %65 = vector.load %arg3[%c0_56, %64, %c0_57, %c0_58] : memref<1x5x5x16xbf16, #tpu.memory_space<vmem>>, vector<1x1x4x16xbf16>
    %66 = vector.shape_cast %65 : vector<1x1x4x16xbf16> to vector<4x16xbf16>
    %c2_59 = arith.constant 2 : index
    %c0_60 = arith.constant 0 : index
    %c0_61 = arith.constant 0 : index
    %67 = vector.load %arg4[%c2_59, %c0_60, %c0_61] : memref<4x16x128xbf16, #tpu.memory_space<vmem>>, vector<1x16x128xbf16>
    %68 = vector.shape_cast %67 : vector<1x16x128xbf16> to vector<16x128xbf16>
    %cst_62 = arith.constant dense<0.000000e+00> : vector<4x128xf32>
    %69 = tpu.matmul %66, %68, %cst_62 {dimension_numbers = #tpu.dot_dimension_numbers<[1], [0], [0], [1], [0, 0, 1, 1], [], []>} : vector<4x16xbf16>, vector<16x128xbf16>, vector<4x128xf32> -> vector<4x128xf32>
    %70 = arith.addf %61, %69 : vector<4x128xf32>
    %c1_i32_63 = arith.constant 1 : i32
    %71 = arith.addi %0, %c1_i32_63 : i32
    %c1_i32_64 = arith.constant 1 : i32
    %72 = arith.addi %71, %c1_i32_64 : i32
    %c0_65 = arith.constant 0 : index
    %73 = arith.index_cast %72 : i32 to index
    %c1_66 = arith.constant 1 : index
    %c0_67 = arith.constant 0 : index
    %74 = vector.load %arg3[%c0_65, %73, %c1_66, %c0_67] : memref<1x5x5x16xbf16, #tpu.memory_space<vmem>>, vector<1x1x4x16xbf16>
    %75 = vector.shape_cast %74 : vector<1x1x4x16xbf16> to vector<4x16xbf16>
    %c3_68 = arith.constant 3 : index
    %c0_69 = arith.constant 0 : index
    %c0_70 = arith.constant 0 : index
    %76 = vector.load %arg4[%c3_68, %c0_69, %c0_70] : memref<4x16x128xbf16, #tpu.memory_space<vmem>>, vector<1x16x128xbf16>
    %77 = vector.shape_cast %76 : vector<1x16x128xbf16> to vector<16x128xbf16>
    %cst_71 = arith.constant dense<0.000000e+00> : vector<4x128xf32>
    %78 = tpu.matmul %75, %77, %cst_71 {dimension_numbers = #tpu.dot_dimension_numbers<[1], [0], [0], [1], [0, 0, 1, 1], [], []>} : vector<4x16xbf16>, vector<16x128xbf16>, vector<4x128xf32> -> vector<4x128xf32>
    %79 = arith.addf %70, %78 : vector<4x128xf32>
    %80 = vector.broadcast %1 : vector<1x128xf32> to vector<4x128xf32>
    %81 = arith.addf %79, %80 : vector<4x128xf32>
    %cst_72 = arith.constant 0.000000e+00 : f32
    %82 = vector.broadcast %cst_72 : f32 to vector<4x128xf32>
    %83 = arith.maximumf %81, %82 : vector<4x128xf32>
    %84 = arith.truncf %83 : vector<4x128xf32> to vector<4x128xbf16>
    %c0_73 = arith.constant 0 : index
    %c1_74 = arith.constant 1 : index
    %c0_75 = arith.constant 0 : index
    %c0_76 = arith.constant 0 : index
    %85 = vector.load %arg6[%c0_73, %c1_74, %c0_75, %c0_76] : memref<1x4x4x128xbf16, #tpu.memory_space<vmem>>, vector<1x1x4x128xbf16>
    %86 = vector.shape_cast %85 : vector<1x1x4x128xbf16> to vector<4x128xbf16>
    %87 = vector.shape_cast %84 : vector<4x128xbf16> to vector<1x1x4x128xbf16>
    tpu.vector_store %arg6[%c0_73, %c1_74, %c0_75, %c0_76], %87 {strides = array<i32>} : memref<1x4x4x128xbf16, #tpu.memory_space<vmem>>, vector<1x1x4x128xbf16>,
    %c2_i32 = arith.constant 2 : i32
    %88 = arith.addi %0, %c2_i32 : i32
    %c0_i32_77 = arith.constant 0 : i32
    %89 = arith.addi %88, %c0_i32_77 : i32
    %c0_78 = arith.constant 0 : index
    %90 = arith.index_cast %89 : i32 to index
    %c0_79 = arith.constant 0 : index
    %c0_80 = arith.constant 0 : index
    %91 = vector.load %arg3[%c0_78, %90, %c0_79, %c0_80] : memref<1x5x5x16xbf16, #tpu.memory_space<vmem>>, vector<1x1x4x16xbf16>
    %92 = vector.shape_cast %91 : vector<1x1x4x16xbf16> to vector<4x16xbf16>
    %c0_81 = arith.constant 0 : index
    %c0_82 = arith.constant 0 : index
    %c0_83 = arith.constant 0 : index
    %93 = vector.load %arg4[%c0_81, %c0_82, %c0_83] : memref<4x16x128xbf16, #tpu.memory_space<vmem>>, vector<1x16x128xbf16>
    %94 = vector.shape_cast %93 : vector<1x16x128xbf16> to vector<16x128xbf16>
    %cst_84 = arith.constant dense<0.000000e+00> : vector<4x128xf32>
    %95 = tpu.matmul %92, %94, %cst_84 {dimension_numbers = #tpu.dot_dimension_numbers<[1], [0], [0], [1], [0, 0, 1, 1], [], []>} : vector<4x16xbf16>, vector<16x128xbf16>, vector<4x128xf32> -> vector<4x128xf32>
    %c2_i32_85 = arith.constant 2 : i32
    %96 = arith.addi %0, %c2_i32_85 : i32
    %c0_i32_86 = arith.constant 0 : i32
    %97 = arith.addi %96, %c0_i32_86 : i32
    %c0_87 = arith.constant 0 : index
    %98 = arith.index_cast %97 : i32 to index
    %c1_88 = arith.constant 1 : index
    %c0_89 = arith.constant 0 : index
    %99 = vector.load %arg3[%c0_87, %98, %c1_88, %c0_89] : memref<1x5x5x16xbf16, #tpu.memory_space<vmem>>, vector<1x1x4x16xbf16>
    %100 = vector.shape_cast %99 : vector<1x1x4x16xbf16> to vector<4x16xbf16>
    %c1_90 = arith.constant 1 : index
    %c0_91 = arith.constant 0 : index
    %c0_92 = arith.constant 0 : index
    %101 = vector.load %arg4[%c1_90, %c0_91, %c0_92] : memref<4x16x128xbf16, #tpu.memory_space<vmem>>, vector<1x16x128xbf16>
    %102 = vector.shape_cast %101 : vector<1x16x128xbf16> to vector<16x128xbf16>
    %cst_93 = arith.constant dense<0.000000e+00> : vector<4x128xf32>
    %103 = tpu.matmul %100, %102, %cst_93 {dimension_numbers = #tpu.dot_dimension_numbers<[1], [0], [0], [1], [0, 0, 1, 1], [], []>} : vector<4x16xbf16>, vector<16x128xbf16>, vector<4x128xf32> -> vector<4x128xf32>
    %104 = arith.addf %95, %103 : vector<4x128xf32>
    %c2_i32_94 = arith.constant 2 : i32
    %105 = arith.addi %0, %c2_i32_94 : i32
    %c1_i32_95 = arith.constant 1 : i32
    %106 = arith.addi %105, %c1_i32_95 : i32
    %c0_96 = arith.constant 0 : index
    %107 = arith.index_cast %106 : i32 to index
    %c0_97 = arith.constant 0 : index
    %c0_98 = arith.constant 0 : index
    %108 = vector.load %arg3[%c0_96, %107, %c0_97, %c0_98] : memref<1x5x5x16xbf16, #tpu.memory_space<vmem>>, vector<1x1x4x16xbf16>
    %109 = vector.shape_cast %108 : vector<1x1x4x16xbf16> to vector<4x16xbf16>
    %c2_99 = arith.constant 2 : index
    %c0_100 = arith.constant 0 : index
    %c0_101 = arith.constant 0 : index
    %110 = vector.load %arg4[%c2_99, %c0_100, %c0_101] : memref<4x16x128xbf16, #tpu.memory_space<vmem>>, vector<1x16x128xbf16>
    %111 = vector.shape_cast %110 : vector<1x16x128xbf16> to vector<16x128xbf16>
    %cst_102 = arith.constant dense<0.000000e+00> : vector<4x128xf32>
    %112 = tpu.matmul %109, %111, %cst_102 {dimension_numbers = #tpu.dot_dimension_numbers<[1], [0], [0], [1], [0, 0, 1, 1], [], []>} : vector<4x16xbf16>, vector<16x128xbf16>, vector<4x128xf32> -> vector<4x128xf32>
    %113 = arith.addf %104, %112 : vector<4x128xf32>
    %c2_i32_103 = arith.constant 2 : i32
    %114 = arith.addi %0, %c2_i32_103 : i32
    %c1_i32_104 = arith.constant 1 : i32
    %115 = arith.addi %114, %c1_i32_104 : i32
    %c0_105 = arith.constant 0 : index
    %116 = arith.index_cast %115 : i32 to index
    %c1_106 = arith.constant 1 : index
    %c0_107 = arith.constant 0 : index
    %117 = vector.load %arg3[%c0_105, %116, %c1_106, %c0_107] : memref<1x5x5x16xbf16, #tpu.memory_space<vmem>>, vector<1x1x4x16xbf16>
    %118 = vector.shape_cast %117 : vector<1x1x4x16xbf16> to vector<4x16xbf16>
    %c3_108 = arith.constant 3 : index
    %c0_109 = arith.constant 0 : index
    %c0_110 = arith.constant 0 : index
    %119 = vector.load %arg4[%c3_108, %c0_109, %c0_110] : memref<4x16x128xbf16, #tpu.memory_space<vmem>>, vector<1x16x128xbf16>
    %120 = vector.shape_cast %119 : vector<1x16x128xbf16> to vector<16x128xbf16>
    %cst_111 = arith.constant dense<0.000000e+00> : vector<4x128xf32>
    %121 = tpu.matmul %118, %120, %cst_111 {dimension_numbers = #tpu.dot_dimension_numbers<[1], [0], [0], [1], [0, 0, 1, 1], [], []>} : vector<4x16xbf16>, vector<16x128xbf16>, vector<4x128xf32> -> vector<4x128xf32>
    %122 = arith.addf %113, %121 : vector<4x128xf32>
    %123 = vector.broadcast %1 : vector<1x128xf32> to vector<4x128xf32>
    %124 = arith.addf %122, %123 : vector<4x128xf32>
    %cst_112 = arith.constant 0.000000e+00 : f32
    %125 = vector.broadcast %cst_112 : f32 to vector<4x128xf32>
    %126 = arith.maximumf %124, %125 : vector<4x128xf32>
    %127 = arith.truncf %126 : vector<4x128xf32> to vector<4x128xbf16>
    %c0_113 = arith.constant 0 : index
    %c2_114 = arith.constant 2 : index
    %c0_115 = arith.constant 0 : index
    %c0_116 = arith.constant 0 : index
    %128 = vector.load %arg6[%c0_113, %c2_114, %c0_115, %c0_116] : memref<1x4x4x128xbf16, #tpu.memory_space<vmem>>, vector<1x1x4x128xbf16>
    %129 = vector.shape_cast %128 : vector<1x1x4x128xbf16> to vector<4x128xbf16>
    %130 = vector.shape_cast %127 : vector<4x128xbf16> to vector<1x1x4x128xbf16>
    tpu.vector_store %arg6[%c0_113, %c2_114, %c0_115, %c0_116], %130 {strides = array<i32>} : memref<1x4x4x128xbf16, #tpu.memory_space<vmem>>, vector<1x1x4x128xbf16>,
    %c3_i32 = arith.constant 3 : i32
    %131 = arith.addi %0, %c3_i32 : i32
    %c0_i32_117 = arith.constant 0 : i32
    %132 = arith.addi %131, %c0_i32_117 : i32
    %c0_118 = arith.constant 0 : index
    %133 = arith.index_cast %132 : i32 to index
    %c0_119 = arith.constant 0 : index
    %c0_120 = arith.constant 0 : index
    %134 = vector.load %arg3[%c0_118, %133, %c0_119, %c0_120] : memref<1x5x5x16xbf16, #tpu.memory_space<vmem>>, vector<1x1x4x16xbf16>
    %135 = vector.shape_cast %134 : vector<1x1x4x16xbf16> to vector<4x16xbf16>
    %c0_121 = arith.constant 0 : index
    %c0_122 = arith.constant 0 : index
    %c0_123 = arith.constant 0 : index
    %136 = vector.load %arg4[%c0_121, %c0_122, %c0_123] : memref<4x16x128xbf16, #tpu.memory_space<vmem>>, vector<1x16x128xbf16>
    %137 = vector.shape_cast %136 : vector<1x16x128xbf16> to vector<16x128xbf16>
    %cst_124 = arith.constant dense<0.000000e+00> : vector<4x128xf32>
    %138 = tpu.matmul %135, %137, %cst_124 {dimension_numbers = #tpu.dot_dimension_numbers<[1], [0], [0], [1], [0, 0, 1, 1], [], []>} : vector<4x16xbf16>, vector<16x128xbf16>, vector<4x128xf32> -> vector<4x128xf32>
    %c3_i32_125 = arith.constant 3 : i32
    %139 = arith.addi %0, %c3_i32_125 : i32
    %c0_i32_126 = arith.constant 0 : i32
    %140 = arith.addi %139, %c0_i32_126 : i32
    %c0_127 = arith.constant 0 : index
    %141 = arith.index_cast %140 : i32 to index
    %c1_128 = arith.constant 1 : index
    %c0_129 = arith.constant 0 : index
    %142 = vector.load %arg3[%c0_127, %141, %c1_128, %c0_129] : memref<1x5x5x16xbf16, #tpu.memory_space<vmem>>, vector<1x1x4x16xbf16>
    %143 = vector.shape_cast %142 : vector<1x1x4x16xbf16> to vector<4x16xbf16>
    %c1_130 = arith.constant 1 : index
    %c0_131 = arith.constant 0 : index
    %c0_132 = arith.constant 0 : index
    %144 = vector.load %arg4[%c1_130, %c0_131, %c0_132] : memref<4x16x128xbf16, #tpu.memory_space<vmem>>, vector<1x16x128xbf16>
    %145 = vector.shape_cast %144 : vector<1x16x128xbf16> to vector<16x128xbf16>
    %cst_133 = arith.constant dense<0.000000e+00> : vector<4x128xf32>
    %146 = tpu.matmul %143, %145, %cst_133 {dimension_numbers = #tpu.dot_dimension_numbers<[1], [0], [0], [1], [0, 0, 1, 1], [], []>} : vector<4x16xbf16>, vector<16x128xbf16>, vector<4x128xf32> -> vector<4x128xf32>
    %147 = arith.addf %138, %146 : vector<4x128xf32>
    %c3_i32_134 = arith.constant 3 : i32
    %148 = arith.addi %0, %c3_i32_134 : i32
    %c1_i32_135 = arith.constant 1 : i32
    %149 = arith.addi %148, %c1_i32_135 : i32
    %c0_136 = arith.constant 0 : index
    %150 = arith.index_cast %149 : i32 to index
    %c0_137 = arith.constant 0 : index
    %c0_138 = arith.constant 0 : index
    %151 = vector.load %arg3[%c0_136, %150, %c0_137, %c0_138] : memref<1x5x5x16xbf16, #tpu.memory_space<vmem>>, vector<1x1x4x16xbf16>
    %152 = vector.shape_cast %151 : vector<1x1x4x16xbf16> to vector<4x16xbf16>
    %c2_139 = arith.constant 2 : index
    %c0_140 = arith.constant 0 : index
    %c0_141 = arith.constant 0 : index
    %153 = vector.load %arg4[%c2_139, %c0_140, %c0_141] : memref<4x16x128xbf16, #tpu.memory_space<vmem>>, vector<1x16x128xbf16>
    %154 = vector.shape_cast %153 : vector<1x16x128xbf16> to vector<16x128xbf16>
    %cst_142 = arith.constant dense<0.000000e+00> : vector<4x128xf32>
    %155 = tpu.matmul %152, %154, %cst_142 {dimension_numbers = #tpu.dot_dimension_numbers<[1], [0], [0], [1], [0, 0, 1, 1], [], []>} : vector<4x16xbf16>, vector<16x128xbf16>, vector<4x128xf32> -> vector<4x128xf32>
    %156 = arith.addf %147, %155 : vector<4x128xf32>
    %c3_i32_143 = arith.constant 3 : i32
    %157 = arith.addi %0, %c3_i32_143 : i32
    %c1_i32_144 = arith.constant 1 : i32
    %158 = arith.addi %157, %c1_i32_144 : i32
    %c0_145 = arith.constant 0 : index
    %159 = arith.index_cast %158 : i32 to index
    %c1_146 = arith.constant 1 : index
    %c0_147 = arith.constant 0 : index
    %160 = vector.load %arg3[%c0_145, %159, %c1_146, %c0_147] : memref<1x5x5x16xbf16, #tpu.memory_space<vmem>>, vector<1x1x4x16xbf16>
    %161 = vector.shape_cast %160 : vector<1x1x4x16xbf16> to vector<4x16xbf16>
    %c3_148 = arith.constant 3 : index
    %c0_149 = arith.constant 0 : index
    %c0_150 = arith.constant 0 : index
    %162 = vector.load %arg4[%c3_148, %c0_149, %c0_150] : memref<4x16x128xbf16, #tpu.memory_space<vmem>>, vector<1x16x128xbf16>
    %163 = vector.shape_cast %162 : vector<1x16x128xbf16> to vector<16x128xbf16>
    %cst_151 = arith.constant dense<0.000000e+00> : vector<4x128xf32>
    %164 = tpu.matmul %161, %163, %cst_151 {dimension_numbers = #tpu.dot_dimension_numbers<[1], [0], [0], [1], [0, 0, 1, 1], [], []>} : vector<4x16xbf16>, vector<16x128xbf16>, vector<4x128xf32> -> vector<4x128xf32>
    %165 = arith.addf %156, %164 : vector<4x128xf32>
    %166 = vector.broadcast %1 : vector<1x128xf32> to vector<4x128xf32>
    %167 = arith.addf %165, %166 : vector<4x128xf32>
    %cst_152 = arith.constant 0.000000e+00 : f32
    %168 = vector.broadcast %cst_152 : f32 to vector<4x128xf32>
    %169 = arith.maximumf %167, %168 : vector<4x128xf32>
    %170 = arith.truncf %169 : vector<4x128xf32> to vector<4x128xbf16>
    %c0_153 = arith.constant 0 : index
    %c3_154 = arith.constant 3 : index
    %c0_155 = arith.constant 0 : index
    %c0_156 = arith.constant 0 : index
    %171 = vector.load %arg6[%c0_153, %c3_154, %c0_155, %c0_156] : memref<1x4x4x128xbf16, #tpu.memory_space<vmem>>, vector<1x1x4x128xbf16>
    %172 = vector.shape_cast %171 : vector<1x1x4x128xbf16> to vector<4x128xbf16>
    %173 = vector.shape_cast %170 : vector<4x128xbf16> to vector<1x1x4x128xbf16>
    tpu.vector_store %arg6[%c0_153, %c3_154, %c0_155, %c0_156], %173 {strides = array<i32>} : memref<1x4x4x128xbf16, #tpu.memory_space<vmem>>, vector<1x1x4x128xbf16>,
    return
  }
  func.func @transform_0(%arg0: i32, %arg1: i32, %arg2: i32) -> (i32, i32, i32, i32) {
    %c0_i32 = arith.constant 0 : i32
    %c0_i32_0 = arith.constant 0 : i32
    %c0_i32_1 = arith.constant 0 : i32
    %c0_i32_2 = arith.constant 0 : i32
    return %arg0, %c0_i32, %c0_i32_0, %c0_i32_1 : i32, i32, i32, i32
  }
  func.func @transform_1(%arg0: i32, %arg1: i32, %arg2: i32) -> (i32, i32, i32) {
    %c0_i32 = arith.constant 0 : i32
    %c0_i32_0 = arith.constant 0 : i32
    %c0_i32_1 = arith.constant 0 : i32
    return %c0_i32, %c0_i32_0, %arg2 : i32, i32, i32
  }
  func.func @transform_2(%arg0: i32, %arg1: i32, %arg2: i32) -> (i32, i32) {
    %c0_i32 = arith.constant 0 : i32
    %c0_i32_0 = arith.constant 0 : i32
    return %c0_i32, %arg2 : i32, i32
  }
  func.func @transform_3(%arg0: i32, %arg1: i32, %arg2: i32) -> (i32, i32, i32, i32) {
    %c0_i32 = arith.constant 0 : i32
    %c0_i32_0 = arith.constant 0 : i32
    return %arg0, %arg1, %c0_i32, %arg2 : i32, i32, i32, i32
  }
}

module attributes {stable_mosaic.version = 11 : i64} {
  func.func @_conv_tap_kernel(%arg0: i32, %arg1: i32, %arg2: i32, %arg3: memref<1x3x3x32xbf16, #tpu.memory_space<vmem>>, %arg4: memref<4x32x128xbf16, #tpu.memory_space<vmem>>, %arg5: memref<1x128xf32, #tpu.memory_space<vmem>>, %arg6: memref<1x2x2x128xbf16, #tpu.memory_space<vmem>>) attributes {dimension_semantics = [#tpu.dimension_semantics<parallel>, #tpu.dimension_semantics<parallel>, #tpu.dimension_semantics<arbitrary>], iteration_bounds = array<i64: 2, 1, 1>, scalar_prefetch = 0 : i64, scratch_operands = 0 : i64, tpu.core_type = #tpu.core_type<tc>, window_params = [{transform_indices = @transform_0, window_bounds = array<i64: 1, 3, 3, 32>}, {transform_indices = @transform_1, window_bounds = array<i64: 4, 32, 128>}, {transform_indices = @transform_2, window_bounds = array<i64: 1, 128>}, {transform_indices = @transform_3, window_bounds = array<i64: 1, 2, 2, 128>}]} {
    %c2_i32 = arith.constant 2 : i32
    %0 = arith.muli %arg1, %c2_i32 : i32
    %c0 = arith.constant 0 : index
    %c0_0 = arith.constant 0 : index
    %1 = vector.load %arg5[%c0, %c0_0] : memref<1x128xf32, #tpu.memory_space<vmem>>, vector<1x128xf32>
    %c0_i32 = arith.constant 0 : i32
    %2 = arith.addi %0, %c0_i32 : i32
    %c0_i32_1 = arith.constant 0 : i32
    %3 = arith.addi %2, %c0_i32_1 : i32
    %c0_2 = arith.constant 0 : index
    %4 = arith.index_cast %3 : i32 to index
    %c0_3 = arith.constant 0 : index
    %c0_4 = arith.constant 0 : index
    %5 = vector.load %arg3[%c0_2, %4, %c0_3, %c0_4] : memref<1x3x3x32xbf16, #tpu.memory_space<vmem>>, vector<1x1x2x32xbf16>
    %6 = vector.shape_cast %5 : vector<1x1x2x32xbf16> to vector<2x32xbf16>
    %c0_5 = arith.constant 0 : index
    %c0_6 = arith.constant 0 : index
    %c0_7 = arith.constant 0 : index
    %7 = vector.load %arg4[%c0_5, %c0_6, %c0_7] : memref<4x32x128xbf16, #tpu.memory_space<vmem>>, vector<1x32x128xbf16>
    %8 = vector.shape_cast %7 : vector<1x32x128xbf16> to vector<32x128xbf16>
    %cst = arith.constant dense<0.000000e+00> : vector<2x128xf32>
    %9 = tpu.matmul %6, %8, %cst {dimension_numbers = #tpu.dot_dimension_numbers<[1], [0], [0], [1], [0, 0, 1, 1], [], []>} : vector<2x32xbf16>, vector<32x128xbf16>, vector<2x128xf32> -> vector<2x128xf32>
    %c0_i32_8 = arith.constant 0 : i32
    %10 = arith.addi %0, %c0_i32_8 : i32
    %c0_i32_9 = arith.constant 0 : i32
    %11 = arith.addi %10, %c0_i32_9 : i32
    %c0_10 = arith.constant 0 : index
    %12 = arith.index_cast %11 : i32 to index
    %c1 = arith.constant 1 : index
    %c0_11 = arith.constant 0 : index
    %13 = vector.load %arg3[%c0_10, %12, %c1, %c0_11] : memref<1x3x3x32xbf16, #tpu.memory_space<vmem>>, vector<1x1x2x32xbf16>
    %14 = vector.shape_cast %13 : vector<1x1x2x32xbf16> to vector<2x32xbf16>
    %c1_12 = arith.constant 1 : index
    %c0_13 = arith.constant 0 : index
    %c0_14 = arith.constant 0 : index
    %15 = vector.load %arg4[%c1_12, %c0_13, %c0_14] : memref<4x32x128xbf16, #tpu.memory_space<vmem>>, vector<1x32x128xbf16>
    %16 = vector.shape_cast %15 : vector<1x32x128xbf16> to vector<32x128xbf16>
    %cst_15 = arith.constant dense<0.000000e+00> : vector<2x128xf32>
    %17 = tpu.matmul %14, %16, %cst_15 {dimension_numbers = #tpu.dot_dimension_numbers<[1], [0], [0], [1], [0, 0, 1, 1], [], []>} : vector<2x32xbf16>, vector<32x128xbf16>, vector<2x128xf32> -> vector<2x128xf32>
    %18 = arith.addf %9, %17 : vector<2x128xf32>
    %c0_i32_16 = arith.constant 0 : i32
    %19 = arith.addi %0, %c0_i32_16 : i32
    %c1_i32 = arith.constant 1 : i32
    %20 = arith.addi %19, %c1_i32 : i32
    %c0_17 = arith.constant 0 : index
    %21 = arith.index_cast %20 : i32 to index
    %c0_18 = arith.constant 0 : index
    %c0_19 = arith.constant 0 : index
    %22 = vector.load %arg3[%c0_17, %21, %c0_18, %c0_19] : memref<1x3x3x32xbf16, #tpu.memory_space<vmem>>, vector<1x1x2x32xbf16>
    %23 = vector.shape_cast %22 : vector<1x1x2x32xbf16> to vector<2x32xbf16>
    %c2 = arith.constant 2 : index
    %c0_20 = arith.constant 0 : index
    %c0_21 = arith.constant 0 : index
    %24 = vector.load %arg4[%c2, %c0_20, %c0_21] : memref<4x32x128xbf16, #tpu.memory_space<vmem>>, vector<1x32x128xbf16>
    %25 = vector.shape_cast %24 : vector<1x32x128xbf16> to vector<32x128xbf16>
    %cst_22 = arith.constant dense<0.000000e+00> : vector<2x128xf32>
    %26 = tpu.matmul %23, %25, %cst_22 {dimension_numbers = #tpu.dot_dimension_numbers<[1], [0], [0], [1], [0, 0, 1, 1], [], []>} : vector<2x32xbf16>, vector<32x128xbf16>, vector<2x128xf32> -> vector<2x128xf32>
    %27 = arith.addf %18, %26 : vector<2x128xf32>
    %c0_i32_23 = arith.constant 0 : i32
    %28 = arith.addi %0, %c0_i32_23 : i32
    %c1_i32_24 = arith.constant 1 : i32
    %29 = arith.addi %28, %c1_i32_24 : i32
    %c0_25 = arith.constant 0 : index
    %30 = arith.index_cast %29 : i32 to index
    %c1_26 = arith.constant 1 : index
    %c0_27 = arith.constant 0 : index
    %31 = vector.load %arg3[%c0_25, %30, %c1_26, %c0_27] : memref<1x3x3x32xbf16, #tpu.memory_space<vmem>>, vector<1x1x2x32xbf16>
    %32 = vector.shape_cast %31 : vector<1x1x2x32xbf16> to vector<2x32xbf16>
    %c3 = arith.constant 3 : index
    %c0_28 = arith.constant 0 : index
    %c0_29 = arith.constant 0 : index
    %33 = vector.load %arg4[%c3, %c0_28, %c0_29] : memref<4x32x128xbf16, #tpu.memory_space<vmem>>, vector<1x32x128xbf16>
    %34 = vector.shape_cast %33 : vector<1x32x128xbf16> to vector<32x128xbf16>
    %cst_30 = arith.constant dense<0.000000e+00> : vector<2x128xf32>
    %35 = tpu.matmul %32, %34, %cst_30 {dimension_numbers = #tpu.dot_dimension_numbers<[1], [0], [0], [1], [0, 0, 1, 1], [], []>} : vector<2x32xbf16>, vector<32x128xbf16>, vector<2x128xf32> -> vector<2x128xf32>
    %36 = arith.addf %27, %35 : vector<2x128xf32>
    %37 = vector.broadcast %1 : vector<1x128xf32> to vector<2x128xf32>
    %38 = arith.addf %36, %37 : vector<2x128xf32>
    %cst_31 = arith.constant 0.000000e+00 : f32
    %39 = vector.broadcast %cst_31 : f32 to vector<2x128xf32>
    %40 = arith.maximumf %38, %39 : vector<2x128xf32>
    %41 = arith.truncf %40 : vector<2x128xf32> to vector<2x128xbf16>
    %c0_32 = arith.constant 0 : index
    %c0_33 = arith.constant 0 : index
    %c0_34 = arith.constant 0 : index
    %c0_35 = arith.constant 0 : index
    %42 = vector.load %arg6[%c0_32, %c0_33, %c0_34, %c0_35] : memref<1x2x2x128xbf16, #tpu.memory_space<vmem>>, vector<1x1x2x128xbf16>
    %43 = vector.shape_cast %42 : vector<1x1x2x128xbf16> to vector<2x128xbf16>
    %44 = vector.shape_cast %41 : vector<2x128xbf16> to vector<1x1x2x128xbf16>
    tpu.vector_store %arg6[%c0_32, %c0_33, %c0_34, %c0_35], %44 {strides = array<i32>} : memref<1x2x2x128xbf16, #tpu.memory_space<vmem>>, vector<1x1x2x128xbf16>,
    %c1_i32_36 = arith.constant 1 : i32
    %45 = arith.addi %0, %c1_i32_36 : i32
    %c0_i32_37 = arith.constant 0 : i32
    %46 = arith.addi %45, %c0_i32_37 : i32
    %c0_38 = arith.constant 0 : index
    %47 = arith.index_cast %46 : i32 to index
    %c0_39 = arith.constant 0 : index
    %c0_40 = arith.constant 0 : index
    %48 = vector.load %arg3[%c0_38, %47, %c0_39, %c0_40] : memref<1x3x3x32xbf16, #tpu.memory_space<vmem>>, vector<1x1x2x32xbf16>
    %49 = vector.shape_cast %48 : vector<1x1x2x32xbf16> to vector<2x32xbf16>
    %c0_41 = arith.constant 0 : index
    %c0_42 = arith.constant 0 : index
    %c0_43 = arith.constant 0 : index
    %50 = vector.load %arg4[%c0_41, %c0_42, %c0_43] : memref<4x32x128xbf16, #tpu.memory_space<vmem>>, vector<1x32x128xbf16>
    %51 = vector.shape_cast %50 : vector<1x32x128xbf16> to vector<32x128xbf16>
    %cst_44 = arith.constant dense<0.000000e+00> : vector<2x128xf32>
    %52 = tpu.matmul %49, %51, %cst_44 {dimension_numbers = #tpu.dot_dimension_numbers<[1], [0], [0], [1], [0, 0, 1, 1], [], []>} : vector<2x32xbf16>, vector<32x128xbf16>, vector<2x128xf32> -> vector<2x128xf32>
    %c1_i32_45 = arith.constant 1 : i32
    %53 = arith.addi %0, %c1_i32_45 : i32
    %c0_i32_46 = arith.constant 0 : i32
    %54 = arith.addi %53, %c0_i32_46 : i32
    %c0_47 = arith.constant 0 : index
    %55 = arith.index_cast %54 : i32 to index
    %c1_48 = arith.constant 1 : index
    %c0_49 = arith.constant 0 : index
    %56 = vector.load %arg3[%c0_47, %55, %c1_48, %c0_49] : memref<1x3x3x32xbf16, #tpu.memory_space<vmem>>, vector<1x1x2x32xbf16>
    %57 = vector.shape_cast %56 : vector<1x1x2x32xbf16> to vector<2x32xbf16>
    %c1_50 = arith.constant 1 : index
    %c0_51 = arith.constant 0 : index
    %c0_52 = arith.constant 0 : index
    %58 = vector.load %arg4[%c1_50, %c0_51, %c0_52] : memref<4x32x128xbf16, #tpu.memory_space<vmem>>, vector<1x32x128xbf16>
    %59 = vector.shape_cast %58 : vector<1x32x128xbf16> to vector<32x128xbf16>
    %cst_53 = arith.constant dense<0.000000e+00> : vector<2x128xf32>
    %60 = tpu.matmul %57, %59, %cst_53 {dimension_numbers = #tpu.dot_dimension_numbers<[1], [0], [0], [1], [0, 0, 1, 1], [], []>} : vector<2x32xbf16>, vector<32x128xbf16>, vector<2x128xf32> -> vector<2x128xf32>
    %61 = arith.addf %52, %60 : vector<2x128xf32>
    %c1_i32_54 = arith.constant 1 : i32
    %62 = arith.addi %0, %c1_i32_54 : i32
    %c1_i32_55 = arith.constant 1 : i32
    %63 = arith.addi %62, %c1_i32_55 : i32
    %c0_56 = arith.constant 0 : index
    %64 = arith.index_cast %63 : i32 to index
    %c0_57 = arith.constant 0 : index
    %c0_58 = arith.constant 0 : index
    %65 = vector.load %arg3[%c0_56, %64, %c0_57, %c0_58] : memref<1x3x3x32xbf16, #tpu.memory_space<vmem>>, vector<1x1x2x32xbf16>
    %66 = vector.shape_cast %65 : vector<1x1x2x32xbf16> to vector<2x32xbf16>
    %c2_59 = arith.constant 2 : index
    %c0_60 = arith.constant 0 : index
    %c0_61 = arith.constant 0 : index
    %67 = vector.load %arg4[%c2_59, %c0_60, %c0_61] : memref<4x32x128xbf16, #tpu.memory_space<vmem>>, vector<1x32x128xbf16>
    %68 = vector.shape_cast %67 : vector<1x32x128xbf16> to vector<32x128xbf16>
    %cst_62 = arith.constant dense<0.000000e+00> : vector<2x128xf32>
    %69 = tpu.matmul %66, %68, %cst_62 {dimension_numbers = #tpu.dot_dimension_numbers<[1], [0], [0], [1], [0, 0, 1, 1], [], []>} : vector<2x32xbf16>, vector<32x128xbf16>, vector<2x128xf32> -> vector<2x128xf32>
    %70 = arith.addf %61, %69 : vector<2x128xf32>
    %c1_i32_63 = arith.constant 1 : i32
    %71 = arith.addi %0, %c1_i32_63 : i32
    %c1_i32_64 = arith.constant 1 : i32
    %72 = arith.addi %71, %c1_i32_64 : i32
    %c0_65 = arith.constant 0 : index
    %73 = arith.index_cast %72 : i32 to index
    %c1_66 = arith.constant 1 : index
    %c0_67 = arith.constant 0 : index
    %74 = vector.load %arg3[%c0_65, %73, %c1_66, %c0_67] : memref<1x3x3x32xbf16, #tpu.memory_space<vmem>>, vector<1x1x2x32xbf16>
    %75 = vector.shape_cast %74 : vector<1x1x2x32xbf16> to vector<2x32xbf16>
    %c3_68 = arith.constant 3 : index
    %c0_69 = arith.constant 0 : index
    %c0_70 = arith.constant 0 : index
    %76 = vector.load %arg4[%c3_68, %c0_69, %c0_70] : memref<4x32x128xbf16, #tpu.memory_space<vmem>>, vector<1x32x128xbf16>
    %77 = vector.shape_cast %76 : vector<1x32x128xbf16> to vector<32x128xbf16>
    %cst_71 = arith.constant dense<0.000000e+00> : vector<2x128xf32>
    %78 = tpu.matmul %75, %77, %cst_71 {dimension_numbers = #tpu.dot_dimension_numbers<[1], [0], [0], [1], [0, 0, 1, 1], [], []>} : vector<2x32xbf16>, vector<32x128xbf16>, vector<2x128xf32> -> vector<2x128xf32>
    %79 = arith.addf %70, %78 : vector<2x128xf32>
    %80 = vector.broadcast %1 : vector<1x128xf32> to vector<2x128xf32>
    %81 = arith.addf %79, %80 : vector<2x128xf32>
    %cst_72 = arith.constant 0.000000e+00 : f32
    %82 = vector.broadcast %cst_72 : f32 to vector<2x128xf32>
    %83 = arith.maximumf %81, %82 : vector<2x128xf32>
    %84 = arith.truncf %83 : vector<2x128xf32> to vector<2x128xbf16>
    %c0_73 = arith.constant 0 : index
    %c1_74 = arith.constant 1 : index
    %c0_75 = arith.constant 0 : index
    %c0_76 = arith.constant 0 : index
    %85 = vector.load %arg6[%c0_73, %c1_74, %c0_75, %c0_76] : memref<1x2x2x128xbf16, #tpu.memory_space<vmem>>, vector<1x1x2x128xbf16>
    %86 = vector.shape_cast %85 : vector<1x1x2x128xbf16> to vector<2x128xbf16>
    %87 = vector.shape_cast %84 : vector<2x128xbf16> to vector<1x1x2x128xbf16>
    tpu.vector_store %arg6[%c0_73, %c1_74, %c0_75, %c0_76], %87 {strides = array<i32>} : memref<1x2x2x128xbf16, #tpu.memory_space<vmem>>, vector<1x1x2x128xbf16>,
    return
  }
  func.func @transform_0(%arg0: i32, %arg1: i32, %arg2: i32) -> (i32, i32, i32, i32) {
    %c0_i32 = arith.constant 0 : i32
    %c0_i32_0 = arith.constant 0 : i32
    %c0_i32_1 = arith.constant 0 : i32
    %c0_i32_2 = arith.constant 0 : i32
    return %arg0, %c0_i32, %c0_i32_0, %c0_i32_1 : i32, i32, i32, i32
  }
  func.func @transform_1(%arg0: i32, %arg1: i32, %arg2: i32) -> (i32, i32, i32) {
    %c0_i32 = arith.constant 0 : i32
    %c0_i32_0 = arith.constant 0 : i32
    %c0_i32_1 = arith.constant 0 : i32
    return %c0_i32, %c0_i32_0, %arg2 : i32, i32, i32
  }
  func.func @transform_2(%arg0: i32, %arg1: i32, %arg2: i32) -> (i32, i32) {
    %c0_i32 = arith.constant 0 : i32
    %c0_i32_0 = arith.constant 0 : i32
    return %c0_i32, %arg2 : i32, i32
  }
  func.func @transform_3(%arg0: i32, %arg1: i32, %arg2: i32) -> (i32, i32, i32, i32) {
    %c0_i32 = arith.constant 0 : i32
    %c0_i32_0 = arith.constant 0 : i32
    return %arg0, %arg1, %c0_i32, %arg2 : i32, i32, i32, i32
  }
}

module attributes {stable_mosaic.version = 11 : i64} {
  func.func @_conv_tap_kernel(%arg0: i32, %arg1: i32, %arg2: i32, %arg3: memref<1x2x2x64xbf16, #tpu.memory_space<vmem>>, %arg4: memref<4x64x128xbf16, #tpu.memory_space<vmem>>, %arg5: memref<1x128xf32, #tpu.memory_space<vmem>>, %arg6: memref<1x1x1x128xbf16, #tpu.memory_space<vmem>>) attributes {dimension_semantics = [#tpu.dimension_semantics<parallel>, #tpu.dimension_semantics<parallel>, #tpu.dimension_semantics<arbitrary>], iteration_bounds = array<i64: 2, 1, 1>, scalar_prefetch = 0 : i64, scratch_operands = 0 : i64, tpu.core_type = #tpu.core_type<tc>, window_params = [{transform_indices = @transform_0, window_bounds = array<i64: 1, 2, 2, 64>}, {transform_indices = @transform_1, window_bounds = array<i64: 4, 64, 128>}, {transform_indices = @transform_2, window_bounds = array<i64: 1, 128>}, {transform_indices = @transform_3, window_bounds = array<i64: 1, 1, 1, 128>}]} {
    %c1_i32 = arith.constant 1 : i32
    %0 = arith.muli %arg1, %c1_i32 : i32
    %c0 = arith.constant 0 : index
    %c0_0 = arith.constant 0 : index
    %1 = vector.load %arg5[%c0, %c0_0] : memref<1x128xf32, #tpu.memory_space<vmem>>, vector<1x128xf32>
    %c0_i32 = arith.constant 0 : i32
    %2 = arith.addi %0, %c0_i32 : i32
    %c0_i32_1 = arith.constant 0 : i32
    %3 = arith.addi %2, %c0_i32_1 : i32
    %c0_2 = arith.constant 0 : index
    %4 = arith.index_cast %3 : i32 to index
    %c0_3 = arith.constant 0 : index
    %c0_4 = arith.constant 0 : index
    %5 = vector.load %arg3[%c0_2, %4, %c0_3, %c0_4] : memref<1x2x2x64xbf16, #tpu.memory_space<vmem>>, vector<1x1x1x64xbf16>
    %6 = vector.shape_cast %5 : vector<1x1x1x64xbf16> to vector<1x64xbf16>
    %c0_5 = arith.constant 0 : index
    %c0_6 = arith.constant 0 : index
    %c0_7 = arith.constant 0 : index
    %7 = vector.load %arg4[%c0_5, %c0_6, %c0_7] : memref<4x64x128xbf16, #tpu.memory_space<vmem>>, vector<1x64x128xbf16>
    %8 = vector.shape_cast %7 : vector<1x64x128xbf16> to vector<64x128xbf16>
    %cst = arith.constant dense<0.000000e+00> : vector<1x128xf32>
    %9 = tpu.matmul %6, %8, %cst {dimension_numbers = #tpu.dot_dimension_numbers<[1], [0], [0], [1], [0, 0, 1, 1], [], []>} : vector<1x64xbf16>, vector<64x128xbf16>, vector<1x128xf32> -> vector<1x128xf32>
    %c0_i32_8 = arith.constant 0 : i32
    %10 = arith.addi %0, %c0_i32_8 : i32
    %c0_i32_9 = arith.constant 0 : i32
    %11 = arith.addi %10, %c0_i32_9 : i32
    %c0_10 = arith.constant 0 : index
    %12 = arith.index_cast %11 : i32 to index
    %c1 = arith.constant 1 : index
    %c0_11 = arith.constant 0 : index
    %13 = vector.load %arg3[%c0_10, %12, %c1, %c0_11] : memref<1x2x2x64xbf16, #tpu.memory_space<vmem>>, vector<1x1x1x64xbf16>
    %14 = vector.shape_cast %13 : vector<1x1x1x64xbf16> to vector<1x64xbf16>
    %c1_12 = arith.constant 1 : index
    %c0_13 = arith.constant 0 : index
    %c0_14 = arith.constant 0 : index
    %15 = vector.load %arg4[%c1_12, %c0_13, %c0_14] : memref<4x64x128xbf16, #tpu.memory_space<vmem>>, vector<1x64x128xbf16>
    %16 = vector.shape_cast %15 : vector<1x64x128xbf16> to vector<64x128xbf16>
    %cst_15 = arith.constant dense<0.000000e+00> : vector<1x128xf32>
    %17 = tpu.matmul %14, %16, %cst_15 {dimension_numbers = #tpu.dot_dimension_numbers<[1], [0], [0], [1], [0, 0, 1, 1], [], []>} : vector<1x64xbf16>, vector<64x128xbf16>, vector<1x128xf32> -> vector<1x128xf32>
    %18 = arith.addf %9, %17 : vector<1x128xf32>
    %c0_i32_16 = arith.constant 0 : i32
    %19 = arith.addi %0, %c0_i32_16 : i32
    %c1_i32_17 = arith.constant 1 : i32
    %20 = arith.addi %19, %c1_i32_17 : i32
    %c0_18 = arith.constant 0 : index
    %21 = arith.index_cast %20 : i32 to index
    %c0_19 = arith.constant 0 : index
    %c0_20 = arith.constant 0 : index
    %22 = vector.load %arg3[%c0_18, %21, %c0_19, %c0_20] : memref<1x2x2x64xbf16, #tpu.memory_space<vmem>>, vector<1x1x1x64xbf16>
    %23 = vector.shape_cast %22 : vector<1x1x1x64xbf16> to vector<1x64xbf16>
    %c2 = arith.constant 2 : index
    %c0_21 = arith.constant 0 : index
    %c0_22 = arith.constant 0 : index
    %24 = vector.load %arg4[%c2, %c0_21, %c0_22] : memref<4x64x128xbf16, #tpu.memory_space<vmem>>, vector<1x64x128xbf16>
    %25 = vector.shape_cast %24 : vector<1x64x128xbf16> to vector<64x128xbf16>
    %cst_23 = arith.constant dense<0.000000e+00> : vector<1x128xf32>
    %26 = tpu.matmul %23, %25, %cst_23 {dimension_numbers = #tpu.dot_dimension_numbers<[1], [0], [0], [1], [0, 0, 1, 1], [], []>} : vector<1x64xbf16>, vector<64x128xbf16>, vector<1x128xf32> -> vector<1x128xf32>
    %27 = arith.addf %18, %26 : vector<1x128xf32>
    %c0_i32_24 = arith.constant 0 : i32
    %28 = arith.addi %0, %c0_i32_24 : i32
    %c1_i32_25 = arith.constant 1 : i32
    %29 = arith.addi %28, %c1_i32_25 : i32
    %c0_26 = arith.constant 0 : index
    %30 = arith.index_cast %29 : i32 to index
    %c1_27 = arith.constant 1 : index
    %c0_28 = arith.constant 0 : index
    %31 = vector.load %arg3[%c0_26, %30, %c1_27, %c0_28] : memref<1x2x2x64xbf16, #tpu.memory_space<vmem>>, vector<1x1x1x64xbf16>
    %32 = vector.shape_cast %31 : vector<1x1x1x64xbf16> to vector<1x64xbf16>
    %c3 = arith.constant 3 : index
    %c0_29 = arith.constant 0 : index
    %c0_30 = arith.constant 0 : index
    %33 = vector.load %arg4[%c3, %c0_29, %c0_30] : memref<4x64x128xbf16, #tpu.memory_space<vmem>>, vector<1x64x128xbf16>
    %34 = vector.shape_cast %33 : vector<1x64x128xbf16> to vector<64x128xbf16>
    %cst_31 = arith.constant dense<0.000000e+00> : vector<1x128xf32>
    %35 = tpu.matmul %32, %34, %cst_31 {dimension_numbers = #tpu.dot_dimension_numbers<[1], [0], [0], [1], [0, 0, 1, 1], [], []>} : vector<1x64xbf16>, vector<64x128xbf16>, vector<1x128xf32> -> vector<1x128xf32>
    %36 = arith.addf %27, %35 : vector<1x128xf32>
    %37 = arith.addf %36, %1 : vector<1x128xf32>
    %cst_32 = arith.constant 0.000000e+00 : f32
    %38 = vector.broadcast %cst_32 : f32 to vector<1x128xf32>
    %39 = arith.maximumf %37, %38 : vector<1x128xf32>
    %40 = arith.truncf %39 : vector<1x128xf32> to vector<1x128xbf16>
    %c0_33 = arith.constant 0 : index
    %c0_34 = arith.constant 0 : index
    %c0_35 = arith.constant 0 : index
    %c0_36 = arith.constant 0 : index
    %41 = vector.load %arg6[%c0_33, %c0_34, %c0_35, %c0_36] : memref<1x1x1x128xbf16, #tpu.memory_space<vmem>>, vector<1x1x1x128xbf16>
    %42 = vector.shape_cast %41 : vector<1x1x1x128xbf16> to vector<1x128xbf16>
    %43 = vector.shape_cast %40 : vector<1x128xbf16> to vector<1x1x1x128xbf16>
    tpu.vector_store %arg6[%c0_33, %c0_34, %c0_35, %c0_36], %43 {strides = array<i32>} : memref<1x1x1x128xbf16, #tpu.memory_space<vmem>>, vector<1x1x1x128xbf16>,
    return
  }
  func.func @transform_0(%arg0: i32, %arg1: i32, %arg2: i32) -> (i32, i32, i32, i32) {
    %c0_i32 = arith.constant 0 : i32
    %c0_i32_0 = arith.constant 0 : i32
    %c0_i32_1 = arith.constant 0 : i32
    %c0_i32_2 = arith.constant 0 : i32
    return %arg0, %c0_i32, %c0_i32_0, %c0_i32_1 : i32, i32, i32, i32
  }
  func.func @transform_1(%arg0: i32, %arg1: i32, %arg2: i32) -> (i32, i32, i32) {
    %c0_i32 = arith.constant 0 : i32
    %c0_i32_0 = arith.constant 0 : i32
    %c0_i32_1 = arith.constant 0 : i32
    return %c0_i32, %c0_i32_0, %arg2 : i32, i32, i32
  }
  func.func @transform_2(%arg0: i32, %arg1: i32, %arg2: i32) -> (i32, i32) {
    %c0_i32 = arith.constant 0 : i32
    %c0_i32_0 = arith.constant 0 : i32
    return %c0_i32, %arg2 : i32, i32
  }
  func.func @transform_3(%arg0: i32, %arg1: i32, %arg2: i32) -> (i32, i32, i32, i32) {
    %c0_i32 = arith.constant 0 : i32
    %c0_i32_0 = arith.constant 0 : i32
    return %arg0, %arg1, %c0_i32, %arg2 : i32, i32, i32, i32
  }
}

module attributes {stable_mosaic.version = 11 : i64} {
  func.func @_conv_tap_kernel(%arg0: i32, %arg1: i32, %arg2: i32, %arg3: memref<1x3x3x32xbf16, #tpu.memory_space<vmem>>, %arg4: memref<9x32x128xbf16, #tpu.memory_space<vmem>>, %arg5: memref<1x128xf32, #tpu.memory_space<vmem>>, %arg6: memref<1x1x1x128xf32, #tpu.memory_space<vmem>>) attributes {dimension_semantics = [#tpu.dimension_semantics<parallel>, #tpu.dimension_semantics<parallel>, #tpu.dimension_semantics<arbitrary>], iteration_bounds = array<i64: 2, 1, 1>, scalar_prefetch = 0 : i64, scratch_operands = 0 : i64, tpu.core_type = #tpu.core_type<tc>, window_params = [{transform_indices = @transform_0, window_bounds = array<i64: 1, 3, 3, 32>}, {transform_indices = @transform_1, window_bounds = array<i64: 9, 32, 128>}, {transform_indices = @transform_2, window_bounds = array<i64: 1, 128>}, {transform_indices = @transform_3, window_bounds = array<i64: 1, 1, 1, 128>}]} {
    %c1_i32 = arith.constant 1 : i32
    %0 = arith.muli %arg1, %c1_i32 : i32
    %c0 = arith.constant 0 : index
    %c0_0 = arith.constant 0 : index
    %1 = vector.load %arg5[%c0, %c0_0] : memref<1x128xf32, #tpu.memory_space<vmem>>, vector<1x128xf32>
    %c0_i32 = arith.constant 0 : i32
    %2 = arith.addi %0, %c0_i32 : i32
    %c0_i32_1 = arith.constant 0 : i32
    %3 = arith.addi %2, %c0_i32_1 : i32
    %c0_2 = arith.constant 0 : index
    %4 = arith.index_cast %3 : i32 to index
    %c0_3 = arith.constant 0 : index
    %c0_4 = arith.constant 0 : index
    %5 = vector.load %arg3[%c0_2, %4, %c0_3, %c0_4] : memref<1x3x3x32xbf16, #tpu.memory_space<vmem>>, vector<1x1x1x32xbf16>
    %6 = vector.shape_cast %5 : vector<1x1x1x32xbf16> to vector<1x32xbf16>
    %c0_5 = arith.constant 0 : index
    %c0_6 = arith.constant 0 : index
    %c0_7 = arith.constant 0 : index
    %7 = vector.load %arg4[%c0_5, %c0_6, %c0_7] : memref<9x32x128xbf16, #tpu.memory_space<vmem>>, vector<1x32x128xbf16>
    %8 = vector.shape_cast %7 : vector<1x32x128xbf16> to vector<32x128xbf16>
    %cst = arith.constant dense<0.000000e+00> : vector<1x128xf32>
    %9 = tpu.matmul %6, %8, %cst {dimension_numbers = #tpu.dot_dimension_numbers<[1], [0], [0], [1], [0, 0, 1, 1], [], []>} : vector<1x32xbf16>, vector<32x128xbf16>, vector<1x128xf32> -> vector<1x128xf32>
    %c0_i32_8 = arith.constant 0 : i32
    %10 = arith.addi %0, %c0_i32_8 : i32
    %c0_i32_9 = arith.constant 0 : i32
    %11 = arith.addi %10, %c0_i32_9 : i32
    %c0_10 = arith.constant 0 : index
    %12 = arith.index_cast %11 : i32 to index
    %c1 = arith.constant 1 : index
    %c0_11 = arith.constant 0 : index
    %13 = vector.load %arg3[%c0_10, %12, %c1, %c0_11] : memref<1x3x3x32xbf16, #tpu.memory_space<vmem>>, vector<1x1x1x32xbf16>
    %14 = vector.shape_cast %13 : vector<1x1x1x32xbf16> to vector<1x32xbf16>
    %c1_12 = arith.constant 1 : index
    %c0_13 = arith.constant 0 : index
    %c0_14 = arith.constant 0 : index
    %15 = vector.load %arg4[%c1_12, %c0_13, %c0_14] : memref<9x32x128xbf16, #tpu.memory_space<vmem>>, vector<1x32x128xbf16>
    %16 = vector.shape_cast %15 : vector<1x32x128xbf16> to vector<32x128xbf16>
    %cst_15 = arith.constant dense<0.000000e+00> : vector<1x128xf32>
    %17 = tpu.matmul %14, %16, %cst_15 {dimension_numbers = #tpu.dot_dimension_numbers<[1], [0], [0], [1], [0, 0, 1, 1], [], []>} : vector<1x32xbf16>, vector<32x128xbf16>, vector<1x128xf32> -> vector<1x128xf32>
    %18 = arith.addf %9, %17 : vector<1x128xf32>
    %c0_i32_16 = arith.constant 0 : i32
    %19 = arith.addi %0, %c0_i32_16 : i32
    %c0_i32_17 = arith.constant 0 : i32
    %20 = arith.addi %19, %c0_i32_17 : i32
    %c0_18 = arith.constant 0 : index
    %21 = arith.index_cast %20 : i32 to index
    %c2 = arith.constant 2 : index
    %c0_19 = arith.constant 0 : index
    %22 = vector.load %arg3[%c0_18, %21, %c2, %c0_19] : memref<1x3x3x32xbf16, #tpu.memory_space<vmem>>, vector<1x1x1x32xbf16>
    %23 = vector.shape_cast %22 : vector<1x1x1x32xbf16> to vector<1x32xbf16>
    %c2_20 = arith.constant 2 : index
    %c0_21 = arith.constant 0 : index
    %c0_22 = arith.constant 0 : index
    %24 = vector.load %arg4[%c2_20, %c0_21, %c0_22] : memref<9x32x128xbf16, #tpu.memory_space<vmem>>, vector<1x32x128xbf16>
    %25 = vector.shape_cast %24 : vector<1x32x128xbf16> to vector<32x128xbf16>
    %cst_23 = arith.constant dense<0.000000e+00> : vector<1x128xf32>
    %26 = tpu.matmul %23, %25, %cst_23 {dimension_numbers = #tpu.dot_dimension_numbers<[1], [0], [0], [1], [0, 0, 1, 1], [], []>} : vector<1x32xbf16>, vector<32x128xbf16>, vector<1x128xf32> -> vector<1x128xf32>
    %27 = arith.addf %18, %26 : vector<1x128xf32>
    %c0_i32_24 = arith.constant 0 : i32
    %28 = arith.addi %0, %c0_i32_24 : i32
    %c1_i32_25 = arith.constant 1 : i32
    %29 = arith.addi %28, %c1_i32_25 : i32
    %c0_26 = arith.constant 0 : index
    %30 = arith.index_cast %29 : i32 to index
    %c0_27 = arith.constant 0 : index
    %c0_28 = arith.constant 0 : index
    %31 = vector.load %arg3[%c0_26, %30, %c0_27, %c0_28] : memref<1x3x3x32xbf16, #tpu.memory_space<vmem>>, vector<1x1x1x32xbf16>
    %32 = vector.shape_cast %31 : vector<1x1x1x32xbf16> to vector<1x32xbf16>
    %c3 = arith.constant 3 : index
    %c0_29 = arith.constant 0 : index
    %c0_30 = arith.constant 0 : index
    %33 = vector.load %arg4[%c3, %c0_29, %c0_30] : memref<9x32x128xbf16, #tpu.memory_space<vmem>>, vector<1x32x128xbf16>
    %34 = vector.shape_cast %33 : vector<1x32x128xbf16> to vector<32x128xbf16>
    %cst_31 = arith.constant dense<0.000000e+00> : vector<1x128xf32>
    %35 = tpu.matmul %32, %34, %cst_31 {dimension_numbers = #tpu.dot_dimension_numbers<[1], [0], [0], [1], [0, 0, 1, 1], [], []>} : vector<1x32xbf16>, vector<32x128xbf16>, vector<1x128xf32> -> vector<1x128xf32>
    %36 = arith.addf %27, %35 : vector<1x128xf32>
    %c0_i32_32 = arith.constant 0 : i32
    %37 = arith.addi %0, %c0_i32_32 : i32
    %c1_i32_33 = arith.constant 1 : i32
    %38 = arith.addi %37, %c1_i32_33 : i32
    %c0_34 = arith.constant 0 : index
    %39 = arith.index_cast %38 : i32 to index
    %c1_35 = arith.constant 1 : index
    %c0_36 = arith.constant 0 : index
    %40 = vector.load %arg3[%c0_34, %39, %c1_35, %c0_36] : memref<1x3x3x32xbf16, #tpu.memory_space<vmem>>, vector<1x1x1x32xbf16>
    %41 = vector.shape_cast %40 : vector<1x1x1x32xbf16> to vector<1x32xbf16>
    %c4 = arith.constant 4 : index
    %c0_37 = arith.constant 0 : index
    %c0_38 = arith.constant 0 : index
    %42 = vector.load %arg4[%c4, %c0_37, %c0_38] : memref<9x32x128xbf16, #tpu.memory_space<vmem>>, vector<1x32x128xbf16>
    %43 = vector.shape_cast %42 : vector<1x32x128xbf16> to vector<32x128xbf16>
    %cst_39 = arith.constant dense<0.000000e+00> : vector<1x128xf32>
    %44 = tpu.matmul %41, %43, %cst_39 {dimension_numbers = #tpu.dot_dimension_numbers<[1], [0], [0], [1], [0, 0, 1, 1], [], []>} : vector<1x32xbf16>, vector<32x128xbf16>, vector<1x128xf32> -> vector<1x128xf32>
    %45 = arith.addf %36, %44 : vector<1x128xf32>
    %c0_i32_40 = arith.constant 0 : i32
    %46 = arith.addi %0, %c0_i32_40 : i32
    %c1_i32_41 = arith.constant 1 : i32
    %47 = arith.addi %46, %c1_i32_41 : i32
    %c0_42 = arith.constant 0 : index
    %48 = arith.index_cast %47 : i32 to index
    %c2_43 = arith.constant 2 : index
    %c0_44 = arith.constant 0 : index
    %49 = vector.load %arg3[%c0_42, %48, %c2_43, %c0_44] : memref<1x3x3x32xbf16, #tpu.memory_space<vmem>>, vector<1x1x1x32xbf16>
    %50 = vector.shape_cast %49 : vector<1x1x1x32xbf16> to vector<1x32xbf16>
    %c5 = arith.constant 5 : index
    %c0_45 = arith.constant 0 : index
    %c0_46 = arith.constant 0 : index
    %51 = vector.load %arg4[%c5, %c0_45, %c0_46] : memref<9x32x128xbf16, #tpu.memory_space<vmem>>, vector<1x32x128xbf16>
    %52 = vector.shape_cast %51 : vector<1x32x128xbf16> to vector<32x128xbf16>
    %cst_47 = arith.constant dense<0.000000e+00> : vector<1x128xf32>
    %53 = tpu.matmul %50, %52, %cst_47 {dimension_numbers = #tpu.dot_dimension_numbers<[1], [0], [0], [1], [0, 0, 1, 1], [], []>} : vector<1x32xbf16>, vector<32x128xbf16>, vector<1x128xf32> -> vector<1x128xf32>
    %54 = arith.addf %45, %53 : vector<1x128xf32>
    %c0_i32_48 = arith.constant 0 : i32
    %55 = arith.addi %0, %c0_i32_48 : i32
    %c2_i32 = arith.constant 2 : i32
    %56 = arith.addi %55, %c2_i32 : i32
    %c0_49 = arith.constant 0 : index
    %57 = arith.index_cast %56 : i32 to index
    %c0_50 = arith.constant 0 : index
    %c0_51 = arith.constant 0 : index
    %58 = vector.load %arg3[%c0_49, %57, %c0_50, %c0_51] : memref<1x3x3x32xbf16, #tpu.memory_space<vmem>>, vector<1x1x1x32xbf16>
    %59 = vector.shape_cast %58 : vector<1x1x1x32xbf16> to vector<1x32xbf16>
    %c6 = arith.constant 6 : index
    %c0_52 = arith.constant 0 : index
    %c0_53 = arith.constant 0 : index
    %60 = vector.load %arg4[%c6, %c0_52, %c0_53] : memref<9x32x128xbf16, #tpu.memory_space<vmem>>, vector<1x32x128xbf16>
    %61 = vector.shape_cast %60 : vector<1x32x128xbf16> to vector<32x128xbf16>
    %cst_54 = arith.constant dense<0.000000e+00> : vector<1x128xf32>
    %62 = tpu.matmul %59, %61, %cst_54 {dimension_numbers = #tpu.dot_dimension_numbers<[1], [0], [0], [1], [0, 0, 1, 1], [], []>} : vector<1x32xbf16>, vector<32x128xbf16>, vector<1x128xf32> -> vector<1x128xf32>
    %63 = arith.addf %54, %62 : vector<1x128xf32>
    %c0_i32_55 = arith.constant 0 : i32
    %64 = arith.addi %0, %c0_i32_55 : i32
    %c2_i32_56 = arith.constant 2 : i32
    %65 = arith.addi %64, %c2_i32_56 : i32
    %c0_57 = arith.constant 0 : index
    %66 = arith.index_cast %65 : i32 to index
    %c1_58 = arith.constant 1 : index
    %c0_59 = arith.constant 0 : index
    %67 = vector.load %arg3[%c0_57, %66, %c1_58, %c0_59] : memref<1x3x3x32xbf16, #tpu.memory_space<vmem>>, vector<1x1x1x32xbf16>
    %68 = vector.shape_cast %67 : vector<1x1x1x32xbf16> to vector<1x32xbf16>
    %c7 = arith.constant 7 : index
    %c0_60 = arith.constant 0 : index
    %c0_61 = arith.constant 0 : index
    %69 = vector.load %arg4[%c7, %c0_60, %c0_61] : memref<9x32x128xbf16, #tpu.memory_space<vmem>>, vector<1x32x128xbf16>
    %70 = vector.shape_cast %69 : vector<1x32x128xbf16> to vector<32x128xbf16>
    %cst_62 = arith.constant dense<0.000000e+00> : vector<1x128xf32>
    %71 = tpu.matmul %68, %70, %cst_62 {dimension_numbers = #tpu.dot_dimension_numbers<[1], [0], [0], [1], [0, 0, 1, 1], [], []>} : vector<1x32xbf16>, vector<32x128xbf16>, vector<1x128xf32> -> vector<1x128xf32>
    %72 = arith.addf %63, %71 : vector<1x128xf32>
    %c0_i32_63 = arith.constant 0 : i32
    %73 = arith.addi %0, %c0_i32_63 : i32
    %c2_i32_64 = arith.constant 2 : i32
    %74 = arith.addi %73, %c2_i32_64 : i32
    %c0_65 = arith.constant 0 : index
    %75 = arith.index_cast %74 : i32 to index
    %c2_66 = arith.constant 2 : index
    %c0_67 = arith.constant 0 : index
    %76 = vector.load %arg3[%c0_65, %75, %c2_66, %c0_67] : memref<1x3x3x32xbf16, #tpu.memory_space<vmem>>, vector<1x1x1x32xbf16>
    %77 = vector.shape_cast %76 : vector<1x1x1x32xbf16> to vector<1x32xbf16>
    %c8 = arith.constant 8 : index
    %c0_68 = arith.constant 0 : index
    %c0_69 = arith.constant 0 : index
    %78 = vector.load %arg4[%c8, %c0_68, %c0_69] : memref<9x32x128xbf16, #tpu.memory_space<vmem>>, vector<1x32x128xbf16>
    %79 = vector.shape_cast %78 : vector<1x32x128xbf16> to vector<32x128xbf16>
    %cst_70 = arith.constant dense<0.000000e+00> : vector<1x128xf32>
    %80 = tpu.matmul %77, %79, %cst_70 {dimension_numbers = #tpu.dot_dimension_numbers<[1], [0], [0], [1], [0, 0, 1, 1], [], []>} : vector<1x32xbf16>, vector<32x128xbf16>, vector<1x128xf32> -> vector<1x128xf32>
    %81 = arith.addf %72, %80 : vector<1x128xf32>
    %82 = arith.addf %81, %1 : vector<1x128xf32>
    %c0_71 = arith.constant 0 : index
    %c0_72 = arith.constant 0 : index
    %c0_73 = arith.constant 0 : index
    %c0_74 = arith.constant 0 : index
    %83 = vector.load %arg6[%c0_71, %c0_72, %c0_73, %c0_74] : memref<1x1x1x128xf32, #tpu.memory_space<vmem>>, vector<1x1x1x128xf32>
    %84 = vector.shape_cast %83 : vector<1x1x1x128xf32> to vector<1x128xf32>
    %85 = vector.shape_cast %82 : vector<1x128xf32> to vector<1x1x1x128xf32>
    tpu.vector_store %arg6[%c0_71, %c0_72, %c0_73, %c0_74], %85 {strides = array<i32>} : memref<1x1x1x128xf32, #tpu.memory_space<vmem>>, vector<1x1x1x128xf32>,
    return
  }
  func.func @transform_0(%arg0: i32, %arg1: i32, %arg2: i32) -> (i32, i32, i32, i32) {
    %c0_i32 = arith.constant 0 : i32
    %c0_i32_0 = arith.constant 0 : i32
    %c0_i32_1 = arith.constant 0 : i32
    %c0_i32_2 = arith.constant 0 : i32
    return %arg0, %c0_i32, %c0_i32_0, %c0_i32_1 : i32, i32, i32, i32
  }
  func.func @transform_1(%arg0: i32, %arg1: i32, %arg2: i32) -> (i32, i32, i32) {
    %c0_i32 = arith.constant 0 : i32
    %c0_i32_0 = arith.constant 0 : i32
    %c0_i32_1 = arith.constant 0 : i32
    return %c0_i32, %c0_i32_0, %arg2 : i32, i32, i32
  }
  func.func @transform_2(%arg0: i32, %arg1: i32, %arg2: i32) -> (i32, i32) {
    %c0_i32 = arith.constant 0 : i32
    %c0_i32_0 = arith.constant 0 : i32
    return %c0_i32, %arg2 : i32, i32
  }
  func.func @transform_3(%arg0: i32, %arg1: i32, %arg2: i32) -> (i32, i32, i32, i32) {
    %c0_i32 = arith.constant 0 : i32
    %c0_i32_0 = arith.constant 0 : i32
    return %arg0, %arg1, %c0_i32, %arg2 : i32, i32, i32, i32
  }
}

</mosaic_0001>

<llo_original>
// kernel: _lambda_.6
$region0: #{_lambda_.6}
  #allocation0 [shape = 'u32[]', space=smem, size = 0x4, offset = 0x4, fixed_abs, tag = 'smem constant byte address 0x4 - core index']
  #allocation1 [shape = 'u32[144,128]{1,0:T(1,128)}', space=vmem, size = 0x12000, scoped, tag = 'internal scratch']
  %s0 = inlined_call_operand.vmem [shape: bf16[2,5,5,16], index: 0, kind: input, shape index: {}]
  %s1 = inlined_call_operand.vmem [shape: bf16[4,16,128], index: 1, kind: input, shape index: {}]
  %s2 = inlined_call_operand.vmem [shape: f32[1,128], index: 2, kind: input, shape index: {}]
  %s3 = inlined_call_operand.vmem [shape: bf16[2,4,4,128], index: 3, kind: output, shape index: {}]
  %s4 = sld [smem:[#allocation0]]
  $region45: #{_lambda_.6} parent=0
    _
  %s6 = ssub.s32 1, %s4
  %s7 = scalar_select 0, %s6, %s4
  loop: start=0, step=1, limit=4
  $region2: #{_lambda_.6} parent=0 // loop_pre_header
    _
  $region3: #{_lambda_.6} parent=0 // loop_header
    %s9 = sphi 0, %s13
    %p10 = scmp.ge.s32.totalorder %s9, 4
    %s16 = sphi 0, %s35
    %s17 = sphi 0, %s31
    %s18 = sphi 0, %s27
    %s19 = sphi 0, %s16
    %s20 = sphi 0, %s17
    %s21 = sphi 0, %s18
    %s22 = sphi 0, %s19
    %s23 = sphi 0, %s20
    %s24 = sphi 0, %s21
    %s38 = sphi 0, %s40
    %s41 = sphi 0, %s38
    %s42 = sphi 0, %s41
    %s58 = sphi 0, %s42
    %s64 = sphi 0, %s66
    %s67 = sphi 0, %s64
    %s68 = sphi 0, %s67
    %s84 = sphi 0, %s68
    %s90 = sphi 0, %s92
    %s93 = sphi 0, %s90
    %s94 = sphi 0, %s93
    %s110 = sphi 0, %s94
    %s120 = sphi 0, %s122
    %s123 = sphi 0, %s120
    %s124 = sphi 0, %s123
    %s140 = sphi 0, %s124
  $region4: #{_lambda_.6} parent=0 // loop_header_branch
    %12 = sbr.rel (%p10) target = $region8
  $region5: #{_lambda_.6} parent=0 // loop_body
    %s14 = ssub.s32 %s9, 1
    %s15 = ssub.s32 %s9, 2
    %s25 = sadd.s32 1, %s18
    %p26 = scmp.ge.s32.totalorder %s25, 1
    %s27 = scalar_select %p26, 0, %s25
    %s28 = sadd.s32 1, %s17
    %s29 = scalar_select %p26, %s28, %s17
    %p30 = scmp.ge.s32.totalorder %s29, 1
    %s31 = scalar_select %p30, 0, %s29
    %s32 = sadd.s32 1, %s16
    %s33 = scalar_select %p30, %s32, %s16
    %p34 = scmp.ge.s32.totalorder %s33, 2
    %s35 = scalar_select %p34, 0, %s33
    %s36 = ssub.s32 %s16, %s35
    %p37 = scmp.eq.s32.totalorder %s36, 0
    %s39 = sadd.s32 %s38, 1
    %s40 = scalar_select %p37, %s38, %s39
    %p43 = pneg %p37
    %p44 = scmp.eq.s32.totalorder %s9, 1
    %p45 = por %p43, %p44
    %p46 = scmp.ne.s32.totalorder %s38, %s41
    %p47 = scmp.eq.s32.totalorder %s9, 0
    %p48 = por %p46, %p47
    %p49 = scmp.ne.s32.totalorder %s38, %s41
    %p50 = scmp.eq.s32.totalorder %s14, 1
    %p51 = por %p49, %p50
    %p52 = scmp.ne.s32.totalorder %s41, %s42
    %p53 = scmp.eq.s32.totalorder %s14, 0
    %p54 = por %p52, %p53
    %p55 = scmp.ne.s32.totalorder %s41, %s42
    %p56 = scmp.eq.s32.totalorder %s15, 1
    %p57 = por %p55, %p56
    %p59 = scmp.ne.s32.totalorder %s42, %s58
    %p60 = scmp.eq.s32.totalorder %s15, 0
    %p61 = por %p59, %p60
    %s62 = ssub.s32 %s18, %s27
    %p63 = scmp.eq.s32.totalorder %s62, 0
    %s65 = sadd.s32 %s64, 1
    %s66 = scalar_select %p63, %s64, %s65
    %p69 = pneg %p63
    %p70 = scmp.eq.s32.totalorder %s9, 1
    %p71 = por %p69, %p70
    %p72 = scmp.ne.s32.totalorder %s64, %s67
    %p73 = scmp.eq.s32.totalorder %s9, 0
    %p74 = por %p72, %p73
    %p75 = scmp.ne.s32.totalorder %s64, %s67
    %p76 = scmp.eq.s32.totalorder %s14, 1
    %p77 = por %p75, %p76
    %p78 = scmp.ne.s32.totalorder %s67, %s68
    %p79 = scmp.eq.s32.totalorder %s14, 0
    %p80 = por %p78, %p79
    %p81 = scmp.ne.s32.totalorder %s67, %s68
    %p82 = scmp.eq.s32.totalorder %s15, 1
    %p83 = por %p81, %p82
    %p85 = scmp.ne.s32.totalorder %s68, %s84
    %p86 = scmp.eq.s32.totalorder %s15, 0
    %p87 = por %p85, %p86
    %s88 = ssub.s32 %s18, %s27
    %p89 = scmp.eq.s32.totalorder %s88, 0
    %s91 = sadd.s32 %s90, 1
    %s92 = scalar_select %p89, %s90, %s91
    %p95 = pneg %p89
    %p96 = scmp.eq.s32.totalorder %s9, 1
    %p97 = por %p95, %p96
    %p98 = scmp.ne.s32.totalorder %s90, %s93
    %p99 = scmp.eq.s32.totalorder %s9, 0
    %p100 = por %p98, %p99
    %p101 = scmp.ne.s32.totalorder %s90, %s93
    %p102 = scmp.eq.s32.totalorder %s14, 1
    %p103 = por %p101, %p102
    %p104 = scmp.ne.s32.totalorder %s93, %s94
    %p105 = scmp.eq.s32.totalorder %s14, 0
    %p106 = por %p104, %p105
    %p107 = scmp.ne.s32.totalorder %s93, %s94
    %p108 = scmp.eq.s32.totalorder %s15, 1
    %p109 = por %p107, %p108
    %p111 = scmp.ne.s32.totalorder %s94, %s110
    %p112 = scmp.eq.s32.totalorder %s15, 0
    %p113 = por %p111, %p112
    %s114 = ssub.s32 %s16, %s35
    %s115 = ssub.s32 %s17, %s31
    %s116 = sor.u32 %s114, %s115
    %s117 = ssub.s32 %s18, %s27
    %s118 = sor.u32 %s116, %s117
    %p119 = scmp.eq.s32.totalorder %s118, 0
    %s121 = sadd.s32 %s120, 1
    %s122 = scalar_select %p119, %s120, %s121
    %p125 = pneg %p119
    %p126 = scmp.eq.s32.totalorder %s9, 1
    %p127 = por %p125, %p126
    %p128 = scmp.ne.s32.totalorder %s120, %s123
    %p129 = scmp.eq.s32.totalorder %s9, 0
    %p130 = por %p128, %p129
    %p131 = scmp.ne.s32.totalorder %s120, %s123
    %p132 = scmp.eq.s32.totalorder %s14, 1
    %p133 = por %p131, %p132
    %p134 = scmp.ne.s32.totalorder %s123, %s124
    %p135 = scmp.eq.s32.totalorder %s14, 0
    %p136 = por %p134, %p135
    %p137 = scmp.ne.s32.totalorder %s123, %s124
    %p138 = scmp.eq.s32.totalorder %s15, 1
    %p139 = por %p137, %p138
    %p141 = scmp.ne.s32.totalorder %s124, %s140
    %p142 = scmp.eq.s32.totalorder %s15, 0
    %p143 = por %p141, %p142
    %p144 = scmp.le.s32.totalorder 1, %s9
    %p145 = scmp.lt.s32.totalorder %s9, 3
    %p146 = pnand %p144, %p145
    %p147 = pneg %p146
    // Predicated region
    $region9: #{_lambda_.6} parent=5 // pred_check
      _
    $region10: #{_lambda_.6} parent=5 // pred_check_branch
      %149 = sbr.rel (%p146) target = $region12
    $region11: #{_lambda_.6} parent=5 // pred_region
      %s150 = ssub.s32 %s9, 1
      // Predicated region
      $region13: #{_lambda_.6} parent=11 // pred_check
        %p151 = pneg %p80
      $region14: #{_lambda_.6} parent=11 // pred_check_branch
        %153 = sbr.rel (%p151) target = $region16
      $region15: #{_lambda_.6} parent=11 // pred_region
        %p154 = scmp.lt.s32.totalorder %s21, 0
        %s155 = scalar_select %p154, %s21, 0
        %s156 = smul.addr %s155, 4
        %s157 = scalar_lea.vmem %s1, %s156
      $region16: #{_lambda_.6} parent=11 // pred_fallthru
        _
      // Predicated region
      $region17: #{_lambda_.6} parent=11 // pred_check
        %p158 = pneg %p106
      $region18: #{_lambda_.6} parent=11 // pred_check_branch
        %160 = sbr.rel (%p158) target = $region20
      $region19: #{_lambda_.6} parent=11 // pred_region
        %p161 = scmp.lt.s32.totalorder %s21, 0
        %s162 = scalar_select %p161, %s21, 0
        %s163 = scalar_lea.vmem %s2, %s162
      $region20: #{_lambda_.6} parent=11 // pred_fallthru
        _
    $region12: #{_lambda_.6} parent=5 // pred_fallthru
      _
    %p164 = scmp.lt.s32.totalorder %s9, 2
    // Predicated region
    $region21: #{_lambda_.6} parent=5 // pred_check
      %p165 = pneg %p164
    $region22: #{_lambda_.6} parent=5 // pred_check_branch
      %167 = sbr.rel (%p165) target = $region24
    $region23: #{_lambda_.6} parent=5 // pred_region
      // Predicated region
      $region25: #{_lambda_.6} parent=23 // pred_check
        %p168 = pneg %p48
      $region26: #{_lambda_.6} parent=23 // pred_check_branch
        %170 = sbr.rel (%p168) target = $region28
      $region27: #{_lambda_.6} parent=23 // pred_region
        %p171 = scmp.lt.s32.totalorder %s16, 1
        %s172 = scalar_select %p171, %s16, 1
        %s173 = smul.addr %s172, 5
        %s174 = smul.addr %s173, 4
        %s175 = scalar_lea.vmem %s0, %s174
      $region28: #{_lambda_.6} parent=23 // pred_fallthru
        _
    $region24: #{_lambda_.6} parent=5 // pred_fallthru
      _
    %p176 = scmp.le.s32.totalorder 1, %s9
    %p177 = scmp.lt.s32.totalorder %s9, 3
    %p178 = pnand %p176, %p177
    %p179 = pneg %p178
    // Predicated region
    $region29: #{_lambda_.6} parent=5 // pred_check
      _
    $region30: #{_lambda_.6} parent=5 // pred_check_branch
      %181 = sbr.rel (%p178) target = $region32
    $region31: #{_lambda_.6} parent=5 // pred_region
      %s182 = ssub.s32 %s9, 1
      %p183 = scmp.lt.s32.totalorder %s19, 1
      %s184 = scalar_select %p183, %s19, 1
      %s185 = smul.addr %s184, 5
      %s186 = smul.addr %s185, 4
      %s187 = scalar_lea.vmem %s0, %s186
      %p188 = pneg %p54
      %p189 = pneg %p51
      %p190 = scmp.lt.s32.totalorder %s21, 0
      %s191 = scalar_select %p190, %s21, 0
      %s192 = smul.addr %s191, 4
      %s193 = scalar_lea.vmem %s1, %s192
      %p194 = pneg %p80
      %p195 = pneg %p77
      %p196 = scmp.lt.s32.totalorder %s21, 0
      %s197 = scalar_select %p196, %s21, 0
      %s198 = scalar_lea.vmem %s2, %s197
      %p199 = pneg %p106
      %p200 = pneg %p103
      %p201 = pneg %p136
      %p202 = pneg %p133
      %s203 = smul.u32 4, %s20
      %p204 = scmp.lt.s32.totalorder %s19, 1
      %s205 = scalar_select %p204, %s19, 1
      %p206 = scmp.lt.s32.totalorder %s203, 3
      %s207 = scalar_select %p206, %s203, 3
      %p208 = scmp.lt.s32.totalorder %s21, 0
      %s209 = scalar_select %p208, %s21, 0
      %s210 = sadd.s32 %s209, %s207
      %s211 = smul.addr %s205, 4
      %s212 = sadd.s32 %s210, %s211
      %s213 = smul.addr %s212, 2
      %s214 = scalar_lea.vmem %s3, %s213
      %p215 = scmp.lt.s32.totalorder %s19, 1
      %s216 = scalar_select %p215, %s19, 1
      %s217 = smul.addr %s216, 5
      %s218 = smul.addr %s217, 4
      %s219 = scalar_lea.vmem %s0, %s218
      %p220 = scmp.lt.s32.totalorder %s21, 0
      %s221 = scalar_select %p220, %s21, 0
      %s222 = smul.addr %s221, 4
      %s223 = scalar_lea.vmem %s1, %s222
      %p224 = scmp.lt.s32.totalorder %s21, 0
      %s225 = scalar_select %p224, %s21, 0
      %s226 = scalar_lea.vmem %s2, %s225
      %s227 = smul.u32 4, %s20
      %p228 = scmp.lt.s32.totalorder %s19, 1
      %s229 = scalar_select %p228, %s19, 1
      %p230 = scmp.lt.s32.totalorder %s227, 3
      %s231 = scalar_select %p230, %s227, 3
      %p232 = scmp.lt.s32.totalorder %s21, 0
      %s233 = scalar_select %p232, %s21, 0
      %s234 = sadd.s32 %s233, %s231
      %s235 = smul.addr %s229, 4
      %s236 = sadd.s32 %s234, %s235
      %s237 = smul.addr %s236, 2
      %s238 = scalar_lea.vmem %s3, %s237
      %s239 = smul.u32 4, %s20
      %s241 = smul.u32 %s20, 4
      %v242 = vld [vmem:[%s226] sm:$0x1]
      %s243 = smul.addr %s241, 4
      %s244 = scalar_lea.vmem %s219, %s243
      %v245 = vld [vmem:[%s244] sm:$0x3]
      %v246 = vld [vmem:[%s223] sm:$0xf]
      %v247 = vld [vmem:[%s223 + $0x4] sm:$0xf]
      %v248 = vld [vmem:[%s244] sm:$0x7]
      %s249 = scalar_lea.vmem %s223, 8
      %v250 = vld [vmem:[%s249] sm:$0xf]
      %v251 = vld [vmem:[%s249 + $0x4] sm:$0xf]
      %v253 = vunpack.c.l.b16 %v248
      %v254 = vpack.c.b16 %v253, %v253
      %v256 = vshrl.u32 %v254, 16
      %v258 = vshll.u32 %v254, 16
      %v260 = vrot.slane %v258, 1
      %v261 = vor.u32 %v256, %v260
      %v264 = vunpack.c.l.b16 %v250
      %v265 = vunpack.c.l.b16 %v251
      %v266 = vpack.c.b16 %v265, %v264
      %vm268 = vcmask 130048
      %v270 = vsel %vm268, %v261, 0
      %272 = vmatprep.subr.bf16.mxu0 0
      %273 = vmatpush1.bf16.msra.mxu0 %v266
      %274 = vmatprep.subr.bf16.mxu0 0
      %275 = vmatpush1.bf16.msra.mxu0 0
      %276 = vmatprep.subr.bf16.mxu0 0
      %277 = vmatpush1.bf16.msra.mxu0 0
      %278 = vmatprep.subr.bf16.mxu0 0
      %279 = vmatpush1.bf16.msra.mxu0 0
      %280 = vmatprep.subr.bf16.mxu0 0
      %281 = vmatpush1.bf16.msra.mxu0 0
      %282 = vmatprep.subr.bf16.mxu0 0
      %283 = vmatpush1.bf16.msra.mxu0 0
      %284 = vmatprep.subr.bf16.mxu0 0
      %285 = vmatpush1.bf16.msra.mxu0 0
      %286 = vmatprep.subr.bf16.mxu0 0
      %287 = vmatpush1.bf16.msra.mxu0 0
      %288 = vmatprep.subr.bf16.mxu0 0
      %289 = vmatpush1.bf16.msra.mxu0 0
      %290 = vmatprep.subr.bf16.mxu0 0
      %291 = vmatpush1.bf16.msra.mxu0 0
      %292 = vmatprep.subr.bf16.mxu0 0
      %293 = vmatpush1.bf16.msra.mxu0 0
      %294 = vmatprep.subr.bf16.mxu0 0
      %295 = vmatpush1.bf16.msra.mxu0 0
      %296 = vmatprep.subr.bf16.mxu0 0
      %297 = vmatpush1.bf16.msra.mxu0 0
      %298 = vmatprep.subr.bf16.mxu0 0
      %299 = vmatpush1.bf16.msra.mxu0 0
      %300 = vmatprep.subr.bf16.mxu0 0
      %301 = vmatpush1.bf16.msra.mxu0 0
      %302 = vmatprep.subr.bf16.mxu0 0
      %303 = vmatpush1.bf16.msra.mxu0 0
      %304 = vmatprep.mubr.bf16.mxu0 0
      %305 = vmatmul.mubr.bf16.gmra.mrb[0].mxu0 %v270
      %v306 = vpop.f32.mrb[0].mxu0
      %v307 = vadd.f32 0.0, %v306
      %v308 = vpop.f32.mrb[0].mxu0
      %v309 = vpop.f32.mrb[0].mxu0
      %v310 = vpop.f32.mrb[0].mxu0
      %311 = vdwg.mxu0
      %v314 = vunpack.c.l.b16 %v246
      %v315 = vunpack.c.l.b16 %v247
      %v316 = vpack.c.b16 %v315, %v314
      %v319 = vsel %vm268, %v245, 0
      %321 = vmatprep.subr.bf16.mxu0 0
      %322 = vmatpush1.bf16.msra.mxu0 %v316
      %323 = vmatprep.subr.bf16.mxu0 0
      %324 = vmatpush1.bf16.msra.mxu0 0
      %325 = vmatprep.subr.bf16.mxu0 0
      %326 = vmatpush1.bf16.msra.mxu0 0
      %327 = vmatprep.subr.bf16.mxu0 0
      %328 = vmatpush1.bf16.msra.mxu0 0
      %329 = vmatprep.subr.bf16.mxu0 0
      %330 = vmatpush1.bf16.msra.mxu0 0
      %331 = vmatprep.subr.bf16.mxu0 0
      %332 = vmatpush1.bf16.msra.mxu0 0
      %333 = vmatprep.subr.bf16.mxu0 0
      %334 = vmatpush1.bf16.msra.mxu0 0
      %335 = vmatprep.subr.bf16.mxu0 0
      %336 = vmatpush1.bf16.msra.mxu0 0
      %337 = vmatprep.subr.bf16.mxu0 0
      %338 = vmatpush1.bf16.msra.mxu0 0
      %339 = vmatprep.subr.bf16.mxu0 0
      %340 = vmatpush1.bf16.msra.mxu0 0
      %341 = vmatprep.subr.bf16.mxu0 0
      %342 = vmatpush1.bf16.msra.mxu0 0
      %343 = vmatprep.subr.bf16.mxu0 0
      %344 = vmatpush1.bf16.msra.mxu0 0
      %345 = vmatprep.subr.bf16.mxu0 0
      %346 = vmatpush1.bf16.msra.mxu0 0
      %347 = vmatprep.subr.bf16.mxu0 0
      %348 = vmatpush1.bf16.msra.mxu0 0
      %349 = vmatprep.subr.bf16.mxu0 0
      %350 = vmatpush1.bf16.msra.mxu0 0
      %351 = vmatprep.subr.bf16.mxu0 0
      %352 = vmatpush1.bf16.msra.mxu0 0
      %353 = vmatprep.mubr.bf16.mxu0 0
      %354 = vmatmul.mubr.bf16.gmra.mrb[0].mxu0 %v319
      %v355 = vpop.f32.mrb[0].mxu0
      %v356 = vadd.f32 %v307, %v355
      %v357 = vpop.f32.mrb[0].mxu0
      %v358 = vpop.f32.mrb[0].mxu0
      %v359 = vpop.f32.mrb[0].mxu0
      %360 = vdwg.mxu0
      %s361 = sadd.s32 %s241, 1
      %s362 = smul.addr %s361, 4
      %s363 = scalar_lea.vmem %s219, %s362
      %v364 = vld [vmem:[%s363] sm:$0x3]
      %s365 = scalar_lea.vmem %s223, 16
      %v366 = vld [vmem:[%s365] sm:$0xf]
      %v367 = vld [vmem:[%s365 + $0x4] sm:$0xf]
      %v370 = vunpack.c.l.b16 %v366
      %v371 = vunpack.c.l.b16 %v367
      %v372 = vpack.c.b16 %v371, %v370
      %v375 = vsel %vm268, %v364, 0
      %377 = vmatprep.subr.bf16.mxu0 0
      %378 = vmatpush1.bf16.msra.mxu0 %v372
      %379 = vmatprep.subr.bf16.mxu0 0
      %380 = vmatpush1.bf16.msra.mxu0 0
      %381 = vmatprep.subr.bf16.mxu0 0
      %382 = vmatpush1.bf16.msra.mxu0 0
      %383 = vmatprep.subr.bf16.mxu0 0
      %384 = vmatpush1.bf16.msra.mxu0 0
      %385 = vmatprep.subr.bf16.mxu0 0
      %386 = vmatpush1.bf16.msra.mxu0 0
      %387 = vmatprep.subr.bf16.mxu0 0
      %388 = vmatpush1.bf16.msra.mxu0 0
      %389 = vmatprep.subr.bf16.mxu0 0
      %390 = vmatpush1.bf16.msra.mxu0 0
      %391 = vmatprep.subr.bf16.mxu0 0
      %392 = vmatpush1.bf16.msra.mxu0 0
      %393 = vmatprep.subr.bf16.mxu0 0
      %394 = vmatpush1.bf16.msra.mxu0 0
      %395 = vmatprep.subr.bf16.mxu0 0
      %396 = vmatpush1.bf16.msra.mxu0 0
      %397 = vmatprep.subr.bf16.mxu0 0
      %398 = vmatpush1.bf16.msra.mxu0 0
      %399 = vmatprep.subr.bf16.mxu0 0
      %400 = vmatpush1.bf16.msra.mxu0 0
      %401 = vmatprep.subr.bf16.mxu0 0
      %402 = vmatpush1.bf16.msra.mxu0 0
      %403 = vmatprep.subr.bf16.mxu0 0
      %404 = vmatpush1.bf16.msra.mxu0 0
      %405 = vmatprep.subr.bf16.mxu0 0
      %406 = vmatpush1.bf16.msra.mxu0 0
      %407 = vmatprep.subr.bf16.mxu0 0
      %408 = vmatpush1.bf16.msra.mxu0 0
      %409 = vmatprep.mubr.bf16.mxu0 0
      %410 = vmatmul.mubr.bf16.gmra.mrb[0].mxu0 %v375
      %v411 = vpop.f32.mrb[0].mxu0
      %v412 = vadd.f32 0.0, %v411
      %v413 = vpop.f32.mrb[0].mxu0
      %v414 = vpop.f32.mrb[0].mxu0
      %v415 = vpop.f32.mrb[0].mxu0
      %416 = vdwg.mxu0
      %v417 = vadd.f32 %v356, %v412
      %v418 = vld [vmem:[%s363] sm:$0x7]
      %s419 = scalar_lea.vmem %s223, 24
      %v420 = vld [vmem:[%s419] sm:$0xf]
      %v421 = vld [vmem:[%s419 + $0x4] sm:$0xf]
      %v423 = vunpack.c.l.b16 %v418
      %v424 = vpack.c.b16 %v423, %v423
      %v426 = vshrl.u32 %v424, 16
      %v428 = vshll.u32 %v424, 16
      %v430 = vrot.slane %v428, 1
      %v431 = vor.u32 %v426, %v430
      %v434 = vunpack.c.l.b16 %v420
      %v435 = vunpack.c.l.b16 %v421
      %v436 = vpack.c.b16 %v435, %v434
      %v439 = vsel %vm268, %v431, 0
      %441 = vmatprep.subr.bf16.mxu0 0
      %442 = vmatpush1.bf16.msra.mxu0 %v436
      %443 = vmatprep.subr.bf16.mxu0 0
      %444 = vmatpush1.bf16.msra.mxu0 0
      %445 = vmatprep.subr.bf16.mxu0 0
      %446 = vmatpush1.bf16.msra.mxu0 0
      %447 = vmatprep.subr.bf16.mxu0 0
      %448 = vmatpush1.bf16.msra.mxu0 0
      %449 = vmatprep.subr.bf16.mxu0 0
      %450 = vmatpush1.bf16.msra.mxu0 0
      %451 = vmatprep.subr.bf16.mxu0 0
      %452 = vmatpush1.bf16.msra.mxu0 0
      %453 = vmatprep.subr.bf16.mxu0 0
      %454 = vmatpush1.bf16.msra.mxu0 0
      %455 = vmatprep.subr.bf16.mxu0 0
      %456 = vmatpush1.bf16.msra.mxu0 0
      %457 = vmatprep.subr.bf16.mxu0 0
      %458 = vmatpush1.bf16.msra.mxu0 0
      %459 = vmatprep.subr.bf16.mxu0 0
      %460 = vmatpush1.bf16.msra.mxu0 0
      %461 = vmatprep.subr.bf16.mxu0 0
      %462 = vmatpush1.bf16.msra.mxu0 0
      %463 = vmatprep.subr.bf16.mxu0 0
      %464 = vmatpush1.bf16.msra.mxu0 0
      %465 = vmatprep.subr.bf16.mxu0 0
      %466 = vmatpush1.bf16.msra.mxu0 0
      %467 = vmatprep.subr.bf16.mxu0 0
      %468 = vmatpush1.bf16.msra.mxu0 0
      %469 = vmatprep.subr.bf16.mxu0 0
      %470 = vmatpush1.bf16.msra.mxu0 0
      %471 = vmatprep.subr.bf16.mxu0 0
      %472 = vmatpush1.bf16.msra.mxu0 0
      %473 = vmatprep.mubr.bf16.mxu0 0
      %474 = vmatmul.mubr.bf16.gmra.mrb[0].mxu0 %v439
      %v475 = vpop.f32.mrb[0].mxu0
      %v476 = vadd.f32 0.0, %v475
      %v477 = vpop.f32.mrb[0].mxu0
      %v478 = vpop.f32.mrb[0].mxu0
      %v479 = vpop.f32.mrb[0].mxu0
      %480 = vdwg.mxu0
      %v481 = vadd.f32 %v417, %v476
      %v483 = vlaneseq
      %v484 = vshrl.u32 %v483, 7
      %v485 = vsub.s32 0, %v484
      %v486 = vrot.slane %v242, %v485
      %v488 = vadd.f32 %v481, %v486
      %v489 = vmax.f32 %v488, 0.0
      %v490 = vpack.c.bf16 %v489, %v489
      %491 = vst [vmem:[%s238] sm:$0x3] %v490
      %v492 = vld [vmem:[%s363] sm:$0x3]
      %v493 = vld [vmem:[%s223] sm:$0xf]
      %v494 = vld [vmem:[%s223 + $0x4] sm:$0xf]
      %v495 = vld [vmem:[%s363] sm:$0x7]
      %v496 = vld [vmem:[%s249] sm:$0xf]
      %v497 = vld [vmem:[%s249 + $0x4] sm:$0xf]
      %v499 = vunpack.c.l.b16 %v495
      %v500 = vpack.c.b16 %v499, %v499
      %v502 = vshrl.u32 %v500, 16
      %v504 = vshll.u32 %v500, 16
      %v506 = vrot.slane %v504, 1
      %v507 = vor.u32 %v502, %v506
      %v510 = vunpack.c.l.b16 %v496
      %v511 = vunpack.c.l.b16 %v497
      %v512 = vpack.c.b16 %v511, %v510
      %v515 = vsel %vm268, %v507, 0
      %517 = vmatprep.subr.bf16.mxu0 0
      %518 = vmatpush1.bf16.msra.mxu0 %v512
      %519 = vmatprep.subr.bf16.mxu0 0
      %520 = vmatpush1.bf16.msra.mxu0 0
      %521 = vmatprep.subr.bf16.mxu0 0
      %522 = vmatpush1.bf16.msra.mxu0 0
      %523 = vmatprep.subr.bf16.mxu0 0
      %524 = vmatpush1.bf16.msra.mxu0 0
      %525 = vmatprep.subr.bf16.mxu0 0
      %526 = vmatpush1.bf16.msra.mxu0 0
      %527 = vmatprep.subr.bf16.mxu0 0
      %528 = vmatpush1.bf16.msra.mxu0 0
      %529 = vmatprep.subr.bf16.mxu0 0
      %530 = vmatpush1.bf16.msra.mxu0 0
      %531 = vmatprep.subr.bf16.mxu0 0
      %532 = vmatpush1.bf16.msra.mxu0 0
      %533 = vmatprep.subr.bf16.mxu0 0
      %534 = vmatpush1.bf16.msra.mxu0 0
      %535 = vmatprep.subr.bf16.mxu0 0
      %536 = vmatpush1.bf16.msra.mxu0 0
      %537 = vmatprep.subr.bf16.mxu0 0
      %538 = vmatpush1.bf16.msra.mxu0 0
      %539 = vmatprep.subr.bf16.mxu0 0
      %540 = vmatpush1.bf16.msra.mxu0 0
      %541 = vmatprep.subr.bf16.mxu0 0
      %542 = vmatpush1.bf16.msra.mxu0 0
      %543 = vmatprep.subr.bf16.mxu0 0
      %544 = vmatpush1.bf16.msra.mxu0 0
      %545 = vmatprep.subr.bf16.mxu0 0
      %546 = vmatpush1.bf16.msra.mxu0 0
      %547 = vmatprep.subr.bf16.mxu0 0
      %548 = vmatpush1.bf16.msra.mxu0 0
      %549 = vmatprep.mubr.bf16.mxu0 0
      %550 = vmatmul.mubr.bf16.gmra.mrb[0].mxu0 %v515
      %v551 = vpop.f32.mrb[0].mxu0
      %v552 = vadd.f32 0.0, %v551
      %v553 = vpop.f32.mrb[0].mxu0
      %v554 = vpop.f32.mrb[0].mxu0
      %v555 = vpop.f32.mrb[0].mxu0
      %556 = vdwg.mxu0
      %v559 = vunpack.c.l.b16 %v493
      %v560 = vunpack.c.l.b16 %v494
      %v561 = vpack.c.b16 %v560, %v559
      %v564 = vsel %vm268, %v492, 0
      %566 = vmatprep.subr.bf16.mxu0 0
      %567 = vmatpush1.bf16.msra.mxu0 %v561
      %568 = vmatprep.subr.bf16.mxu0 0
      %569 = vmatpush1.bf16.msra.mxu0 0
      %570 = vmatprep.subr.bf16.mxu0 0
      %571 = vmatpush1.bf16.msra.mxu0 0
      %572 = vmatprep.subr.bf16.mxu0 0
      %573 = vmatpush1.bf16.msra.mxu0 0
      %574 = vmatprep.subr.bf16.mxu0 0
      %575 = vmatpush1.bf16.msra.mxu0 0
      %576 = vmatprep.subr.bf16.mxu0 0
      %577 = vmatpush1.bf16.msra.mxu0 0
      %578 = vmatprep.subr.bf16.mxu0 0
      %579 = vmatpush1.bf16.msra.mxu0 0
      %580 = vmatprep.subr.bf16.mxu0 0
      %581 = vmatpush1.bf16.msra.mxu0 0
      %582 = vmatprep.subr.bf16.mxu0 0
      %583 = vmatpush1.bf16.msra.mxu0 0
      %584 = vmatprep.subr.bf16.mxu0 0
      %585 = vmatpush1.bf16.msra.mxu0 0
      %586 = vmatprep.subr.bf16.mxu0 0
      %587 = vmatpush1.bf16.msra.mxu0 0
      %588 = vmatprep.subr.bf16.mxu0 0
      %589 = vmatpush1.bf16.msra.mxu0 0
      %590 = vmatprep.subr.bf16.mxu0 0
      %591 = vmatpush1.bf16.msra.mxu0 0
      %592 = vmatprep.subr.bf16.mxu0 0
      %593 = vmatpush1.bf16.msra.mxu0 0
      %594 = vmatprep.subr.bf16.mxu0 0
      %595 = vmatpush1.bf16.msra.mxu0 0
      %596 = vmatprep.subr.bf16.mxu0 0
      %597 = vmatpush1.bf16.msra.mxu0 0
      %598 = vmatprep.mubr.bf16.mxu0 0
      %599 = vmatmul.mubr.bf16.gmra.mrb[0].mxu0 %v564
      %v600 = vpop.f32.mrb[0].mxu0
      %v601 = vadd.f32 %v552, %v600
      %v602 = vpop.f32.mrb[0].mxu0
      %v603 = vpop.f32.mrb[0].mxu0
      %v604 = vpop.f32.mrb[0].mxu0
      %605 = vdwg.mxu0
      %s606 = sadd.s32 %s241, 2
      %s607 = smul.addr %s606, 4
      %s608 = scalar_lea.vmem %s219, %s607
      %v609 = vld [vmem:[%s608] sm:$0x3]
      %v610 = vld [vmem:[%s365] sm:$0xf]
      %v611 = vld [vmem:[%s365 + $0x4] sm:$0xf]
      %v614 = vunpack.c.l.b16 %v610
      %v615 = vunpack.c.l.b16 %v611
      %v616 = vpack.c.b16 %v615, %v614
      %v619 = vsel %vm268, %v609, 0
      %621 = vmatprep.subr.bf16.mxu0 0
      %622 = vmatpush1.bf16.msra.mxu0 %v616
      %623 = vmatprep.subr.bf16.mxu0 0
      %624 = vmatpush1.bf16.msra.mxu0 0
      %625 = vmatprep.subr.bf16.mxu0 0
      %626 = vmatpush1.bf16.msra.mxu0 0
      %627 = vmatprep.subr.bf16.mxu0 0
      %628 = vmatpush1.bf16.msra.mxu0 0
      %629 = vmatprep.subr.bf16.mxu0 0
      %630 = vmatpush1.bf16.msra.mxu0 0
      %631 = vmatprep.subr.bf16.mxu0 0
      %632 = vmatpush1.bf16.msra.mxu0 0
      %633 = vmatprep.subr.bf16.mxu0 0
      %634 = vmatpush1.bf16.msra.mxu0 0
      %635 = vmatprep.subr.bf16.mxu0 0
      %636 = vmatpush1.bf16.msra.mxu0 0
      %637 = vmatprep.subr.bf16.mxu0 0
      %638 = vmatpush1.bf16.msra.mxu0 0
      %639 = vmatprep.subr.bf16.mxu0 0
      %640 = vmatpush1.bf16.msra.mxu0 0
      %641 = vmatprep.subr.bf16.mxu0 0
      %642 = vmatpush1.bf16.msra.mxu0 0
      %643 = vmatprep.subr.bf16.mxu0 0
      %644 = vmatpush1.bf16.msra.mxu0 0
      %645 = vmatprep.subr.bf16.mxu0 0
      %646 = vmatpush1.bf16.msra.mxu0 0
      %647 = vmatprep.subr.bf16.mxu0 0
      %648 = vmatpush1.bf16.msra.mxu0 0
      %649 = vmatprep.subr.bf16.mxu0 0
      %650 = vmatpush1.bf16.msra.mxu0 0
      %651 = vmatprep.subr.bf16.mxu0 0
      %652 = vmatpush1.bf16.msra.mxu0 0
      %653 = vmatprep.mubr.bf16.mxu0 0
      %654 = vmatmul.mubr.bf16.gmra.mrb[0].mxu0 %v619
      %v655 = vpop.f32.mrb[0].mxu0
      %v656 = vadd.f32 0.0, %v655
      %v657 = vpop.f32.mrb[0].mxu0
      %v658 = vpop.f32.mrb[0].mxu0
      %v659 = vpop.f32.mrb[0].mxu0
      %660 = vdwg.mxu0
      %v661 = vadd.f32 %v601, %v656
      %v662 = vld [vmem:[%s608] sm:$0x7]
      %v663 = vld [vmem:[%s419] sm:$0xf]
      %v664 = vld [vmem:[%s419 + $0x4] sm:$0xf]
      %v666 = vunpack.c.l.b16 %v662
      %v667 = vpack.c.b16 %v666, %v666
      %v669 = vshrl.u32 %v667, 16
      %v671 = vshll.u32 %v667, 16
      %v673 = vrot.slane %v671, 1
      %v674 = vor.u32 %v669, %v673
      %v677 = vunpack.c.l.b16 %v663
      %v678 = vunpack.c.l.b16 %v664
      %v679 = vpack.c.b16 %v678, %v677
      %v682 = vsel %vm268, %v674, 0
      %684 = vmatprep.subr.bf16.mxu0 0
      %685 = vmatpush1.bf16.msra.mxu0 %v679
      %686 = vmatprep.subr.bf16.mxu0 0
      %687 = vmatpush1.bf16.msra.mxu0 0
      %688 = vmatprep.subr.bf16.mxu0 0
      %689 = vmatpush1.bf16.msra.mxu0 0
      %690 = vmatprep.subr.bf16.mxu0 0
      %691 = vmatpush1.bf16.msra.mxu0 0
      %692 = vmatprep.subr.bf16.mxu0 0
      %693 = vmatpush1.bf16.msra.mxu0 0
      %694 = vmatprep.subr.bf16.mxu0 0
      %695 = vmatpush1.bf16.msra.mxu0 0
      %696 = vmatprep.subr.bf16.mxu0 0
      %697 = vmatpush1.bf16.msra.mxu0 0
      %698 = vmatprep.subr.bf16.mxu0 0
      %699 = vmatpush1.bf16.msra.mxu0 0
      %700 = vmatprep.subr.bf16.mxu0 0
      %701 = vmatpush1.bf16.msra.mxu0 0
      %702 = vmatprep.subr.bf16.mxu0 0
      %703 = vmatpush1.bf16.msra.mxu0 0
      %704 = vmatprep.subr.bf16.mxu0 0
      %705 = vmatpush1.bf16.msra.mxu0 0
      %706 = vmatprep.subr.bf16.mxu0 0
      %707 = vmatpush1.bf16.msra.mxu0 0
      %708 = vmatprep.subr.bf16.mxu0 0
      %709 = vmatpush1.bf16.msra.mxu0 0
      %710 = vmatprep.subr.bf16.mxu0 0
      %711 = vmatpush1.bf16.msra.mxu0 0
      %712 = vmatprep.subr.bf16.mxu0 0
      %713 = vmatpush1.bf16.msra.mxu0 0
      %714 = vmatprep.subr.bf16.mxu0 0
      %715 = vmatpush1.bf16.msra.mxu0 0
      %716 = vmatprep.mubr.bf16.mxu0 0
      %717 = vmatmul.mubr.bf16.gmra.mrb[0].mxu0 %v682
      %v718 = vpop.f32.mrb[0].mxu0
      %v719 = vadd.f32 0.0, %v718
      %v720 = vpop.f32.mrb[0].mxu0
      %v721 = vpop.f32.mrb[0].mxu0
      %v722 = vpop.f32.mrb[0].mxu0
      %723 = vdwg.mxu0
      %v724 = vadd.f32 %v661, %v719
      %v725 = vadd.f32 %v724, %v486
      %v726 = vmax.f32 %v725, 0.0
      %v727 = vpack.c.bf16 %v726, %v726
      %s728 = scalar_lea.vmem %s238, 2
      %729 = vst [vmem:[%s728] sm:$0x3] %v727
      %v730 = vld [vmem:[%s608] sm:$0x3]
      %v731 = vld [vmem:[%s223] sm:$0xf]
      %v732 = vld [vmem:[%s223 + $0x4] sm:$0xf]
      %v733 = vld [vmem:[%s608] sm:$0x7]
      %v734 = vld [vmem:[%s249] sm:$0xf]
      %v735 = vld [vmem:[%s249 + $0x4] sm:$0xf]
      %v737 = vunpack.c.l.b16 %v733
      %v738 = vpack.c.b16 %v737, %v737
      %v740 = vshrl.u32 %v738, 16
      %v742 = vshll.u32 %v738, 16
      %v744 = vrot.slane %v742, 1
      %v745 = vor.u32 %v740, %v744
      %v748 = vunpack.c.l.b16 %v734
      %v749 = vunpack.c.l.b16 %v735
      %v750 = vpack.c.b16 %v749, %v748
      %v753 = vsel %vm268, %v745, 0
      %755 = vmatprep.subr.bf16.mxu0 0
      %756 = vmatpush1.bf16.msra.mxu0 %v750
      %757 = vmatprep.subr.bf16.mxu0 0
      %758 = vmatpush1.bf16.msra.mxu0 0
      %759 = vmatprep.subr.bf16.mxu0 0
      %760 = vmatpush1.bf16.msra.mxu0 0
      %761 = vmatprep.subr.bf16.mxu0 0
      %762 = vmatpush1.bf16.msra.mxu0 0
      %763 = vmatprep.subr.bf16.mxu0 0
      %764 = vmatpush1.bf16.msra.mxu0 0
      %765 = vmatprep.subr.bf16.mxu0 0
      %766 = vmatpush1.bf16.msra.mxu0 0
      %767 = vmatprep.subr.bf16.mxu0 0
      %768 = vmatpush1.bf16.msra.mxu0 0
      %769 = vmatprep.subr.bf16.mxu0 0
      %770 = vmatpush1.bf16.msra.mxu0 0
      %771 = vmatprep.subr.bf16.mxu0 0
      %772 = vmatpush1.bf16.msra.mxu0 0
      %773 = vmatprep.subr.bf16.mxu0 0
      %774 = vmatpush1.bf16.msra.mxu0 0
      %775 = vmatprep.subr.bf16.mxu0 0
      %776 = vmatpush1.bf16.msra.mxu0 0
      %777 = vmatprep.subr.bf16.mxu0 0
      %778 = vmatpush1.bf16.msra.mxu0 0
      %779 = vmatprep.subr.bf16.mxu0 0
      %780 = vmatpush1.bf16.msra.mxu0 0
      %781 = vmatprep.subr.bf16.mxu0 0
      %782 = vmatpush1.bf16.msra.mxu0 0
      %783 = vmatprep.subr.bf16.mxu0 0
      %784 = vmatpush1.bf16.msra.mxu0 0
      %785 = vmatprep.subr.bf16.mxu0 0
      %786 = vmatpush1.bf16.msra.mxu0 0
      %787 = vmatprep.mubr.bf16.mxu0 0
      %788 = vmatmul.mubr.bf16.gmra.mrb[0].mxu0 %v753
      %v789 = vpop.f32.mrb[0].mxu0
      %v790 = vadd.f32 0.0, %v789
      %v791 = vpop.f32.mrb[0].mxu0
      %v792 = vpop.f32.mrb[0].mxu0
      %v793 = vpop.f32.mrb[0].mxu0
      %794 = vdwg.mxu0
      %v797 = vunpack.c.l.b16 %v731
      %v798 = vunpack.c.l.b16 %v732
      %v799 = vpack.c.b16 %v798, %v797
      %v802 = vsel %vm268, %v730, 0
      %804 = vmatprep.subr.bf16.mxu0 0
      %805 = vmatpush1.bf16.msra.mxu0 %v799
      %806 = vmatprep.subr.bf16.mxu0 0
      %807 = vmatpush1.bf16.msra.mxu0 0
      %808 = vmatprep.subr.bf16.mxu0 0
      %809 = vmatpush1.bf16.msra.mxu0 0
      %810 = vmatprep.subr.bf16.mxu0 0
      %811 = vmatpush1.bf16.msra.mxu0 0
      %812 = vmatprep.subr.bf16.mxu0 0
      %813 = vmatpush1.bf16.msra.mxu0 0
      %814 = vmatprep.subr.bf16.mxu0 0
      %815 = vmatpush1.bf16.msra.mxu0 0
      %816 = vmatprep.subr.bf16.mxu0 0
      %817 = vmatpush1.bf16.msra.mxu0 0
      %818 = vmatprep.subr.bf16.mxu0 0
      %819 = vmatpush1.bf16.msra.mxu0 0
      %820 = vmatprep.subr.bf16.mxu0 0
      %821 = vmatpush1.bf16.msra.mxu0 0
      %822 = vmatprep.subr.bf16.mxu0 0
      %823 = vmatpush1.bf16.msra.mxu0 0
      %824 = vmatprep.subr.bf16.mxu0 0
      %825 = vmatpush1.bf16.msra.mxu0 0
      %826 = vmatprep.subr.bf16.mxu0 0
      %827 = vmatpush1.bf16.msra.mxu0 0
      %828 = vmatprep.subr.bf16.mxu0 0
      %829 = vmatpush1.bf16.msra.mxu0 0
      %830 = vmatprep.subr.bf16.mxu0 0
      %831 = vmatpush1.bf16.msra.mxu0 0
      %832 = vmatprep.subr.bf16.mxu0 0
      %833 = vmatpush1.bf16.msra.mxu0 0
      %834 = vmatprep.subr.bf16.mxu0 0
      %835 = vmatpush1.bf16.msra.mxu0 0
      %836 = vmatprep.mubr.bf16.mxu0 0
      %837 = vmatmul.mubr.bf16.gmra.mrb[0].mxu0 %v802
      %v838 = vpop.f32.mrb[0].mxu0
      %v839 = vadd.f32 %v790, %v838
      %v840 = vpop.f32.mrb[0].mxu0
      %v841 = vpop.f32.mrb[0].mxu0
      %v842 = vpop.f32.mrb[0].mxu0
      %843 = vdwg.mxu0
      %s844 = sadd.s32 %s241, 3
      %s845 = smul.addr %s844, 4
      %s846 = scalar_lea.vmem %s219, %s845
      %v847 = vld [vmem:[%s846] sm:$0x3]
      %v848 = vld [vmem:[%s365] sm:$0xf]
      %v849 = vld [vmem:[%s365 + $0x4] sm:$0xf]
      %v852 = vunpack.c.l.b16 %v848
      %v853 = vunpack.c.l.b16 %v849
      %v854 = vpack.c.b16 %v853, %v852
      %v857 = vsel %vm268, %v847, 0
      %859 = vmatprep.subr.bf16.mxu0 0
      %860 = vmatpush1.bf16.msra.mxu0 %v854
      %861 = vmatprep.subr.bf16.mxu0 0
      %862 = vmatpush1.bf16.msra.mxu0 0
      %863 = vmatprep.subr.bf16.mxu0 0
      %864 = vmatpush1.bf16.msra.mxu0 0
      %865 = vmatprep.subr.bf16.mxu0 0
      %866 = vmatpush1.bf16.msra.mxu0 0
      %867 = vmatprep.subr.bf16.mxu0 0
      %868 = vmatpush1.bf16.msra.mxu0 0
      %869 = vmatprep.subr.bf16.mxu0 0
      %870 = vmatpush1.bf16.msra.mxu0 0
      %871 = vmatprep.subr.bf16.mxu0 0
      %872 = vmatpush1.bf16.msra.mxu0 0
      %873 = vmatprep.subr.bf16.mxu0 0
      %874 = vmatpush1.bf16.msra.mxu0 0
      %875 = vmatprep.subr.bf16.mxu0 0
      %876 = vmatpush1.bf16.msra.mxu0 0
      %877 = vmatprep.subr.bf16.mxu0 0
      %878 = vmatpush1.bf16.msra.mxu0 0
      %879 = vmatprep.subr.bf16.mxu0 0
      %880 = vmatpush1.bf16.msra.mxu0 0
      %881 = vmatprep.subr.bf16.mxu0 0
      %882 = vmatpush1.bf16.msra.mxu0 0
      %883 = vmatprep.subr.bf16.mxu0 0
      %884 = vmatpush1.bf16.msra.mxu0 0
      %885 = vmatprep.subr.bf16.mxu0 0
      %886 = vmatpush1.bf16.msra.mxu0 0
      %887 = vmatprep.subr.bf16.mxu0 0
      %888 = vmatpush1.bf16.msra.mxu0 0
      %889 = vmatprep.subr.bf16.mxu0 0
      %890 = vmatpush1.bf16.msra.mxu0 0
      %891 = vmatprep.mubr.bf16.mxu0 0
      %892 = vmatmul.mubr.bf16.gmra.mrb[0].mxu0 %v857
      %v893 = vpop.f32.mrb[0].mxu0
      %v894 = vadd.f32 0.0, %v893
      %v895 = vpop.f32.mrb[0].mxu0
      %v896 = vpop.f32.mrb[0].mxu0
      %v897 = vpop.f32.mrb[0].mxu0
      %898 = vdwg.mxu0
      %v899 = vadd.f32 %v839, %v894
      %v900 = vld [vmem:[%s846] sm:$0x7]
      %v901 = vld [vmem:[%s419] sm:$0xf]
      %v902 = vld [vmem:[%s419 + $0x4] sm:$0xf]
      %v904 = vunpack.c.l.b16 %v900
      %v905 = vpack.c.b16 %v904, %v904
      %v907 = vshrl.u32 %v905, 16
      %v909 = vshll.u32 %v905, 16
      %v911 = vrot.slane %v909, 1
      %v912 = vor.u32 %v907, %v911
      %v915 = vunpack.c.l.b16 %v901
      %v916 = vunpack.c.l.b16 %v902
      %v917 = vpack.c.b16 %v916, %v915
      %v920 = vsel %vm268, %v912, 0
      %922 = vmatprep.subr.bf16.mxu0 0
      %923 = vmatpush1.bf16.msra.mxu0 %v917
      %924 = vmatprep.subr.bf16.mxu0 0
      %925 = vmatpush1.bf16.msra.mxu0 0
      %926 = vmatprep.subr.bf16.mxu0 0
      %927 = vmatpush1.bf16.msra.mxu0 0
      %928 = vmatprep.subr.bf16.mxu0 0
      %929 = vmatpush1.bf16.msra.mxu0 0
      %930 = vmatprep.subr.bf16.mxu0 0
      %931 = vmatpush1.bf16.msra.mxu0 0
      %932 = vmatprep.subr.bf16.mxu0 0
      %933 = vmatpush1.bf16.msra.mxu0 0
      %934 = vmatprep.subr.bf16.mxu0 0
      %935 = vmatpush1.bf16.msra.mxu0 0
      %936 = vmatprep.subr.bf16.mxu0 0
      %937 = vmatpush1.bf16.msra.mxu0 0
      %938 = vmatprep.subr.bf16.mxu0 0
      %939 = vmatpush1.bf16.msra.mxu0 0
      %940 = vmatprep.subr.bf16.mxu0 0
      %941 = vmatpush1.bf16.msra.mxu0 0
      %942 = vmatprep.subr.bf16.mxu0 0
      %943 = vmatpush1.bf16.msra.mxu0 0
      %944 = vmatprep.subr.bf16.mxu0 0
      %945 = vmatpush1.bf16.msra.mxu0 0
      %946 = vmatprep.subr.bf16.mxu0 0
      %947 = vmatpush1.bf16.msra.mxu0 0
      %948 = vmatprep.subr.bf16.mxu0 0
      %949 = vmatpush1.bf16.msra.mxu0 0
      %950 = vmatprep.subr.bf16.mxu0 0
      %951 = vmatpush1.bf16.msra.mxu0 0
      %952 = vmatprep.subr.bf16.mxu0 0
      %953 = vmatpush1.bf16.msra.mxu0 0
      %954 = vmatprep.mubr.bf16.mxu0 0
      %955 = vmatmul.mubr.bf16.gmra.mrb[0].mxu0 %v920
      %v956 = vpop.f32.mrb[0].mxu0
      %v957 = vadd.f32 0.0, %v956
      %v958 = vpop.f32.mrb[0].mxu0
      %v959 = vpop.f32.mrb[0].mxu0
      %v960 = vpop.f32.mrb[0].mxu0
      %961 = vdwg.mxu0
      %v962 = vadd.f32 %v899, %v957
      %v963 = vadd.f32 %v962, %v486
      %v964 = vmax.f32 %v963, 0.0
      %v965 = vpack.c.bf16 %v964, %v964
      %s966 = scalar_lea.vmem %s238, 4
      %967 = vst [vmem:[%s966] sm:$0x3] %v965
      %v968 = vld [vmem:[%s846] sm:$0x3]
      %v969 = vld [vmem:[%s223] sm:$0xf]
      %v970 = vld [vmem:[%s223 + $0x4] sm:$0xf]
      %v971 = vld [vmem:[%s846] sm:$0x7]
      %v972 = vld [vmem:[%s249] sm:$0xf]
      %v973 = vld [vmem:[%s249 + $0x4] sm:$0xf]
      %v975 = vunpack.c.l.b16 %v971
      %v976 = vpack.c.b16 %v975, %v975
      %v978 = vshrl.u32 %v976, 16
      %v980 = vshll.u32 %v976, 16
      %v982 = vrot.slane %v980, 1
      %v983 = vor.u32 %v978, %v982
      %v986 = vunpack.c.l.b16 %v972
      %v987 = vunpack.c.l.b16 %v973
      %v988 = vpack.c.b16 %v987, %v986
      %v991 = vsel %vm268, %v983, 0
      %993 = vmatprep.subr.bf16.mxu0 0
      %994 = vmatpush1.bf16.msra.mxu0 %v988
      %995 = vmatprep.subr.bf16.mxu0 0
      %996 = vmatpush1.bf16.msra.mxu0 0
      %997 = vmatprep.subr.bf16.mxu0 0
      %998 = vmatpush1.bf16.msra.mxu0 0
      %999 = vmatprep.subr.bf16.mxu0 0
      %1000 = vmatpush1.bf16.msra.mxu0 0
      %1001 = vmatprep.subr.bf16.mxu0 0
      %1002 = vmatpush1.bf16.msra.mxu0 0
      %1003 = vmatprep.subr.bf16.mxu0 0
      %1004 = vmatpush1.bf16.msra.mxu0 0
      %1005 = vmatprep.subr.bf16.mxu0 0
      %1006 = vmatpush1.bf16.msra.mxu0 0
      %1007 = vmatprep.subr.bf16.mxu0 0
      %1008 = vmatpush1.bf16.msra.mxu0 0
      %1009 = vmatprep.subr.bf16.mxu0 0
      %1010 = vmatpush1.bf16.msra.mxu0 0
      %1011 = vmatprep.subr.bf16.mxu0 0
      %1012 = vmatpush1.bf16.msra.mxu0 0
      %1013 = vmatprep.subr.bf16.mxu0 0
      %1014 = vmatpush1.bf16.msra.mxu0 0
      %1015 = vmatprep.subr.bf16.mxu0 0
      %1016 = vmatpush1.bf16.msra.mxu0 0
      %1017 = vmatprep.subr.bf16.mxu0 0
      %1018 = vmatpush1.bf16.msra.mxu0 0
      %1019 = vmatprep.subr.bf16.mxu0 0
      %1020 = vmatpush1.bf16.msra.mxu0 0
      %1021 = vmatprep.subr.bf16.mxu0 0
      %1022 = vmatpush1.bf16.msra.mxu0 0
      %1023 = vmatprep.subr.bf16.mxu0 0
      %1024 = vmatpush1.bf16.msra.mxu0 0
      %1025 = vmatprep.mubr.bf16.mxu0 0
      %1026 = vmatmul.mubr.bf16.gmra.mrb[0].mxu0 %v991
      %v1027 = vpop.f32.mrb[0].mxu0
      %v1028 = vadd.f32 0.0, %v1027
      %v1029 = vpop.f32.mrb[0].mxu0
      %v1030 = vpop.f32.mrb[0].mxu0
      %v1031 = vpop.f32.mrb[0].mxu0
      %1032 = vdwg.mxu0
      %v1035 = vunpack.c.l.b16 %v969
      %v1036 = vunpack.c.l.b16 %v970
      %v1037 = vpack.c.b16 %v1036, %v1035
      %v1040 = vsel %vm268, %v968, 0
      %1042 = vmatprep.subr.bf16.mxu0 0
      %1043 = vmatpush1.bf16.msra.mxu0 %v1037
      %1044 = vmatprep.subr.bf16.mxu0 0
      %1045 = vmatpush1.bf16.msra.mxu0 0
      %1046 = vmatprep.subr.bf16.mxu0 0
      %1047 = vmatpush1.bf16.msra.mxu0 0
      %1048 = vmatprep.subr.bf16.mxu0 0
      %1049 = vmatpush1.bf16.msra.mxu0 0
      %1050 = vmatprep.subr.bf16.mxu0 0
      %1051 = vmatpush1.bf16.msra.mxu0 0
      %1052 = vmatprep.subr.bf16.mxu0 0
      %1053 = vmatpush1.bf16.msra.mxu0 0
      %1054 = vmatprep.subr.bf16.mxu0 0
      %1055 = vmatpush1.bf16.msra.mxu0 0
      %1056 = vmatprep.subr.bf16.mxu0 0
      %1057 = vmatpush1.bf16.msra.mxu0 0
      %1058 = vmatprep.subr.bf16.mxu0 0
      %1059 = vmatpush1.bf16.msra.mxu0 0
      %1060 = vmatprep.subr.bf16.mxu0 0
      %1061 = vmatpush1.bf16.msra.mxu0 0
      %1062 = vmatprep.subr.bf16.mxu0 0
      %1063 = vmatpush1.bf16.msra.mxu0 0
      %1064 = vmatprep.subr.bf16.mxu0 0
      %1065 = vmatpush1.bf16.msra.mxu0 0
      %1066 = vmatprep.subr.bf16.mxu0 0
      %1067 = vmatpush1.bf16.msra.mxu0 0
      %1068 = vmatprep.subr.bf16.mxu0 0
      %1069 = vmatpush1.bf16.msra.mxu0 0
      %1070 = vmatprep.subr.bf16.mxu0 0
      %1071 = vmatpush1.bf16.msra.mxu0 0
      %1072 = vmatprep.subr.bf16.mxu0 0
      %1073 = vmatpush1.bf16.msra.mxu0 0
      %1074 = vmatprep.mubr.bf16.mxu0 0
      %1075 = vmatmul.mubr.bf16.gmra.mrb[0].mxu0 %v1040
      %v1076 = vpop.f32.mrb[0].mxu0
      %v1077 = vadd.f32 %v1028, %v1076
      %v1078 = vpop.f32.mrb[0].mxu0
      %v1079 = vpop.f32.mrb[0].mxu0
      %v1080 = vpop.f32.mrb[0].mxu0
      %1081 = vdwg.mxu0
      %s1082 = sadd.s32 %s241, 4
      %s1083 = smul.addr %s1082, 4
      %s1084 = scalar_lea.vmem %s219, %s1083
      %v1085 = vld [vmem:[%s1084] sm:$0x3]
      %v1086 = vld [vmem:[%s365] sm:$0xf]
      %v1087 = vld [vmem:[%s365 + $0x4] sm:$0xf]
      %v1090 = vunpack.c.l.b16 %v1086
      %v1091 = vunpack.c.l.b16 %v1087
      %v1092 = vpack.c.b16 %v1091, %v1090
      %v1095 = vsel %vm268, %v1085, 0
      %1097 = vmatprep.subr.bf16.mxu0 0
      %1098 = vmatpush1.bf16.msra.mxu0 %v1092
      %1099 = vmatprep.subr.bf16.mxu0 0
      %1100 = vmatpush1.bf16.msra.mxu0 0
      %1101 = vmatprep.subr.bf16.mxu0 0
      %1102 = vmatpush1.bf16.msra.mxu0 0
      %1103 = vmatprep.subr.bf16.mxu0 0
      %1104 = vmatpush1.bf16.msra.mxu0 0
      %1105 = vmatprep.subr.bf16.mxu0 0
      %1106 = vmatpush1.bf16.msra.mxu0 0
      %1107 = vmatprep.subr.bf16.mxu0 0
      %1108 = vmatpush1.bf16.msra.mxu0 0
      %1109 = vmatprep.subr.bf16.mxu0 0
      %1110 = vmatpush1.bf16.msra.mxu0 0
      %1111 = vmatprep.subr.bf16.mxu0 0
      %1112 = vmatpush1.bf16.msra.mxu0 0
      %1113 = vmatprep.subr.bf16.mxu0 0
      %1114 = vmatpush1.bf16.msra.mxu0 0
      %1115 = vmatprep.subr.bf16.mxu0 0
      %1116 = vmatpush1.bf16.msra.mxu0 0
      %1117 = vmatprep.subr.bf16.mxu0 0
      %1118 = vmatpush1.bf16.msra.mxu0 0
      %1119 = vmatprep.subr.bf16.mxu0 0
      %1120 = vmatpush1.bf16.msra.mxu0 0
      %1121 = vmatprep.subr.bf16.mxu0 0
      %1122 = vmatpush1.bf16.msra.mxu0 0
      %1123 = vmatprep.subr.bf16.mxu0 0
      %1124 = vmatpush1.bf16.msra.mxu0 0
      %1125 = vmatprep.subr.bf16.mxu0 0
      %1126 = vmatpush1.bf16.msra.mxu0 0
      %1127 = vmatprep.subr.bf16.mxu0 0
      %1128 = vmatpush1.bf16.msra.mxu0 0
      %1129 = vmatprep.mubr.bf16.mxu0 0
      %1130 = vmatmul.mubr.bf16.gmra.mrb[0].mxu0 %v1095
      %v1131 = vpop.f32.mrb[0].mxu0
      %v1132 = vadd.f32 0.0, %v1131
      %v1133 = vpop.f32.mrb[0].mxu0
      %v1134 = vpop.f32.mrb[0].mxu0
      %v1135 = vpop.f32.mrb[0].mxu0
      %1136 = vdwg.mxu0
      %v1137 = vadd.f32 %v1077, %v1132
      %v1138 = vld [vmem:[%s1084] sm:$0x7]
      %v1139 = vld [vmem:[%s419] sm:$0xf]
      %v1140 = vld [vmem:[%s419 + $0x4] sm:$0xf]
      %v1142 = vunpack.c.l.b16 %v1138
      %v1143 = vpack.c.b16 %v1142, %v1142
      %v1145 = vshrl.u32 %v1143, 16
      %v1147 = vshll.u32 %v1143, 16
      %v1149 = vrot.slane %v1147, 1
      %v1150 = vor.u32 %v1145, %v1149
      %v1153 = vunpack.c.l.b16 %v1139
      %v1154 = vunpack.c.l.b16 %v1140
      %v1155 = vpack.c.b16 %v1154, %v1153
      %v1158 = vsel %vm268, %v1150, 0
      %1160 = vmatprep.subr.bf16.mxu0 0
      %1161 = vmatpush1.bf16.msra.mxu0 %v1155
      %1162 = vmatprep.subr.bf16.mxu0 0
      %1163 = vmatpush1.bf16.msra.mxu0 0
      %1164 = vmatprep.subr.bf16.mxu0 0
      %1165 = vmatpush1.bf16.msra.mxu0 0
      %1166 = vmatprep.subr.bf16.mxu0 0
      %1167 = vmatpush1.bf16.msra.mxu0 0
      %1168 = vmatprep.subr.bf16.mxu0 0
      %1169 = vmatpush1.bf16.msra.mxu0 0
      %1170 = vmatprep.subr.bf16.mxu0 0
      %1171 = vmatpush1.bf16.msra.mxu0 0
      %1172 = vmatprep.subr.bf16.mxu0 0
      %1173 = vmatpush1.bf16.msra.mxu0 0
      %1174 = vmatprep.subr.bf16.mxu0 0
      %1175 = vmatpush1.bf16.msra.mxu0 0
      %1176 = vmatprep.subr.bf16.mxu0 0
      %1177 = vmatpush1.bf16.msra.mxu0 0
      %1178 = vmatprep.subr.bf16.mxu0 0
      %1179 = vmatpush1.bf16.msra.mxu0 0
      %1180 = vmatprep.subr.bf16.mxu0 0
      %1181 = vmatpush1.bf16.msra.mxu0 0
      %1182 = vmatprep.subr.bf16.mxu0 0
      %1183 = vmatpush1.bf16.msra.mxu0 0
      %1184 = vmatprep.subr.bf16.mxu0 0
      %1185 = vmatpush1.bf16.msra.mxu0 0
      %1186 = vmatprep.subr.bf16.mxu0 0
      %1187 = vmatpush1.bf16.msra.mxu0 0
      %1188 = vmatprep.subr.bf16.mxu0 0
      %1189 = vmatpush1.bf16.msra.mxu0 0
      %1190 = vmatprep.subr.bf16.mxu0 0
      %1191 = vmatpush1.bf16.msra.mxu0 0
      %1192 = vmatprep.mubr.bf16.mxu0 0
      %1193 = vmatmul.mubr.bf16.gmra.mrb[0].mxu0 %v1158
      %v1194 = vpop.f32.mrb[0].mxu0
      %v1195 = vadd.f32 0.0, %v1194
      %v1196 = vpop.f32.mrb[0].mxu0
      %v1197 = vpop.f32.mrb[0].mxu0
      %v1198 = vpop.f32.mrb[0].mxu0
      %1199 = vdwg.mxu0
      %v1200 = vadd.f32 %v1137, %v1195
      %v1201 = vadd.f32 %v1200, %v486
      %v1202 = vmax.f32 %v1201, 0.0
      %v1203 = vpack.c.bf16 %v1202, %v1202
      %s1204 = scalar_lea.vmem %s238, 6
      %1205 = vst [vmem:[%s1204] sm:$0x3] %v1203
      %s1206 = smul.u32 4, %s20
      %p1207 = scmp.lt.s32.totalorder %s19, 1
      %s1208 = scalar_select %p1207, %s19, 1
      %p1209 = scmp.lt.s32.totalorder %s1206, 3
      %s1210 = scalar_select %p1209, %s1206, 3
      %p1211 = scmp.lt.s32.totalorder %s21, 0
      %s1212 = scalar_select %p1211, %s21, 0
      %s1213 = sadd.s32 %s1212, %s1210
      %s1214 = smul.addr %s1208, 4
      %s1215 = sadd.s32 %s1213, %s1214
      %s1216 = smul.addr %s1215, 2
      %s1217 = scalar_lea.vmem %s3, %s1216
      // Predicated region
      $region33: #{_lambda_.6} parent=31 // pred_check
        %p1218 = pneg %p133
      $region34: #{_lambda_.6} parent=31 // pred_check_branch
        %1220 = sbr.rel (%p1218) target = $region36
      $region35: #{_lambda_.6} parent=31 // pred_region
        %s1221 = smul.u32 4, %s20
      $region36: #{_lambda_.6} parent=31 // pred_fallthru
        _
    $region32: #{_lambda_.6} parent=5 // pred_fallthru
      _
    %p1222 = scmp.le.s32.totalorder 2, %s9
    // Predicated region
    $region37: #{_lambda_.6} parent=5 // pred_check
      %p1223 = pneg %p1222
    $region38: #{_lambda_.6} parent=5 // pred_check_branch
      %1225 = sbr.rel (%p1223) target = $region40
    $region39: #{_lambda_.6} parent=5 // pred_region
      %s1226 = ssub.s32 %s9, 2
      // Predicated region
      $region41: #{_lambda_.6} parent=39 // pred_check
        %p1227 = pneg %p139
      $region42: #{_lambda_.6} parent=39 // pred_check_branch
        %1229 = sbr.rel (%p1227) target = $region44
      $region43: #{_lambda_.6} parent=39 // pred_region
        %s1230 = smul.u32 4, %s23
        %p1231 = scmp.lt.s32.totalorder %s22, 1
        %s1232 = scalar_select %p1231, %s22, 1
        %p1233 = scmp.lt.s32.totalorder %s1230, 3
        %s1234 = scalar_select %p1233, %s1230, 3
        %p1235 = scmp.lt.s32.totalorder %s24, 0
        %s1236 = scalar_select %p1235, %s24, 0
        %s1237 = sadd.s32 %s1236, %s1234
        %s1238 = smul.addr %s1232, 4
        %s1239 = sadd.s32 %s1237, %s1238
        %s1240 = smul.addr %s1239, 2
        %s1241 = scalar_lea.vmem %s3, %s1240
      $region44: #{_lambda_.6} parent=39 // pred_fallthru
        _
    $region40: #{_lambda_.6} parent=5 // pred_fallthru
      _
  $region6: #{_lambda_.6} parent=0 // loop_footer
    %s13 = sadd.s32 1, %s9
  $region7: #{_lambda_.6} parent=0 // loop_footer_branch
    %8 = sbr.rel target = $region3
  $region8: #{_lambda_.6} parent=0 // loop_exit
    _

// kernel: _lambda_.5
$region0: #{_lambda_.5}
  #allocation0 [shape = 'u32[]', space=smem, size = 0x4, offset = 0x4, fixed_abs, tag = 'smem constant byte address 0x4 - core index']
  #allocation1 [shape = 'u32[144,128]{1,0:T(1,128)}', space=vmem, size = 0x12000, scoped, tag = 'internal scratch']
  %s0 = inlined_call_operand.vmem [shape: bf16[2,9,9,16], index: 0, kind: input, shape index: {}]
  %s1 = inlined_call_operand.vmem [shape: bf16[4,16,128], index: 1, kind: input, shape index: {}]
  %s2 = inlined_call_operand.vmem [shape: f32[1,128], index: 2, kind: input, shape index: {}]
  %s3 = inlined_call_operand.vmem [shape: bf16[2,8,8,128], index: 3, kind: output, shape index: {}]
  %s4 = sld [smem:[#allocation0]]
  $region45: #{_lambda_.5} parent=0
    _
  %s6 = ssub.s32 1, %s4
  %s7 = scalar_select 0, %s6, %s4
  loop: start=0, step=1, limit=4
  $region2: #{_lambda_.5} parent=0 // loop_pre_header
    _
  $region3: #{_lambda_.5} parent=0 // loop_header
    %s9 = sphi 0, %s13
    %p10 = scmp.ge.s32.totalorder %s9, 4
    %s16 = sphi 0, %s35
    %s17 = sphi 0, %s31
    %s18 = sphi 0, %s27
    %s19 = sphi 0, %s16
    %s20 = sphi 0, %s17
    %s21 = sphi 0, %s18
    %s22 = sphi 0, %s19
    %s23 = sphi 0, %s20
    %s24 = sphi 0, %s21
    %s38 = sphi 0, %s40
    %s41 = sphi 0, %s38
    %s42 = sphi 0, %s41
    %s58 = sphi 0, %s42
    %s64 = sphi 0, %s66
    %s67 = sphi 0, %s64
    %s68 = sphi 0, %s67
    %s84 = sphi 0, %s68
    %s90 = sphi 0, %s92
    %s93 = sphi 0, %s90
    %s94 = sphi 0, %s93
    %s110 = sphi 0, %s94
    %s120 = sphi 0, %s122
    %s123 = sphi 0, %s120
    %s124 = sphi 0, %s123
    %s140 = sphi 0, %s124
  $region4: #{_lambda_.5} parent=0 // loop_header_branch
    %12 = sbr.rel (%p10) target = $region8
  $region5: #{_lambda_.5} parent=0 // loop_body
    %s14 = ssub.s32 %s9, 1
    %s15 = ssub.s32 %s9, 2
    %s25 = sadd.s32 1, %s18
    %p26 = scmp.ge.s32.totalorder %s25, 1
    %s27 = scalar_select %p26, 0, %s25
    %s28 = sadd.s32 1, %s17
    %s29 = scalar_select %p26, %s28, %s17
    %p30 = scmp.ge.s32.totalorder %s29, 1
    %s31 = scalar_select %p30, 0, %s29
    %s32 = sadd.s32 1, %s16
    %s33 = scalar_select %p30, %s32, %s16
    %p34 = scmp.ge.s32.totalorder %s33, 2
    %s35 = scalar_select %p34, 0, %s33
    %s36 = ssub.s32 %s16, %s35
    %p37 = scmp.eq.s32.totalorder %s36, 0
    %s39 = sadd.s32 %s38, 1
    %s40 = scalar_select %p37, %s38, %s39
    %p43 = pneg %p37
    %p44 = scmp.eq.s32.totalorder %s9, 1
    %p45 = por %p43, %p44
    %p46 = scmp.ne.s32.totalorder %s38, %s41
    %p47 = scmp.eq.s32.totalorder %s9, 0
    %p48 = por %p46, %p47
    %p49 = scmp.ne.s32.totalorder %s38, %s41
    %p50 = scmp.eq.s32.totalorder %s14, 1
    %p51 = por %p49, %p50
    %p52 = scmp.ne.s32.totalorder %s41, %s42
    %p53 = scmp.eq.s32.totalorder %s14, 0
    %p54 = por %p52, %p53
    %p55 = scmp.ne.s32.totalorder %s41, %s42
    %p56 = scmp.eq.s32.totalorder %s15, 1
    %p57 = por %p55, %p56
    %p59 = scmp.ne.s32.totalorder %s42, %s58
    %p60 = scmp.eq.s32.totalorder %s15, 0
    %p61 = por %p59, %p60
    %s62 = ssub.s32 %s18, %s27
    %p63 = scmp.eq.s32.totalorder %s62, 0
    %s65 = sadd.s32 %s64, 1
    %s66 = scalar_select %p63, %s64, %s65
    %p69 = pneg %p63
    %p70 = scmp.eq.s32.totalorder %s9, 1
    %p71 = por %p69, %p70
    %p72 = scmp.ne.s32.totalorder %s64, %s67
    %p73 = scmp.eq.s32.totalorder %s9, 0
    %p74 = por %p72, %p73
    %p75 = scmp.ne.s32.totalorder %s64, %s67
    %p76 = scmp.eq.s32.totalorder %s14, 1
    %p77 = por %p75, %p76
    %p78 = scmp.ne.s32.totalorder %s67, %s68
    %p79 = scmp.eq.s32.totalorder %s14, 0
    %p80 = por %p78, %p79
    %p81 = scmp.ne.s32.totalorder %s67, %s68
    %p82 = scmp.eq.s32.totalorder %s15, 1
    %p83 = por %p81, %p82
    %p85 = scmp.ne.s32.totalorder %s68, %s84
    %p86 = scmp.eq.s32.totalorder %s15, 0
    %p87 = por %p85, %p86
    %s88 = ssub.s32 %s18, %s27
    %p89 = scmp.eq.s32.totalorder %s88, 0
    %s91 = sadd.s32 %s90, 1
    %s92 = scalar_select %p89, %s90, %s91
    %p95 = pneg %p89
    %p96 = scmp.eq.s32.totalorder %s9, 1
    %p97 = por %p95, %p96
    %p98 = scmp.ne.s32.totalorder %s90, %s93
    %p99 = scmp.eq.s32.totalorder %s9, 0
    %p100 = por %p98, %p99
    %p101 = scmp.ne.s32.totalorder %s90, %s93
    %p102 = scmp.eq.s32.totalorder %s14, 1
    %p103 = por %p101, %p102
    %p104 = scmp.ne.s32.totalorder %s93, %s94
    %p105 = scmp.eq.s32.totalorder %s14, 0
    %p106 = por %p104, %p105
    %p107 = scmp.ne.s32.totalorder %s93, %s94
    %p108 = scmp.eq.s32.totalorder %s15, 1
    %p109 = por %p107, %p108
    %p111 = scmp.ne.s32.totalorder %s94, %s110
    %p112 = scmp.eq.s32.totalorder %s15, 0
    %p113 = por %p111, %p112
    %s114 = ssub.s32 %s16, %s35
    %s115 = ssub.s32 %s17, %s31
    %s116 = sor.u32 %s114, %s115
    %s117 = ssub.s32 %s18, %s27
    %s118 = sor.u32 %s116, %s117
    %p119 = scmp.eq.s32.totalorder %s118, 0
    %s121 = sadd.s32 %s120, 1
    %s122 = scalar_select %p119, %s120, %s121
    %p125 = pneg %p119
    %p126 = scmp.eq.s32.totalorder %s9, 1
    %p127 = por %p125, %p126
    %p128 = scmp.ne.s32.totalorder %s120, %s123
    %p129 = scmp.eq.s32.totalorder %s9, 0
    %p130 = por %p128, %p129
    %p131 = scmp.ne.s32.totalorder %s120, %s123
    %p132 = scmp.eq.s32.totalorder %s14, 1
    %p133 = por %p131, %p132
    %p134 = scmp.ne.s32.totalorder %s123, %s124
    %p135 = scmp.eq.s32.totalorder %s14, 0
    %p136 = por %p134, %p135
    %p137 = scmp.ne.s32.totalorder %s123, %s124
    %p138 = scmp.eq.s32.totalorder %s15, 1
    %p139 = por %p137, %p138
    %p141 = scmp.ne.s32.totalorder %s124, %s140
    %p142 = scmp.eq.s32.totalorder %s15, 0
    %p143 = por %p141, %p142
    %p144 = scmp.le.s32.totalorder 1, %s9
    %p145 = scmp.lt.s32.totalorder %s9, 3
    %p146 = pnand %p144, %p145
    %p147 = pneg %p146
    // Predicated region
    $region9: #{_lambda_.5} parent=5 // pred_check
      _
    $region10: #{_lambda_.5} parent=5 // pred_check_branch
      %149 = sbr.rel (%p146) target = $region12
    $region11: #{_lambda_.5} parent=5 // pred_region
      %s150 = ssub.s32 %s9, 1
      // Predicated region
      $region13: #{_lambda_.5} parent=11 // pred_check
        %p151 = pneg %p80
      $region14: #{_lambda_.5} parent=11 // pred_check_branch
        %153 = sbr.rel (%p151) target = $region16
      $region15: #{_lambda_.5} parent=11 // pred_region
        %p154 = scmp.lt.s32.totalorder %s21, 0
        %s155 = scalar_select %p154, %s21, 0
        %s156 = smul.addr %s155, 4
        %s157 = scalar_lea.vmem %s1, %s156
      $region16: #{_lambda_.5} parent=11 // pred_fallthru
        _
      // Predicated region
      $region17: #{_lambda_.5} parent=11 // pred_check
        %p158 = pneg %p106
      $region18: #{_lambda_.5} parent=11 // pred_check_branch
        %160 = sbr.rel (%p158) target = $region20
      $region19: #{_lambda_.5} parent=11 // pred_region
        %p161 = scmp.lt.s32.totalorder %s21, 0
        %s162 = scalar_select %p161, %s21, 0
        %s163 = scalar_lea.vmem %s2, %s162
      $region20: #{_lambda_.5} parent=11 // pred_fallthru
        _
    $region12: #{_lambda_.5} parent=5 // pred_fallthru
      _
    %p164 = scmp.lt.s32.totalorder %s9, 2
    // Predicated region
    $region21: #{_lambda_.5} parent=5 // pred_check
      %p165 = pneg %p164
    $region22: #{_lambda_.5} parent=5 // pred_check_branch
      %167 = sbr.rel (%p165) target = $region24
    $region23: #{_lambda_.5} parent=5 // pred_region
      // Predicated region
      $region25: #{_lambda_.5} parent=23 // pred_check
        %p168 = pneg %p48
      $region26: #{_lambda_.5} parent=23 // pred_check_branch
        %170 = sbr.rel (%p168) target = $region28
      $region27: #{_lambda_.5} parent=23 // pred_region
        %p171 = scmp.lt.s32.totalorder %s16, 1
        %s172 = scalar_select %p171, %s16, 1
        %s173 = smul.addr %s172, 18
        %s174 = smul.addr %s173, 4
        %s175 = scalar_lea.vmem %s0, %s174
      $region28: #{_lambda_.5} parent=23 // pred_fallthru
        _
    $region24: #{_lambda_.5} parent=5 // pred_fallthru
      _
    %p176 = scmp.le.s32.totalorder 1, %s9
    %p177 = scmp.lt.s32.totalorder %s9, 3
    %p178 = pnand %p176, %p177
    %p179 = pneg %p178
    // Predicated region
    $region29: #{_lambda_.5} parent=5 // pred_check
      _
    $region30: #{_lambda_.5} parent=5 // pred_check_branch
      %181 = sbr.rel (%p178) target = $region32
    $region31: #{_lambda_.5} parent=5 // pred_region
      %s182 = ssub.s32 %s9, 1
      %p183 = scmp.lt.s32.totalorder %s19, 1
      %s184 = scalar_select %p183, %s19, 1
      %s185 = smul.addr %s184, 18
      %s186 = smul.addr %s185, 4
      %s187 = scalar_lea.vmem %s0, %s186
      %p188 = pneg %p54
      %p189 = pneg %p51
      %p190 = scmp.lt.s32.totalorder %s21, 0
      %s191 = scalar_select %p190, %s21, 0
      %s192 = smul.addr %s191, 4
      %s193 = scalar_lea.vmem %s1, %s192
      %p194 = pneg %p80
      %p195 = pneg %p77
      %p196 = scmp.lt.s32.totalorder %s21, 0
      %s197 = scalar_select %p196, %s21, 0
      %s198 = scalar_lea.vmem %s2, %s197
      %p199 = pneg %p106
      %p200 = pneg %p103
      %p201 = pneg %p136
      %p202 = pneg %p133
      %s203 = smul.u32 8, %s20
      %p204 = scmp.lt.s32.totalorder %s19, 1
      %s205 = scalar_select %p204, %s19, 1
      %p206 = scmp.lt.s32.totalorder %s203, 7
      %s207 = scalar_select %p206, %s203, 7
      %p208 = scmp.lt.s32.totalorder %s21, 0
      %s209 = scalar_select %p208, %s21, 0
      %s210 = sadd.s32 %s209, %s207
      %s211 = smul.addr %s205, 8
      %s212 = sadd.s32 %s210, %s211
      %s213 = smul.addr %s212, 4
      %s214 = scalar_lea.vmem %s3, %s213
      %p215 = scmp.lt.s32.totalorder %s19, 1
      %s216 = scalar_select %p215, %s19, 1
      %s217 = smul.addr %s216, 18
      %s218 = smul.addr %s217, 4
      %s219 = scalar_lea.vmem %s0, %s218
      %p220 = scmp.lt.s32.totalorder %s21, 0
      %s221 = scalar_select %p220, %s21, 0
      %s222 = smul.addr %s221, 4
      %s223 = scalar_lea.vmem %s1, %s222
      %p224 = scmp.lt.s32.totalorder %s21, 0
      %s225 = scalar_select %p224, %s21, 0
      %s226 = scalar_lea.vmem %s2, %s225
      %s227 = smul.u32 8, %s20
      %p228 = scmp.lt.s32.totalorder %s19, 1
      %s229 = scalar_select %p228, %s19, 1
      %p230 = scmp.lt.s32.totalorder %s227, 7
      %s231 = scalar_select %p230, %s227, 7
      %p232 = scmp.lt.s32.totalorder %s21, 0
      %s233 = scalar_select %p232, %s21, 0
      %s234 = sadd.s32 %s233, %s231
      %s235 = smul.addr %s229, 8
      %s236 = sadd.s32 %s234, %s235
      %s237 = smul.addr %s236, 4
      %s238 = scalar_lea.vmem %s3, %s237
      %s239 = smul.u32 8, %s20
      %s241 = smul.u32 %s20, 8
      %v242 = vld [vmem:[%s226] sm:$0x1]
      %s243 = smul.u32 %s241, 2
      %s244 = smul.addr %s243, 4
      %s245 = scalar_lea.vmem %s219, %s244
      %v246 = vld [vmem:[%s245] sm:$0xf]
      %v247 = vld [vmem:[%s223] sm:$0xf]
      %v248 = vld [vmem:[%s223 + $0x4] sm:$0xf]
      %v249 = vld [vmem:[%s245 + $0x4] sm:$0x1]
      %s250 = scalar_lea.vmem %s223, 8
      %v251 = vld [vmem:[%s250] sm:$0xf]
      %v252 = vld [vmem:[%s250 + $0x4] sm:$0xf]
      %v255 = vunpack.c.l.b16 %v246
      %v256 = vunpack.c.l.b16 %v249
      %v257 = vpack.c.b16 %v256, %v255
      %v259 = vshrl.u32 %v257, 16
      %v261 = vshll.u32 %v257, 16
      %v263 = vrot.slane %v261, 1
      %v264 = vor.u32 %v259, %v263
      %v267 = vunpack.c.l.b16 %v251
      %v268 = vunpack.c.l.b16 %v252
      %v269 = vpack.c.b16 %v268, %v267
      %vm271 = vcmask 130048
      %v273 = vsel %vm271, %v264, 0
      %275 = vmatprep.subr.bf16.mxu0 0
      %276 = vmatpush1.bf16.msra.mxu0 %v269
      %277 = vmatprep.subr.bf16.mxu0 0
      %278 = vmatpush1.bf16.msra.mxu0 0
      %279 = vmatprep.subr.bf16.mxu0 0
      %280 = vmatpush1.bf16.msra.mxu0 0
      %281 = vmatprep.subr.bf16.mxu0 0
      %282 = vmatpush1.bf16.msra.mxu0 0
      %283 = vmatprep.subr.bf16.mxu0 0
      %284 = vmatpush1.bf16.msra.mxu0 0
      %285 = vmatprep.subr.bf16.mxu0 0
      %286 = vmatpush1.bf16.msra.mxu0 0
      %287 = vmatprep.subr.bf16.mxu0 0
      %288 = vmatpush1.bf16.msra.mxu0 0
      %289 = vmatprep.subr.bf16.mxu0 0
      %290 = vmatpush1.bf16.msra.mxu0 0
      %291 = vmatprep.subr.bf16.mxu0 0
      %292 = vmatpush1.bf16.msra.mxu0 0
      %293 = vmatprep.subr.bf16.mxu0 0
      %294 = vmatpush1.bf16.msra.mxu0 0
      %295 = vmatprep.subr.bf16.mxu0 0
      %296 = vmatpush1.bf16.msra.mxu0 0
      %297 = vmatprep.subr.bf16.mxu0 0
      %298 = vmatpush1.bf16.msra.mxu0 0
      %299 = vmatprep.subr.bf16.mxu0 0
      %300 = vmatpush1.bf16.msra.mxu0 0
      %301 = vmatprep.subr.bf16.mxu0 0
      %302 = vmatpush1.bf16.msra.mxu0 0
      %303 = vmatprep.subr.bf16.mxu0 0
      %304 = vmatpush1.bf16.msra.mxu0 0
      %305 = vmatprep.subr.bf16.mxu0 0
      %306 = vmatpush1.bf16.msra.mxu0 0
      %307 = vmatprep.mubr.bf16.mxu0 0
      %308 = vmatmul.mubr.bf16.gmra.mrb[0].mxu0 %v273
      %v309 = vpop.f32.mrb[0].mxu0
      %v310 = vadd.f32 0.0, %v309
      %v311 = vpop.f32.mrb[0].mxu0
      %v312 = vpop.f32.mrb[0].mxu0
      %v313 = vpop.f32.mrb[0].mxu0
      %314 = vdwg.mxu0
      %v317 = vunpack.c.l.b16 %v247
      %v318 = vunpack.c.l.b16 %v248
      %v319 = vpack.c.b16 %v318, %v317
      %v322 = vsel %vm271, %v246, 0
      %324 = vmatprep.subr.bf16.mxu0 0
      %325 = vmatpush1.bf16.msra.mxu0 %v319
      %326 = vmatprep.subr.bf16.mxu0 0
      %327 = vmatpush1.bf16.msra.mxu0 0
      %328 = vmatprep.subr.bf16.mxu0 0
      %329 = vmatpush1.bf16.msra.mxu0 0
      %330 = vmatprep.subr.bf16.mxu0 0
      %331 = vmatpush1.bf16.msra.mxu0 0
      %332 = vmatprep.subr.bf16.mxu0 0
      %333 = vmatpush1.bf16.msra.mxu0 0
      %334 = vmatprep.subr.bf16.mxu0 0
      %335 = vmatpush1.bf16.msra.mxu0 0
      %336 = vmatprep.subr.bf16.mxu0 0
      %337 = vmatpush1.bf16.msra.mxu0 0
      %338 = vmatprep.subr.bf16.mxu0 0
      %339 = vmatpush1.bf16.msra.mxu0 0
      %340 = vmatprep.subr.bf16.mxu0 0
      %341 = vmatpush1.bf16.msra.mxu0 0
      %342 = vmatprep.subr.bf16.mxu0 0
      %343 = vmatpush1.bf16.msra.mxu0 0
      %344 = vmatprep.subr.bf16.mxu0 0
      %345 = vmatpush1.bf16.msra.mxu0 0
      %346 = vmatprep.subr.bf16.mxu0 0
      %347 = vmatpush1.bf16.msra.mxu0 0
      %348 = vmatprep.subr.bf16.mxu0 0
      %349 = vmatpush1.bf16.msra.mxu0 0
      %350 = vmatprep.subr.bf16.mxu0 0
      %351 = vmatpush1.bf16.msra.mxu0 0
      %352 = vmatprep.subr.bf16.mxu0 0
      %353 = vmatpush1.bf16.msra.mxu0 0
      %354 = vmatprep.subr.bf16.mxu0 0
      %355 = vmatpush1.bf16.msra.mxu0 0
      %356 = vmatprep.mubr.bf16.mxu0 0
      %357 = vmatmul.mubr.bf16.gmra.mrb[0].mxu0 %v322
      %v358 = vpop.f32.mrb[0].mxu0
      %v359 = vadd.f32 %v310, %v358
      %v360 = vpop.f32.mrb[0].mxu0
      %v361 = vpop.f32.mrb[0].mxu0
      %v362 = vpop.f32.mrb[0].mxu0
      %363 = vdwg.mxu0
      %s364 = sadd.s32 %s241, 1
      %s365 = smul.u32 %s364, 2
      %s366 = smul.addr %s365, 4
      %s367 = scalar_lea.vmem %s219, %s366
      %v368 = vld [vmem:[%s367] sm:$0xf]
      %s369 = scalar_lea.vmem %s223, 16
      %v370 = vld [vmem:[%s369] sm:$0xf]
      %v371 = vld [vmem:[%s369 + $0x4] sm:$0xf]
      %v374 = vunpack.c.l.b16 %v370
      %v375 = vunpack.c.l.b16 %v371
      %v376 = vpack.c.b16 %v375, %v374
      %v379 = vsel %vm271, %v368, 0
      %381 = vmatprep.subr.bf16.mxu0 0
      %382 = vmatpush1.bf16.msra.mxu0 %v376
      %383 = vmatprep.subr.bf16.mxu0 0
      %384 = vmatpush1.bf16.msra.mxu0 0
      %385 = vmatprep.subr.bf16.mxu0 0
      %386 = vmatpush1.bf16.msra.mxu0 0
      %387 = vmatprep.subr.bf16.mxu0 0
      %388 = vmatpush1.bf16.msra.mxu0 0
      %389 = vmatprep.subr.bf16.mxu0 0
      %390 = vmatpush1.bf16.msra.mxu0 0
      %391 = vmatprep.subr.bf16.mxu0 0
      %392 = vmatpush1.bf16.msra.mxu0 0
      %393 = vmatprep.subr.bf16.mxu0 0
      %394 = vmatpush1.bf16.msra.mxu0 0
      %395 = vmatprep.subr.bf16.mxu0 0
      %396 = vmatpush1.bf16.msra.mxu0 0
      %397 = vmatprep.subr.bf16.mxu0 0
      %398 = vmatpush1.bf16.msra.mxu0 0
      %399 = vmatprep.subr.bf16.mxu0 0
      %400 = vmatpush1.bf16.msra.mxu0 0
      %401 = vmatprep.subr.bf16.mxu0 0
      %402 = vmatpush1.bf16.msra.mxu0 0
      %403 = vmatprep.subr.bf16.mxu0 0
      %404 = vmatpush1.bf16.msra.mxu0 0
      %405 = vmatprep.subr.bf16.mxu0 0
      %406 = vmatpush1.bf16.msra.mxu0 0
      %407 = vmatprep.subr.bf16.mxu0 0
      %408 = vmatpush1.bf16.msra.mxu0 0
      %409 = vmatprep.subr.bf16.mxu0 0
      %410 = vmatpush1.bf16.msra.mxu0 0
      %411 = vmatprep.subr.bf16.mxu0 0
      %412 = vmatpush1.bf16.msra.mxu0 0
      %413 = vmatprep.mubr.bf16.mxu0 0
      %414 = vmatmul.mubr.bf16.gmra.mrb[0].mxu0 %v379
      %v415 = vpop.f32.mrb[0].mxu0
      %v416 = vadd.f32 0.0, %v415
      %v417 = vpop.f32.mrb[0].mxu0
      %v418 = vpop.f32.mrb[0].mxu0
      %v419 = vpop.f32.mrb[0].mxu0
      %420 = vdwg.mxu0
      %v421 = vadd.f32 %v359, %v416
      %v422 = vld [vmem:[%s367] sm:$0xf]
      %v423 = vld [vmem:[%s367 + $0x4] sm:$0x1]
      %s424 = scalar_lea.vmem %s223, 24
      %v425 = vld [vmem:[%s424] sm:$0xf]
      %v426 = vld [vmem:[%s424 + $0x4] sm:$0xf]
      %v429 = vunpack.c.l.b16 %v422
      %v430 = vunpack.c.l.b16 %v423
      %v431 = vpack.c.b16 %v430, %v429
      %v433 = vshrl.u32 %v431, 16
      %v435 = vshll.u32 %v431, 16
      %v437 = vrot.slane %v435, 1
      %v438 = vor.u32 %v433, %v437
      %v441 = vunpack.c.l.b16 %v425
      %v442 = vunpack.c.l.b16 %v426
      %v443 = vpack.c.b16 %v442, %v441
      %v446 = vsel %vm271, %v438, 0
      %448 = vmatprep.subr.bf16.mxu0 0
      %449 = vmatpush1.bf16.msra.mxu0 %v443
      %450 = vmatprep.subr.bf16.mxu0 0
      %451 = vmatpush1.bf16.msra.mxu0 0
      %452 = vmatprep.subr.bf16.mxu0 0
      %453 = vmatpush1.bf16.msra.mxu0 0
      %454 = vmatprep.subr.bf16.mxu0 0
      %455 = vmatpush1.bf16.msra.mxu0 0
      %456 = vmatprep.subr.bf16.mxu0 0
      %457 = vmatpush1.bf16.msra.mxu0 0
      %458 = vmatprep.subr.bf16.mxu0 0
      %459 = vmatpush1.bf16.msra.mxu0 0
      %460 = vmatprep.subr.bf16.mxu0 0
      %461 = vmatpush1.bf16.msra.mxu0 0
      %462 = vmatprep.subr.bf16.mxu0 0
      %463 = vmatpush1.bf16.msra.mxu0 0
      %464 = vmatprep.subr.bf16.mxu0 0
      %465 = vmatpush1.bf16.msra.mxu0 0
      %466 = vmatprep.subr.bf16.mxu0 0
      %467 = vmatpush1.bf16.msra.mxu0 0
      %468 = vmatprep.subr.bf16.mxu0 0
      %469 = vmatpush1.bf16.msra.mxu0 0
      %470 = vmatprep.subr.bf16.mxu0 0
      %471 = vmatpush1.bf16.msra.mxu0 0
      %472 = vmatprep.subr.bf16.mxu0 0
      %473 = vmatpush1.bf16.msra.mxu0 0
      %474 = vmatprep.subr.bf16.mxu0 0
      %475 = vmatpush1.bf16.msra.mxu0 0
      %476 = vmatprep.subr.bf16.mxu0 0
      %477 = vmatpush1.bf16.msra.mxu0 0
      %478 = vmatprep.subr.bf16.mxu0 0
      %479 = vmatpush1.bf16.msra.mxu0 0
      %480 = vmatprep.mubr.bf16.mxu0 0
      %481 = vmatmul.mubr.bf16.gmra.mrb[0].mxu0 %v446
      %v482 = vpop.f32.mrb[0].mxu0
      %v483 = vadd.f32 0.0, %v482
      %v484 = vpop.f32.mrb[0].mxu0
      %v485 = vpop.f32.mrb[0].mxu0
      %v486 = vpop.f32.mrb[0].mxu0
      %487 = vdwg.mxu0
      %v488 = vadd.f32 %v421, %v483
      %v490 = vlaneseq
      %v491 = vshrl.u32 %v490, 7
      %v492 = vsub.s32 0, %v491
      %v493 = vrot.slane %v242, %v492
      %v495 = vadd.f32 %v488, %v493
      %v496 = vmax.f32 %v495, 0.0
      %v497 = vpack.c.bf16 %v496, %v496
      %498 = vst [vmem:[%s238] sm:$0xf] %v497
      %v499 = vld [vmem:[%s367] sm:$0xf]
      %v500 = vld [vmem:[%s223] sm:$0xf]
      %v501 = vld [vmem:[%s223 + $0x4] sm:$0xf]
      %v502 = vld [vmem:[%s367 + $0x4] sm:$0x1]
      %v503 = vld [vmem:[%s250] sm:$0xf]
      %v504 = vld [vmem:[%s250 + $0x4] sm:$0xf]
      %v507 = vunpack.c.l.b16 %v499
      %v508 = vunpack.c.l.b16 %v502
      %v509 = vpack.c.b16 %v508, %v507
      %v511 = vshrl.u32 %v509, 16
      %v513 = vshll.u32 %v509, 16
      %v515 = vrot.slane %v513, 1
      %v516 = vor.u32 %v511, %v515
      %v519 = vunpack.c.l.b16 %v503
      %v520 = vunpack.c.l.b16 %v504
      %v521 = vpack.c.b16 %v520, %v519
      %v524 = vsel %vm271, %v516, 0
      %526 = vmatprep.subr.bf16.mxu0 0
      %527 = vmatpush1.bf16.msra.mxu0 %v521
      %528 = vmatprep.subr.bf16.mxu0 0
      %529 = vmatpush1.bf16.msra.mxu0 0
      %530 = vmatprep.subr.bf16.mxu0 0
      %531 = vmatpush1.bf16.msra.mxu0 0
      %532 = vmatprep.subr.bf16.mxu0 0
      %533 = vmatpush1.bf16.msra.mxu0 0
      %534 = vmatprep.subr.bf16.mxu0 0
      %535 = vmatpush1.bf16.msra.mxu0 0
      %536 = vmatprep.subr.bf16.mxu0 0
      %537 = vmatpush1.bf16.msra.mxu0 0
      %538 = vmatprep.subr.bf16.mxu0 0
      %539 = vmatpush1.bf16.msra.mxu0 0
      %540 = vmatprep.subr.bf16.mxu0 0
      %541 = vmatpush1.bf16.msra.mxu0 0
      %542 = vmatprep.subr.bf16.mxu0 0
      %543 = vmatpush1.bf16.msra.mxu0 0
      %544 = vmatprep.subr.bf16.mxu0 0
      %545 = vmatpush1.bf16.msra.mxu0 0
      %546 = vmatprep.subr.bf16.mxu0 0
      %547 = vmatpush1.bf16.msra.mxu0 0
      %548 = vmatprep.subr.bf16.mxu0 0
      %549 = vmatpush1.bf16.msra.mxu0 0
      %550 = vmatprep.subr.bf16.mxu0 0
      %551 = vmatpush1.bf16.msra.mxu0 0
      %552 = vmatprep.subr.bf16.mxu0 0
      %553 = vmatpush1.bf16.msra.mxu0 0
      %554 = vmatprep.subr.bf16.mxu0 0
      %555 = vmatpush1.bf16.msra.mxu0 0
      %556 = vmatprep.subr.bf16.mxu0 0
      %557 = vmatpush1.bf16.msra.mxu0 0
      %558 = vmatprep.mubr.bf16.mxu0 0
      %559 = vmatmul.mubr.bf16.gmra.mrb[0].mxu0 %v524
      %v560 = vpop.f32.mrb[0].mxu0
      %v561 = vadd.f32 0.0, %v560
      %v562 = vpop.f32.mrb[0].mxu0
      %v563 = vpop.f32.mrb[0].mxu0
      %v564 = vpop.f32.mrb[0].mxu0
      %565 = vdwg.mxu0
      %v568 = vunpack.c.l.b16 %v500
      %v569 = vunpack.c.l.b16 %v501
      %v570 = vpack.c.b16 %v569, %v568
      %v573 = vsel %vm271, %v499, 0
      %575 = vmatprep.subr.bf16.mxu0 0
      %576 = vmatpush1.bf16.msra.mxu0 %v570
      %577 = vmatprep.subr.bf16.mxu0 0
      %578 = vmatpush1.bf16.msra.mxu0 0
      %579 = vmatprep.subr.bf16.mxu0 0
      %580 = vmatpush1.bf16.msra.mxu0 0
      %581 = vmatprep.subr.bf16.mxu0 0
      %582 = vmatpush1.bf16.msra.mxu0 0
      %583 = vmatprep.subr.bf16.mxu0 0
      %584 = vmatpush1.bf16.msra.mxu0 0
      %585 = vmatprep.subr.bf16.mxu0 0
      %586 = vmatpush1.bf16.msra.mxu0 0
      %587 = vmatprep.subr.bf16.mxu0 0
      %588 = vmatpush1.bf16.msra.mxu0 0
      %589 = vmatprep.subr.bf16.mxu0 0
      %590 = vmatpush1.bf16.msra.mxu0 0
      %591 = vmatprep.subr.bf16.mxu0 0
      %592 = vmatpush1.bf16.msra.mxu0 0
      %593 = vmatprep.subr.bf16.mxu0 0
      %594 = vmatpush1.bf16.msra.mxu0 0
      %595 = vmatprep.subr.bf16.mxu0 0
      %596 = vmatpush1.bf16.msra.mxu0 0
      %597 = vmatprep.subr.bf16.mxu0 0
      %598 = vmatpush1.bf16.msra.mxu0 0
      %599 = vmatprep.subr.bf16.mxu0 0
      %600 = vmatpush1.bf16.msra.mxu0 0
      %601 = vmatprep.subr.bf16.mxu0 0
      %602 = vmatpush1.bf16.msra.mxu0 0
      %603 = vmatprep.subr.bf16.mxu0 0
      %604 = vmatpush1.bf16.msra.mxu0 0
      %605 = vmatprep.subr.bf16.mxu0 0
      %606 = vmatpush1.bf16.msra.mxu0 0
      %607 = vmatprep.mubr.bf16.mxu0 0
      %608 = vmatmul.mubr.bf16.gmra.mrb[0].mxu0 %v573
      %v609 = vpop.f32.mrb[0].mxu0
      %v610 = vadd.f32 %v561, %v609
      %v611 = vpop.f32.mrb[0].mxu0
      %v612 = vpop.f32.mrb[0].mxu0
      %v613 = vpop.f32.mrb[0].mxu0
      %614 = vdwg.mxu0
      %s615 = sadd.s32 %s241, 2
      %s616 = smul.u32 %s615, 2
      %s617 = smul.addr %s616, 4
      %s618 = scalar_lea.vmem %s219, %s617
      %v619 = vld [vmem:[%s618] sm:$0xf]
      %v620 = vld [vmem:[%s369] sm:$0xf]
      %v621 = vld [vmem:[%s369 + $0x4] sm:$0xf]
      %v624 = vunpack.c.l.b16 %v620
      %v625 = vunpack.c.l.b16 %v621
      %v626 = vpack.c.b16 %v625, %v624
      %v629 = vsel %vm271, %v619, 0
      %631 = vmatprep.subr.bf16.mxu0 0
      %632 = vmatpush1.bf16.msra.mxu0 %v626
      %633 = vmatprep.subr.bf16.mxu0 0
      %634 = vmatpush1.bf16.msra.mxu0 0
      %635 = vmatprep.subr.bf16.mxu0 0
      %636 = vmatpush1.bf16.msra.mxu0 0
      %637 = vmatprep.subr.bf16.mxu0 0
      %638 = vmatpush1.bf16.msra.mxu0 0
      %639 = vmatprep.subr.bf16.mxu0 0
      %640 = vmatpush1.bf16.msra.mxu0 0
      %641 = vmatprep.subr.bf16.mxu0 0
      %642 = vmatpush1.bf16.msra.mxu0 0
      %643 = vmatprep.subr.bf16.mxu0 0
      %644 = vmatpush1.bf16.msra.mxu0 0
      %645 = vmatprep.subr.bf16.mxu0 0
      %646 = vmatpush1.bf16.msra.mxu0 0
      %647 = vmatprep.subr.bf16.mxu0 0
      %648 = vmatpush1.bf16.msra.mxu0 0
      %649 = vmatprep.subr.bf16.mxu0 0
      %650 = vmatpush1.bf16.msra.mxu0 0
      %651 = vmatprep.subr.bf16.mxu0 0
      %652 = vmatpush1.bf16.msra.mxu0 0
      %653 = vmatprep.subr.bf16.mxu0 0
      %654 = vmatpush1.bf16.msra.mxu0 0
      %655 = vmatprep.subr.bf16.mxu0 0
      %656 = vmatpush1.bf16.msra.mxu0 0
      %657 = vmatprep.subr.bf16.mxu0 0
      %658 = vmatpush1.bf16.msra.mxu0 0
      %659 = vmatprep.subr.bf16.mxu0 0
      %660 = vmatpush1.bf16.msra.mxu0 0
      %661 = vmatprep.subr.bf16.mxu0 0
      %662 = vmatpush1.bf16.msra.mxu0 0
      %663 = vmatprep.mubr.bf16.mxu0 0
      %664 = vmatmul.mubr.bf16.gmra.mrb[0].mxu0 %v629
      %v665 = vpop.f32.mrb[0].mxu0
      %v666 = vadd.f32 0.0, %v665
      %v667 = vpop.f32.mrb[0].mxu0
      %v668 = vpop.f32.mrb[0].mxu0
      %v669 = vpop.f32.mrb[0].mxu0
      %670 = vdwg.mxu0
      %v671 = vadd.f32 %v610, %v666
      %v672 = vld [vmem:[%s618] sm:$0xf]
      %v673 = vld [vmem:[%s618 + $0x4] sm:$0x1]
      %v674 = vld [vmem:[%s424] sm:$0xf]
      %v675 = vld [vmem:[%s424 + $0x4] sm:$0xf]
      %v678 = vunpack.c.l.b16 %v672
      %v679 = vunpack.c.l.b16 %v673
      %v680 = vpack.c.b16 %v679, %v678
      %v682 = vshrl.u32 %v680, 16
      %v684 = vshll.u32 %v680, 16
      %v686 = vrot.slane %v684, 1
      %v687 = vor.u32 %v682, %v686
      %v690 = vunpack.c.l.b16 %v674
      %v691 = vunpack.c.l.b16 %v675
      %v692 = vpack.c.b16 %v691, %v690
      %v695 = vsel %vm271, %v687, 0
      %697 = vmatprep.subr.bf16.mxu0 0
      %698 = vmatpush1.bf16.msra.mxu0 %v692
      %699 = vmatprep.subr.bf16.mxu0 0
      %700 = vmatpush1.bf16.msra.mxu0 0
      %701 = vmatprep.subr.bf16.mxu0 0
      %702 = vmatpush1.bf16.msra.mxu0 0
      %703 = vmatprep.subr.bf16.mxu0 0
      %704 = vmatpush1.bf16.msra.mxu0 0
      %705 = vmatprep.subr.bf16.mxu0 0
      %706 = vmatpush1.bf16.msra.mxu0 0
      %707 = vmatprep.subr.bf16.mxu0 0
      %708 = vmatpush1.bf16.msra.mxu0 0
      %709 = vmatprep.subr.bf16.mxu0 0
      %710 = vmatpush1.bf16.msra.mxu0 0
      %711 = vmatprep.subr.bf16.mxu0 0
      %712 = vmatpush1.bf16.msra.mxu0 0
      %713 = vmatprep.subr.bf16.mxu0 0
      %714 = vmatpush1.bf16.msra.mxu0 0
      %715 = vmatprep.subr.bf16.mxu0 0
      %716 = vmatpush1.bf16.msra.mxu0 0
      %717 = vmatprep.subr.bf16.mxu0 0
      %718 = vmatpush1.bf16.msra.mxu0 0
      %719 = vmatprep.subr.bf16.mxu0 0
      %720 = vmatpush1.bf16.msra.mxu0 0
      %721 = vmatprep.subr.bf16.mxu0 0
      %722 = vmatpush1.bf16.msra.mxu0 0
      %723 = vmatprep.subr.bf16.mxu0 0
      %724 = vmatpush1.bf16.msra.mxu0 0
      %725 = vmatprep.subr.bf16.mxu0 0
      %726 = vmatpush1.bf16.msra.mxu0 0
      %727 = vmatprep.subr.bf16.mxu0 0
      %728 = vmatpush1.bf16.msra.mxu0 0
      %729 = vmatprep.mubr.bf16.mxu0 0
      %730 = vmatmul.mubr.bf16.gmra.mrb[0].mxu0 %v695
      %v731 = vpop.f32.mrb[0].mxu0
      %v732 = vadd.f32 0.0, %v731
      %v733 = vpop.f32.mrb[0].mxu0
      %v734 = vpop.f32.mrb[0].mxu0
      %v735 = vpop.f32.mrb[0].mxu0
      %736 = vdwg.mxu0
      %v737 = vadd.f32 %v671, %v732
      %v738 = vadd.f32 %v737, %v493
      %v739 = vmax.f32 %v738, 0.0
      %v740 = vpack.c.bf16 %v739, %v739
      %s741 = scalar_lea.vmem %s238, 4
      %742 = vst [vmem:[%s741] sm:$0xf] %v740
      %v743 = vld [vmem:[%s618] sm:$0xf]
      %v744 = vld [vmem:[%s223] sm:$0xf]
      %v745 = vld [vmem:[%s223 + $0x4] sm:$0xf]
      %v746 = vld [vmem:[%s618 + $0x4] sm:$0x1]
      %v747 = vld [vmem:[%s250] sm:$0xf]
      %v748 = vld [vmem:[%s250 + $0x4] sm:$0xf]
      %v751 = vunpack.c.l.b16 %v743
      %v752 = vunpack.c.l.b16 %v746
      %v753 = vpack.c.b16 %v752, %v751
      %v755 = vshrl.u32 %v753, 16
      %v757 = vshll.u32 %v753, 16
      %v759 = vrot.slane %v757, 1
      %v760 = vor.u32 %v755, %v759
      %v763 = vunpack.c.l.b16 %v747
      %v764 = vunpack.c.l.b16 %v748
      %v765 = vpack.c.b16 %v764, %v763
      %v768 = vsel %vm271, %v760, 0
      %770 = vmatprep.subr.bf16.mxu0 0
      %771 = vmatpush1.bf16.msra.mxu0 %v765
      %772 = vmatprep.subr.bf16.mxu0 0
      %773 = vmatpush1.bf16.msra.mxu0 0
      %774 = vmatprep.subr.bf16.mxu0 0
      %775 = vmatpush1.bf16.msra.mxu0 0
      %776 = vmatprep.subr.bf16.mxu0 0
      %777 = vmatpush1.bf16.msra.mxu0 0
      %778 = vmatprep.subr.bf16.mxu0 0
      %779 = vmatpush1.bf16.msra.mxu0 0
      %780 = vmatprep.subr.bf16.mxu0 0
      %781 = vmatpush1.bf16.msra.mxu0 0
      %782 = vmatprep.subr.bf16.mxu0 0
      %783 = vmatpush1.bf16.msra.mxu0 0
      %784 = vmatprep.subr.bf16.mxu0 0
      %785 = vmatpush1.bf16.msra.mxu0 0
      %786 = vmatprep.subr.bf16.mxu0 0
      %787 = vmatpush1.bf16.msra.mxu0 0
      %788 = vmatprep.subr.bf16.mxu0 0
      %789 = vmatpush1.bf16.msra.mxu0 0
      %790 = vmatprep.subr.bf16.mxu0 0
      %791 = vmatpush1.bf16.msra.mxu0 0
      %792 = vmatprep.subr.bf16.mxu0 0
      %793 = vmatpush1.bf16.msra.mxu0 0
      %794 = vmatprep.subr.bf16.mxu0 0
      %795 = vmatpush1.bf16.msra.mxu0 0
      %796 = vmatprep.subr.bf16.mxu0 0
      %797 = vmatpush1.bf16.msra.mxu0 0
      %798 = vmatprep.subr.bf16.mxu0 0
      %799 = vmatpush1.bf16.msra.mxu0 0
      %800 = vmatprep.subr.bf16.mxu0 0
      %801 = vmatpush1.bf16.msra.mxu0 0
      %802 = vmatprep.mubr.bf16.mxu0 0
      %803 = vmatmul.mubr.bf16.gmra.mrb[0].mxu0 %v768
      %v804 = vpop.f32.mrb[0].mxu0
      %v805 = vadd.f32 0.0, %v804
      %v806 = vpop.f32.mrb[0].mxu0
      %v807 = vpop.f32.mrb[0].mxu0
      %v808 = vpop.f32.mrb[0].mxu0
      %809 = vdwg.mxu0
      %v812 = vunpack.c.l.b16 %v744
      %v813 = vunpack.c.l.b16 %v745
      %v814 = vpack.c.b16 %v813, %v812
      %v817 = vsel %vm271, %v743, 0
      %819 = vmatprep.subr.bf16.mxu0 0
      %820 = vmatpush1.bf16.msra.mxu0 %v814
      %821 = vmatprep.subr.bf16.mxu0 0
      %822 = vmatpush1.bf16.msra.mxu0 0
      %823 = vmatprep.subr.bf16.mxu0 0
      %824 = vmatpush1.bf16.msra.mxu0 0
      %825 = vmatprep.subr.bf16.mxu0 0
      %826 = vmatpush1.bf16.msra.mxu0 0
      %827 = vmatprep.subr.bf16.mxu0 0
      %828 = vmatpush1.bf16.msra.mxu0 0
      %829 = vmatprep.subr.bf16.mxu0 0
      %830 = vmatpush1.bf16.msra.mxu0 0
      %831 = vmatprep.subr.bf16.mxu0 0
      %832 = vmatpush1.bf16.msra.mxu0 0
      %833 = vmatprep.subr.bf16.mxu0 0
      %834 = vmatpush1.bf16.msra.mxu0 0
      %835 = vmatprep.subr.bf16.mxu0 0
      %836 = vmatpush1.bf16.msra.mxu0 0
      %837 = vmatprep.subr.bf16.mxu0 0
      %838 = vmatpush1.bf16.msra.mxu0 0
      %839 = vmatprep.subr.bf16.mxu0 0
      %840 = vmatpush1.bf16.msra.mxu0 0
      %841 = vmatprep.subr.bf16.mxu0 0
      %842 = vmatpush1.bf16.msra.mxu0 0
      %843 = vmatprep.subr.bf16.mxu0 0
      %844 = vmatpush1.bf16.msra.mxu0 0
      %845 = vmatprep.subr.bf16.mxu0 0
      %846 = vmatpush1.bf16.msra.mxu0 0
      %847 = vmatprep.subr.bf16.mxu0 0
      %848 = vmatpush1.bf16.msra.mxu0 0
      %849 = vmatprep.subr.bf16.mxu0 0
      %850 = vmatpush1.bf16.msra.mxu0 0
      %851 = vmatprep.mubr.bf16.mxu0 0
      %852 = vmatmul.mubr.bf16.gmra.mrb[0].mxu0 %v817
      %v853 = vpop.f32.mrb[0].mxu0
      %v854 = vadd.f32 %v805, %v853
      %v855 = vpop.f32.mrb[0].mxu0
      %v856 = vpop.f32.mrb[0].mxu0
      %v857 = vpop.f32.mrb[0].mxu0
      %858 = vdwg.mxu0
      %s859 = sadd.s32 %s241, 3
      %s860 = smul.u32 %s859, 2
      %s861 = smul.addr %s860, 4
      %s862 = scalar_lea.vmem %s219, %s861
      %v863 = vld [vmem:[%s862] sm:$0xf]
      %v864 = vld [vmem:[%s369] sm:$0xf]
      %v865 = vld [vmem:[%s369 + $0x4] sm:$0xf]
      %v868 = vunpack.c.l.b16 %v864
      %v869 = vunpack.c.l.b16 %v865
      %v870 = vpack.c.b16 %v869, %v868
      %v873 = vsel %vm271, %v863, 0
      %875 = vmatprep.subr.bf16.mxu0 0
      %876 = vmatpush1.bf16.msra.mxu0 %v870
      %877 = vmatprep.subr.bf16.mxu0 0
      %878 = vmatpush1.bf16.msra.mxu0 0
      %879 = vmatprep.subr.bf16.mxu0 0
      %880 = vmatpush1.bf16.msra.mxu0 0
      %881 = vmatprep.subr.bf16.mxu0 0
      %882 = vmatpush1.bf16.msra.mxu0 0
      %883 = vmatprep.subr.bf16.mxu0 0
      %884 = vmatpush1.bf16.msra.mxu0 0
      %885 = vmatprep.subr.bf16.mxu0 0
      %886 = vmatpush1.bf16.msra.mxu0 0
      %887 = vmatprep.subr.bf16.mxu0 0
      %888 = vmatpush1.bf16.msra.mxu0 0
      %889 = vmatprep.subr.bf16.mxu0 0
      %890 = vmatpush1.bf16.msra.mxu0 0
      %891 = vmatprep.subr.bf16.mxu0 0
      %892 = vmatpush1.bf16.msra.mxu0 0
      %893 = vmatprep.subr.bf16.mxu0 0
      %894 = vmatpush1.bf16.msra.mxu0 0
      %895 = vmatprep.subr.bf16.mxu0 0
      %896 = vmatpush1.bf16.msra.mxu0 0
      %897 = vmatprep.subr.bf16.mxu0 0
      %898 = vmatpush1.bf16.msra.mxu0 0
      %899 = vmatprep.subr.bf16.mxu0 0
      %900 = vmatpush1.bf16.msra.mxu0 0
      %901 = vmatprep.subr.bf16.mxu0 0
      %902 = vmatpush1.bf16.msra.mxu0 0
      %903 = vmatprep.subr.bf16.mxu0 0
      %904 = vmatpush1.bf16.msra.mxu0 0
      %905 = vmatprep.subr.bf16.mxu0 0
      %906 = vmatpush1.bf16.msra.mxu0 0
      %907 = vmatprep.mubr.bf16.mxu0 0
      %908 = vmatmul.mubr.bf16.gmra.mrb[0].mxu0 %v873
      %v909 = vpop.f32.mrb[0].mxu0
      %v910 = vadd.f32 0.0, %v909
      %v911 = vpop.f32.mrb[0].mxu0
      %v912 = vpop.f32.mrb[0].mxu0
      %v913 = vpop.f32.mrb[0].mxu0
      %914 = vdwg.mxu0
      %v915 = vadd.f32 %v854, %v910
      %v916 = vld [vmem:[%s862] sm:$0xf]
      %v917 = vld [vmem:[%s862 + $0x4] sm:$0x1]
      %v918 = vld [vmem:[%s424] sm:$0xf]
      %v919 = vld [vmem:[%s424 + $0x4] sm:$0xf]
      %v922 = vunpack.c.l.b16 %v916
      %v923 = vunpack.c.l.b16 %v917
      %v924 = vpack.c.b16 %v923, %v922
      %v926 = vshrl.u32 %v924, 16
      %v928 = vshll.u32 %v924, 16
      %v930 = vrot.slane %v928, 1
      %v931 = vor.u32 %v926, %v930
      %v934 = vunpack.c.l.b16 %v918
      %v935 = vunpack.c.l.b16 %v919
      %v936 = vpack.c.b16 %v935, %v934
      %v939 = vsel %vm271, %v931, 0
      %941 = vmatprep.subr.bf16.mxu0 0
      %942 = vmatpush1.bf16.msra.mxu0 %v936
      %943 = vmatprep.subr.bf16.mxu0 0
      %944 = vmatpush1.bf16.msra.mxu0 0
      %945 = vmatprep.subr.bf16.mxu0 0
      %946 = vmatpush1.bf16.msra.mxu0 0
      %947 = vmatprep.subr.bf16.mxu0 0
      %948 = vmatpush1.bf16.msra.mxu0 0
      %949 = vmatprep.subr.bf16.mxu0 0
      %950 = vmatpush1.bf16.msra.mxu0 0
      %951 = vmatprep.subr.bf16.mxu0 0
      %952 = vmatpush1.bf16.msra.mxu0 0
      %953 = vmatprep.subr.bf16.mxu0 0
      %954 = vmatpush1.bf16.msra.mxu0 0
      %955 = vmatprep.subr.bf16.mxu0 0
      %956 = vmatpush1.bf16.msra.mxu0 0
      %957 = vmatprep.subr.bf16.mxu0 0
      %958 = vmatpush1.bf16.msra.mxu0 0
      %959 = vmatprep.subr.bf16.mxu0 0
      %960 = vmatpush1.bf16.msra.mxu0 0
      %961 = vmatprep.subr.bf16.mxu0 0
      %962 = vmatpush1.bf16.msra.mxu0 0
      %963 = vmatprep.subr.bf16.mxu0 0
      %964 = vmatpush1.bf16.msra.mxu0 0
      %965 = vmatprep.subr.bf16.mxu0 0
      %966 = vmatpush1.bf16.msra.mxu0 0
      %967 = vmatprep.subr.bf16.mxu0 0
      %968 = vmatpush1.bf16.msra.mxu0 0
      %969 = vmatprep.subr.bf16.mxu0 0
      %970 = vmatpush1.bf16.msra.mxu0 0
      %971 = vmatprep.subr.bf16.mxu0 0
      %972 = vmatpush1.bf16.msra.mxu0 0
      %973 = vmatprep.mubr.bf16.mxu0 0
      %974 = vmatmul.mubr.bf16.gmra.mrb[0].mxu0 %v939
      %v975 = vpop.f32.mrb[0].mxu0
      %v976 = vadd.f32 0.0, %v975
      %v977 = vpop.f32.mrb[0].mxu0
      %v978 = vpop.f32.mrb[0].mxu0
      %v979 = vpop.f32.mrb[0].mxu0
      %980 = vdwg.mxu0
      %v981 = vadd.f32 %v915, %v976
      %v982 = vadd.f32 %v981, %v493
      %v983 = vmax.f32 %v982, 0.0
      %v984 = vpack.c.bf16 %v983, %v983
      %s985 = scalar_lea.vmem %s238, 8
      %986 = vst [vmem:[%s985] sm:$0xf] %v984
      %v987 = vld [vmem:[%s862] sm:$0xf]
      %v988 = vld [vmem:[%s223] sm:$0xf]
      %v989 = vld [vmem:[%s223 + $0x4] sm:$0xf]
      %v990 = vld [vmem:[%s862 + $0x4] sm:$0x1]
      %v991 = vld [vmem:[%s250] sm:$0xf]
      %v992 = vld [vmem:[%s250 + $0x4] sm:$0xf]
      %v995 = vunpack.c.l.b16 %v987
      %v996 = vunpack.c.l.b16 %v990
      %v997 = vpack.c.b16 %v996, %v995
      %v999 = vshrl.u32 %v997, 16
      %v1001 = vshll.u32 %v997, 16
      %v1003 = vrot.slane %v1001, 1
      %v1004 = vor.u32 %v999, %v1003
      %v1007 = vunpack.c.l.b16 %v991
      %v1008 = vunpack.c.l.b16 %v992
      %v1009 = vpack.c.b16 %v1008, %v1007
      %v1012 = vsel %vm271, %v1004, 0
      %1014 = vmatprep.subr.bf16.mxu0 0
      %1015 = vmatpush1.bf16.msra.mxu0 %v1009
      %1016 = vmatprep.subr.bf16.mxu0 0
      %1017 = vmatpush1.bf16.msra.mxu0 0
      %1018 = vmatprep.subr.bf16.mxu0 0
      %1019 = vmatpush1.bf16.msra.mxu0 0
      %1020 = vmatprep.subr.bf16.mxu0 0
      %1021 = vmatpush1.bf16.msra.mxu0 0
      %1022 = vmatprep.subr.bf16.mxu0 0
      %1023 = vmatpush1.bf16.msra.mxu0 0
      %1024 = vmatprep.subr.bf16.mxu0 0
      %1025 = vmatpush1.bf16.msra.mxu0 0
      %1026 = vmatprep.subr.bf16.mxu0 0
      %1027 = vmatpush1.bf16.msra.mxu0 0
      %1028 = vmatprep.subr.bf16.mxu0 0
      %1029 = vmatpush1.bf16.msra.mxu0 0
      %1030 = vmatprep.subr.bf16.mxu0 0
      %1031 = vmatpush1.bf16.msra.mxu0 0
      %1032 = vmatprep.subr.bf16.mxu0 0
      %1033 = vmatpush1.bf16.msra.mxu0 0
      %1034 = vmatprep.subr.bf16.mxu0 0
      %1035 = vmatpush1.bf16.msra.mxu0 0
      %1036 = vmatprep.subr.bf16.mxu0 0
      %1037 = vmatpush1.bf16.msra.mxu0 0
      %1038 = vmatprep.subr.bf16.mxu0 0
      %1039 = vmatpush1.bf16.msra.mxu0 0
      %1040 = vmatprep.subr.bf16.mxu0 0
      %1041 = vmatpush1.bf16.msra.mxu0 0
      %1042 = vmatprep.subr.bf16.mxu0 0
      %1043 = vmatpush1.bf16.msra.mxu0 0
      %1044 = vmatprep.subr.bf16.mxu0 0
      %1045 = vmatpush1.bf16.msra.mxu0 0
      %1046 = vmatprep.mubr.bf16.mxu0 0
      %1047 = vmatmul.mubr.bf16.gmra.mrb[0].mxu0 %v1012
      %v1048 = vpop.f32.mrb[0].mxu0
      %v1049 = vadd.f32 0.0, %v1048
      %v1050 = vpop.f32.mrb[0].mxu0
      %v1051 = vpop.f32.mrb[0].mxu0
      %v1052 = vpop.f32.mrb[0].mxu0
      %1053 = vdwg.mxu0
      %v1056 = vunpack.c.l.b16 %v988
      %v1057 = vunpack.c.l.b16 %v989
      %v1058 = vpack.c.b16 %v1057, %v1056
      %v1061 = vsel %vm271, %v987, 0
      %1063 = vmatprep.subr.bf16.mxu0 0
      %1064 = vmatpush1.bf16.msra.mxu0 %v1058
      %1065 = vmatprep.subr.bf16.mxu0 0
      %1066 = vmatpush1.bf16.msra.mxu0 0
      %1067 = vmatprep.subr.bf16.mxu0 0
      %1068 = vmatpush1.bf16.msra.mxu0 0
      %1069 = vmatprep.subr.bf16.mxu0 0
      %1070 = vmatpush1.bf16.msra.mxu0 0
      %1071 = vmatprep.subr.bf16.mxu0 0
      %1072 = vmatpush1.bf16.msra.mxu0 0
      %1073 = vmatprep.subr.bf16.mxu0 0
      %1074 = vmatpush1.bf16.msra.mxu0 0
      %1075 = vmatprep.subr.bf16.mxu0 0
      %1076 = vmatpush1.bf16.msra.mxu0 0
      %1077 = vmatprep.subr.bf16.mxu0 0
      %1078 = vmatpush1.bf16.msra.mxu0 0
      %1079 = vmatprep.subr.bf16.mxu0 0
      %1080 = vmatpush1.bf16.msra.mxu0 0
      %1081 = vmatprep.subr.bf16.mxu0 0
      %1082 = vmatpush1.bf16.msra.mxu0 0
      %1083 = vmatprep.subr.bf16.mxu0 0
      %1084 = vmatpush1.bf16.msra.mxu0 0
      %1085 = vmatprep.subr.bf16.mxu0 0
      %1086 = vmatpush1.bf16.msra.mxu0 0
      %1087 = vmatprep.subr.bf16.mxu0 0
      %1088 = vmatpush1.bf16.msra.mxu0 0
      %1089 = vmatprep.subr.bf16.mxu0 0
      %1090 = vmatpush1.bf16.msra.mxu0 0
      %1091 = vmatprep.subr.bf16.mxu0 0
      %1092 = vmatpush1.bf16.msra.mxu0 0
      %1093 = vmatprep.subr.bf16.mxu0 0
      %1094 = vmatpush1.bf16.msra.mxu0 0
      %1095 = vmatprep.mubr.bf16.mxu0 0
      %1096 = vmatmul.mubr.bf16.gmra.mrb[0].mxu0 %v1061
      %v1097 = vpop.f32.mrb[0].mxu0
      %v1098 = vadd.f32 %v1049, %v1097
      %v1099 = vpop.f32.mrb[0].mxu0
      %v1100 = vpop.f32.mrb[0].mxu0
      %v1101 = vpop.f32.mrb[0].mxu0
      %1102 = vdwg.mxu0
      %s1103 = sadd.s32 %s241, 4
      %s1104 = smul.u32 %s1103, 2
      %s1105 = smul.addr %s1104, 4
      %s1106 = scalar_lea.vmem %s219, %s1105
      %v1107 = vld [vmem:[%s1106] sm:$0xf]
      %v1108 = vld [vmem:[%s369] sm:$0xf]
      %v1109 = vld [vmem:[%s369 + $0x4] sm:$0xf]
      %v1112 = vunpack.c.l.b16 %v1108
      %v1113 = vunpack.c.l.b16 %v1109
      %v1114 = vpack.c.b16 %v1113, %v1112
      %v1117 = vsel %vm271, %v1107, 0
      %1119 = vmatprep.subr.bf16.mxu0 0
      %1120 = vmatpush1.bf16.msra.mxu0 %v1114
      %1121 = vmatprep.subr.bf16.mxu0 0
      %1122 = vmatpush1.bf16.msra.mxu0 0
      %1123 = vmatprep.subr.bf16.mxu0 0
      %1124 = vmatpush1.bf16.msra.mxu0 0
      %1125 = vmatprep.subr.bf16.mxu0 0
      %1126 = vmatpush1.bf16.msra.mxu0 0
      %1127 = vmatprep.subr.bf16.mxu0 0
      %1128 = vmatpush1.bf16.msra.mxu0 0
      %1129 = vmatprep.subr.bf16.mxu0 0
      %1130 = vmatpush1.bf16.msra.mxu0 0
      %1131 = vmatprep.subr.bf16.mxu0 0
      %1132 = vmatpush1.bf16.msra.mxu0 0
      %1133 = vmatprep.subr.bf16.mxu0 0
      %1134 = vmatpush1.bf16.msra.mxu0 0
      %1135 = vmatprep.subr.bf16.mxu0 0
      %1136 = vmatpush1.bf16.msra.mxu0 0
      %1137 = vmatprep.subr.bf16.mxu0 0
      %1138 = vmatpush1.bf16.msra.mxu0 0
      %1139 = vmatprep.subr.bf16.mxu0 0
      %1140 = vmatpush1.bf16.msra.mxu0 0
      %1141 = vmatprep.subr.bf16.mxu0 0
      %1142 = vmatpush1.bf16.msra.mxu0 0
      %1143 = vmatprep.subr.bf16.mxu0 0
      %1144 = vmatpush1.bf16.msra.mxu0 0
      %1145 = vmatprep.subr.bf16.mxu0 0
      %1146 = vmatpush1.bf16.msra.mxu0 0
      %1147 = vmatprep.subr.bf16.mxu0 0
      %1148 = vmatpush1.bf16.msra.mxu0 0
      %1149 = vmatprep.subr.bf16.mxu0 0
      %1150 = vmatpush1.bf16.msra.mxu0 0
      %1151 = vmatprep.mubr.bf16.mxu0 0
      %1152 = vmatmul.mubr.bf16.gmra.mrb[0].mxu0 %v1117
      %v1153 = vpop.f32.mrb[0].mxu0
      %v1154 = vadd.f32 0.0, %v1153
      %v1155 = vpop.f32.mrb[0].mxu0
      %v1156 = vpop.f32.mrb[0].mxu0
      %v1157 = vpop.f32.mrb[0].mxu0
      %1158 = vdwg.mxu0
      %v1159 = vadd.f32 %v1098, %v1154
      %v1160 = vld [vmem:[%s1106] sm:$0xf]
      %v1161 = vld [vmem:[%s1106 + $0x4] sm:$0x1]
      %v1162 = vld [vmem:[%s424] sm:$0xf]
      %v1163 = vld [vmem:[%s424 + $0x4] sm:$0xf]
      %v1166 = vunpack.c.l.b16 %v1160
      %v1167 = vunpack.c.l.b16 %v1161
      %v1168 = vpack.c.b16 %v1167, %v1166
      %v1170 = vshrl.u32 %v1168, 16
      %v1172 = vshll.u32 %v1168, 16
      %v1174 = vrot.slane %v1172, 1
      %v1175 = vor.u32 %v1170, %v1174
      %v1178 = vunpack.c.l.b16 %v1162
      %v1179 = vunpack.c.l.b16 %v1163
      %v1180 = vpack.c.b16 %v1179, %v1178
      %v1183 = vsel %vm271, %v1175, 0
      %1185 = vmatprep.subr.bf16.mxu0 0
      %1186 = vmatpush1.bf16.msra.mxu0 %v1180
      %1187 = vmatprep.subr.bf16.mxu0 0
      %1188 = vmatpush1.bf16.msra.mxu0 0
      %1189 = vmatprep.subr.bf16.mxu0 0
      %1190 = vmatpush1.bf16.msra.mxu0 0
      %1191 = vmatprep.subr.bf16.mxu0 0
      %1192 = vmatpush1.bf16.msra.mxu0 0
      %1193 = vmatprep.subr.bf16.mxu0 0
      %1194 = vmatpush1.bf16.msra.mxu0 0
      %1195 = vmatprep.subr.bf16.mxu0 0
      %1196 = vmatpush1.bf16.msra.mxu0 0
      %1197 = vmatprep.subr.bf16.mxu0 0
      %1198 = vmatpush1.bf16.msra.mxu0 0
      %1199 = vmatprep.subr.bf16.mxu0 0
      %1200 = vmatpush1.bf16.msra.mxu0 0
      %1201 = vmatprep.subr.bf16.mxu0 0
      %1202 = vmatpush1.bf16.msra.mxu0 0
      %1203 = vmatprep.subr.bf16.mxu0 0
      %1204 = vmatpush1.bf16.msra.mxu0 0
      %1205 = vmatprep.subr.bf16.mxu0 0
      %1206 = vmatpush1.bf16.msra.mxu0 0
      %1207 = vmatprep.subr.bf16.mxu0 0
      %1208 = vmatpush1.bf16.msra.mxu0 0
      %1209 = vmatprep.subr.bf16.mxu0 0
      %1210 = vmatpush1.bf16.msra.mxu0 0
      %1211 = vmatprep.subr.bf16.mxu0 0
      %1212 = vmatpush1.bf16.msra.mxu0 0
      %1213 = vmatprep.subr.bf16.mxu0 0
      %1214 = vmatpush1.bf16.msra.mxu0 0
      %1215 = vmatprep.subr.bf16.mxu0 0
      %1216 = vmatpush1.bf16.msra.mxu0 0
      %1217 = vmatprep.mubr.bf16.mxu0 0
      %1218 = vmatmul.mubr.bf16.gmra.mrb[0].mxu0 %v1183
      %v1219 = vpop.f32.mrb[0].mxu0
      %v1220 = vadd.f32 0.0, %v1219
      %v1221 = vpop.f32.mrb[0].mxu0
      %v1222 = vpop.f32.mrb[0].mxu0
      %v1223 = vpop.f32.mrb[0].mxu0
      %1224 = vdwg.mxu0
      %v1225 = vadd.f32 %v1159, %v1220
      %v1226 = vadd.f32 %v1225, %v493
      %v1227 = vmax.f32 %v1226, 0.0
      %v1228 = vpack.c.bf16 %v1227, %v1227
      %s1229 = scalar_lea.vmem %s238, 12
      %1230 = vst [vmem:[%s1229] sm:$0xf] %v1228
      %v1231 = vld [vmem:[%s1106] sm:$0xf]
      %v1232 = vld [vmem:[%s223] sm:$0xf]
      %v1233 = vld [vmem:[%s223 + $0x4] sm:$0xf]
      %v1234 = vld [vmem:[%s1106 + $0x4] sm:$0x1]
      %v1235 = vld [vmem:[%s250] sm:$0xf]
      %v1236 = vld [vmem:[%s250 + $0x4] sm:$0xf]
      %v1239 = vunpack.c.l.b16 %v1231
      %v1240 = vunpack.c.l.b16 %v1234
      %v1241 = vpack.c.b16 %v1240, %v1239
      %v1243 = vshrl.u32 %v1241, 16
      %v1245 = vshll.u32 %v1241, 16
      %v1247 = vrot.slane %v1245, 1
      %v1248 = vor.u32 %v1243, %v1247
      %v1251 = vunpack.c.l.b16 %v1235
      %v1252 = vunpack.c.l.b16 %v1236
      %v1253 = vpack.c.b16 %v1252, %v1251
      %v1256 = vsel %vm271, %v1248, 0
      %1258 = vmatprep.subr.bf16.mxu0 0
      %1259 = vmatpush1.bf16.msra.mxu0 %v1253
      %1260 = vmatprep.subr.bf16.mxu0 0
      %1261 = vmatpush1.bf16.msra.mxu0 0
      %1262 = vmatprep.subr.bf16.mxu0 0
      %1263 = vmatpush1.bf16.msra.mxu0 0
      %1264 = vmatprep.subr.bf16.mxu0 0
      %1265 = vmatpush1.bf16.msra.mxu0 0
      %1266 = vmatprep.subr.bf16.mxu0 0
      %1267 = vmatpush1.bf16.msra.mxu0 0
      %1268 = vmatprep.subr.bf16.mxu0 0
      %1269 = vmatpush1.bf16.msra.mxu0 0
      %1270 = vmatprep.subr.bf16.mxu0 0
      %1271 = vmatpush1.bf16.msra.mxu0 0
      %1272 = vmatprep.subr.bf16.mxu0 0
      %1273 = vmatpush1.bf16.msra.mxu0 0
      %1274 = vmatprep.subr.bf16.mxu0 0
      %1275 = vmatpush1.bf16.msra.mxu0 0
      %1276 = vmatprep.subr.bf16.mxu0 0
      %1277 = vmatpush1.bf16.msra.mxu0 0
      %1278 = vmatprep.subr.bf16.mxu0 0
      %1279 = vmatpush1.bf16.msra.mxu0 0
      %1280 = vmatprep.subr.bf16.mxu0 0
      %1281 = vmatpush1.bf16.msra.mxu0 0
      %1282 = vmatprep.subr.bf16.mxu0 0
      %1283 = vmatpush1.bf16.msra.mxu0 0
      %1284 = vmatprep.subr.bf16.mxu0 0
      %1285 = vmatpush1.bf16.msra.mxu0 0
      %1286 = vmatprep.subr.bf16.mxu0 0
      %1287 = vmatpush1.bf16.msra.mxu0 0
      %1288 = vmatprep.subr.bf16.mxu0 0
      %1289 = vmatpush1.bf16.msra.mxu0 0
      %1290 = vmatprep.mubr.bf16.mxu0 0
      %1291 = vmatmul.mubr.bf16.gmra.mrb[0].mxu0 %v1256
      %v1292 = vpop.f32.mrb[0].mxu0
      %v1293 = vadd.f32 0.0, %v1292
      %v1294 = vpop.f32.mrb[0].mxu0
      %v1295 = vpop.f32.mrb[0].mxu0
      %v1296 = vpop.f32.mrb[0].mxu0
      %1297 = vdwg.mxu0
      %v1300 = vunpack.c.l.b16 %v1232
      %v1301 = vunpack.c.l.b16 %v1233
      %v1302 = vpack.c.b16 %v1301, %v1300
      %v1305 = vsel %vm271, %v1231, 0
      %1307 = vmatprep.subr.bf16.mxu0 0
      %1308 = vmatpush1.bf16.msra.mxu0 %v1302
      %1309 = vmatprep.subr.bf16.mxu0 0
      %1310 = vmatpush1.bf16.msra.mxu0 0
      %1311 = vmatprep.subr.bf16.mxu0 0
      %1312 = vmatpush1.bf16.msra.mxu0 0
      %1313 = vmatprep.subr.bf16.mxu0 0
      %1314 = vmatpush1.bf16.msra.mxu0 0
      %1315 = vmatprep.subr.bf16.mxu0 0
      %1316 = vmatpush1.bf16.msra.mxu0 0
      %1317 = vmatprep.subr.bf16.mxu0 0
      %1318 = vmatpush1.bf16.msra.mxu0 0
      %1319 = vmatprep.subr.bf16.mxu0 0
      %1320 = vmatpush1.bf16.msra.mxu0 0
      %1321 = vmatprep.subr.bf16.mxu0 0
      %1322 = vmatpush1.bf16.msra.mxu0 0
      %1323 = vmatprep.subr.bf16.mxu0 0
      %1324 = vmatpush1.bf16.msra.mxu0 0
      %1325 = vmatprep.subr.bf16.mxu0 0
      %1326 = vmatpush1.bf16.msra.mxu0 0
      %1327 = vmatprep.subr.bf16.mxu0 0
      %1328 = vmatpush1.bf16.msra.mxu0 0
      %1329 = vmatprep.subr.bf16.mxu0 0
      %1330 = vmatpush1.bf16.msra.mxu0 0
      %1331 = vmatprep.subr.bf16.mxu0 0
      %1332 = vmatpush1.bf16.msra.mxu0 0
      %1333 = vmatprep.subr.bf16.mxu0 0
      %1334 = vmatpush1.bf16.msra.mxu0 0
      %1335 = vmatprep.subr.bf16.mxu0 0
      %1336 = vmatpush1.bf16.msra.mxu0 0
      %1337 = vmatprep.subr.bf16.mxu0 0
      %1338 = vmatpush1.bf16.msra.mxu0 0
      %1339 = vmatprep.mubr.bf16.mxu0 0
      %1340 = vmatmul.mubr.bf16.gmra.mrb[0].mxu0 %v1305
      %v1341 = vpop.f32.mrb[0].mxu0
      %v1342 = vadd.f32 %v1293, %v1341
      %v1343 = vpop.f32.mrb[0].mxu0
      %v1344 = vpop.f32.mrb[0].mxu0
      %v1345 = vpop.f32.mrb[0].mxu0
      %1346 = vdwg.mxu0
      %s1347 = sadd.s32 %s241, 5
      %s1348 = smul.u32 %s1347, 2
      %s1349 = smul.addr %s1348, 4
      %s1350 = scalar_lea.vmem %s219, %s1349
      %v1351 = vld [vmem:[%s1350] sm:$0xf]
      %v1352 = vld [vmem:[%s369] sm:$0xf]
      %v1353 = vld [vmem:[%s369 + $0x4] sm:$0xf]
      %v1356 = vunpack.c.l.b16 %v1352
      %v1357 = vunpack.c.l.b16 %v1353
      %v1358 = vpack.c.b16 %v1357, %v1356
      %v1361 = vsel %vm271, %v1351, 0
      %1363 = vmatprep.subr.bf16.mxu0 0
      %1364 = vmatpush1.bf16.msra.mxu0 %v1358
      %1365 = vmatprep.subr.bf16.mxu0 0
      %1366 = vmatpush1.bf16.msra.mxu0 0
      %1367 = vmatprep.subr.bf16.mxu0 0
      %1368 = vmatpush1.bf16.msra.mxu0 0
      %1369 = vmatprep.subr.bf16.mxu0 0
      %1370 = vmatpush1.bf16.msra.mxu0 0
      %1371 = vmatprep.subr.bf16.mxu0 0
      %1372 = vmatpush1.bf16.msra.mxu0 0
      %1373 = vmatprep.subr.bf16.mxu0 0
      %1374 = vmatpush1.bf16.msra.mxu0 0
      %1375 = vmatprep.subr.bf16.mxu0 0
      %1376 = vmatpush1.bf16.msra.mxu0 0
      %1377 = vmatprep.subr.bf16.mxu0 0
      %1378 = vmatpush1.bf16.msra.mxu0 0
      %1379 = vmatprep.subr.bf16.mxu0 0
      %1380 = vmatpush1.bf16.msra.mxu0 0
      %1381 = vmatprep.subr.bf16.mxu0 0
      %1382 = vmatpush1.bf16.msra.mxu0 0
      %1383 = vmatprep.subr.bf16.mxu0 0
      %1384 = vmatpush1.bf16.msra.mxu0 0
      %1385 = vmatprep.subr.bf16.mxu0 0
      %1386 = vmatpush1.bf16.msra.mxu0 0
      %1387 = vmatprep.subr.bf16.mxu0 0
      %1388 = vmatpush1.bf16.msra.mxu0 0
      %1389 = vmatprep.subr.bf16.mxu0 0
      %1390 = vmatpush1.bf16.msra.mxu0 0
      %1391 = vmatprep.subr.bf16.mxu0 0
      %1392 = vmatpush1.bf16.msra.mxu0 0
      %1393 = vmatprep.subr.bf16.mxu0 0
      %1394 = vmatpush1.bf16.msra.mxu0 0
      %1395 = vmatprep.mubr.bf16.mxu0 0
      %1396 = vmatmul.mubr.bf16.gmra.mrb[0].mxu0 %v1361
      %v1397 = vpop.f32.mrb[0].mxu0
      %v1398 = vadd.f32 0.0, %v1397
      %v1399 = vpop.f32.mrb[0].mxu0
      %v1400 = vpop.f32.mrb[0].mxu0
      %v1401 = vpop.f32.mrb[0].mxu0
      %1402 = vdwg.mxu0
      %v1403 = vadd.f32 %v1342, %v1398
      %v1404 = vld [vmem:[%s1350] sm:$0xf]
      %v1405 = vld [vmem:[%s1350 + $0x4] sm:$0x1]
      %v1406 = vld [vmem:[%s424] sm:$0xf]
      %v1407 = vld [vmem:[%s424 + $0x4] sm:$0xf]
      %v1410 = vunpack.c.l.b16 %v1404
      %v1411 = vunpack.c.l.b16 %v1405
      %v1412 = vpack.c.b16 %v1411, %v1410
      %v1414 = vshrl.u32 %v1412, 16
      %v1416 = vshll.u32 %v1412, 16
      %v1418 = vrot.slane %v1416, 1
      %v1419 = vor.u32 %v1414, %v1418
      %v1422 = vunpack.c.l.b16 %v1406
      %v1423 = vunpack.c.l.b16 %v1407
      %v1424 = vpack.c.b16 %v1423, %v1422
      %v1427 = vsel %vm271, %v1419, 0
      %1429 = vmatprep.subr.bf16.mxu0 0
      %1430 = vmatpush1.bf16.msra.mxu0 %v1424
      %1431 = vmatprep.subr.bf16.mxu0 0
      %1432 = vmatpush1.bf16.msra.mxu0 0
      %1433 = vmatprep.subr.bf16.mxu0 0
      %1434 = vmatpush1.bf16.msra.mxu0 0
      %1435 = vmatprep.subr.bf16.mxu0 0
      %1436 = vmatpush1.bf16.msra.mxu0 0
      %1437 = vmatprep.subr.bf16.mxu0 0
      %1438 = vmatpush1.bf16.msra.mxu0 0
      %1439 = vmatprep.subr.bf16.mxu0 0
      %1440 = vmatpush1.bf16.msra.mxu0 0
      %1441 = vmatprep.subr.bf16.mxu0 0
      %1442 = vmatpush1.bf16.msra.mxu0 0
      %1443 = vmatprep.subr.bf16.mxu0 0
      %1444 = vmatpush1.bf16.msra.mxu0 0
      %1445 = vmatprep.subr.bf16.mxu0 0
      %1446 = vmatpush1.bf16.msra.mxu0 0
      %1447 = vmatprep.subr.bf16.mxu0 0
      %1448 = vmatpush1.bf16.msra.mxu0 0
      %1449 = vmatprep.subr.bf16.mxu0 0
      %1450 = vmatpush1.bf16.msra.mxu0 0
      %1451 = vmatprep.subr.bf16.mxu0 0
      %1452 = vmatpush1.bf16.msra.mxu0 0
      %1453 = vmatprep.subr.bf16.mxu0 0
      %1454 = vmatpush1.bf16.msra.mxu0 0
      %1455 = vmatprep.subr.bf16.mxu0 0
      %1456 = vmatpush1.bf16.msra.mxu0 0
      %1457 = vmatprep.subr.bf16.mxu0 0
      %1458 = vmatpush1.bf16.msra.mxu0 0
      %1459 = vmatprep.subr.bf16.mxu0 0
      %1460 = vmatpush1.bf16.msra.mxu0 0
      %1461 = vmatprep.mubr.bf16.mxu0 0
      %1462 = vmatmul.mubr.bf16.gmra.mrb[0].mxu0 %v1427
      %v1463 = vpop.f32.mrb[0].mxu0
      %v1464 = vadd.f32 0.0, %v1463
      %v1465 = vpop.f32.mrb[0].mxu0
      %v1466 = vpop.f32.mrb[0].mxu0
      %v1467 = vpop.f32.mrb[0].mxu0
      %1468 = vdwg.mxu0
      %v1469 = vadd.f32 %v1403, %v1464
      %v1470 = vadd.f32 %v1469, %v493
      %v1471 = vmax.f32 %v1470, 0.0
      %v1472 = vpack.c.bf16 %v1471, %v1471
      %s1473 = scalar_lea.vmem %s238, 16
      %1474 = vst [vmem:[%s1473] sm:$0xf] %v1472
      %v1475 = vld [vmem:[%s1350] sm:$0xf]
      %v1476 = vld [vmem:[%s223] sm:$0xf]
      %v1477 = vld [vmem:[%s223 + $0x4] sm:$0xf]
      %v1478 = vld [vmem:[%s1350 + $0x4] sm:$0x1]
      %v1479 = vld [vmem:[%s250] sm:$0xf]
      %v1480 = vld [vmem:[%s250 + $0x4] sm:$0xf]
      %v1483 = vunpack.c.l.b16 %v1475
      %v1484 = vunpack.c.l.b16 %v1478
      %v1485 = vpack.c.b16 %v1484, %v1483
      %v1487 = vshrl.u32 %v1485, 16
      %v1489 = vshll.u32 %v1485, 16
      %v1491 = vrot.slane %v1489, 1
      %v1492 = vor.u32 %v1487, %v1491
      %v1495 = vunpack.c.l.b16 %v1479
      %v1496 = vunpack.c.l.b16 %v1480
      %v1497 = vpack.c.b16 %v1496, %v1495
      %v1500 = vsel %vm271, %v1492, 0
      %1502 = vmatprep.subr.bf16.mxu0 0
      %1503 = vmatpush1.bf16.msra.mxu0 %v1497
      %1504 = vmatprep.subr.bf16.mxu0 0
      %1505 = vmatpush1.bf16.msra.mxu0 0
      %1506 = vmatprep.subr.bf16.mxu0 0
      %1507 = vmatpush1.bf16.msra.mxu0 0
      %1508 = vmatprep.subr.bf16.mxu0 0
      %1509 = vmatpush1.bf16.msra.mxu0 0
      %1510 = vmatprep.subr.bf16.mxu0 0
      %1511 = vmatpush1.bf16.msra.mxu0 0
      %1512 = vmatprep.subr.bf16.mxu0 0
      %1513 = vmatpush1.bf16.msra.mxu0 0
      %1514 = vmatprep.subr.bf16.mxu0 0
      %1515 = vmatpush1.bf16.msra.mxu0 0
      %1516 = vmatprep.subr.bf16.mxu0 0
      %1517 = vmatpush1.bf16.msra.mxu0 0
      %1518 = vmatprep.subr.bf16.mxu0 0
      %1519 = vmatpush1.bf16.msra.mxu0 0
      %1520 = vmatprep.subr.bf16.mxu0 0
      %1521 = vmatpush1.bf16.msra.mxu0 0
      %1522 = vmatprep.subr.bf16.mxu0 0
      %1523 = vmatpush1.bf16.msra.mxu0 0
      %1524 = vmatprep.subr.bf16.mxu0 0
      %1525 = vmatpush1.bf16.msra.mxu0 0
      %1526 = vmatprep.subr.bf16.mxu0 0
      %1527 = vmatpush1.bf16.msra.mxu0 0
      %1528 = vmatprep.subr.bf16.mxu0 0
      %1529 = vmatpush1.bf16.msra.mxu0 0
      %1530 = vmatprep.subr.bf16.mxu0 0
      %1531 = vmatpush1.bf16.msra.mxu0 0
      %1532 = vmatprep.subr.bf16.mxu0 0
      %1533 = vmatpush1.bf16.msra.mxu0 0
      %1534 = vmatprep.mubr.bf16.mxu0 0
      %1535 = vmatmul.mubr.bf16.gmra.mrb[0].mxu0 %v1500
      %v1536 = vpop.f32.mrb[0].mxu0
      %v1537 = vadd.f32 0.0, %v1536
      %v1538 = vpop.f32.mrb[0].mxu0
      %v1539 = vpop.f32.mrb[0].mxu0
      %v1540 = vpop.f32.mrb[0].mxu0
      %1541 = vdwg.mxu0
      %v1544 = vunpack.c.l.b16 %v1476
      %v1545 = vunpack.c.l.b16 %v1477
      %v1546 = vpack.c.b16 %v1545, %v1544
      %v1549 = vsel %vm271, %v1475, 0
      %1551 = vmatprep.subr.bf16.mxu0 0
      %1552 = vmatpush1.bf16.msra.mxu0 %v1546
      %1553 = vmatprep.subr.bf16.mxu0 0
      %1554 = vmatpush1.bf16.msra.mxu0 0
      %1555 = vmatprep.subr.bf16.mxu0 0
      %1556 = vmatpush1.bf16.msra.mxu0 0
      %1557 = vmatprep.subr.bf16.mxu0 0
      %1558 = vmatpush1.bf16.msra.mxu0 0
      %1559 = vmatprep.subr.bf16.mxu0 0
      %1560 = vmatpush1.bf16.msra.mxu0 0
      %1561 = vmatprep.subr.bf16.mxu0 0
      %1562 = vmatpush1.bf16.msra.mxu0 0
      %1563 = vmatprep.subr.bf16.mxu0 0
      %1564 = vmatpush1.bf16.msra.mxu0 0
      %1565 = vmatprep.subr.bf16.mxu0 0
      %1566 = vmatpush1.bf16.msra.mxu0 0
      %1567 = vmatprep.subr.bf16.mxu0 0
      %1568 = vmatpush1.bf16.msra.mxu0 0
      %1569 = vmatprep.subr.bf16.mxu0 0
      %1570 = vmatpush1.bf16.msra.mxu0 0
      %1571 = vmatprep.subr.bf16.mxu0 0
      %1572 = vmatpush1.bf16.msra.mxu0 0
      %1573 = vmatprep.subr.bf16.mxu0 0
      %1574 = vmatpush1.bf16.msra.mxu0 0
      %1575 = vmatprep.subr.bf16.mxu0 0
      %1576 = vmatpush1.bf16.msra.mxu0 0
      %1577 = vmatprep.subr.bf16.mxu0 0
      %1578 = vmatpush1.bf16.msra.mxu0 0
      %1579 = vmatprep.subr.bf16.mxu0 0
      %1580 = vmatpush1.bf16.msra.mxu0 0
      %1581 = vmatprep.subr.bf16.mxu0 0
      %1582 = vmatpush1.bf16.msra.mxu0 0
      %1583 = vmatprep.mubr.bf16.mxu0 0
      %1584 = vmatmul.mubr.bf16.gmra.mrb[0].mxu0 %v1549
      %v1585 = vpop.f32.mrb[0].mxu0
      %v1586 = vadd.f32 %v1537, %v1585
      %v1587 = vpop.f32.mrb[0].mxu0
      %v1588 = vpop.f32.mrb[0].mxu0
      %v1589 = vpop.f32.mrb[0].mxu0
      %1590 = vdwg.mxu0
      %s1591 = sadd.s32 %s241, 6
      %s1592 = smul.u32 %s1591, 2
      %s1593 = smul.addr %s1592, 4
      %s1594 = scalar_lea.vmem %s219, %s1593
      %v1595 = vld [vmem:[%s1594] sm:$0xf]
      %v1596 = vld [vmem:[%s369] sm:$0xf]
      %v1597 = vld [vmem:[%s369 + $0x4] sm:$0xf]
      %v1600 = vunpack.c.l.b16 %v1596
      %v1601 = vunpack.c.l.b16 %v1597
      %v1602 = vpack.c.b16 %v1601, %v1600
      %v1605 = vsel %vm271, %v1595, 0
      %1607 = vmatprep.subr.bf16.mxu0 0
      %1608 = vmatpush1.bf16.msra.mxu0 %v1602
      %1609 = vmatprep.subr.bf16.mxu0 0
      %1610 = vmatpush1.bf16.msra.mxu0 0
      %1611 = vmatprep.subr.bf16.mxu0 0
      %1612 = vmatpush1.bf16.msra.mxu0 0
      %1613 = vmatprep.subr.bf16.mxu0 0
      %1614 = vmatpush1.bf16.msra.mxu0 0
      %1615 = vmatprep.subr.bf16.mxu0 0
      %1616 = vmatpush1.bf16.msra.mxu0 0
      %1617 = vmatprep.subr.bf16.mxu0 0
      %1618 = vmatpush1.bf16.msra.mxu0 0
      %1619 = vmatprep.subr.bf16.mxu0 0
      %1620 = vmatpush1.bf16.msra.mxu0 0
      %1621 = vmatprep.subr.bf16.mxu0 0
      %1622 = vmatpush1.bf16.msra.mxu0 0
      %1623 = vmatprep.subr.bf16.mxu0 0
      %1624 = vmatpush1.bf16.msra.mxu0 0
      %1625 = vmatprep.subr.bf16.mxu0 0
      %1626 = vmatpush1.bf16.msra.mxu0 0
      %1627 = vmatprep.subr.bf16.mxu0 0
      %1628 = vmatpush1.bf16.msra.mxu0 0
      %1629 = vmatprep.subr.bf16.mxu0 0
      %1630 = vmatpush1.bf16.msra.mxu0 0
      %1631 = vmatprep.subr.bf16.mxu0 0
      %1632 = vmatpush1.bf16.msra.mxu0 0
      %1633 = vmatprep.subr.bf16.mxu0 0
      %1634 = vmatpush1.bf16.msra.mxu0 0
      %1635 = vmatprep.subr.bf16.mxu0 0
      %1636 = vmatpush1.bf16.msra.mxu0 0
      %1637 = vmatprep.subr.bf16.mxu0 0
      %1638 = vmatpush1.bf16.msra.mxu0 0
      %1639 = vmatprep.mubr.bf16.mxu0 0
      %1640 = vmatmul.mubr.bf16.gmra.mrb[0].mxu0 %v1605
      %v1641 = vpop.f32.mrb[0].mxu0
      %v1642 = vadd.f32 0.0, %v1641
      %v1643 = vpop.f32.mrb[0].mxu0
      %v1644 = vpop.f32.mrb[0].mxu0
      %v1645 = vpop.f32.mrb[0].mxu0
      %1646 = vdwg.mxu0
      %v1647 = vadd.f32 %v1586, %v1642
      %v1648 = vld [vmem:[%s1594] sm:$0xf]
      %v1649 = vld [vmem:[%s1594 + $0x4] sm:$0x1]
      %v1650 = vld [vmem:[%s424] sm:$0xf]
      %v1651 = vld [vmem:[%s424 + $0x4] sm:$0xf]
      %v1654 = vunpack.c.l.b16 %v1648
      %v1655 = vunpack.c.l.b16 %v1649
      %v1656 = vpack.c.b16 %v1655, %v1654
      %v1658 = vshrl.u32 %v1656, 16
      %v1660 = vshll.u32 %v1656, 16
      %v1662 = vrot.slane %v1660, 1
      %v1663 = vor.u32 %v1658, %v1662
      %v1666 = vunpack.c.l.b16 %v1650
      %v1667 = vunpack.c.l.b16 %v1651
      %v1668 = vpack.c.b16 %v1667, %v1666
      %v1671 = vsel %vm271, %v1663, 0
      %1673 = vmatprep.subr.bf16.mxu0 0
      %1674 = vmatpush1.bf16.msra.mxu0 %v1668
      %1675 = vmatprep.subr.bf16.mxu0 0
      %1676 = vmatpush1.bf16.msra.mxu0 0
      %1677 = vmatprep.subr.bf16.mxu0 0
      %1678 = vmatpush1.bf16.msra.mxu0 0
      %1679 = vmatprep.subr.bf16.mxu0 0
      %1680 = vmatpush1.bf16.msra.mxu0 0
      %1681 = vmatprep.subr.bf16.mxu0 0
      %1682 = vmatpush1.bf16.msra.mxu0 0
      %1683 = vmatprep.subr.bf16.mxu0 0
      %1684 = vmatpush1.bf16.msra.mxu0 0
      %1685 = vmatprep.subr.bf16.mxu0 0
      %1686 = vmatpush1.bf16.msra.mxu0 0
      %1687 = vmatprep.subr.bf16.mxu0 0
      %1688 = vmatpush1.bf16.msra.mxu0 0
      %1689 = vmatprep.subr.bf16.mxu0 0
      %1690 = vmatpush1.bf16.msra.mxu0 0
      %1691 = vmatprep.subr.bf16.mxu0 0
      %1692 = vmatpush1.bf16.msra.mxu0 0
      %1693 = vmatprep.subr.bf16.mxu0 0
      %1694 = vmatpush1.bf16.msra.mxu0 0
      %1695 = vmatprep.subr.bf16.mxu0 0
      %1696 = vmatpush1.bf16.msra.mxu0 0
      %1697 = vmatprep.subr.bf16.mxu0 0
      %1698 = vmatpush1.bf16.msra.mxu0 0
      %1699 = vmatprep.subr.bf16.mxu0 0
      %1700 = vmatpush1.bf16.msra.mxu0 0
      %1701 = vmatprep.subr.bf16.mxu0 0
      %1702 = vmatpush1.bf16.msra.mxu0 0
      %1703 = vmatprep.subr.bf16.mxu0 0
      %1704 = vmatpush1.bf16.msra.mxu0 0
      %1705 = vmatprep.mubr.bf16.mxu0 0
      %1706 = vmatmul.mubr.bf16.gmra.mrb[0].mxu0 %v1671
      %v1707 = vpop.f32.mrb[0].mxu0
      %v1708 = vadd.f32 0.0, %v1707
      %v1709 = vpop.f32.mrb[0].mxu0
      %v1710 = vpop.f32.mrb[0].mxu0
      %v1711 = vpop.f32.mrb[0].mxu0
      %1712 = vdwg.mxu0
      %v1713 = vadd.f32 %v1647, %v1708
      %v1714 = vadd.f32 %v1713, %v493
      %v1715 = vmax.f32 %v1714, 0.0
      %v1716 = vpack.c.bf16 %v1715, %v1715
      %s1717 = scalar_lea.vmem %s238, 20
      %1718 = vst [vmem:[%s1717] sm:$0xf] %v1716
      %v1719 = vld [vmem:[%s1594] sm:$0xf]
      %v1720 = vld [vmem:[%s223] sm:$0xf]
      %v1721 = vld [vmem:[%s223 + $0x4] sm:$0xf]
      %v1722 = vld [vmem:[%s1594 + $0x4] sm:$0x1]
      %v1723 = vld [vmem:[%s250] sm:$0xf]
      %v1724 = vld [vmem:[%s250 + $0x4] sm:$0xf]
      %v1727 = vunpack.c.l.b16 %v1719
      %v1728 = vunpack.c.l.b16 %v1722
      %v1729 = vpack.c.b16 %v1728, %v1727
      %v1731 = vshrl.u32 %v1729, 16
      %v1733 = vshll.u32 %v1729, 16
      %v1735 = vrot.slane %v1733, 1
      %v1736 = vor.u32 %v1731, %v1735
      %v1739 = vunpack.c.l.b16 %v1723
      %v1740 = vunpack.c.l.b16 %v1724
      %v1741 = vpack.c.b16 %v1740, %v1739
      %v1744 = vsel %vm271, %v1736, 0
      %1746 = vmatprep.subr.bf16.mxu0 0
      %1747 = vmatpush1.bf16.msra.mxu0 %v1741
      %1748 = vmatprep.subr.bf16.mxu0 0
      %1749 = vmatpush1.bf16.msra.mxu0 0
      %1750 = vmatprep.subr.bf16.mxu0 0
      %1751 = vmatpush1.bf16.msra.mxu0 0
      %1752 = vmatprep.subr.bf16.mxu0 0
      %1753 = vmatpush1.bf16.msra.mxu0 0
      %1754 = vmatprep.subr.bf16.mxu0 0
      %1755 = vmatpush1.bf16.msra.mxu0 0
      %1756 = vmatprep.subr.bf16.mxu0 0
      %1757 = vmatpush1.bf16.msra.mxu0 0
      %1758 = vmatprep.subr.bf16.mxu0 0
      %1759 = vmatpush1.bf16.msra.mxu0 0
      %1760 = vmatprep.subr.bf16.mxu0 0
      %1761 = vmatpush1.bf16.msra.mxu0 0
      %1762 = vmatprep.subr.bf16.mxu0 0
      %1763 = vmatpush1.bf16.msra.mxu0 0
      %1764 = vmatprep.subr.bf16.mxu0 0
      %1765 = vmatpush1.bf16.msra.mxu0 0
      %1766 = vmatprep.subr.bf16.mxu0 0
      %1767 = vmatpush1.bf16.msra.mxu0 0
      %1768 = vmatprep.subr.bf16.mxu0 0
      %1769 = vmatpush1.bf16.msra.mxu0 0
      %1770 = vmatprep.subr.bf16.mxu0 0
      %1771 = vmatpush1.bf16.msra.mxu0 0
      %1772 = vmatprep.subr.bf16.mxu0 0
      %1773 = vmatpush1.bf16.msra.mxu0 0
      %1774 = vmatprep.subr.bf16.mxu0 0
      %1775 = vmatpush1.bf16.msra.mxu0 0
      %1776 = vmatprep.subr.bf16.mxu0 0
      %1777 = vmatpush1.bf16.msra.mxu0 0
      %1778 = vmatprep.mubr.bf16.mxu0 0
      %1779 = vmatmul.mubr.bf16.gmra.mrb[0].mxu0 %v1744
      %v1780 = vpop.f32.mrb[0].mxu0
      %v1781 = vadd.f32 0.0, %v1780
      %v1782 = vpop.f32.mrb[0].mxu0
      %v1783 = vpop.f32.mrb[0].mxu0
      %v1784 = vpop.f32.mrb[0].mxu0
      %1785 = vdwg.mxu0
      %v1788 = vunpack.c.l.b16 %v1720
      %v1789 = vunpack.c.l.b16 %v1721
      %v1790 = vpack.c.b16 %v1789, %v1788
      %v1793 = vsel %vm271, %v1719, 0
      %1795 = vmatprep.subr.bf16.mxu0 0
      %1796 = vmatpush1.bf16.msra.mxu0 %v1790
      %1797 = vmatprep.subr.bf16.mxu0 0
      %1798 = vmatpush1.bf16.msra.mxu0 0
      %1799 = vmatprep.subr.bf16.mxu0 0
      %1800 = vmatpush1.bf16.msra.mxu0 0
      %1801 = vmatprep.subr.bf16.mxu0 0
      %1802 = vmatpush1.bf16.msra.mxu0 0
      %1803 = vmatprep.subr.bf16.mxu0 0
      %1804 = vmatpush1.bf16.msra.mxu0 0
      %1805 = vmatprep.subr.bf16.mxu0 0
      %1806 = vmatpush1.bf16.msra.mxu0 0
      %1807 = vmatprep.subr.bf16.mxu0 0
      %1808 = vmatpush1.bf16.msra.mxu0 0
      %1809 = vmatprep.subr.bf16.mxu0 0
      %1810 = vmatpush1.bf16.msra.mxu0 0
      %1811 = vmatprep.subr.bf16.mxu0 0
      %1812 = vmatpush1.bf16.msra.mxu0 0
      %1813 = vmatprep.subr.bf16.mxu0 0
      %1814 = vmatpush1.bf16.msra.mxu0 0
      %1815 = vmatprep.subr.bf16.mxu0 0
      %1816 = vmatpush1.bf16.msra.mxu0 0
      %1817 = vmatprep.subr.bf16.mxu0 0
      %1818 = vmatpush1.bf16.msra.mxu0 0
      %1819 = vmatprep.subr.bf16.mxu0 0
      %1820 = vmatpush1.bf16.msra.mxu0 0
      %1821 = vmatprep.subr.bf16.mxu0 0
      %1822 = vmatpush1.bf16.msra.mxu0 0
      %1823 = vmatprep.subr.bf16.mxu0 0
      %1824 = vmatpush1.bf16.msra.mxu0 0
      %1825 = vmatprep.subr.bf16.mxu0 0
      %1826 = vmatpush1.bf16.msra.mxu0 0
      %1827 = vmatprep.mubr.bf16.mxu0 0
      %1828 = vmatmul.mubr.bf16.gmra.mrb[0].mxu0 %v1793
      %v1829 = vpop.f32.mrb[0].mxu0
      %v1830 = vadd.f32 %v1781, %v1829
      %v1831 = vpop.f32.mrb[0].mxu0
      %v1832 = vpop.f32.mrb[0].mxu0
      %v1833 = vpop.f32.mrb[0].mxu0
      %1834 = vdwg.mxu0
      %s1835 = sadd.s32 %s241, 7
      %s1836 = smul.u32 %s1835, 2
      %s1837 = smul.addr %s1836, 4
      %s1838 = scalar_lea.vmem %s219, %s1837
      %v1839 = vld [vmem:[%s1838] sm:$0xf]
      %v1840 = vld [vmem:[%s369] sm:$0xf]
      %v1841 = vld [vmem:[%s369 + $0x4] sm:$0xf]
      %v1844 = vunpack.c.l.b16 %v1840
      %v1845 = vunpack.c.l.b16 %v1841
      %v1846 = vpack.c.b16 %v1845, %v1844
      %v1849 = vsel %vm271, %v1839, 0
      %1851 = vmatprep.subr.bf16.mxu0 0
      %1852 = vmatpush1.bf16.msra.mxu0 %v1846
      %1853 = vmatprep.subr.bf16.mxu0 0
      %1854 = vmatpush1.bf16.msra.mxu0 0
      %1855 = vmatprep.subr.bf16.mxu0 0
      %1856 = vmatpush1.bf16.msra.mxu0 0
      %1857 = vmatprep.subr.bf16.mxu0 0
      %1858 = vmatpush1.bf16.msra.mxu0 0
      %1859 = vmatprep.subr.bf16.mxu0 0
      %1860 = vmatpush1.bf16.msra.mxu0 0
      %1861 = vmatprep.subr.bf16.mxu0 0
      %1862 = vmatpush1.bf16.msra.mxu0 0
      %1863 = vmatprep.subr.bf16.mxu0 0
      %1864 = vmatpush1.bf16.msra.mxu0 0
      %1865 = vmatprep.subr.bf16.mxu0 0
      %1866 = vmatpush1.bf16.msra.mxu0 0
      %1867 = vmatprep.subr.bf16.mxu0 0
      %1868 = vmatpush1.bf16.msra.mxu0 0
      %1869 = vmatprep.subr.bf16.mxu0 0
      %1870 = vmatpush1.bf16.msra.mxu0 0
      %1871 = vmatprep.subr.bf16.mxu0 0
      %1872 = vmatpush1.bf16.msra.mxu0 0
      %1873 = vmatprep.subr.bf16.mxu0 0
      %1874 = vmatpush1.bf16.msra.mxu0 0
      %1875 = vmatprep.subr.bf16.mxu0 0
      %1876 = vmatpush1.bf16.msra.mxu0 0
      %1877 = vmatprep.subr.bf16.mxu0 0
      %1878 = vmatpush1.bf16.msra.mxu0 0
      %1879 = vmatprep.subr.bf16.mxu0 0
      %1880 = vmatpush1.bf16.msra.mxu0 0
      %1881 = vmatprep.subr.bf16.mxu0 0
      %1882 = vmatpush1.bf16.msra.mxu0 0
      %1883 = vmatprep.mubr.bf16.mxu0 0
      %1884 = vmatmul.mubr.bf16.gmra.mrb[0].mxu0 %v1849
      %v1885 = vpop.f32.mrb[0].mxu0
      %v1886 = vadd.f32 0.0, %v1885
      %v1887 = vpop.f32.mrb[0].mxu0
      %v1888 = vpop.f32.mrb[0].mxu0
      %v1889 = vpop.f32.mrb[0].mxu0
      %1890 = vdwg.mxu0
      %v1891 = vadd.f32 %v1830, %v1886
      %v1892 = vld [vmem:[%s1838] sm:$0xf]
      %v1893 = vld [vmem:[%s1838 + $0x4] sm:$0x1]
      %v1894 = vld [vmem:[%s424] sm:$0xf]
      %v1895 = vld [vmem:[%s424 + $0x4] sm:$0xf]
      %v1898 = vunpack.c.l.b16 %v1892
      %v1899 = vunpack.c.l.b16 %v1893
      %v1900 = vpack.c.b16 %v1899, %v1898
      %v1902 = vshrl.u32 %v1900, 16
      %v1904 = vshll.u32 %v1900, 16
      %v1906 = vrot.slane %v1904, 1
      %v1907 = vor.u32 %v1902, %v1906
      %v1910 = vunpack.c.l.b16 %v1894
      %v1911 = vunpack.c.l.b16 %v1895
      %v1912 = vpack.c.b16 %v1911, %v1910
      %v1915 = vsel %vm271, %v1907, 0
      %1917 = vmatprep.subr.bf16.mxu0 0
      %1918 = vmatpush1.bf16.msra.mxu0 %v1912
      %1919 = vmatprep.subr.bf16.mxu0 0
      %1920 = vmatpush1.bf16.msra.mxu0 0
      %1921 = vmatprep.subr.bf16.mxu0 0
      %1922 = vmatpush1.bf16.msra.mxu0 0
      %1923 = vmatprep.subr.bf16.mxu0 0
      %1924 = vmatpush1.bf16.msra.mxu0 0
      %1925 = vmatprep.subr.bf16.mxu0 0
      %1926 = vmatpush1.bf16.msra.mxu0 0
      %1927 = vmatprep.subr.bf16.mxu0 0
      %1928 = vmatpush1.bf16.msra.mxu0 0
      %1929 = vmatprep.subr.bf16.mxu0 0
      %1930 = vmatpush1.bf16.msra.mxu0 0
      %1931 = vmatprep.subr.bf16.mxu0 0
      %1932 = vmatpush1.bf16.msra.mxu0 0
      %1933 = vmatprep.subr.bf16.mxu0 0
      %1934 = vmatpush1.bf16.msra.mxu0 0
      %1935 = vmatprep.subr.bf16.mxu0 0
      %1936 = vmatpush1.bf16.msra.mxu0 0
      %1937 = vmatprep.subr.bf16.mxu0 0
      %1938 = vmatpush1.bf16.msra.mxu0 0
      %1939 = vmatprep.subr.bf16.mxu0 0
      %1940 = vmatpush1.bf16.msra.mxu0 0
      %1941 = vmatprep.subr.bf16.mxu0 0
      %1942 = vmatpush1.bf16.msra.mxu0 0
      %1943 = vmatprep.subr.bf16.mxu0 0
      %1944 = vmatpush1.bf16.msra.mxu0 0
      %1945 = vmatprep.subr.bf16.mxu0 0
      %1946 = vmatpush1.bf16.msra.mxu0 0
      %1947 = vmatprep.subr.bf16.mxu0 0
      %1948 = vmatpush1.bf16.msra.mxu0 0
      %1949 = vmatprep.mubr.bf16.mxu0 0
      %1950 = vmatmul.mubr.bf16.gmra.mrb[0].mxu0 %v1915
      %v1951 = vpop.f32.mrb[0].mxu0
      %v1952 = vadd.f32 0.0, %v1951
      %v1953 = vpop.f32.mrb[0].mxu0
      %v1954 = vpop.f32.mrb[0].mxu0
      %v1955 = vpop.f32.mrb[0].mxu0
      %1956 = vdwg.mxu0
      %v1957 = vadd.f32 %v1891, %v1952
      %v1958 = vadd.f32 %v1957, %v493
      %v1959 = vmax.f32 %v1958, 0.0
      %v1960 = vpack.c.bf16 %v1959, %v1959
      %s1961 = scalar_lea.vmem %s238, 24
      %1962 = vst [vmem:[%s1961] sm:$0xf] %v1960
      %v1963 = vld [vmem:[%s1838] sm:$0xf]
      %v1964 = vld [vmem:[%s223] sm:$0xf]
      %v1965 = vld [vmem:[%s223 + $0x4] sm:$0xf]
      %v1966 = vld [vmem:[%s1838 + $0x4] sm:$0x1]
      %v1967 = vld [vmem:[%s250] sm:$0xf]
      %v1968 = vld [vmem:[%s250 + $0x4] sm:$0xf]
      %v1971 = vunpack.c.l.b16 %v1963
      %v1972 = vunpack.c.l.b16 %v1966
      %v1973 = vpack.c.b16 %v1972, %v1971
      %v1975 = vshrl.u32 %v1973, 16
      %v1977 = vshll.u32 %v1973, 16
      %v1979 = vrot.slane %v1977, 1
      %v1980 = vor.u32 %v1975, %v1979
      %v1983 = vunpack.c.l.b16 %v1967
      %v1984 = vunpack.c.l.b16 %v1968
      %v1985 = vpack.c.b16 %v1984, %v1983
      %v1988 = vsel %vm271, %v1980, 0
      %1990 = vmatprep.subr.bf16.mxu0 0
      %1991 = vmatpush1.bf16.msra.mxu0 %v1985
      %1992 = vmatprep.subr.bf16.mxu0 0
      %1993 = vmatpush1.bf16.msra.mxu0 0
      %1994 = vmatprep.subr.bf16.mxu0 0
      %1995 = vmatpush1.bf16.msra.mxu0 0
      %1996 = vmatprep.subr.bf16.mxu0 0
      %1997 = vmatpush1.bf16.msra.mxu0 0
      %1998 = vmatprep.subr.bf16.mxu0 0
      %1999 = vmatpush1.bf16.msra.mxu0 0
      %2000 = vmatprep.subr.bf16.mxu0 0
      %2001 = vmatpush1.bf16.msra.mxu0 0
      %2002 = vmatprep.subr.bf16.mxu0 0
      %2003 = vmatpush1.bf16.msra.mxu0 0
      %2004 = vmatprep.subr.bf16.mxu0 0
      %2005 = vmatpush1.bf16.msra.mxu0 0
      %2006 = vmatprep.subr.bf16.mxu0 0
      %2007 = vmatpush1.bf16.msra.mxu0 0
      %2008 = vmatprep.subr.bf16.mxu0 0
      %2009 = vmatpush1.bf16.msra.mxu0 0
      %2010 = vmatprep.subr.bf16.mxu0 0
      %2011 = vmatpush1.bf16.msra.mxu0 0
      %2012 = vmatprep.subr.bf16.mxu0 0
      %2013 = vmatpush1.bf16.msra.mxu0 0
      %2014 = vmatprep.subr.bf16.mxu0 0
      %2015 = vmatpush1.bf16.msra.mxu0 0
      %2016 = vmatprep.subr.bf16.mxu0 0
      %2017 = vmatpush1.bf16.msra.mxu0 0
      %2018 = vmatprep.subr.bf16.mxu0 0
      %2019 = vmatpush1.bf16.msra.mxu0 0
      %2020 = vmatprep.subr.bf16.mxu0 0
      %2021 = vmatpush1.bf16.msra.mxu0 0
      %2022 = vmatprep.mubr.bf16.mxu0 0
      %2023 = vmatmul.mubr.bf16.gmra.mrb[0].mxu0 %v1988
      %v2024 = vpop.f32.mrb[0].mxu0
      %v2025 = vadd.f32 0.0, %v2024
      %v2026 = vpop.f32.mrb[0].mxu0
      %v2027 = vpop.f32.mrb[0].mxu0
      %v2028 = vpop.f32.mrb[0].mxu0
      %2029 = vdwg.mxu0
      %v2032 = vunpack.c.l.b16 %v1964
      %v2033 = vunpack.c.l.b16 %v1965
      %v2034 = vpack.c.b16 %v2033, %v2032
      %v2037 = vsel %vm271, %v1963, 0
      %2039 = vmatprep.subr.bf16.mxu0 0
      %2040 = vmatpush1.bf16.msra.mxu0 %v2034
      %2041 = vmatprep.subr.bf16.mxu0 0
      %2042 = vmatpush1.bf16.msra.mxu0 0
      %2043 = vmatprep.subr.bf16.mxu0 0
      %2044 = vmatpush1.bf16.msra.mxu0 0
      %2045 = vmatprep.subr.bf16.mxu0 0
      %2046 = vmatpush1.bf16.msra.mxu0 0
      %2047 = vmatprep.subr.bf16.mxu0 0
      %2048 = vmatpush1.bf16.msra.mxu0 0
      %2049 = vmatprep.subr.bf16.mxu0 0
      %2050 = vmatpush1.bf16.msra.mxu0 0
      %2051 = vmatprep.subr.bf16.mxu0 0
      %2052 = vmatpush1.bf16.msra.mxu0 0
      %2053 = vmatprep.subr.bf16.mxu0 0
      %2054 = vmatpush1.bf16.msra.mxu0 0
      %2055 = vmatprep.subr.bf16.mxu0 0
      %2056 = vmatpush1.bf16.msra.mxu0 0
      %2057 = vmatprep.subr.bf16.mxu0 0
      %2058 = vmatpush1.bf16.msra.mxu0 0
      %2059 = vmatprep.subr.bf16.mxu0 0
      %2060 = vmatpush1.bf16.msra.mxu0 0
      %2061 = vmatprep.subr.bf16.mxu0 0
      %2062 = vmatpush1.bf16.msra.mxu0 0
      %2063 = vmatprep.subr.bf16.mxu0 0
      %2064 = vmatpush1.bf16.msra.mxu0 0
      %2065 = vmatprep.subr.bf16.mxu0 0
      %2066 = vmatpush1.bf16.msra.mxu0 0
      %2067 = vmatprep.subr.bf16.mxu0 0
      %2068 = vmatpush1.bf16.msra.mxu0 0
      %2069 = vmatprep.subr.bf16.mxu0 0
      %2070 = vmatpush1.bf16.msra.mxu0 0
      %2071 = vmatprep.mubr.bf16.mxu0 0
      %2072 = vmatmul.mubr.bf16.gmra.mrb[0].mxu0 %v2037
      %v2073 = vpop.f32.mrb[0].mxu0
      %v2074 = vadd.f32 %v2025, %v2073
      %v2075 = vpop.f32.mrb[0].mxu0
      %v2076 = vpop.f32.mrb[0].mxu0
      %v2077 = vpop.f32.mrb[0].mxu0
      %2078 = vdwg.mxu0
      %s2079 = sadd.s32 %s241, 8
      %s2080 = smul.u32 %s2079, 2
      %s2081 = smul.addr %s2080, 4
      %s2082 = scalar_lea.vmem %s219, %s2081
      %v2083 = vld [vmem:[%s2082] sm:$0xf]
      %v2084 = vld [vmem:[%s369] sm:$0xf]
      %v2085 = vld [vmem:[%s369 + $0x4] sm:$0xf]
      %v2088 = vunpack.c.l.b16 %v2084
      %v2089 = vunpack.c.l.b16 %v2085
      %v2090 = vpack.c.b16 %v2089, %v2088
      %v2093 = vsel %vm271, %v2083, 0
      %2095 = vmatprep.subr.bf16.mxu0 0
      %2096 = vmatpush1.bf16.msra.mxu0 %v2090
      %2097 = vmatprep.subr.bf16.mxu0 0
      %2098 = vmatpush1.bf16.msra.mxu0 0
      %2099 = vmatprep.subr.bf16.mxu0 0
      %2100 = vmatpush1.bf16.msra.mxu0 0
      %2101 = vmatprep.subr.bf16.mxu0 0
      %2102 = vmatpush1.bf16.msra.mxu0 0
      %2103 = vmatprep.subr.bf16.mxu0 0
      %2104 = vmatpush1.bf16.msra.mxu0 0
      %2105 = vmatprep.subr.bf16.mxu0 0
      %2106 = vmatpush1.bf16.msra.mxu0 0
      %2107 = vmatprep.subr.bf16.mxu0 0
      %2108 = vmatpush1.bf16.msra.mxu0 0
      %2109 = vmatprep.subr.bf16.mxu0 0
      %2110 = vmatpush1.bf16.msra.mxu0 0
      %2111 = vmatprep.subr.bf16.mxu0 0
      %2112 = vmatpush1.bf16.msra.mxu0 0
      %2113 = vmatprep.subr.bf16.mxu0 0
      %2114 = vmatpush1.bf16.msra.mxu0 0
      %2115 = vmatprep.subr.bf16.mxu0 0
      %2116 = vmatpush1.bf16.msra.mxu0 0
      %2117 = vmatprep.subr.bf16.mxu0 0
      %2118 = vmatpush1.bf16.msra.mxu0 0
      %2119 = vmatprep.subr.bf16.mxu0 0
      %2120 = vmatpush1.bf16.msra.mxu0 0
      %2121 = vmatprep.subr.bf16.mxu0 0
      %2122 = vmatpush1.bf16.msra.mxu0 0
      %2123 = vmatprep.subr.bf16.mxu0 0
      %2124 = vmatpush1.bf16.msra.mxu0 0
      %2125 = vmatprep.subr.bf16.mxu0 0
      %2126 = vmatpush1.bf16.msra.mxu0 0
      %2127 = vmatprep.mubr.bf16.mxu0 0
      %2128 = vmatmul.mubr.bf16.gmra.mrb[0].mxu0 %v2093
      %v2129 = vpop.f32.mrb[0].mxu0
      %v2130 = vadd.f32 0.0, %v2129
      %v2131 = vpop.f32.mrb[0].mxu0
      %v2132 = vpop.f32.mrb[0].mxu0
      %v2133 = vpop.f32.mrb[0].mxu0
      %2134 = vdwg.mxu0
      %v2135 = vadd.f32 %v2074, %v2130
      %v2136 = vld [vmem:[%s2082] sm:$0xf]
      %v2137 = vld [vmem:[%s2082 + $0x4] sm:$0x1]
      %v2138 = vld [vmem:[%s424] sm:$0xf]
      %v2139 = vld [vmem:[%s424 + $0x4] sm:$0xf]
      %v2142 = vunpack.c.l.b16 %v2136
      %v2143 = vunpack.c.l.b16 %v2137
      %v2144 = vpack.c.b16 %v2143, %v2142
      %v2146 = vshrl.u32 %v2144, 16
      %v2148 = vshll.u32 %v2144, 16
      %v2150 = vrot.slane %v2148, 1
      %v2151 = vor.u32 %v2146, %v2150
      %v2154 = vunpack.c.l.b16 %v2138
      %v2155 = vunpack.c.l.b16 %v2139
      %v2156 = vpack.c.b16 %v2155, %v2154
      %v2159 = vsel %vm271, %v2151, 0
      %2161 = vmatprep.subr.bf16.mxu0 0
      %2162 = vmatpush1.bf16.msra.mxu0 %v2156
      %2163 = vmatprep.subr.bf16.mxu0 0
      %2164 = vmatpush1.bf16.msra.mxu0 0
      %2165 = vmatprep.subr.bf16.mxu0 0
      %2166 = vmatpush1.bf16.msra.mxu0 0
      %2167 = vmatprep.subr.bf16.mxu0 0
      %2168 = vmatpush1.bf16.msra.mxu0 0
      %2169 = vmatprep.subr.bf16.mxu0 0
      %2170 = vmatpush1.bf16.msra.mxu0 0
      %2171 = vmatprep.subr.bf16.mxu0 0
      %2172 = vmatpush1.bf16.msra.mxu0 0
      %2173 = vmatprep.subr.bf16.mxu0 0
      %2174 = vmatpush1.bf16.msra.mxu0 0
      %2175 = vmatprep.subr.bf16.mxu0 0
      %2176 = vmatpush1.bf16.msra.mxu0 0
      %2177 = vmatprep.subr.bf16.mxu0 0
      %2178 = vmatpush1.bf16.msra.mxu0 0
      %2179 = vmatprep.subr.bf16.mxu0 0
      %2180 = vmatpush1.bf16.msra.mxu0 0
      %2181 = vmatprep.subr.bf16.mxu0 0
      %2182 = vmatpush1.bf16.msra.mxu0 0
      %2183 = vmatprep.subr.bf16.mxu0 0
      %2184 = vmatpush1.bf16.msra.mxu0 0
      %2185 = vmatprep.subr.bf16.mxu0 0
      %2186 = vmatpush1.bf16.msra.mxu0 0
      %2187 = vmatprep.subr.bf16.mxu0 0
      %2188 = vmatpush1.bf16.msra.mxu0 0
      %2189 = vmatprep.subr.bf16.mxu0 0
      %2190 = vmatpush1.bf16.msra.mxu0 0
      %2191 = vmatprep.subr.bf16.mxu0 0
      %2192 = vmatpush1.bf16.msra.mxu0 0
      %2193 = vmatprep.mubr.bf16.mxu0 0
      %2194 = vmatmul.mubr.bf16.gmra.mrb[0].mxu0 %v2159
      %v2195 = vpop.f32.mrb[0].mxu0
      %v2196 = vadd.f32 0.0, %v2195
      %v2197 = vpop.f32.mrb[0].mxu0
      %v2198 = vpop.f32.mrb[0].mxu0
      %v2199 = vpop.f32.mrb[0].mxu0
      %2200 = vdwg.mxu0
      %v2201 = vadd.f32 %v2135, %v2196
      %v2202 = vadd.f32 %v2201, %v493
      %v2203 = vmax.f32 %v2202, 0.0
      %v2204 = vpack.c.bf16 %v2203, %v2203
      %s2205 = scalar_lea.vmem %s238, 28
      %2206 = vst [vmem:[%s2205] sm:$0xf] %v2204
      %s2207 = smul.u32 8, %s20
      %p2208 = scmp.lt.s32.totalorder %s19, 1
      %s2209 = scalar_select %p2208, %s19, 1
      %p2210 = scmp.lt.s32.totalorder %s2207, 7
      %s2211 = scalar_select %p2210, %s2207, 7
      %p2212 = scmp.lt.s32.totalorder %s21, 0
      %s2213 = scalar_select %p2212, %s21, 0
      %s2214 = sadd.s32 %s2213, %s2211
      %s2215 = smul.addr %s2209, 8
      %s2216 = sadd.s32 %s2214, %s2215
      %s2217 = smul.addr %s2216, 4
      %s2218 = scalar_lea.vmem %s3, %s2217
      // Predicated region
      $region33: #{_lambda_.5} parent=31 // pred_check
        %p2219 = pneg %p133
      $region34: #{_lambda_.5} parent=31 // pred_check_branch
        %2221 = sbr.rel (%p2219) target = $region36
      $region35: #{_lambda_.5} parent=31 // pred_region
        %s2222 = smul.u32 8, %s20
      $region36: #{_lambda_.5} parent=31 // pred_fallthru
        _
    $region32: #{_lambda_.5} parent=5 // pred_fallthru
      _
    %p2223 = scmp.le.s32.totalorder 2, %s9
    // Predicated region
    $region37: #{_lambda_.5} parent=5 // pred_check
      %p2224 = pneg %p2223
    $region38: #{_lambda_.5} parent=5 // pred_check_branch
      %2226 = sbr.rel (%p2224) target = $region40
    $region39: #{_lambda_.5} parent=5 // pred_region
      %s2227 = ssub.s32 %s9, 2
      // Predicated region
      $region41: #{_lambda_.5} parent=39 // pred_check
        %p2228 = pneg %p139
      $region42: #{_lambda_.5} parent=39 // pred_check_branch
        %2230 = sbr.rel (%p2228) target = $region44
      $region43: #{_lambda_.5} parent=39 // pred_region
        %s2231 = smul.u32 8, %s23
        %p2232 = scmp.lt.s32.totalorder %s22, 1
        %s2233 = scalar_select %p2232, %s22, 1
        %p2234 = scmp.lt.s32.totalorder %s2231, 7
        %s2235 = scalar_select %p2234, %s2231, 7
        %p2236 = scmp.lt.s32.totalorder %s24, 0
        %s2237 = scalar_select %p2236, %s24, 0
        %s2238 = sadd.s32 %s2237, %s2235
        %s2239 = smul.addr %s2233, 8
        %s2240 = sadd.s32 %s2238, %s2239
        %s2241 = smul.addr %s2240, 4
        %s2242 = scalar_lea.vmem %s3, %s2241
      $region44: #{_lambda_.5} parent=39 // pred_fallthru
        _
    $region40: #{_lambda_.5} parent=5 // pred_fallthru
      _
  $region6: #{_lambda_.5} parent=0 // loop_footer
    %s13 = sadd.s32 1, %s9
  $region7: #{_lambda_.5} parent=0 // loop_footer_branch
    %8 = sbr.rel target = $region3
  $region8: #{_lambda_.5} parent=0 // loop_exit
    _

// kernel: _lambda_.7
$region0: #{_lambda_.7}
  #allocation0 [shape = 'u32[]', space=smem, size = 0x4, offset = 0x4, fixed_abs, tag = 'smem constant byte address 0x4 - core index']
  #allocation1 [shape = 'u32[144,128]{1,0:T(1,128)}', space=vmem, size = 0x12000, scoped, tag = 'internal scratch']
  %s0 = inlined_call_operand.vmem [shape: bf16[2,3,3,32], index: 0, kind: input, shape index: {}]
  %s1 = inlined_call_operand.vmem [shape: bf16[4,32,128], index: 1, kind: input, shape index: {}]
  %s2 = inlined_call_operand.vmem [shape: f32[1,128], index: 2, kind: input, shape index: {}]
  %s3 = inlined_call_operand.vmem [shape: bf16[2,2,2,128], index: 3, kind: output, shape index: {}]
  %s4 = sld [smem:[#allocation0]]
  $region45: #{_lambda_.7} parent=0
    _
  %s6 = ssub.s32 1, %s4
  %s7 = scalar_select 0, %s6, %s4
  loop: start=0, step=1, limit=4
  $region2: #{_lambda_.7} parent=0 // loop_pre_header
    _
  $region3: #{_lambda_.7} parent=0 // loop_header
    %s9 = sphi 0, %s13
    %p10 = scmp.ge.s32.totalorder %s9, 4
    %s16 = sphi 0, %s35
    %s17 = sphi 0, %s31
    %s18 = sphi 0, %s27
    %s19 = sphi 0, %s16
    %s20 = sphi 0, %s17
    %s21 = sphi 0, %s18
    %s22 = sphi 0, %s19
    %s23 = sphi 0, %s20
    %s24 = sphi 0, %s21
    %s38 = sphi 0, %s40
    %s41 = sphi 0, %s38
    %s42 = sphi 0, %s41
    %s58 = sphi 0, %s42
    %s64 = sphi 0, %s66
    %s67 = sphi 0, %s64
    %s68 = sphi 0, %s67
    %s84 = sphi 0, %s68
    %s90 = sphi 0, %s92
    %s93 = sphi 0, %s90
    %s94 = sphi 0, %s93
    %s110 = sphi 0, %s94
    %s120 = sphi 0, %s122
    %s123 = sphi 0, %s120
    %s124 = sphi 0, %s123
    %s140 = sphi 0, %s124
  $region4: #{_lambda_.7} parent=0 // loop_header_branch
    %12 = sbr.rel (%p10) target = $region8
  $region5: #{_lambda_.7} parent=0 // loop_body
    %s14 = ssub.s32 %s9, 1
    %s15 = ssub.s32 %s9, 2
    %s25 = sadd.s32 1, %s18
    %p26 = scmp.ge.s32.totalorder %s25, 1
    %s27 = scalar_select %p26, 0, %s25
    %s28 = sadd.s32 1, %s17
    %s29 = scalar_select %p26, %s28, %s17
    %p30 = scmp.ge.s32.totalorder %s29, 1
    %s31 = scalar_select %p30, 0, %s29
    %s32 = sadd.s32 1, %s16
    %s33 = scalar_select %p30, %s32, %s16
    %p34 = scmp.ge.s32.totalorder %s33, 2
    %s35 = scalar_select %p34, 0, %s33
    %s36 = ssub.s32 %s16, %s35
    %p37 = scmp.eq.s32.totalorder %s36, 0
    %s39 = sadd.s32 %s38, 1
    %s40 = scalar_select %p37, %s38, %s39
    %p43 = pneg %p37
    %p44 = scmp.eq.s32.totalorder %s9, 1
    %p45 = por %p43, %p44
    %p46 = scmp.ne.s32.totalorder %s38, %s41
    %p47 = scmp.eq.s32.totalorder %s9, 0
    %p48 = por %p46, %p47
    %p49 = scmp.ne.s32.totalorder %s38, %s41
    %p50 = scmp.eq.s32.totalorder %s14, 1
    %p51 = por %p49, %p50
    %p52 = scmp.ne.s32.totalorder %s41, %s42
    %p53 = scmp.eq.s32.totalorder %s14, 0
    %p54 = por %p52, %p53
    %p55 = scmp.ne.s32.totalorder %s41, %s42
    %p56 = scmp.eq.s32.totalorder %s15, 1
    %p57 = por %p55, %p56
    %p59 = scmp.ne.s32.totalorder %s42, %s58
    %p60 = scmp.eq.s32.totalorder %s15, 0
    %p61 = por %p59, %p60
    %s62 = ssub.s32 %s18, %s27
    %p63 = scmp.eq.s32.totalorder %s62, 0
    %s65 = sadd.s32 %s64, 1
    %s66 = scalar_select %p63, %s64, %s65
    %p69 = pneg %p63
    %p70 = scmp.eq.s32.totalorder %s9, 1
    %p71 = por %p69, %p70
    %p72 = scmp.ne.s32.totalorder %s64, %s67
    %p73 = scmp.eq.s32.totalorder %s9, 0
    %p74 = por %p72, %p73
    %p75 = scmp.ne.s32.totalorder %s64, %s67
    %p76 = scmp.eq.s32.totalorder %s14, 1
    %p77 = por %p75, %p76
    %p78 = scmp.ne.s32.totalorder %s67, %s68
    %p79 = scmp.eq.s32.totalorder %s14, 0
    %p80 = por %p78, %p79
    %p81 = scmp.ne.s32.totalorder %s67, %s68
    %p82 = scmp.eq.s32.totalorder %s15, 1
    %p83 = por %p81, %p82
    %p85 = scmp.ne.s32.totalorder %s68, %s84
    %p86 = scmp.eq.s32.totalorder %s15, 0
    %p87 = por %p85, %p86
    %s88 = ssub.s32 %s18, %s27
    %p89 = scmp.eq.s32.totalorder %s88, 0
    %s91 = sadd.s32 %s90, 1
    %s92 = scalar_select %p89, %s90, %s91
    %p95 = pneg %p89
    %p96 = scmp.eq.s32.totalorder %s9, 1
    %p97 = por %p95, %p96
    %p98 = scmp.ne.s32.totalorder %s90, %s93
    %p99 = scmp.eq.s32.totalorder %s9, 0
    %p100 = por %p98, %p99
    %p101 = scmp.ne.s32.totalorder %s90, %s93
    %p102 = scmp.eq.s32.totalorder %s14, 1
    %p103 = por %p101, %p102
    %p104 = scmp.ne.s32.totalorder %s93, %s94
    %p105 = scmp.eq.s32.totalorder %s14, 0
    %p106 = por %p104, %p105
    %p107 = scmp.ne.s32.totalorder %s93, %s94
    %p108 = scmp.eq.s32.totalorder %s15, 1
    %p109 = por %p107, %p108
    %p111 = scmp.ne.s32.totalorder %s94, %s110
    %p112 = scmp.eq.s32.totalorder %s15, 0
    %p113 = por %p111, %p112
    %s114 = ssub.s32 %s16, %s35
    %s115 = ssub.s32 %s17, %s31
    %s116 = sor.u32 %s114, %s115
    %s117 = ssub.s32 %s18, %s27
    %s118 = sor.u32 %s116, %s117
    %p119 = scmp.eq.s32.totalorder %s118, 0
    %s121 = sadd.s32 %s120, 1
    %s122 = scalar_select %p119, %s120, %s121
    %p125 = pneg %p119
    %p126 = scmp.eq.s32.totalorder %s9, 1
    %p127 = por %p125, %p126
    %p128 = scmp.ne.s32.totalorder %s120, %s123
    %p129 = scmp.eq.s32.totalorder %s9, 0
    %p130 = por %p128, %p129
    %p131 = scmp.ne.s32.totalorder %s120, %s123
    %p132 = scmp.eq.s32.totalorder %s14, 1
    %p133 = por %p131, %p132
    %p134 = scmp.ne.s32.totalorder %s123, %s124
    %p135 = scmp.eq.s32.totalorder %s14, 0
    %p136 = por %p134, %p135
    %p137 = scmp.ne.s32.totalorder %s123, %s124
    %p138 = scmp.eq.s32.totalorder %s15, 1
    %p139 = por %p137, %p138
    %p141 = scmp.ne.s32.totalorder %s124, %s140
    %p142 = scmp.eq.s32.totalorder %s15, 0
    %p143 = por %p141, %p142
    %p144 = scmp.le.s32.totalorder 1, %s9
    %p145 = scmp.lt.s32.totalorder %s9, 3
    %p146 = pnand %p144, %p145
    %p147 = pneg %p146
    // Predicated region
    $region9: #{_lambda_.7} parent=5 // pred_check
      _
    $region10: #{_lambda_.7} parent=5 // pred_check_branch
      %149 = sbr.rel (%p146) target = $region12
    $region11: #{_lambda_.7} parent=5 // pred_region
      %s150 = ssub.s32 %s9, 1
      // Predicated region
      $region13: #{_lambda_.7} parent=11 // pred_check
        %p151 = pneg %p80
      $region14: #{_lambda_.7} parent=11 // pred_check_branch
        %153 = sbr.rel (%p151) target = $region16
      $region15: #{_lambda_.7} parent=11 // pred_region
        %p154 = scmp.lt.s32.totalorder %s21, 0
        %s155 = scalar_select %p154, %s21, 0
        %s156 = smul.addr %s155, 4
        %s157 = scalar_lea.vmem %s1, %s156
      $region16: #{_lambda_.7} parent=11 // pred_fallthru
        _
      // Predicated region
      $region17: #{_lambda_.7} parent=11 // pred_check
        %p158 = pneg %p106
      $region18: #{_lambda_.7} parent=11 // pred_check_branch
        %160 = sbr.rel (%p158) target = $region20
      $region19: #{_lambda_.7} parent=11 // pred_region
        %p161 = scmp.lt.s32.totalorder %s21, 0
        %s162 = scalar_select %p161, %s21, 0
        %s163 = scalar_lea.vmem %s2, %s162
      $region20: #{_lambda_.7} parent=11 // pred_fallthru
        _
    $region12: #{_lambda_.7} parent=5 // pred_fallthru
      _
    %p164 = scmp.lt.s32.totalorder %s9, 2
    // Predicated region
    $region21: #{_lambda_.7} parent=5 // pred_check
      %p165 = pneg %p164
    $region22: #{_lambda_.7} parent=5 // pred_check_branch
      %167 = sbr.rel (%p165) target = $region24
    $region23: #{_lambda_.7} parent=5 // pred_region
      // Predicated region
      $region25: #{_lambda_.7} parent=23 // pred_check
        %p168 = pneg %p48
      $region26: #{_lambda_.7} parent=23 // pred_check_branch
        %170 = sbr.rel (%p168) target = $region28
      $region27: #{_lambda_.7} parent=23 // pred_region
        %p171 = scmp.lt.s32.totalorder %s16, 1
        %s172 = scalar_select %p171, %s16, 1
        %s173 = smul.addr %s172, 3
        %s174 = smul.addr %s173, 2
        %s175 = scalar_lea.vmem %s0, %s174
      $region28: #{_lambda_.7} parent=23 // pred_fallthru
        _
    $region24: #{_lambda_.7} parent=5 // pred_fallthru
      _
    %p176 = scmp.le.s32.totalorder 1, %s9
    %p177 = scmp.lt.s32.totalorder %s9, 3
    %p178 = pnand %p176, %p177
    %p179 = pneg %p178
    // Predicated region
    $region29: #{_lambda_.7} parent=5 // pred_check
      _
    $region30: #{_lambda_.7} parent=5 // pred_check_branch
      %181 = sbr.rel (%p178) target = $region32
    $region31: #{_lambda_.7} parent=5 // pred_region
      %s182 = ssub.s32 %s9, 1
      %p183 = scmp.lt.s32.totalorder %s19, 1
      %s184 = scalar_select %p183, %s19, 1
      %s185 = smul.addr %s184, 3
      %s186 = smul.addr %s185, 2
      %s187 = scalar_lea.vmem %s0, %s186
      %p188 = pneg %p54
      %p189 = pneg %p51
      %p190 = scmp.lt.s32.totalorder %s21, 0
      %s191 = scalar_select %p190, %s21, 0
      %s192 = smul.addr %s191, 4
      %s193 = scalar_lea.vmem %s1, %s192
      %p194 = pneg %p80
      %p195 = pneg %p77
      %p196 = scmp.lt.s32.totalorder %s21, 0
      %s197 = scalar_select %p196, %s21, 0
      %s198 = scalar_lea.vmem %s2, %s197
      %p199 = pneg %p106
      %p200 = pneg %p103
      %p201 = pneg %p136
      %p202 = pneg %p133
      %s203 = smul.u32 2, %s20
      %p204 = scmp.lt.s32.totalorder %s19, 1
      %s205 = scalar_select %p204, %s19, 1
      %p206 = scmp.lt.s32.totalorder %s203, 1
      %s207 = scalar_select %p206, %s203, 1
      %p208 = scmp.lt.s32.totalorder %s21, 0
      %s209 = scalar_select %p208, %s21, 0
      %s210 = sadd.s32 %s209, %s207
      %s211 = smul.addr %s205, 2
      %s212 = sadd.s32 %s210, %s211
      %s213 = scalar_lea.vmem %s3, %s212
      %p214 = scmp.lt.s32.totalorder %s19, 1
      %s215 = scalar_select %p214, %s19, 1
      %s216 = smul.addr %s215, 3
      %s217 = smul.addr %s216, 2
      %s218 = scalar_lea.vmem %s0, %s217
      %p219 = scmp.lt.s32.totalorder %s21, 0
      %s220 = scalar_select %p219, %s21, 0
      %s221 = smul.addr %s220, 4
      %s222 = scalar_lea.vmem %s1, %s221
      %p223 = scmp.lt.s32.totalorder %s21, 0
      %s224 = scalar_select %p223, %s21, 0
      %s225 = scalar_lea.vmem %s2, %s224
      %s226 = smul.u32 2, %s20
      %p227 = scmp.lt.s32.totalorder %s19, 1
      %s228 = scalar_select %p227, %s19, 1
      %p229 = scmp.lt.s32.totalorder %s226, 1
      %s230 = scalar_select %p229, %s226, 1
      %p231 = scmp.lt.s32.totalorder %s21, 0
      %s232 = scalar_select %p231, %s21, 0
      %s233 = sadd.s32 %s232, %s230
      %s234 = smul.addr %s228, 2
      %s235 = sadd.s32 %s233, %s234
      %s236 = scalar_lea.vmem %s3, %s235
      %s237 = smul.u32 2, %s20
      %s239 = smul.u32 %s20, 2
      %v240 = vld [vmem:[%s225] sm:$0x1]
      %s241 = smul.addr %s239, 2
      %s242 = scalar_lea.vmem %s218, %s241
      %v243 = vld [vmem:[%s242] sm:$0x1]
      %v244 = vld [vmem:[%s222] sm:$0xf]
      %v245 = vld [vmem:[%s222 + $0x4] sm:$0xf]
      %v246 = vld [vmem:[%s222 + $0x8] sm:$0xf]
      %v247 = vld [vmem:[%s222 + $0xc] sm:$0xf]
      %v248 = vld [vmem:[%s242] sm:$0x3]
      %s249 = scalar_lea.vmem %s222, 16
      %v250 = vld [vmem:[%s249] sm:$0xf]
      %v251 = vld [vmem:[%s249 + $0x4] sm:$0xf]
      %v252 = vld [vmem:[%s249 + $0x8] sm:$0xf]
      %v253 = vld [vmem:[%s249 + $0xc] sm:$0xf]
      %v256 = vunpack.c.l.s4 1983009808
      %v257 = vunpack.c.0.s8 %v256
      %v258 = vlaneseq
      %v259 = vshrl.u32 %v258, 7
      %v260 = vsub.s32 %v257, %v259
      %v261 = vrot.slane %v248, %v260
      %v263 = vshrl.u32 %v261, 16
      %v265 = vshll.u32 %v261, 16
      %v267 = vrot.slane %v265, 1
      %v268 = vor.u32 %v263, %v267
      %v273 = vunpack.c.l.b16 %v250
      %v274 = vunpack.c.l.b16 %v251
      %v275 = vunpack.c.l.b16 %v252
      %v276 = vunpack.c.l.b16 %v253
      %v277 = vpack.c.b16 %v274, %v273
      %v278 = vpack.c.b16 %v276, %v275
      %vm281 = vcmask 261120
      %v283 = vsel %vm281, %v268, 0
      %285 = vmatprep.subr.bf16.mxu0 0
      %286 = vmatpush1.bf16.msra.mxu0 %v277
      %287 = vmatprep.subr.bf16.mxu0 0
      %288 = vmatpush1.bf16.msra.mxu0 %v278
      %289 = vmatprep.subr.bf16.mxu0 0
      %290 = vmatpush1.bf16.msra.mxu0 0
      %291 = vmatprep.subr.bf16.mxu0 0
      %292 = vmatpush1.bf16.msra.mxu0 0
      %293 = vmatprep.subr.bf16.mxu0 0
      %294 = vmatpush1.bf16.msra.mxu0 0
      %295 = vmatprep.subr.bf16.mxu0 0
      %296 = vmatpush1.bf16.msra.mxu0 0
      %297 = vmatprep.subr.bf16.mxu0 0
      %298 = vmatpush1.bf16.msra.mxu0 0
      %299 = vmatprep.subr.bf16.mxu0 0
      %300 = vmatpush1.bf16.msra.mxu0 0
      %301 = vmatprep.subr.bf16.mxu0 0
      %302 = vmatpush1.bf16.msra.mxu0 0
      %303 = vmatprep.subr.bf16.mxu0 0
      %304 = vmatpush1.bf16.msra.mxu0 0
      %305 = vmatprep.subr.bf16.mxu0 0
      %306 = vmatpush1.bf16.msra.mxu0 0
      %307 = vmatprep.subr.bf16.mxu0 0
      %308 = vmatpush1.bf16.msra.mxu0 0
      %309 = vmatprep.subr.bf16.mxu0 0
      %310 = vmatpush1.bf16.msra.mxu0 0
      %311 = vmatprep.subr.bf16.mxu0 0
      %312 = vmatpush1.bf16.msra.mxu0 0
      %313 = vmatprep.subr.bf16.mxu0 0
      %314 = vmatpush1.bf16.msra.mxu0 0
      %315 = vmatprep.subr.bf16.mxu0 0
      %316 = vmatpush1.bf16.msra.mxu0 0
      %317 = vmatprep.mubr.bf16.mxu0 0
      %318 = vmatmul.mubr.bf16.gmra.mrb[0].mxu0 %v283
      %v319 = vpop.f32.mrb[0].mxu0
      %v320 = vadd.f32 0.0, %v319
      %v321 = vpop.f32.mrb[0].mxu0
      %v322 = vpop.f32.mrb[0].mxu0
      %v323 = vpop.f32.mrb[0].mxu0
      %324 = vdwg.mxu0
      %v329 = vunpack.c.l.b16 %v244
      %v330 = vunpack.c.l.b16 %v245
      %v331 = vunpack.c.l.b16 %v246
      %v332 = vunpack.c.l.b16 %v247
      %v333 = vpack.c.b16 %v330, %v329
      %v334 = vpack.c.b16 %v332, %v331
      %v338 = vsel %vm281, %v243, 0
      %340 = vmatprep.subr.bf16.mxu0 0
      %341 = vmatpush1.bf16.msra.mxu0 %v333
      %342 = vmatprep.subr.bf16.mxu0 0
      %343 = vmatpush1.bf16.msra.mxu0 %v334
      %344 = vmatprep.subr.bf16.mxu0 0
      %345 = vmatpush1.bf16.msra.mxu0 0
      %346 = vmatprep.subr.bf16.mxu0 0
      %347 = vmatpush1.bf16.msra.mxu0 0
      %348 = vmatprep.subr.bf16.mxu0 0
      %349 = vmatpush1.bf16.msra.mxu0 0
      %350 = vmatprep.subr.bf16.mxu0 0
      %351 = vmatpush1.bf16.msra.mxu0 0
      %352 = vmatprep.subr.bf16.mxu0 0
      %353 = vmatpush1.bf16.msra.mxu0 0
      %354 = vmatprep.subr.bf16.mxu0 0
      %355 = vmatpush1.bf16.msra.mxu0 0
      %356 = vmatprep.subr.bf16.mxu0 0
      %357 = vmatpush1.bf16.msra.mxu0 0
      %358 = vmatprep.subr.bf16.mxu0 0
      %359 = vmatpush1.bf16.msra.mxu0 0
      %360 = vmatprep.subr.bf16.mxu0 0
      %361 = vmatpush1.bf16.msra.mxu0 0
      %362 = vmatprep.subr.bf16.mxu0 0
      %363 = vmatpush1.bf16.msra.mxu0 0
      %364 = vmatprep.subr.bf16.mxu0 0
      %365 = vmatpush1.bf16.msra.mxu0 0
      %366 = vmatprep.subr.bf16.mxu0 0
      %367 = vmatpush1.bf16.msra.mxu0 0
      %368 = vmatprep.subr.bf16.mxu0 0
      %369 = vmatpush1.bf16.msra.mxu0 0
      %370 = vmatprep.subr.bf16.mxu0 0
      %371 = vmatpush1.bf16.msra.mxu0 0
      %372 = vmatprep.mubr.bf16.mxu0 0
      %373 = vmatmul.mubr.bf16.gmra.mrb[0].mxu0 %v338
      %v374 = vpop.f32.mrb[0].mxu0
      %v375 = vadd.f32 %v320, %v374
      %v376 = vpop.f32.mrb[0].mxu0
      %v377 = vpop.f32.mrb[0].mxu0
      %v378 = vpop.f32.mrb[0].mxu0
      %379 = vdwg.mxu0
      %s380 = sadd.s32 %s239, 1
      %s381 = smul.addr %s380, 2
      %s382 = scalar_lea.vmem %s218, %s381
      %v383 = vld [vmem:[%s382] sm:$0x1]
      %s384 = scalar_lea.vmem %s222, 32
      %v385 = vld [vmem:[%s384] sm:$0xf]
      %v386 = vld [vmem:[%s384 + $0x4] sm:$0xf]
      %v387 = vld [vmem:[%s384 + $0x8] sm:$0xf]
      %v388 = vld [vmem:[%s384 + $0xc] sm:$0xf]
      %v393 = vunpack.c.l.b16 %v385
      %v394 = vunpack.c.l.b16 %v386
      %v395 = vunpack.c.l.b16 %v387
      %v396 = vunpack.c.l.b16 %v388
      %v397 = vpack.c.b16 %v394, %v393
      %v398 = vpack.c.b16 %v396, %v395
      %v402 = vsel %vm281, %v383, 0
      %404 = vmatprep.subr.bf16.mxu0 0
      %405 = vmatpush1.bf16.msra.mxu0 %v397
      %406 = vmatprep.subr.bf16.mxu0 0
      %407 = vmatpush1.bf16.msra.mxu0 %v398
      %408 = vmatprep.subr.bf16.mxu0 0
      %409 = vmatpush1.bf16.msra.mxu0 0
      %410 = vmatprep.subr.bf16.mxu0 0
      %411 = vmatpush1.bf16.msra.mxu0 0
      %412 = vmatprep.subr.bf16.mxu0 0
      %413 = vmatpush1.bf16.msra.mxu0 0
      %414 = vmatprep.subr.bf16.mxu0 0
      %415 = vmatpush1.bf16.msra.mxu0 0
      %416 = vmatprep.subr.bf16.mxu0 0
      %417 = vmatpush1.bf16.msra.mxu0 0
      %418 = vmatprep.subr.bf16.mxu0 0
      %419 = vmatpush1.bf16.msra.mxu0 0
      %420 = vmatprep.subr.bf16.mxu0 0
      %421 = vmatpush1.bf16.msra.mxu0 0
      %422 = vmatprep.subr.bf16.mxu0 0
      %423 = vmatpush1.bf16.msra.mxu0 0
      %424 = vmatprep.subr.bf16.mxu0 0
      %425 = vmatpush1.bf16.msra.mxu0 0
      %426 = vmatprep.subr.bf16.mxu0 0
      %427 = vmatpush1.bf16.msra.mxu0 0
      %428 = vmatprep.subr.bf16.mxu0 0
      %429 = vmatpush1.bf16.msra.mxu0 0
      %430 = vmatprep.subr.bf16.mxu0 0
      %431 = vmatpush1.bf16.msra.mxu0 0
      %432 = vmatprep.subr.bf16.mxu0 0
      %433 = vmatpush1.bf16.msra.mxu0 0
      %434 = vmatprep.subr.bf16.mxu0 0
      %435 = vmatpush1.bf16.msra.mxu0 0
      %436 = vmatprep.mubr.bf16.mxu0 0
      %437 = vmatmul.mubr.bf16.gmra.mrb[0].mxu0 %v402
      %v438 = vpop.f32.mrb[0].mxu0
      %v439 = vadd.f32 0.0, %v438
      %v440 = vpop.f32.mrb[0].mxu0
      %v441 = vpop.f32.mrb[0].mxu0
      %v442 = vpop.f32.mrb[0].mxu0
      %443 = vdwg.mxu0
      %v444 = vadd.f32 %v375, %v439
      %v445 = vld [vmem:[%s382] sm:$0x3]
      %s446 = scalar_lea.vmem %s222, 48
      %v447 = vld [vmem:[%s446] sm:$0xf]
      %v448 = vld [vmem:[%s446 + $0x4] sm:$0xf]
      %v449 = vld [vmem:[%s446 + $0x8] sm:$0xf]
      %v450 = vld [vmem:[%s446 + $0xc] sm:$0xf]
      %v453 = vunpack.c.l.s4 1983009808
      %v454 = vunpack.c.0.s8 %v453
      %v455 = vlaneseq
      %v456 = vshrl.u32 %v455, 7
      %v457 = vsub.s32 %v454, %v456
      %v458 = vrot.slane %v445, %v457
      %v460 = vshrl.u32 %v458, 16
      %v462 = vshll.u32 %v458, 16
      %v464 = vrot.slane %v462, 1
      %v465 = vor.u32 %v460, %v464
      %v470 = vunpack.c.l.b16 %v447
      %v471 = vunpack.c.l.b16 %v448
      %v472 = vunpack.c.l.b16 %v449
      %v473 = vunpack.c.l.b16 %v450
      %v474 = vpack.c.b16 %v471, %v470
      %v475 = vpack.c.b16 %v473, %v472
      %v479 = vsel %vm281, %v465, 0
      %481 = vmatprep.subr.bf16.mxu0 0
      %482 = vmatpush1.bf16.msra.mxu0 %v474
      %483 = vmatprep.subr.bf16.mxu0 0
      %484 = vmatpush1.bf16.msra.mxu0 %v475
      %485 = vmatprep.subr.bf16.mxu0 0
      %486 = vmatpush1.bf16.msra.mxu0 0
      %487 = vmatprep.subr.bf16.mxu0 0
      %488 = vmatpush1.bf16.msra.mxu0 0
      %489 = vmatprep.subr.bf16.mxu0 0
      %490 = vmatpush1.bf16.msra.mxu0 0
      %491 = vmatprep.subr.bf16.mxu0 0
      %492 = vmatpush1.bf16.msra.mxu0 0
      %493 = vmatprep.subr.bf16.mxu0 0
      %494 = vmatpush1.bf16.msra.mxu0 0
      %495 = vmatprep.subr.bf16.mxu0 0
      %496 = vmatpush1.bf16.msra.mxu0 0
      %497 = vmatprep.subr.bf16.mxu0 0
      %498 = vmatpush1.bf16.msra.mxu0 0
      %499 = vmatprep.subr.bf16.mxu0 0
      %500 = vmatpush1.bf16.msra.mxu0 0
      %501 = vmatprep.subr.bf16.mxu0 0
      %502 = vmatpush1.bf16.msra.mxu0 0
      %503 = vmatprep.subr.bf16.mxu0 0
      %504 = vmatpush1.bf16.msra.mxu0 0
      %505 = vmatprep.subr.bf16.mxu0 0
      %506 = vmatpush1.bf16.msra.mxu0 0
      %507 = vmatprep.subr.bf16.mxu0 0
      %508 = vmatpush1.bf16.msra.mxu0 0
      %509 = vmatprep.subr.bf16.mxu0 0
      %510 = vmatpush1.bf16.msra.mxu0 0
      %511 = vmatprep.subr.bf16.mxu0 0
      %512 = vmatpush1.bf16.msra.mxu0 0
      %513 = vmatprep.mubr.bf16.mxu0 0
      %514 = vmatmul.mubr.bf16.gmra.mrb[0].mxu0 %v479
      %v515 = vpop.f32.mrb[0].mxu0
      %v516 = vadd.f32 0.0, %v515
      %v517 = vpop.f32.mrb[0].mxu0
      %v518 = vpop.f32.mrb[0].mxu0
      %v519 = vpop.f32.mrb[0].mxu0
      %520 = vdwg.mxu0
      %v521 = vadd.f32 %v444, %v516
      %v523 = vlaneseq
      %v524 = vshrl.u32 %v523, 7
      %v525 = vsub.s32 0, %v524
      %v526 = vrot.slane %v240, %v525
      %v528 = vadd.f32 %v521, %v526
      %v529 = vmax.f32 %v528, 0.0
      %v530 = vpack.c.bf16 %v529, %v529
      %531 = vst [vmem:[%s236] sm:$0x1] %v530
      %v532 = vld [vmem:[%s382] sm:$0x1]
      %v533 = vld [vmem:[%s222] sm:$0xf]
      %v534 = vld [vmem:[%s222 + $0x4] sm:$0xf]
      %v535 = vld [vmem:[%s222 + $0x8] sm:$0xf]
      %v536 = vld [vmem:[%s222 + $0xc] sm:$0xf]
      %v537 = vld [vmem:[%s382] sm:$0x3]
      %v538 = vld [vmem:[%s249] sm:$0xf]
      %v539 = vld [vmem:[%s249 + $0x4] sm:$0xf]
      %v540 = vld [vmem:[%s249 + $0x8] sm:$0xf]
      %v541 = vld [vmem:[%s249 + $0xc] sm:$0xf]
      %v544 = vunpack.c.l.s4 1983009808
      %v545 = vunpack.c.0.s8 %v544
      %v546 = vlaneseq
      %v547 = vshrl.u32 %v546, 7
      %v548 = vsub.s32 %v545, %v547
      %v549 = vrot.slane %v537, %v548
      %v551 = vshrl.u32 %v549, 16
      %v553 = vshll.u32 %v549, 16
      %v555 = vrot.slane %v553, 1
      %v556 = vor.u32 %v551, %v555
      %v561 = vunpack.c.l.b16 %v538
      %v562 = vunpack.c.l.b16 %v539
      %v563 = vunpack.c.l.b16 %v540
      %v564 = vunpack.c.l.b16 %v541
      %v565 = vpack.c.b16 %v562, %v561
      %v566 = vpack.c.b16 %v564, %v563
      %v570 = vsel %vm281, %v556, 0
      %572 = vmatprep.subr.bf16.mxu0 0
      %573 = vmatpush1.bf16.msra.mxu0 %v565
      %574 = vmatprep.subr.bf16.mxu0 0
      %575 = vmatpush1.bf16.msra.mxu0 %v566
      %576 = vmatprep.subr.bf16.mxu0 0
      %577 = vmatpush1.bf16.msra.mxu0 0
      %578 = vmatprep.subr.bf16.mxu0 0
      %579 = vmatpush1.bf16.msra.mxu0 0
      %580 = vmatprep.subr.bf16.mxu0 0
      %581 = vmatpush1.bf16.msra.mxu0 0
      %582 = vmatprep.subr.bf16.mxu0 0
      %583 = vmatpush1.bf16.msra.mxu0 0
      %584 = vmatprep.subr.bf16.mxu0 0
      %585 = vmatpush1.bf16.msra.mxu0 0
      %586 = vmatprep.subr.bf16.mxu0 0
      %587 = vmatpush1.bf16.msra.mxu0 0
      %588 = vmatprep.subr.bf16.mxu0 0
      %589 = vmatpush1.bf16.msra.mxu0 0
      %590 = vmatprep.subr.bf16.mxu0 0
      %591 = vmatpush1.bf16.msra.mxu0 0
      %592 = vmatprep.subr.bf16.mxu0 0
      %593 = vmatpush1.bf16.msra.mxu0 0
      %594 = vmatprep.subr.bf16.mxu0 0
      %595 = vmatpush1.bf16.msra.mxu0 0
      %596 = vmatprep.subr.bf16.mxu0 0
      %597 = vmatpush1.bf16.msra.mxu0 0
      %598 = vmatprep.subr.bf16.mxu0 0
      %599 = vmatpush1.bf16.msra.mxu0 0
      %600 = vmatprep.subr.bf16.mxu0 0
      %601 = vmatpush1.bf16.msra.mxu0 0
      %602 = vmatprep.subr.bf16.mxu0 0
      %603 = vmatpush1.bf16.msra.mxu0 0
      %604 = vmatprep.mubr.bf16.mxu0 0
      %605 = vmatmul.mubr.bf16.gmra.mrb[0].mxu0 %v570
      %v606 = vpop.f32.mrb[0].mxu0
      %v607 = vadd.f32 0.0, %v606
      %v608 = vpop.f32.mrb[0].mxu0
      %v609 = vpop.f32.mrb[0].mxu0
      %v610 = vpop.f32.mrb[0].mxu0
      %611 = vdwg.mxu0
      %v616 = vunpack.c.l.b16 %v533
      %v617 = vunpack.c.l.b16 %v534
      %v618 = vunpack.c.l.b16 %v535
      %v619 = vunpack.c.l.b16 %v536
      %v620 = vpack.c.b16 %v617, %v616
      %v621 = vpack.c.b16 %v619, %v618
      %v625 = vsel %vm281, %v532, 0
      %627 = vmatprep.subr.bf16.mxu0 0
      %628 = vmatpush1.bf16.msra.mxu0 %v620
      %629 = vmatprep.subr.bf16.mxu0 0
      %630 = vmatpush1.bf16.msra.mxu0 %v621
      %631 = vmatprep.subr.bf16.mxu0 0
      %632 = vmatpush1.bf16.msra.mxu0 0
      %633 = vmatprep.subr.bf16.mxu0 0
      %634 = vmatpush1.bf16.msra.mxu0 0
      %635 = vmatprep.subr.bf16.mxu0 0
      %636 = vmatpush1.bf16.msra.mxu0 0
      %637 = vmatprep.subr.bf16.mxu0 0
      %638 = vmatpush1.bf16.msra.mxu0 0
      %639 = vmatprep.subr.bf16.mxu0 0
      %640 = vmatpush1.bf16.msra.mxu0 0
      %641 = vmatprep.subr.bf16.mxu0 0
      %642 = vmatpush1.bf16.msra.mxu0 0
      %643 = vmatprep.subr.bf16.mxu0 0
      %644 = vmatpush1.bf16.msra.mxu0 0
      %645 = vmatprep.subr.bf16.mxu0 0
      %646 = vmatpush1.bf16.msra.mxu0 0
      %647 = vmatprep.subr.bf16.mxu0 0
      %648 = vmatpush1.bf16.msra.mxu0 0
      %649 = vmatprep.subr.bf16.mxu0 0
      %650 = vmatpush1.bf16.msra.mxu0 0
      %651 = vmatprep.subr.bf16.mxu0 0
      %652 = vmatpush1.bf16.msra.mxu0 0
      %653 = vmatprep.subr.bf16.mxu0 0
      %654 = vmatpush1.bf16.msra.mxu0 0
      %655 = vmatprep.subr.bf16.mxu0 0
      %656 = vmatpush1.bf16.msra.mxu0 0
      %657 = vmatprep.subr.bf16.mxu0 0
      %658 = vmatpush1.bf16.msra.mxu0 0
      %659 = vmatprep.mubr.bf16.mxu0 0
      %660 = vmatmul.mubr.bf16.gmra.mrb[0].mxu0 %v625
      %v661 = vpop.f32.mrb[0].mxu0
      %v662 = vadd.f32 %v607, %v661
      %v663 = vpop.f32.mrb[0].mxu0
      %v664 = vpop.f32.mrb[0].mxu0
      %v665 = vpop.f32.mrb[0].mxu0
      %666 = vdwg.mxu0
      %s667 = sadd.s32 %s239, 2
      %s668 = smul.addr %s667, 2
      %s669 = scalar_lea.vmem %s218, %s668
      %v670 = vld [vmem:[%s669] sm:$0x1]
      %v671 = vld [vmem:[%s384] sm:$0xf]
      %v672 = vld [vmem:[%s384 + $0x4] sm:$0xf]
      %v673 = vld [vmem:[%s384 + $0x8] sm:$0xf]
      %v674 = vld [vmem:[%s384 + $0xc] sm:$0xf]
      %v679 = vunpack.c.l.b16 %v671
      %v680 = vunpack.c.l.b16 %v672
      %v681 = vunpack.c.l.b16 %v673
      %v682 = vunpack.c.l.b16 %v674
      %v683 = vpack.c.b16 %v680, %v679
      %v684 = vpack.c.b16 %v682, %v681
      %v688 = vsel %vm281, %v670, 0
      %690 = vmatprep.subr.bf16.mxu0 0
      %691 = vmatpush1.bf16.msra.mxu0 %v683
      %692 = vmatprep.subr.bf16.mxu0 0
      %693 = vmatpush1.bf16.msra.mxu0 %v684
      %694 = vmatprep.subr.bf16.mxu0 0
      %695 = vmatpush1.bf16.msra.mxu0 0
      %696 = vmatprep.subr.bf16.mxu0 0
      %697 = vmatpush1.bf16.msra.mxu0 0
      %698 = vmatprep.subr.bf16.mxu0 0
      %699 = vmatpush1.bf16.msra.mxu0 0
      %700 = vmatprep.subr.bf16.mxu0 0
      %701 = vmatpush1.bf16.msra.mxu0 0
      %702 = vmatprep.subr.bf16.mxu0 0
      %703 = vmatpush1.bf16.msra.mxu0 0
      %704 = vmatprep.subr.bf16.mxu0 0
      %705 = vmatpush1.bf16.msra.mxu0 0
      %706 = vmatprep.subr.bf16.mxu0 0
      %707 = vmatpush1.bf16.msra.mxu0 0
      %708 = vmatprep.subr.bf16.mxu0 0
      %709 = vmatpush1.bf16.msra.mxu0 0
      %710 = vmatprep.subr.bf16.mxu0 0
      %711 = vmatpush1.bf16.msra.mxu0 0
      %712 = vmatprep.subr.bf16.mxu0 0
      %713 = vmatpush1.bf16.msra.mxu0 0
      %714 = vmatprep.subr.bf16.mxu0 0
      %715 = vmatpush1.bf16.msra.mxu0 0
      %716 = vmatprep.subr.bf16.mxu0 0
      %717 = vmatpush1.bf16.msra.mxu0 0
      %718 = vmatprep.subr.bf16.mxu0 0
      %719 = vmatpush1.bf16.msra.mxu0 0
      %720 = vmatprep.subr.bf16.mxu0 0
      %721 = vmatpush1.bf16.msra.mxu0 0
      %722 = vmatprep.mubr.bf16.mxu0 0
      %723 = vmatmul.mubr.bf16.gmra.mrb[0].mxu0 %v688
      %v724 = vpop.f32.mrb[0].mxu0
      %v725 = vadd.f32 0.0, %v724
      %v726 = vpop.f32.mrb[0].mxu0
      %v727 = vpop.f32.mrb[0].mxu0
      %v728 = vpop.f32.mrb[0].mxu0
      %729 = vdwg.mxu0
      %v730 = vadd.f32 %v662, %v725
      %v731 = vld [vmem:[%s669] sm:$0x3]
      %v732 = vld [vmem:[%s446] sm:$0xf]
      %v733 = vld [vmem:[%s446 + $0x4] sm:$0xf]
      %v734 = vld [vmem:[%s446 + $0x8] sm:$0xf]
      %v735 = vld [vmem:[%s446 + $0xc] sm:$0xf]
      %v738 = vunpack.c.l.s4 1983009808
      %v739 = vunpack.c.0.s8 %v738
      %v740 = vlaneseq
      %v741 = vshrl.u32 %v740, 7
      %v742 = vsub.s32 %v739, %v741
      %v743 = vrot.slane %v731, %v742
      %v745 = vshrl.u32 %v743, 16
      %v747 = vshll.u32 %v743, 16
      %v749 = vrot.slane %v747, 1
      %v750 = vor.u32 %v745, %v749
      %v755 = vunpack.c.l.b16 %v732
      %v756 = vunpack.c.l.b16 %v733
      %v757 = vunpack.c.l.b16 %v734
      %v758 = vunpack.c.l.b16 %v735
      %v759 = vpack.c.b16 %v756, %v755
      %v760 = vpack.c.b16 %v758, %v757
      %v764 = vsel %vm281, %v750, 0
      %766 = vmatprep.subr.bf16.mxu0 0
      %767 = vmatpush1.bf16.msra.mxu0 %v759
      %768 = vmatprep.subr.bf16.mxu0 0
      %769 = vmatpush1.bf16.msra.mxu0 %v760
      %770 = vmatprep.subr.bf16.mxu0 0
      %771 = vmatpush1.bf16.msra.mxu0 0
      %772 = vmatprep.subr.bf16.mxu0 0
      %773 = vmatpush1.bf16.msra.mxu0 0
      %774 = vmatprep.subr.bf16.mxu0 0
      %775 = vmatpush1.bf16.msra.mxu0 0
      %776 = vmatprep.subr.bf16.mxu0 0
      %777 = vmatpush1.bf16.msra.mxu0 0
      %778 = vmatprep.subr.bf16.mxu0 0
      %779 = vmatpush1.bf16.msra.mxu0 0
      %780 = vmatprep.subr.bf16.mxu0 0
      %781 = vmatpush1.bf16.msra.mxu0 0
      %782 = vmatprep.subr.bf16.mxu0 0
      %783 = vmatpush1.bf16.msra.mxu0 0
      %784 = vmatprep.subr.bf16.mxu0 0
      %785 = vmatpush1.bf16.msra.mxu0 0
      %786 = vmatprep.subr.bf16.mxu0 0
      %787 = vmatpush1.bf16.msra.mxu0 0
      %788 = vmatprep.subr.bf16.mxu0 0
      %789 = vmatpush1.bf16.msra.mxu0 0
      %790 = vmatprep.subr.bf16.mxu0 0
      %791 = vmatpush1.bf16.msra.mxu0 0
      %792 = vmatprep.subr.bf16.mxu0 0
      %793 = vmatpush1.bf16.msra.mxu0 0
      %794 = vmatprep.subr.bf16.mxu0 0
      %795 = vmatpush1.bf16.msra.mxu0 0
      %796 = vmatprep.subr.bf16.mxu0 0
      %797 = vmatpush1.bf16.msra.mxu0 0
      %798 = vmatprep.mubr.bf16.mxu0 0
      %799 = vmatmul.mubr.bf16.gmra.mrb[0].mxu0 %v764
      %v800 = vpop.f32.mrb[0].mxu0
      %v801 = vadd.f32 0.0, %v800
      %v802 = vpop.f32.mrb[0].mxu0
      %v803 = vpop.f32.mrb[0].mxu0
      %v804 = vpop.f32.mrb[0].mxu0
      %805 = vdwg.mxu0
      %v806 = vadd.f32 %v730, %v801
      %v807 = vadd.f32 %v806, %v526
      %v808 = vmax.f32 %v807, 0.0
      %v809 = vpack.c.bf16 %v808, %v808
      %s810 = scalar_lea.vmem %s236, 1
      %811 = vst [vmem:[%s810] sm:$0x1] %v809
      %s812 = smul.u32 2, %s20
      %p813 = scmp.lt.s32.totalorder %s19, 1
      %s814 = scalar_select %p813, %s19, 1
      %p815 = scmp.lt.s32.totalorder %s812, 1
      %s816 = scalar_select %p815, %s812, 1
      %p817 = scmp.lt.s32.totalorder %s21, 0
      %s818 = scalar_select %p817, %s21, 0
      %s819 = sadd.s32 %s818, %s816
      %s820 = smul.addr %s814, 2
      %s821 = sadd.s32 %s819, %s820
      %s822 = scalar_lea.vmem %s3, %s821
      // Predicated region
      $region33: #{_lambda_.7} parent=31 // pred_check
        %p823 = pneg %p133
      $region34: #{_lambda_.7} parent=31 // pred_check_branch
        %825 = sbr.rel (%p823) target = $region36
      $region35: #{_lambda_.7} parent=31 // pred_region
        %s826 = smul.u32 2, %s20
      $region36: #{_lambda_.7} parent=31 // pred_fallthru
        _
    $region32: #{_lambda_.7} parent=5 // pred_fallthru
      _
    %p827 = scmp.le.s32.totalorder 2, %s9
    // Predicated region
    $region37: #{_lambda_.7} parent=5 // pred_check
      %p828 = pneg %p827
    $region38: #{_lambda_.7} parent=5 // pred_check_branch
      %830 = sbr.rel (%p828) target = $region40
    $region39: #{_lambda_.7} parent=5 // pred_region
      %s831 = ssub.s32 %s9, 2
      // Predicated region
      $region41: #{_lambda_.7} parent=39 // pred_check
        %p832 = pneg %p139
      $region42: #{_lambda_.7} parent=39 // pred_check_branch
        %834 = sbr.rel (%p832) target = $region44
      $region43: #{_lambda_.7} parent=39 // pred_region
        %s835 = smul.u32 2, %s23
        %p836 = scmp.lt.s32.totalorder %s22, 1
        %s837 = scalar_select %p836, %s22, 1
        %p838 = scmp.lt.s32.totalorder %s835, 1
        %s839 = scalar_select %p838, %s835, 1
        %p840 = scmp.lt.s32.totalorder %s24, 0
        %s841 = scalar_select %p840, %s24, 0
        %s842 = sadd.s32 %s841, %s839
        %s843 = smul.addr %s837, 2
        %s844 = sadd.s32 %s842, %s843
        %s845 = scalar_lea.vmem %s3, %s844
      $region44: #{_lambda_.7} parent=39 // pred_fallthru
        _
    $region40: #{_lambda_.7} parent=5 // pred_fallthru
      _
  $region6: #{_lambda_.7} parent=0 // loop_footer
    %s13 = sadd.s32 1, %s9
  $region7: #{_lambda_.7} parent=0 // loop_footer_branch
    %8 = sbr.rel target = $region3
  $region8: #{_lambda_.7} parent=0 // loop_exit
    _

// kernel: _lambda_.8
$region0: #{_lambda_.8}
  #allocation0 [shape = 'u32[]', space=smem, size = 0x4, offset = 0x4, fixed_abs, tag = 'smem constant byte address 0x4 - core index']
  #allocation1 [shape = 'u32[144,128]{1,0:T(1,128)}', space=vmem, size = 0x12000, scoped, tag = 'internal scratch']
  %s0 = inlined_call_operand.vmem [shape: bf16[2,2,2,64], index: 0, kind: input, shape index: {}]
  %s1 = inlined_call_operand.vmem [shape: bf16[4,64,128], index: 1, kind: input, shape index: {}]
  %s2 = inlined_call_operand.vmem [shape: f32[1,128], index: 2, kind: input, shape index: {}]
  %s3 = inlined_call_operand.vmem [shape: bf16[2,1,1,128], index: 3, kind: output, shape index: {}]
  %s4 = sld [smem:[#allocation0]]
  $region45: #{_lambda_.8} parent=0
    _
  %s6 = ssub.s32 1, %s4
  %s7 = scalar_select 0, %s6, %s4
  loop: start=0, step=1, limit=4
  $region2: #{_lambda_.8} parent=0 // loop_pre_header
    _
  $region3: #{_lambda_.8} parent=0 // loop_header
    %s9 = sphi 0, %s13
    %p10 = scmp.ge.s32.totalorder %s9, 4
    %s16 = sphi 0, %s35
    %s17 = sphi 0, %s31
    %s18 = sphi 0, %s27
    %s19 = sphi 0, %s16
    %s20 = sphi 0, %s17
    %s21 = sphi 0, %s18
    %s22 = sphi 0, %s19
    %s23 = sphi 0, %s20
    %s24 = sphi 0, %s21
    %s38 = sphi 0, %s40
    %s41 = sphi 0, %s38
    %s42 = sphi 0, %s41
    %s58 = sphi 0, %s42
    %s64 = sphi 0, %s66
    %s67 = sphi 0, %s64
    %s68 = sphi 0, %s67
    %s84 = sphi 0, %s68
    %s90 = sphi 0, %s92
    %s93 = sphi 0, %s90
    %s94 = sphi 0, %s93
    %s110 = sphi 0, %s94
    %s120 = sphi 0, %s122
    %s123 = sphi 0, %s120
    %s124 = sphi 0, %s123
    %s140 = sphi 0, %s124
  $region4: #{_lambda_.8} parent=0 // loop_header_branch
    %12 = sbr.rel (%p10) target = $region8
  $region5: #{_lambda_.8} parent=0 // loop_body
    %s14 = ssub.s32 %s9, 1
    %s15 = ssub.s32 %s9, 2
    %s25 = sadd.s32 1, %s18
    %p26 = scmp.ge.s32.totalorder %s25, 1
    %s27 = scalar_select %p26, 0, %s25
    %s28 = sadd.s32 1, %s17
    %s29 = scalar_select %p26, %s28, %s17
    %p30 = scmp.ge.s32.totalorder %s29, 1
    %s31 = scalar_select %p30, 0, %s29
    %s32 = sadd.s32 1, %s16
    %s33 = scalar_select %p30, %s32, %s16
    %p34 = scmp.ge.s32.totalorder %s33, 2
    %s35 = scalar_select %p34, 0, %s33
    %s36 = ssub.s32 %s16, %s35
    %p37 = scmp.eq.s32.totalorder %s36, 0
    %s39 = sadd.s32 %s38, 1
    %s40 = scalar_select %p37, %s38, %s39
    %p43 = pneg %p37
    %p44 = scmp.eq.s32.totalorder %s9, 1
    %p45 = por %p43, %p44
    %p46 = scmp.ne.s32.totalorder %s38, %s41
    %p47 = scmp.eq.s32.totalorder %s9, 0
    %p48 = por %p46, %p47
    %p49 = scmp.ne.s32.totalorder %s38, %s41
    %p50 = scmp.eq.s32.totalorder %s14, 1
    %p51 = por %p49, %p50
    %p52 = scmp.ne.s32.totalorder %s41, %s42
    %p53 = scmp.eq.s32.totalorder %s14, 0
    %p54 = por %p52, %p53
    %p55 = scmp.ne.s32.totalorder %s41, %s42
    %p56 = scmp.eq.s32.totalorder %s15, 1
    %p57 = por %p55, %p56
    %p59 = scmp.ne.s32.totalorder %s42, %s58
    %p60 = scmp.eq.s32.totalorder %s15, 0
    %p61 = por %p59, %p60
    %s62 = ssub.s32 %s18, %s27
    %p63 = scmp.eq.s32.totalorder %s62, 0
    %s65 = sadd.s32 %s64, 1
    %s66 = scalar_select %p63, %s64, %s65
    %p69 = pneg %p63
    %p70 = scmp.eq.s32.totalorder %s9, 1
    %p71 = por %p69, %p70
    %p72 = scmp.ne.s32.totalorder %s64, %s67
    %p73 = scmp.eq.s32.totalorder %s9, 0
    %p74 = por %p72, %p73
    %p75 = scmp.ne.s32.totalorder %s64, %s67
    %p76 = scmp.eq.s32.totalorder %s14, 1
    %p77 = por %p75, %p76
    %p78 = scmp.ne.s32.totalorder %s67, %s68
    %p79 = scmp.eq.s32.totalorder %s14, 0
    %p80 = por %p78, %p79
    %p81 = scmp.ne.s32.totalorder %s67, %s68
    %p82 = scmp.eq.s32.totalorder %s15, 1
    %p83 = por %p81, %p82
    %p85 = scmp.ne.s32.totalorder %s68, %s84
    %p86 = scmp.eq.s32.totalorder %s15, 0
    %p87 = por %p85, %p86
    %s88 = ssub.s32 %s18, %s27
    %p89 = scmp.eq.s32.totalorder %s88, 0
    %s91 = sadd.s32 %s90, 1
    %s92 = scalar_select %p89, %s90, %s91
    %p95 = pneg %p89
    %p96 = scmp.eq.s32.totalorder %s9, 1
    %p97 = por %p95, %p96
    %p98 = scmp.ne.s32.totalorder %s90, %s93
    %p99 = scmp.eq.s32.totalorder %s9, 0
    %p100 = por %p98, %p99
    %p101 = scmp.ne.s32.totalorder %s90, %s93
    %p102 = scmp.eq.s32.totalorder %s14, 1
    %p103 = por %p101, %p102
    %p104 = scmp.ne.s32.totalorder %s93, %s94
    %p105 = scmp.eq.s32.totalorder %s14, 0
    %p106 = por %p104, %p105
    %p107 = scmp.ne.s32.totalorder %s93, %s94
    %p108 = scmp.eq.s32.totalorder %s15, 1
    %p109 = por %p107, %p108
    %p111 = scmp.ne.s32.totalorder %s94, %s110
    %p112 = scmp.eq.s32.totalorder %s15, 0
    %p113 = por %p111, %p112
    %s114 = ssub.s32 %s16, %s35
    %s115 = ssub.s32 %s17, %s31
    %s116 = sor.u32 %s114, %s115
    %s117 = ssub.s32 %s18, %s27
    %s118 = sor.u32 %s116, %s117
    %p119 = scmp.eq.s32.totalorder %s118, 0
    %s121 = sadd.s32 %s120, 1
    %s122 = scalar_select %p119, %s120, %s121
    %p125 = pneg %p119
    %p126 = scmp.eq.s32.totalorder %s9, 1
    %p127 = por %p125, %p126
    %p128 = scmp.ne.s32.totalorder %s120, %s123
    %p129 = scmp.eq.s32.totalorder %s9, 0
    %p130 = por %p128, %p129
    %p131 = scmp.ne.s32.totalorder %s120, %s123
    %p132 = scmp.eq.s32.totalorder %s14, 1
    %p133 = por %p131, %p132
    %p134 = scmp.ne.s32.totalorder %s123, %s124
    %p135 = scmp.eq.s32.totalorder %s14, 0
    %p136 = por %p134, %p135
    %p137 = scmp.ne.s32.totalorder %s123, %s124
    %p138 = scmp.eq.s32.totalorder %s15, 1
    %p139 = por %p137, %p138
    %p141 = scmp.ne.s32.totalorder %s124, %s140
    %p142 = scmp.eq.s32.totalorder %s15, 0
    %p143 = por %p141, %p142
    %p144 = scmp.le.s32.totalorder 1, %s9
    %p145 = scmp.lt.s32.totalorder %s9, 3
    %p146 = pnand %p144, %p145
    %p147 = pneg %p146
    // Predicated region
    $region9: #{_lambda_.8} parent=5 // pred_check
      _
    $region10: #{_lambda_.8} parent=5 // pred_check_branch
      %149 = sbr.rel (%p146) target = $region12
    $region11: #{_lambda_.8} parent=5 // pred_region
      %s150 = ssub.s32 %s9, 1
      // Predicated region
      $region13: #{_lambda_.8} parent=11 // pred_check
        %p151 = pneg %p80
      $region14: #{_lambda_.8} parent=11 // pred_check_branch
        %153 = sbr.rel (%p151) target = $region16
      $region15: #{_lambda_.8} parent=11 // pred_region
        %p154 = scmp.lt.s32.totalorder %s21, 0
        %s155 = scalar_select %p154, %s21, 0
        %s156 = smul.addr %s155, 4
        %s157 = scalar_lea.vmem %s1, %s156
      $region16: #{_lambda_.8} parent=11 // pred_fallthru
        _
      // Predicated region
      $region17: #{_lambda_.8} parent=11 // pred_check
        %p158 = pneg %p106
      $region18: #{_lambda_.8} parent=11 // pred_check_branch
        %160 = sbr.rel (%p158) target = $region20
      $region19: #{_lambda_.8} parent=11 // pred_region
        %p161 = scmp.lt.s32.totalorder %s21, 0
        %s162 = scalar_select %p161, %s21, 0
        %s163 = scalar_lea.vmem %s2, %s162
      $region20: #{_lambda_.8} parent=11 // pred_fallthru
        _
    $region12: #{_lambda_.8} parent=5 // pred_fallthru
      _
    %p164 = scmp.lt.s32.totalorder %s9, 2
    // Predicated region
    $region21: #{_lambda_.8} parent=5 // pred_check
      %p165 = pneg %p164
    $region22: #{_lambda_.8} parent=5 // pred_check_branch
      %167 = sbr.rel (%p165) target = $region24
    $region23: #{_lambda_.8} parent=5 // pred_region
      // Predicated region
      $region25: #{_lambda_.8} parent=23 // pred_check
        %p168 = pneg %p48
      $region26: #{_lambda_.8} parent=23 // pred_check_branch
        %170 = sbr.rel (%p168) target = $region28
      $region27: #{_lambda_.8} parent=23 // pred_region
        %p171 = scmp.lt.s32.totalorder %s16, 1
        %s172 = scalar_select %p171, %s16, 1
        %s173 = smul.addr %s172, 2
        %s174 = scalar_lea.vmem %s0, %s173
      $region28: #{_lambda_.8} parent=23 // pred_fallthru
        _
    $region24: #{_lambda_.8} parent=5 // pred_fallthru
      _
    %p175 = scmp.le.s32.totalorder 1, %s9
    %p176 = scmp.lt.s32.totalorder %s9, 3
    %p177 = pnand %p175, %p176
    %p178 = pneg %p177
    // Predicated region
    $region29: #{_lambda_.8} parent=5 // pred_check
      _
    $region30: #{_lambda_.8} parent=5 // pred_check_branch
      %180 = sbr.rel (%p177) target = $region32
    $region31: #{_lambda_.8} parent=5 // pred_region
      %s181 = ssub.s32 %s9, 1
      %p182 = scmp.lt.s32.totalorder %s19, 1
      %s183 = scalar_select %p182, %s19, 1
      %s184 = smul.addr %s183, 2
      %s185 = scalar_lea.vmem %s0, %s184
      %p186 = pneg %p54
      %p187 = pneg %p51
      %p188 = scmp.lt.s32.totalorder %s21, 0
      %s189 = scalar_select %p188, %s21, 0
      %s190 = smul.addr %s189, 4
      %s191 = scalar_lea.vmem %s1, %s190
      %p192 = pneg %p80
      %p193 = pneg %p77
      %p194 = scmp.lt.s32.totalorder %s21, 0
      %s195 = scalar_select %p194, %s21, 0
      %s196 = scalar_lea.vmem %s2, %s195
      %p197 = pneg %p106
      %p198 = pneg %p103
      %p199 = pneg %p136
      %p200 = pneg %p133
      %p201 = scmp.lt.s32.totalorder %s19, 1
      %s202 = scalar_select %p201, %s19, 1
      %p203 = scmp.lt.s32.totalorder %s20, 0
      %s204 = scalar_select %p203, %s20, 0
      %p205 = scmp.lt.s32.totalorder %s21, 0
      %s206 = scalar_select %p205, %s21, 0
      %s207 = sadd.s32 %s206, %s204
      %s208 = sadd.s32 %s207, %s202
      %s209 = scalar_lea.vmem %s3, %s208
      %p210 = scmp.lt.s32.totalorder %s19, 1
      %s211 = scalar_select %p210, %s19, 1
      %s212 = smul.addr %s211, 2
      %s213 = scalar_lea.vmem %s0, %s212
      %p214 = scmp.lt.s32.totalorder %s21, 0
      %s215 = scalar_select %p214, %s21, 0
      %s216 = smul.addr %s215, 4
      %s217 = scalar_lea.vmem %s1, %s216
      %p218 = scmp.lt.s32.totalorder %s21, 0
      %s219 = scalar_select %p218, %s21, 0
      %s220 = scalar_lea.vmem %s2, %s219
      %p221 = scmp.lt.s32.totalorder %s19, 1
      %s222 = scalar_select %p221, %s19, 1
      %p223 = scmp.lt.s32.totalorder %s20, 0
      %s224 = scalar_select %p223, %s20, 0
      %p225 = scmp.lt.s32.totalorder %s21, 0
      %s226 = scalar_select %p225, %s21, 0
      %s227 = sadd.s32 %s226, %s224
      %s228 = sadd.s32 %s227, %s222
      %s229 = scalar_lea.vmem %s3, %s228
      %v231 = vld [vmem:[%s220] sm:$0x1]
      %s232 = scalar_lea.vmem %s213, %s20
      %v233 = vld [vmem:[%s232] sm:$0x1]
      %v234 = vld [vmem:[%s217] sm:$0xf]
      %v235 = vld [vmem:[%s217 + $0x4] sm:$0xf]
      %v236 = vld [vmem:[%s217 + $0x8] sm:$0xf]
      %v237 = vld [vmem:[%s217 + $0xc] sm:$0xf]
      %v238 = vld [vmem:[%s217 + $0x10] sm:$0xf]
      %v239 = vld [vmem:[%s217 + $0x14] sm:$0xf]
      %v240 = vld [vmem:[%s217 + $0x18] sm:$0xf]
      %v241 = vld [vmem:[%s217 + $0x1c] sm:$0xf]
      %s242 = scalar_lea.vmem %s217, 32
      %v243 = vld [vmem:[%s242] sm:$0xf]
      %v244 = vld [vmem:[%s242 + $0x4] sm:$0xf]
      %v245 = vld [vmem:[%s242 + $0x8] sm:$0xf]
      %v246 = vld [vmem:[%s242 + $0xc] sm:$0xf]
      %v247 = vld [vmem:[%s242 + $0x10] sm:$0xf]
      %v248 = vld [vmem:[%s242 + $0x14] sm:$0xf]
      %v249 = vld [vmem:[%s242 + $0x18] sm:$0xf]
      %v250 = vld [vmem:[%s242 + $0x1c] sm:$0xf]
      %v253 = vunpack.c.l.s4 1966171168
      %v254 = vunpack.c.0.s8 %v253
      %v255 = vlaneseq
      %v256 = vshrl.u32 %v255, 7
      %v257 = vsub.s32 %v254, %v256
      %v258 = vrot.slane %v233, %v257
      %v260 = vunpack.c.l.s4 1966171168
      %v261 = vunpack.c.0.s8 %v260
      %v262 = vlaneseq
      %v263 = vshrl.u32 %v262, 7
      %v264 = vsub.s32 %v261, %v263
      %v265 = vrot.slane %v258, %v264
      %v267 = vshrl.u32 %v265, 16
      %v277 = vunpack.c.l.b16 %v243
      %v278 = vunpack.c.l.b16 %v244
      %v279 = vunpack.c.l.b16 %v245
      %v280 = vunpack.c.l.b16 %v246
      %v281 = vunpack.c.l.b16 %v247
      %v282 = vunpack.c.l.b16 %v248
      %v283 = vunpack.c.l.b16 %v249
      %v284 = vunpack.c.l.b16 %v250
      %v285 = vpack.c.b16 %v278, %v277
      %v286 = vpack.c.b16 %v280, %v279
      %v287 = vpack.c.b16 %v282, %v281
      %v288 = vpack.c.b16 %v284, %v283
      %vm293 = vcmask 523264
      %v295 = vsel %vm293, %v267, 0
      %297 = vmatprep.subr.bf16.mxu0 0
      %298 = vmatpush1.bf16.msra.mxu0 %v285
      %299 = vmatprep.subr.bf16.mxu0 0
      %300 = vmatpush1.bf16.msra.mxu0 %v286
      %301 = vmatprep.subr.bf16.mxu0 0
      %302 = vmatpush1.bf16.msra.mxu0 %v287
      %303 = vmatprep.subr.bf16.mxu0 0
      %304 = vmatpush1.bf16.msra.mxu0 %v288
      %305 = vmatprep.subr.bf16.mxu0 0
      %306 = vmatpush1.bf16.msra.mxu0 0
      %307 = vmatprep.subr.bf16.mxu0 0
      %308 = vmatpush1.bf16.msra.mxu0 0
      %309 = vmatprep.subr.bf16.mxu0 0
      %310 = vmatpush1.bf16.msra.mxu0 0
      %311 = vmatprep.subr.bf16.mxu0 0
      %312 = vmatpush1.bf16.msra.mxu0 0
      %313 = vmatprep.subr.bf16.mxu0 0
      %314 = vmatpush1.bf16.msra.mxu0 0
      %315 = vmatprep.subr.bf16.mxu0 0
      %316 = vmatpush1.bf16.msra.mxu0 0
      %317 = vmatprep.subr.bf16.mxu0 0
      %318 = vmatpush1.bf16.msra.mxu0 0
      %319 = vmatprep.subr.bf16.mxu0 0
      %320 = vmatpush1.bf16.msra.mxu0 0
      %321 = vmatprep.subr.bf16.mxu0 0
      %322 = vmatpush1.bf16.msra.mxu0 0
      %323 = vmatprep.subr.bf16.mxu0 0
      %324 = vmatpush1.bf16.msra.mxu0 0
      %325 = vmatprep.subr.bf16.mxu0 0
      %326 = vmatpush1.bf16.msra.mxu0 0
      %327 = vmatprep.subr.bf16.mxu0 0
      %328 = vmatpush1.bf16.msra.mxu0 0
      %329 = vmatprep.mubr.bf16.mxu0 0
      %330 = vmatmul.mubr.bf16.gmra.mrb[0].mxu0 %v295
      %v331 = vpop.f32.mrb[0].mxu0
      %v332 = vadd.f32 0.0, %v331
      %v333 = vpop.f32.mrb[0].mxu0
      %v334 = vpop.f32.mrb[0].mxu0
      %v335 = vpop.f32.mrb[0].mxu0
      %336 = vdwg.mxu0
      %v345 = vunpack.c.l.b16 %v234
      %v346 = vunpack.c.l.b16 %v235
      %v347 = vunpack.c.l.b16 %v236
      %v348 = vunpack.c.l.b16 %v237
      %v349 = vunpack.c.l.b16 %v238
      %v350 = vunpack.c.l.b16 %v239
      %v351 = vunpack.c.l.b16 %v240
      %v352 = vunpack.c.l.b16 %v241
      %v353 = vpack.c.b16 %v346, %v345
      %v354 = vpack.c.b16 %v348, %v347
      %v355 = vpack.c.b16 %v350, %v349
      %v356 = vpack.c.b16 %v352, %v351
      %v362 = vsel %vm293, %v233, 0
      %364 = vmatprep.subr.bf16.mxu0 0
      %365 = vmatpush1.bf16.msra.mxu0 %v353
      %366 = vmatprep.subr.bf16.mxu0 0
      %367 = vmatpush1.bf16.msra.mxu0 %v354
      %368 = vmatprep.subr.bf16.mxu0 0
      %369 = vmatpush1.bf16.msra.mxu0 %v355
      %370 = vmatprep.subr.bf16.mxu0 0
      %371 = vmatpush1.bf16.msra.mxu0 %v356
      %372 = vmatprep.subr.bf16.mxu0 0
      %373 = vmatpush1.bf16.msra.mxu0 0
      %374 = vmatprep.subr.bf16.mxu0 0
      %375 = vmatpush1.bf16.msra.mxu0 0
      %376 = vmatprep.subr.bf16.mxu0 0
      %377 = vmatpush1.bf16.msra.mxu0 0
      %378 = vmatprep.subr.bf16.mxu0 0
      %379 = vmatpush1.bf16.msra.mxu0 0
      %380 = vmatprep.subr.bf16.mxu0 0
      %381 = vmatpush1.bf16.msra.mxu0 0
      %382 = vmatprep.subr.bf16.mxu0 0
      %383 = vmatpush1.bf16.msra.mxu0 0
      %384 = vmatprep.subr.bf16.mxu0 0
      %385 = vmatpush1.bf16.msra.mxu0 0
      %386 = vmatprep.subr.bf16.mxu0 0
      %387 = vmatpush1.bf16.msra.mxu0 0
      %388 = vmatprep.subr.bf16.mxu0 0
      %389 = vmatpush1.bf16.msra.mxu0 0
      %390 = vmatprep.subr.bf16.mxu0 0
      %391 = vmatpush1.bf16.msra.mxu0 0
      %392 = vmatprep.subr.bf16.mxu0 0
      %393 = vmatpush1.bf16.msra.mxu0 0
      %394 = vmatprep.subr.bf16.mxu0 0
      %395 = vmatpush1.bf16.msra.mxu0 0
      %396 = vmatprep.mubr.bf16.mxu0 0
      %397 = vmatmul.mubr.bf16.gmra.mrb[0].mxu0 %v362
      %v398 = vpop.f32.mrb[0].mxu0
      %v399 = vadd.f32 %v332, %v398
      %v400 = vpop.f32.mrb[0].mxu0
      %v401 = vpop.f32.mrb[0].mxu0
      %v402 = vpop.f32.mrb[0].mxu0
      %403 = vdwg.mxu0
      %s404 = sadd.s32 %s20, 1
      %s405 = scalar_lea.vmem %s213, %s404
      %v406 = vld [vmem:[%s405] sm:$0x1]
      %s407 = scalar_lea.vmem %s217, 64
      %v408 = vld [vmem:[%s407] sm:$0xf]
      %v409 = vld [vmem:[%s407 + $0x4] sm:$0xf]
      %v410 = vld [vmem:[%s407 + $0x8] sm:$0xf]
      %v411 = vld [vmem:[%s407 + $0xc] sm:$0xf]
      %v412 = vld [vmem:[%s407 + $0x10] sm:$0xf]
      %v413 = vld [vmem:[%s407 + $0x14] sm:$0xf]
      %v414 = vld [vmem:[%s407 + $0x18] sm:$0xf]
      %v415 = vld [vmem:[%s407 + $0x1c] sm:$0xf]
      %v424 = vunpack.c.l.b16 %v408
      %v425 = vunpack.c.l.b16 %v409
      %v426 = vunpack.c.l.b16 %v410
      %v427 = vunpack.c.l.b16 %v411
      %v428 = vunpack.c.l.b16 %v412
      %v429 = vunpack.c.l.b16 %v413
      %v430 = vunpack.c.l.b16 %v414
      %v431 = vunpack.c.l.b16 %v415
      %v432 = vpack.c.b16 %v425, %v424
      %v433 = vpack.c.b16 %v427, %v426
      %v434 = vpack.c.b16 %v429, %v428
      %v435 = vpack.c.b16 %v431, %v430
      %v441 = vsel %vm293, %v406, 0
      %443 = vmatprep.subr.bf16.mxu0 0
      %444 = vmatpush1.bf16.msra.mxu0 %v432
      %445 = vmatprep.subr.bf16.mxu0 0
      %446 = vmatpush1.bf16.msra.mxu0 %v433
      %447 = vmatprep.subr.bf16.mxu0 0
      %448 = vmatpush1.bf16.msra.mxu0 %v434
      %449 = vmatprep.subr.bf16.mxu0 0
      %450 = vmatpush1.bf16.msra.mxu0 %v435
      %451 = vmatprep.subr.bf16.mxu0 0
      %452 = vmatpush1.bf16.msra.mxu0 0
      %453 = vmatprep.subr.bf16.mxu0 0
      %454 = vmatpush1.bf16.msra.mxu0 0
      %455 = vmatprep.subr.bf16.mxu0 0
      %456 = vmatpush1.bf16.msra.mxu0 0
      %457 = vmatprep.subr.bf16.mxu0 0
      %458 = vmatpush1.bf16.msra.mxu0 0
      %459 = vmatprep.subr.bf16.mxu0 0
      %460 = vmatpush1.bf16.msra.mxu0 0
      %461 = vmatprep.subr.bf16.mxu0 0
      %462 = vmatpush1.bf16.msra.mxu0 0
      %463 = vmatprep.subr.bf16.mxu0 0
      %464 = vmatpush1.bf16.msra.mxu0 0
      %465 = vmatprep.subr.bf16.mxu0 0
      %466 = vmatpush1.bf16.msra.mxu0 0
      %467 = vmatprep.subr.bf16.mxu0 0
      %468 = vmatpush1.bf16.msra.mxu0 0
      %469 = vmatprep.subr.bf16.mxu0 0
      %470 = vmatpush1.bf16.msra.mxu0 0
      %471 = vmatprep.subr.bf16.mxu0 0
      %472 = vmatpush1.bf16.msra.mxu0 0
      %473 = vmatprep.subr.bf16.mxu0 0
      %474 = vmatpush1.bf16.msra.mxu0 0
      %475 = vmatprep.mubr.bf16.mxu0 0
      %476 = vmatmul.mubr.bf16.gmra.mrb[0].mxu0 %v441
      %v477 = vpop.f32.mrb[0].mxu0
      %v478 = vadd.f32 0.0, %v477
      %v479 = vpop.f32.mrb[0].mxu0
      %v480 = vpop.f32.mrb[0].mxu0
      %v481 = vpop.f32.mrb[0].mxu0
      %482 = vdwg.mxu0
      %v483 = vadd.f32 %v399, %v478
      %s484 = scalar_lea.vmem %s217, 96
      %v485 = vld [vmem:[%s484] sm:$0xf]
      %v486 = vld [vmem:[%s484 + $0x4] sm:$0xf]
      %v487 = vld [vmem:[%s484 + $0x8] sm:$0xf]
      %v488 = vld [vmem:[%s484 + $0xc] sm:$0xf]
      %v489 = vld [vmem:[%s484 + $0x10] sm:$0xf]
      %v490 = vld [vmem:[%s484 + $0x14] sm:$0xf]
      %v491 = vld [vmem:[%s484 + $0x18] sm:$0xf]
      %v492 = vld [vmem:[%s484 + $0x1c] sm:$0xf]
      %v495 = vunpack.c.l.s4 1966171168
      %v496 = vunpack.c.0.s8 %v495
      %v497 = vlaneseq
      %v498 = vshrl.u32 %v497, 7
      %v499 = vsub.s32 %v496, %v498
      %v500 = vrot.slane %v406, %v499
      %v502 = vunpack.c.l.s4 1966171168
      %v503 = vunpack.c.0.s8 %v502
      %v504 = vlaneseq
      %v505 = vshrl.u32 %v504, 7
      %v506 = vsub.s32 %v503, %v505
      %v507 = vrot.slane %v500, %v506
      %v509 = vshrl.u32 %v507, 16
      %v519 = vunpack.c.l.b16 %v485
      %v520 = vunpack.c.l.b16 %v486
      %v521 = vunpack.c.l.b16 %v487
      %v522 = vunpack.c.l.b16 %v488
      %v523 = vunpack.c.l.b16 %v489
      %v524 = vunpack.c.l.b16 %v490
      %v525 = vunpack.c.l.b16 %v491
      %v526 = vunpack.c.l.b16 %v492
      %v527 = vpack.c.b16 %v520, %v519
      %v528 = vpack.c.b16 %v522, %v521
      %v529 = vpack.c.b16 %v524, %v523
      %v530 = vpack.c.b16 %v526, %v525
      %v536 = vsel %vm293, %v509, 0
      %538 = vmatprep.subr.bf16.mxu0 0
      %539 = vmatpush1.bf16.msra.mxu0 %v527
      %540 = vmatprep.subr.bf16.mxu0 0
      %541 = vmatpush1.bf16.msra.mxu0 %v528
      %542 = vmatprep.subr.bf16.mxu0 0
      %543 = vmatpush1.bf16.msra.mxu0 %v529
      %544 = vmatprep.subr.bf16.mxu0 0
      %545 = vmatpush1.bf16.msra.mxu0 %v530
      %546 = vmatprep.subr.bf16.mxu0 0
      %547 = vmatpush1.bf16.msra.mxu0 0
      %548 = vmatprep.subr.bf16.mxu0 0
      %549 = vmatpush1.bf16.msra.mxu0 0
      %550 = vmatprep.subr.bf16.mxu0 0
      %551 = vmatpush1.bf16.msra.mxu0 0
      %552 = vmatprep.subr.bf16.mxu0 0
      %553 = vmatpush1.bf16.msra.mxu0 0
      %554 = vmatprep.subr.bf16.mxu0 0
      %555 = vmatpush1.bf16.msra.mxu0 0
      %556 = vmatprep.subr.bf16.mxu0 0
      %557 = vmatpush1.bf16.msra.mxu0 0
      %558 = vmatprep.subr.bf16.mxu0 0
      %559 = vmatpush1.bf16.msra.mxu0 0
      %560 = vmatprep.subr.bf16.mxu0 0
      %561 = vmatpush1.bf16.msra.mxu0 0
      %562 = vmatprep.subr.bf16.mxu0 0
      %563 = vmatpush1.bf16.msra.mxu0 0
      %564 = vmatprep.subr.bf16.mxu0 0
      %565 = vmatpush1.bf16.msra.mxu0 0
      %566 = vmatprep.subr.bf16.mxu0 0
      %567 = vmatpush1.bf16.msra.mxu0 0
      %568 = vmatprep.subr.bf16.mxu0 0
      %569 = vmatpush1.bf16.msra.mxu0 0
      %570 = vmatprep.mubr.bf16.mxu0 0
      %571 = vmatmul.mubr.bf16.gmra.mrb[0].mxu0 %v536
      %v572 = vpop.f32.mrb[0].mxu0
      %v573 = vadd.f32 0.0, %v572
      %v574 = vpop.f32.mrb[0].mxu0
      %v575 = vpop.f32.mrb[0].mxu0
      %v576 = vpop.f32.mrb[0].mxu0
      %577 = vdwg.mxu0
      %v578 = vadd.f32 %v483, %v573
      %v579 = vadd.f32 %v578, %v231
      %v580 = vmax.f32 %v579, 0.0
      %v581 = vpack.c.bf16 %v580, %v580
      %vm582 = vcmask 1040384
      %vm583 = vsmask.f32 256
      %vm584 = vmand %vm582, %vm583
      %v585 = vld [vmem:[%s229] sm:$0x1]
      %v586 = vsel %vm584, %v581, %v585
      %587 = vst [vmem:[%s229] sm:$0x1] %v586
      %p588 = scmp.lt.s32.totalorder %s19, 1
      %s589 = scalar_select %p588, %s19, 1
      %p590 = scmp.lt.s32.totalorder %s20, 0
      %s591 = scalar_select %p590, %s20, 0
      %p592 = scmp.lt.s32.totalorder %s21, 0
      %s593 = scalar_select %p592, %s21, 0
      %s594 = sadd.s32 %s593, %s591
      %s595 = sadd.s32 %s594, %s589
      %s596 = scalar_lea.vmem %s3, %s595
      // Predicated region
      $region33: #{_lambda_.8} parent=31 // pred_check
        %p597 = pneg %p133
      $region34: #{_lambda_.8} parent=31 // pred_check_branch
        %599 = sbr.rel (%p597) target = $region36
      $region35: #{_lambda_.8} parent=31 // pred_region
        _
      $region36: #{_lambda_.8} parent=31 // pred_fallthru
        _
    $region32: #{_lambda_.8} parent=5 // pred_fallthru
      _
    %p600 = scmp.le.s32.totalorder 2, %s9
    // Predicated region
    $region37: #{_lambda_.8} parent=5 // pred_check
      %p601 = pneg %p600
    $region38: #{_lambda_.8} parent=5 // pred_check_branch
      %603 = sbr.rel (%p601) target = $region40
    $region39: #{_lambda_.8} parent=5 // pred_region
      %s604 = ssub.s32 %s9, 2
      // Predicated region
      $region41: #{_lambda_.8} parent=39 // pred_check
        %p605 = pneg %p139
      $region42: #{_lambda_.8} parent=39 // pred_check_branch
        %607 = sbr.rel (%p605) target = $region44
      $region43: #{_lambda_.8} parent=39 // pred_region
        %p608 = scmp.lt.s32.totalorder %s22, 1
        %s609 = scalar_select %p608, %s22, 1
        %p610 = scmp.lt.s32.totalorder %s23, 0
        %s611 = scalar_select %p610, %s23, 0
        %p612 = scmp.lt.s32.totalorder %s24, 0
        %s613 = scalar_select %p612, %s24, 0
        %s614 = sadd.s32 %s613, %s611
        %s615 = sadd.s32 %s614, %s609
        %s616 = scalar_lea.vmem %s3, %s615
      $region44: #{_lambda_.8} parent=39 // pred_fallthru
        _
    $region40: #{_lambda_.8} parent=5 // pred_fallthru
      _
  $region6: #{_lambda_.8} parent=0 // loop_footer
    %s13 = sadd.s32 1, %s9
  $region7: #{_lambda_.8} parent=0 // loop_footer_branch
    %8 = sbr.rel target = $region3
  $region8: #{_lambda_.8} parent=0 // loop_exit
    _

// kernel: _lambda_.9
$region0: #{_lambda_.9}
  #allocation0 [shape = 'u32[]', space=smem, size = 0x4, offset = 0x4, fixed_abs, tag = 'smem constant byte address 0x4 - core index']
  #allocation1 [shape = 'u32[144,128]{1,0:T(1,128)}', space=vmem, size = 0x12000, scoped, tag = 'internal scratch']
  %s0 = inlined_call_operand.vmem [shape: bf16[2,3,3,32], index: 0, kind: input, shape index: {}]
  %s1 = inlined_call_operand.vmem [shape: bf16[9,32,128], index: 1, kind: input, shape index: {}]
  %s2 = inlined_call_operand.vmem [shape: f32[1,128], index: 2, kind: input, shape index: {}]
  %s3 = inlined_call_operand.vmem [shape: f32[2,1,1,128], index: 3, kind: output, shape index: {}]
  %s4 = sld [smem:[#allocation0]]
  $region45: #{_lambda_.9} parent=0
    _
  %s6 = ssub.s32 1, %s4
  %s7 = scalar_select 0, %s6, %s4
  loop: start=0, step=1, limit=4
  $region2: #{_lambda_.9} parent=0 // loop_pre_header
    _
  $region3: #{_lambda_.9} parent=0 // loop_header
    %s9 = sphi 0, %s13
    %p10 = scmp.ge.s32.totalorder %s9, 4
    %s16 = sphi 0, %s35
    %s17 = sphi 0, %s31
    %s18 = sphi 0, %s27
    %s19 = sphi 0, %s16
    %s20 = sphi 0, %s17
    %s21 = sphi 0, %s18
    %s22 = sphi 0, %s19
    %s23 = sphi 0, %s20
    %s24 = sphi 0, %s21
    %s38 = sphi 0, %s40
    %s41 = sphi 0, %s38
    %s42 = sphi 0, %s41
    %s58 = sphi 0, %s42
    %s64 = sphi 0, %s66
    %s67 = sphi 0, %s64
    %s68 = sphi 0, %s67
    %s84 = sphi 0, %s68
    %s90 = sphi 0, %s92
    %s93 = sphi 0, %s90
    %s94 = sphi 0, %s93
    %s110 = sphi 0, %s94
    %s120 = sphi 0, %s122
    %s123 = sphi 0, %s120
    %s124 = sphi 0, %s123
    %s140 = sphi 0, %s124
  $region4: #{_lambda_.9} parent=0 // loop_header_branch
    %12 = sbr.rel (%p10) target = $region8
  $region5: #{_lambda_.9} parent=0 // loop_body
    %s14 = ssub.s32 %s9, 1
    %s15 = ssub.s32 %s9, 2
    %s25 = sadd.s32 1, %s18
    %p26 = scmp.ge.s32.totalorder %s25, 1
    %s27 = scalar_select %p26, 0, %s25
    %s28 = sadd.s32 1, %s17
    %s29 = scalar_select %p26, %s28, %s17
    %p30 = scmp.ge.s32.totalorder %s29, 1
    %s31 = scalar_select %p30, 0, %s29
    %s32 = sadd.s32 1, %s16
    %s33 = scalar_select %p30, %s32, %s16
    %p34 = scmp.ge.s32.totalorder %s33, 2
    %s35 = scalar_select %p34, 0, %s33
    %s36 = ssub.s32 %s16, %s35
    %p37 = scmp.eq.s32.totalorder %s36, 0
    %s39 = sadd.s32 %s38, 1
    %s40 = scalar_select %p37, %s38, %s39
    %p43 = pneg %p37
    %p44 = scmp.eq.s32.totalorder %s9, 1
    %p45 = por %p43, %p44
    %p46 = scmp.ne.s32.totalorder %s38, %s41
    %p47 = scmp.eq.s32.totalorder %s9, 0
    %p48 = por %p46, %p47
    %p49 = scmp.ne.s32.totalorder %s38, %s41
    %p50 = scmp.eq.s32.totalorder %s14, 1
    %p51 = por %p49, %p50
    %p52 = scmp.ne.s32.totalorder %s41, %s42
    %p53 = scmp.eq.s32.totalorder %s14, 0
    %p54 = por %p52, %p53
    %p55 = scmp.ne.s32.totalorder %s41, %s42
    %p56 = scmp.eq.s32.totalorder %s15, 1
    %p57 = por %p55, %p56
    %p59 = scmp.ne.s32.totalorder %s42, %s58
    %p60 = scmp.eq.s32.totalorder %s15, 0
    %p61 = por %p59, %p60
    %s62 = ssub.s32 %s18, %s27
    %p63 = scmp.eq.s32.totalorder %s62, 0
    %s65 = sadd.s32 %s64, 1
    %s66 = scalar_select %p63, %s64, %s65
    %p69 = pneg %p63
    %p70 = scmp.eq.s32.totalorder %s9, 1
    %p71 = por %p69, %p70
    %p72 = scmp.ne.s32.totalorder %s64, %s67
    %p73 = scmp.eq.s32.totalorder %s9, 0
    %p74 = por %p72, %p73
    %p75 = scmp.ne.s32.totalorder %s64, %s67
    %p76 = scmp.eq.s32.totalorder %s14, 1
    %p77 = por %p75, %p76
    %p78 = scmp.ne.s32.totalorder %s67, %s68
    %p79 = scmp.eq.s32.totalorder %s14, 0
    %p80 = por %p78, %p79
    %p81 = scmp.ne.s32.totalorder %s67, %s68
    %p82 = scmp.eq.s32.totalorder %s15, 1
    %p83 = por %p81, %p82
    %p85 = scmp.ne.s32.totalorder %s68, %s84
    %p86 = scmp.eq.s32.totalorder %s15, 0
    %p87 = por %p85, %p86
    %s88 = ssub.s32 %s18, %s27
    %p89 = scmp.eq.s32.totalorder %s88, 0
    %s91 = sadd.s32 %s90, 1
    %s92 = scalar_select %p89, %s90, %s91
    %p95 = pneg %p89
    %p96 = scmp.eq.s32.totalorder %s9, 1
    %p97 = por %p95, %p96
    %p98 = scmp.ne.s32.totalorder %s90, %s93
    %p99 = scmp.eq.s32.totalorder %s9, 0
    %p100 = por %p98, %p99
    %p101 = scmp.ne.s32.totalorder %s90, %s93
    %p102 = scmp.eq.s32.totalorder %s14, 1
    %p103 = por %p101, %p102
    %p104 = scmp.ne.s32.totalorder %s93, %s94
    %p105 = scmp.eq.s32.totalorder %s14, 0
    %p106 = por %p104, %p105
    %p107 = scmp.ne.s32.totalorder %s93, %s94
    %p108 = scmp.eq.s32.totalorder %s15, 1
    %p109 = por %p107, %p108
    %p111 = scmp.ne.s32.totalorder %s94, %s110
    %p112 = scmp.eq.s32.totalorder %s15, 0
    %p113 = por %p111, %p112
    %s114 = ssub.s32 %s16, %s35
    %s115 = ssub.s32 %s17, %s31
    %s116 = sor.u32 %s114, %s115
    %s117 = ssub.s32 %s18, %s27
    %s118 = sor.u32 %s116, %s117
    %p119 = scmp.eq.s32.totalorder %s118, 0
    %s121 = sadd.s32 %s120, 1
    %s122 = scalar_select %p119, %s120, %s121
    %p125 = pneg %p119
    %p126 = scmp.eq.s32.totalorder %s9, 1
    %p127 = por %p125, %p126
    %p128 = scmp.ne.s32.totalorder %s120, %s123
    %p129 = scmp.eq.s32.totalorder %s9, 0
    %p130 = por %p128, %p129
    %p131 = scmp.ne.s32.totalorder %s120, %s123
    %p132 = scmp.eq.s32.totalorder %s14, 1
    %p133 = por %p131, %p132
    %p134 = scmp.ne.s32.totalorder %s123, %s124
    %p135 = scmp.eq.s32.totalorder %s14, 0
    %p136 = por %p134, %p135
    %p137 = scmp.ne.s32.totalorder %s123, %s124
    %p138 = scmp.eq.s32.totalorder %s15, 1
    %p139 = por %p137, %p138
    %p141 = scmp.ne.s32.totalorder %s124, %s140
    %p142 = scmp.eq.s32.totalorder %s15, 0
    %p143 = por %p141, %p142
    %p144 = scmp.le.s32.totalorder 1, %s9
    %p145 = scmp.lt.s32.totalorder %s9, 3
    %p146 = pnand %p144, %p145
    %p147 = pneg %p146
    // Predicated region
    $region9: #{_lambda_.9} parent=5 // pred_check
      _
    $region10: #{_lambda_.9} parent=5 // pred_check_branch
      %149 = sbr.rel (%p146) target = $region12
    $region11: #{_lambda_.9} parent=5 // pred_region
      %s150 = ssub.s32 %s9, 1
      // Predicated region
      $region13: #{_lambda_.9} parent=11 // pred_check
        %p151 = pneg %p80
      $region14: #{_lambda_.9} parent=11 // pred_check_branch
        %153 = sbr.rel (%p151) target = $region16
      $region15: #{_lambda_.9} parent=11 // pred_region
        %p154 = scmp.lt.s32.totalorder %s21, 0
        %s155 = scalar_select %p154, %s21, 0
        %s156 = smul.addr %s155, 4
        %s157 = scalar_lea.vmem %s1, %s156
      $region16: #{_lambda_.9} parent=11 // pred_fallthru
        _
      // Predicated region
      $region17: #{_lambda_.9} parent=11 // pred_check
        %p158 = pneg %p106
      $region18: #{_lambda_.9} parent=11 // pred_check_branch
        %160 = sbr.rel (%p158) target = $region20
      $region19: #{_lambda_.9} parent=11 // pred_region
        %p161 = scmp.lt.s32.totalorder %s21, 0
        %s162 = scalar_select %p161, %s21, 0
        %s163 = scalar_lea.vmem %s2, %s162
      $region20: #{_lambda_.9} parent=11 // pred_fallthru
        _
    $region12: #{_lambda_.9} parent=5 // pred_fallthru
      _
    %p164 = scmp.lt.s32.totalorder %s9, 2
    // Predicated region
    $region21: #{_lambda_.9} parent=5 // pred_check
      %p165 = pneg %p164
    $region22: #{_lambda_.9} parent=5 // pred_check_branch
      %167 = sbr.rel (%p165) target = $region24
    $region23: #{_lambda_.9} parent=5 // pred_region
      // Predicated region
      $region25: #{_lambda_.9} parent=23 // pred_check
        %p168 = pneg %p48
      $region26: #{_lambda_.9} parent=23 // pred_check_branch
        %170 = sbr.rel (%p168) target = $region28
      $region27: #{_lambda_.9} parent=23 // pred_region
        %p171 = scmp.lt.s32.totalorder %s16, 1
        %s172 = scalar_select %p171, %s16, 1
        %s173 = smul.addr %s172, 3
        %s174 = smul.addr %s173, 2
        %s175 = scalar_lea.vmem %s0, %s174
      $region28: #{_lambda_.9} parent=23 // pred_fallthru
        _
    $region24: #{_lambda_.9} parent=5 // pred_fallthru
      _
    %p176 = scmp.le.s32.totalorder 1, %s9
    %p177 = scmp.lt.s32.totalorder %s9, 3
    %p178 = pnand %p176, %p177
    %p179 = pneg %p178
    // Predicated region
    $region29: #{_lambda_.9} parent=5 // pred_check
      _
    $region30: #{_lambda_.9} parent=5 // pred_check_branch
      %181 = sbr.rel (%p178) target = $region32
    $region31: #{_lambda_.9} parent=5 // pred_region
      %s182 = ssub.s32 %s9, 1
      %p183 = scmp.lt.s32.totalorder %s19, 1
      %s184 = scalar_select %p183, %s19, 1
      %s185 = smul.addr %s184, 3
      %s186 = smul.addr %s185, 2
      %s187 = scalar_lea.vmem %s0, %s186
      %p188 = pneg %p54
      %p189 = pneg %p51
      %p190 = scmp.lt.s32.totalorder %s21, 0
      %s191 = scalar_select %p190, %s21, 0
      %s192 = smul.addr %s191, 4
      %s193 = scalar_lea.vmem %s1, %s192
      %p194 = pneg %p80
      %p195 = pneg %p77
      %p196 = scmp.lt.s32.totalorder %s21, 0
      %s197 = scalar_select %p196, %s21, 0
      %s198 = scalar_lea.vmem %s2, %s197
      %p199 = pneg %p106
      %p200 = pneg %p103
      %p201 = pneg %p136
      %p202 = pneg %p133
      %p203 = scmp.lt.s32.totalorder %s19, 1
      %s204 = scalar_select %p203, %s19, 1
      %p205 = scmp.lt.s32.totalorder %s20, 0
      %s206 = scalar_select %p205, %s20, 0
      %p207 = scmp.lt.s32.totalorder %s21, 0
      %s208 = scalar_select %p207, %s21, 0
      %s209 = sadd.s32 %s208, %s206
      %s210 = sadd.s32 %s209, %s204
      %s211 = scalar_lea.vmem %s3, %s210
      %p212 = scmp.lt.s32.totalorder %s19, 1
      %s213 = scalar_select %p212, %s19, 1
      %s214 = smul.addr %s213, 3
      %s215 = smul.addr %s214, 2
      %s216 = scalar_lea.vmem %s0, %s215
      %p217 = scmp.lt.s32.totalorder %s21, 0
      %s218 = scalar_select %p217, %s21, 0
      %s219 = smul.addr %s218, 4
      %s220 = scalar_lea.vmem %s1, %s219
      %p221 = scmp.lt.s32.totalorder %s21, 0
      %s222 = scalar_select %p221, %s21, 0
      %s223 = scalar_lea.vmem %s2, %s222
      %p224 = scmp.lt.s32.totalorder %s19, 1
      %s225 = scalar_select %p224, %s19, 1
      %p226 = scmp.lt.s32.totalorder %s20, 0
      %s227 = scalar_select %p226, %s20, 0
      %p228 = scmp.lt.s32.totalorder %s21, 0
      %s229 = scalar_select %p228, %s21, 0
      %s230 = sadd.s32 %s229, %s227
      %s231 = sadd.s32 %s230, %s225
      %s232 = scalar_lea.vmem %s3, %s231
      %v234 = vld [vmem:[%s223] sm:$0x1]
      %s235 = smul.addr %s20, 2
      %s236 = scalar_lea.vmem %s216, %s235
      %v237 = vld [vmem:[%s236] sm:$0x1]
      %v238 = vld [vmem:[%s220] sm:$0xf]
      %v239 = vld [vmem:[%s220 + $0x4] sm:$0xf]
      %v240 = vld [vmem:[%s220 + $0x8] sm:$0xf]
      %v241 = vld [vmem:[%s220 + $0xc] sm:$0xf]
      %s242 = scalar_lea.vmem %s220, 16
      %v243 = vld [vmem:[%s242] sm:$0xf]
      %v244 = vld [vmem:[%s242 + $0x4] sm:$0xf]
      %v245 = vld [vmem:[%s242 + $0x8] sm:$0xf]
      %v246 = vld [vmem:[%s242 + $0xc] sm:$0xf]
      %v249 = vunpack.c.l.s4 1983009808
      %v250 = vunpack.c.0.s8 %v249
      %v251 = vlaneseq
      %v252 = vshrl.u32 %v251, 7
      %v253 = vsub.s32 %v250, %v252
      %v254 = vrot.slane %v237, %v253
      %v256 = vshrl.u32 %v254, 16
      %v262 = vunpack.c.l.b16 %v243
      %v263 = vunpack.c.l.b16 %v244
      %v264 = vunpack.c.l.b16 %v245
      %v265 = vunpack.c.l.b16 %v246
      %v266 = vpack.c.b16 %v263, %v262
      %v267 = vpack.c.b16 %v265, %v264
      %vm270 = vcmask 261120
      %v272 = vsel %vm270, %v256, 0
      %274 = vmatprep.subr.bf16.mxu0 0
      %275 = vmatpush1.bf16.msra.mxu0 %v266
      %276 = vmatprep.subr.bf16.mxu0 0
      %277 = vmatpush1.bf16.msra.mxu0 %v267
      %278 = vmatprep.subr.bf16.mxu0 0
      %279 = vmatpush1.bf16.msra.mxu0 0
      %280 = vmatprep.subr.bf16.mxu0 0
      %281 = vmatpush1.bf16.msra.mxu0 0
      %282 = vmatprep.subr.bf16.mxu0 0
      %283 = vmatpush1.bf16.msra.mxu0 0
      %284 = vmatprep.subr.bf16.mxu0 0
      %285 = vmatpush1.bf16.msra.mxu0 0
      %286 = vmatprep.subr.bf16.mxu0 0
      %287 = vmatpush1.bf16.msra.mxu0 0
      %288 = vmatprep.subr.bf16.mxu0 0
      %289 = vmatpush1.bf16.msra.mxu0 0
      %290 = vmatprep.subr.bf16.mxu0 0
      %291 = vmatpush1.bf16.msra.mxu0 0
      %292 = vmatprep.subr.bf16.mxu0 0
      %293 = vmatpush1.bf16.msra.mxu0 0
      %294 = vmatprep.subr.bf16.mxu0 0
      %295 = vmatpush1.bf16.msra.mxu0 0
      %296 = vmatprep.subr.bf16.mxu0 0
      %297 = vmatpush1.bf16.msra.mxu0 0
      %298 = vmatprep.subr.bf16.mxu0 0
      %299 = vmatpush1.bf16.msra.mxu0 0
      %300 = vmatprep.subr.bf16.mxu0 0
      %301 = vmatpush1.bf16.msra.mxu0 0
      %302 = vmatprep.subr.bf16.mxu0 0
      %303 = vmatpush1.bf16.msra.mxu0 0
      %304 = vmatprep.subr.bf16.mxu0 0
      %305 = vmatpush1.bf16.msra.mxu0 0
      %306 = vmatprep.mubr.bf16.mxu0 0
      %307 = vmatmul.mubr.bf16.gmra.mrb[0].mxu0 %v272
      %v308 = vpop.f32.mrb[0].mxu0
      %v309 = vadd.f32 0.0, %v308
      %v310 = vpop.f32.mrb[0].mxu0
      %v311 = vpop.f32.mrb[0].mxu0
      %v312 = vpop.f32.mrb[0].mxu0
      %313 = vdwg.mxu0
      %v318 = vunpack.c.l.b16 %v238
      %v319 = vunpack.c.l.b16 %v239
      %v320 = vunpack.c.l.b16 %v240
      %v321 = vunpack.c.l.b16 %v241
      %v322 = vpack.c.b16 %v319, %v318
      %v323 = vpack.c.b16 %v321, %v320
      %v327 = vsel %vm270, %v237, 0
      %329 = vmatprep.subr.bf16.mxu0 0
      %330 = vmatpush1.bf16.msra.mxu0 %v322
      %331 = vmatprep.subr.bf16.mxu0 0
      %332 = vmatpush1.bf16.msra.mxu0 %v323
      %333 = vmatprep.subr.bf16.mxu0 0
      %334 = vmatpush1.bf16.msra.mxu0 0
      %335 = vmatprep.subr.bf16.mxu0 0
      %336 = vmatpush1.bf16.msra.mxu0 0
      %337 = vmatprep.subr.bf16.mxu0 0
      %338 = vmatpush1.bf16.msra.mxu0 0
      %339 = vmatprep.subr.bf16.mxu0 0
      %340 = vmatpush1.bf16.msra.mxu0 0
      %341 = vmatprep.subr.bf16.mxu0 0
      %342 = vmatpush1.bf16.msra.mxu0 0
      %343 = vmatprep.subr.bf16.mxu0 0
      %344 = vmatpush1.bf16.msra.mxu0 0
      %345 = vmatprep.subr.bf16.mxu0 0
      %346 = vmatpush1.bf16.msra.mxu0 0
      %347 = vmatprep.subr.bf16.mxu0 0
      %348 = vmatpush1.bf16.msra.mxu0 0
      %349 = vmatprep.subr.bf16.mxu0 0
      %350 = vmatpush1.bf16.msra.mxu0 0
      %351 = vmatprep.subr.bf16.mxu0 0
      %352 = vmatpush1.bf16.msra.mxu0 0
      %353 = vmatprep.subr.bf16.mxu0 0
      %354 = vmatpush1.bf16.msra.mxu0 0
      %355 = vmatprep.subr.bf16.mxu0 0
      %356 = vmatpush1.bf16.msra.mxu0 0
      %357 = vmatprep.subr.bf16.mxu0 0
      %358 = vmatpush1.bf16.msra.mxu0 0
      %359 = vmatprep.subr.bf16.mxu0 0
      %360 = vmatpush1.bf16.msra.mxu0 0
      %361 = vmatprep.mubr.bf16.mxu0 0
      %362 = vmatmul.mubr.bf16.gmra.mrb[0].mxu0 %v327
      %v363 = vpop.f32.mrb[0].mxu0
      %v364 = vadd.f32 %v309, %v363
      %v365 = vpop.f32.mrb[0].mxu0
      %v366 = vpop.f32.mrb[0].mxu0
      %v367 = vpop.f32.mrb[0].mxu0
      %368 = vdwg.mxu0
      %v369 = vld [vmem:[%s236] sm:$0x2]
      %s370 = scalar_lea.vmem %s220, 32
      %v371 = vld [vmem:[%s370] sm:$0xf]
      %v372 = vld [vmem:[%s370 + $0x4] sm:$0xf]
      %v373 = vld [vmem:[%s370 + $0x8] sm:$0xf]
      %v374 = vld [vmem:[%s370 + $0xc] sm:$0xf]
      %v377 = vunpack.c.l.s4 1983009808
      %v378 = vunpack.c.0.s8 %v377
      %v379 = vlaneseq
      %v380 = vshrl.u32 %v379, 7
      %v381 = vsub.s32 %v378, %v380
      %v382 = vrot.slane %v369, %v381
      %v383 = vrot.slane %v382, 1
      %v388 = vunpack.c.l.b16 %v371
      %v389 = vunpack.c.l.b16 %v372
      %v390 = vunpack.c.l.b16 %v373
      %v391 = vunpack.c.l.b16 %v374
      %v392 = vpack.c.b16 %v389, %v388
      %v393 = vpack.c.b16 %v391, %v390
      %v397 = vsel %vm270, %v383, 0
      %399 = vmatprep.subr.bf16.mxu0 0
      %400 = vmatpush1.bf16.msra.mxu0 %v392
      %401 = vmatprep.subr.bf16.mxu0 0
      %402 = vmatpush1.bf16.msra.mxu0 %v393
      %403 = vmatprep.subr.bf16.mxu0 0
      %404 = vmatpush1.bf16.msra.mxu0 0
      %405 = vmatprep.subr.bf16.mxu0 0
      %406 = vmatpush1.bf16.msra.mxu0 0
      %407 = vmatprep.subr.bf16.mxu0 0
      %408 = vmatpush1.bf16.msra.mxu0 0
      %409 = vmatprep.subr.bf16.mxu0 0
      %410 = vmatpush1.bf16.msra.mxu0 0
      %411 = vmatprep.subr.bf16.mxu0 0
      %412 = vmatpush1.bf16.msra.mxu0 0
      %413 = vmatprep.subr.bf16.mxu0 0
      %414 = vmatpush1.bf16.msra.mxu0 0
      %415 = vmatprep.subr.bf16.mxu0 0
      %416 = vmatpush1.bf16.msra.mxu0 0
      %417 = vmatprep.subr.bf16.mxu0 0
      %418 = vmatpush1.bf16.msra.mxu0 0
      %419 = vmatprep.subr.bf16.mxu0 0
      %420 = vmatpush1.bf16.msra.mxu0 0
      %421 = vmatprep.subr.bf16.mxu0 0
      %422 = vmatpush1.bf16.msra.mxu0 0
      %423 = vmatprep.subr.bf16.mxu0 0
      %424 = vmatpush1.bf16.msra.mxu0 0
      %425 = vmatprep.subr.bf16.mxu0 0
      %426 = vmatpush1.bf16.msra.mxu0 0
      %427 = vmatprep.subr.bf16.mxu0 0
      %428 = vmatpush1.bf16.msra.mxu0 0
      %429 = vmatprep.subr.bf16.mxu0 0
      %430 = vmatpush1.bf16.msra.mxu0 0
      %431 = vmatprep.mubr.bf16.mxu0 0
      %432 = vmatmul.mubr.bf16.gmra.mrb[0].mxu0 %v397
      %v433 = vpop.f32.mrb[0].mxu0
      %v434 = vadd.f32 0.0, %v433
      %v435 = vpop.f32.mrb[0].mxu0
      %v436 = vpop.f32.mrb[0].mxu0
      %v437 = vpop.f32.mrb[0].mxu0
      %438 = vdwg.mxu0
      %v439 = vadd.f32 %v364, %v434
      %s440 = sadd.s32 %s20, 1
      %s441 = smul.addr %s440, 2
      %s442 = scalar_lea.vmem %s216, %s441
      %v443 = vld [vmem:[%s442] sm:$0x1]
      %s444 = scalar_lea.vmem %s220, 48
      %v445 = vld [vmem:[%s444] sm:$0xf]
      %v446 = vld [vmem:[%s444 + $0x4] sm:$0xf]
      %v447 = vld [vmem:[%s444 + $0x8] sm:$0xf]
      %v448 = vld [vmem:[%s444 + $0xc] sm:$0xf]
      %v453 = vunpack.c.l.b16 %v445
      %v454 = vunpack.c.l.b16 %v446
      %v455 = vunpack.c.l.b16 %v447
      %v456 = vunpack.c.l.b16 %v448
      %v457 = vpack.c.b16 %v454, %v453
      %v458 = vpack.c.b16 %v456, %v455
      %v462 = vsel %vm270, %v443, 0
      %464 = vmatprep.subr.bf16.mxu0 0
      %465 = vmatpush1.bf16.msra.mxu0 %v457
      %466 = vmatprep.subr.bf16.mxu0 0
      %467 = vmatpush1.bf16.msra.mxu0 %v458
      %468 = vmatprep.subr.bf16.mxu0 0
      %469 = vmatpush1.bf16.msra.mxu0 0
      %470 = vmatprep.subr.bf16.mxu0 0
      %471 = vmatpush1.bf16.msra.mxu0 0
      %472 = vmatprep.subr.bf16.mxu0 0
      %473 = vmatpush1.bf16.msra.mxu0 0
      %474 = vmatprep.subr.bf16.mxu0 0
      %475 = vmatpush1.bf16.msra.mxu0 0
      %476 = vmatprep.subr.bf16.mxu0 0
      %477 = vmatpush1.bf16.msra.mxu0 0
      %478 = vmatprep.subr.bf16.mxu0 0
      %479 = vmatpush1.bf16.msra.mxu0 0
      %480 = vmatprep.subr.bf16.mxu0 0
      %481 = vmatpush1.bf16.msra.mxu0 0
      %482 = vmatprep.subr.bf16.mxu0 0
      %483 = vmatpush1.bf16.msra.mxu0 0
      %484 = vmatprep.subr.bf16.mxu0 0
      %485 = vmatpush1.bf16.msra.mxu0 0
      %486 = vmatprep.subr.bf16.mxu0 0
      %487 = vmatpush1.bf16.msra.mxu0 0
      %488 = vmatprep.subr.bf16.mxu0 0
      %489 = vmatpush1.bf16.msra.mxu0 0
      %490 = vmatprep.subr.bf16.mxu0 0
      %491 = vmatpush1.bf16.msra.mxu0 0
      %492 = vmatprep.subr.bf16.mxu0 0
      %493 = vmatpush1.bf16.msra.mxu0 0
      %494 = vmatprep.subr.bf16.mxu0 0
      %495 = vmatpush1.bf16.msra.mxu0 0
      %496 = vmatprep.mubr.bf16.mxu0 0
      %497 = vmatmul.mubr.bf16.gmra.mrb[0].mxu0 %v462
      %v498 = vpop.f32.mrb[0].mxu0
      %v499 = vadd.f32 0.0, %v498
      %v500 = vpop.f32.mrb[0].mxu0
      %v501 = vpop.f32.mrb[0].mxu0
      %v502 = vpop.f32.mrb[0].mxu0
      %503 = vdwg.mxu0
      %v504 = vadd.f32 %v439, %v499
      %s505 = scalar_lea.vmem %s220, 64
      %v506 = vld [vmem:[%s505] sm:$0xf]
      %v507 = vld [vmem:[%s505 + $0x4] sm:$0xf]
      %v508 = vld [vmem:[%s505 + $0x8] sm:$0xf]
      %v509 = vld [vmem:[%s505 + $0xc] sm:$0xf]
      %v512 = vunpack.c.l.s4 1983009808
      %v513 = vunpack.c.0.s8 %v512
      %v514 = vlaneseq
      %v515 = vshrl.u32 %v514, 7
      %v516 = vsub.s32 %v513, %v515
      %v517 = vrot.slane %v443, %v516
      %v519 = vshrl.u32 %v517, 16
      %v525 = vunpack.c.l.b16 %v506
      %v526 = vunpack.c.l.b16 %v507
      %v527 = vunpack.c.l.b16 %v508
      %v528 = vunpack.c.l.b16 %v509
      %v529 = vpack.c.b16 %v526, %v525
      %v530 = vpack.c.b16 %v528, %v527
      %v534 = vsel %vm270, %v519, 0
      %536 = vmatprep.subr.bf16.mxu0 0
      %537 = vmatpush1.bf16.msra.mxu0 %v529
      %538 = vmatprep.subr.bf16.mxu0 0
      %539 = vmatpush1.bf16.msra.mxu0 %v530
      %540 = vmatprep.subr.bf16.mxu0 0
      %541 = vmatpush1.bf16.msra.mxu0 0
      %542 = vmatprep.subr.bf16.mxu0 0
      %543 = vmatpush1.bf16.msra.mxu0 0
      %544 = vmatprep.subr.bf16.mxu0 0
      %545 = vmatpush1.bf16.msra.mxu0 0
      %546 = vmatprep.subr.bf16.mxu0 0
      %547 = vmatpush1.bf16.msra.mxu0 0
      %548 = vmatprep.subr.bf16.mxu0 0
      %549 = vmatpush1.bf16.msra.mxu0 0
      %550 = vmatprep.subr.bf16.mxu0 0
      %551 = vmatpush1.bf16.msra.mxu0 0
      %552 = vmatprep.subr.bf16.mxu0 0
      %553 = vmatpush1.bf16.msra.mxu0 0
      %554 = vmatprep.subr.bf16.mxu0 0
      %555 = vmatpush1.bf16.msra.mxu0 0
      %556 = vmatprep.subr.bf16.mxu0 0
      %557 = vmatpush1.bf16.msra.mxu0 0
      %558 = vmatprep.subr.bf16.mxu0 0
      %559 = vmatpush1.bf16.msra.mxu0 0
      %560 = vmatprep.subr.bf16.mxu0 0
      %561 = vmatpush1.bf16.msra.mxu0 0
      %562 = vmatprep.subr.bf16.mxu0 0
      %563 = vmatpush1.bf16.msra.mxu0 0
      %564 = vmatprep.subr.bf16.mxu0 0
      %565 = vmatpush1.bf16.msra.mxu0 0
      %566 = vmatprep.subr.bf16.mxu0 0
      %567 = vmatpush1.bf16.msra.mxu0 0
      %568 = vmatprep.mubr.bf16.mxu0 0
      %569 = vmatmul.mubr.bf16.gmra.mrb[0].mxu0 %v534
      %v570 = vpop.f32.mrb[0].mxu0
      %v571 = vadd.f32 0.0, %v570
      %v572 = vpop.f32.mrb[0].mxu0
      %v573 = vpop.f32.mrb[0].mxu0
      %v574 = vpop.f32.mrb[0].mxu0
      %575 = vdwg.mxu0
      %v576 = vadd.f32 %v504, %v571
      %v577 = vld [vmem:[%s442] sm:$0x2]
      %s578 = scalar_lea.vmem %s220, 80
      %v579 = vld [vmem:[%s578] sm:$0xf]
      %v580 = vld [vmem:[%s578 + $0x4] sm:$0xf]
      %v581 = vld [vmem:[%s578 + $0x8] sm:$0xf]
      %v582 = vld [vmem:[%s578 + $0xc] sm:$0xf]
      %v585 = vunpack.c.l.s4 1983009808
      %v586 = vunpack.c.0.s8 %v585
      %v587 = vlaneseq
      %v588 = vshrl.u32 %v587, 7
      %v589 = vsub.s32 %v586, %v588
      %v590 = vrot.slane %v577, %v589
      %v591 = vrot.slane %v590, 1
      %v596 = vunpack.c.l.b16 %v579
      %v597 = vunpack.c.l.b16 %v580
      %v598 = vunpack.c.l.b16 %v581
      %v599 = vunpack.c.l.b16 %v582
      %v600 = vpack.c.b16 %v597, %v596
      %v601 = vpack.c.b16 %v599, %v598
      %v605 = vsel %vm270, %v591, 0
      %607 = vmatprep.subr.bf16.mxu0 0
      %608 = vmatpush1.bf16.msra.mxu0 %v600
      %609 = vmatprep.subr.bf16.mxu0 0
      %610 = vmatpush1.bf16.msra.mxu0 %v601
      %611 = vmatprep.subr.bf16.mxu0 0
      %612 = vmatpush1.bf16.msra.mxu0 0
      %613 = vmatprep.subr.bf16.mxu0 0
      %614 = vmatpush1.bf16.msra.mxu0 0
      %615 = vmatprep.subr.bf16.mxu0 0
      %616 = vmatpush1.bf16.msra.mxu0 0
      %617 = vmatprep.subr.bf16.mxu0 0
      %618 = vmatpush1.bf16.msra.mxu0 0
      %619 = vmatprep.subr.bf16.mxu0 0
      %620 = vmatpush1.bf16.msra.mxu0 0
      %621 = vmatprep.subr.bf16.mxu0 0
      %622 = vmatpush1.bf16.msra.mxu0 0
      %623 = vmatprep.subr.bf16.mxu0 0
      %624 = vmatpush1.bf16.msra.mxu0 0
      %625 = vmatprep.subr.bf16.mxu0 0
      %626 = vmatpush1.bf16.msra.mxu0 0
      %627 = vmatprep.subr.bf16.mxu0 0
      %628 = vmatpush1.bf16.msra.mxu0 0
      %629 = vmatprep.subr.bf16.mxu0 0
      %630 = vmatpush1.bf16.msra.mxu0 0
      %631 = vmatprep.subr.bf16.mxu0 0
      %632 = vmatpush1.bf16.msra.mxu0 0
      %633 = vmatprep.subr.bf16.mxu0 0
      %634 = vmatpush1.bf16.msra.mxu0 0
      %635 = vmatprep.subr.bf16.mxu0 0
      %636 = vmatpush1.bf16.msra.mxu0 0
      %637 = vmatprep.subr.bf16.mxu0 0
      %638 = vmatpush1.bf16.msra.mxu0 0
      %639 = vmatprep.mubr.bf16.mxu0 0
      %640 = vmatmul.mubr.bf16.gmra.mrb[0].mxu0 %v605
      %v641 = vpop.f32.mrb[0].mxu0
      %v642 = vadd.f32 0.0, %v641
      %v643 = vpop.f32.mrb[0].mxu0
      %v644 = vpop.f32.mrb[0].mxu0
      %v645 = vpop.f32.mrb[0].mxu0
      %646 = vdwg.mxu0
      %v647 = vadd.f32 %v576, %v642
      %s648 = sadd.s32 %s20, 2
      %s649 = smul.addr %s648, 2
      %s650 = scalar_lea.vmem %s216, %s649
      %v651 = vld [vmem:[%s650] sm:$0x1]
      %s652 = scalar_lea.vmem %s220, 96
      %v653 = vld [vmem:[%s652] sm:$0xf]
      %v654 = vld [vmem:[%s652 + $0x4] sm:$0xf]
      %v655 = vld [vmem:[%s652 + $0x8] sm:$0xf]
      %v656 = vld [vmem:[%s652 + $0xc] sm:$0xf]
      %v661 = vunpack.c.l.b16 %v653
      %v662 = vunpack.c.l.b16 %v654
      %v663 = vunpack.c.l.b16 %v655
      %v664 = vunpack.c.l.b16 %v656
      %v665 = vpack.c.b16 %v662, %v661
      %v666 = vpack.c.b16 %v664, %v663
      %v670 = vsel %vm270, %v651, 0
      %672 = vmatprep.subr.bf16.mxu0 0
      %673 = vmatpush1.bf16.msra.mxu0 %v665
      %674 = vmatprep.subr.bf16.mxu0 0
      %675 = vmatpush1.bf16.msra.mxu0 %v666
      %676 = vmatprep.subr.bf16.mxu0 0
      %677 = vmatpush1.bf16.msra.mxu0 0
      %678 = vmatprep.subr.bf16.mxu0 0
      %679 = vmatpush1.bf16.msra.mxu0 0
      %680 = vmatprep.subr.bf16.mxu0 0
      %681 = vmatpush1.bf16.msra.mxu0 0
      %682 = vmatprep.subr.bf16.mxu0 0
      %683 = vmatpush1.bf16.msra.mxu0 0
      %684 = vmatprep.subr.bf16.mxu0 0
      %685 = vmatpush1.bf16.msra.mxu0 0
      %686 = vmatprep.subr.bf16.mxu0 0
      %687 = vmatpush1.bf16.msra.mxu0 0
      %688 = vmatprep.subr.bf16.mxu0 0
      %689 = vmatpush1.bf16.msra.mxu0 0
      %690 = vmatprep.subr.bf16.mxu0 0
      %691 = vmatpush1.bf16.msra.mxu0 0
      %692 = vmatprep.subr.bf16.mxu0 0
      %693 = vmatpush1.bf16.msra.mxu0 0
      %694 = vmatprep.subr.bf16.mxu0 0
      %695 = vmatpush1.bf16.msra.mxu0 0
      %696 = vmatprep.subr.bf16.mxu0 0
      %697 = vmatpush1.bf16.msra.mxu0 0
      %698 = vmatprep.subr.bf16.mxu0 0
      %699 = vmatpush1.bf16.msra.mxu0 0
      %700 = vmatprep.subr.bf16.mxu0 0
      %701 = vmatpush1.bf16.msra.mxu0 0
      %702 = vmatprep.subr.bf16.mxu0 0
      %703 = vmatpush1.bf16.msra.mxu0 0
      %704 = vmatprep.mubr.bf16.mxu0 0
      %705 = vmatmul.mubr.bf16.gmra.mrb[0].mxu0 %v670
      %v706 = vpop.f32.mrb[0].mxu0
      %v707 = vadd.f32 0.0, %v706
      %v708 = vpop.f32.mrb[0].mxu0
      %v709 = vpop.f32.mrb[0].mxu0
      %v710 = vpop.f32.mrb[0].mxu0
      %711 = vdwg.mxu0
      %v712 = vadd.f32 %v647, %v707
      %s713 = scalar_lea.vmem %s220, 112
      %v714 = vld [vmem:[%s713] sm:$0xf]
      %v715 = vld [vmem:[%s713 + $0x4] sm:$0xf]
      %v716 = vld [vmem:[%s713 + $0x8] sm:$0xf]
      %v717 = vld [vmem:[%s713 + $0xc] sm:$0xf]
      %v720 = vunpack.c.l.s4 1983009808
      %v721 = vunpack.c.0.s8 %v720
      %v722 = vlaneseq
      %v723 = vshrl.u32 %v722, 7
      %v724 = vsub.s32 %v721, %v723
      %v725 = vrot.slane %v651, %v724
      %v727 = vshrl.u32 %v725, 16
      %v733 = vunpack.c.l.b16 %v714
      %v734 = vunpack.c.l.b16 %v715
      %v735 = vunpack.c.l.b16 %v716
      %v736 = vunpack.c.l.b16 %v717
      %v737 = vpack.c.b16 %v734, %v733
      %v738 = vpack.c.b16 %v736, %v735
      %v742 = vsel %vm270, %v727, 0
      %744 = vmatprep.subr.bf16.mxu0 0
      %745 = vmatpush1.bf16.msra.mxu0 %v737
      %746 = vmatprep.subr.bf16.mxu0 0
      %747 = vmatpush1.bf16.msra.mxu0 %v738
      %748 = vmatprep.subr.bf16.mxu0 0
      %749 = vmatpush1.bf16.msra.mxu0 0
      %750 = vmatprep.subr.bf16.mxu0 0
      %751 = vmatpush1.bf16.msra.mxu0 0
      %752 = vmatprep.subr.bf16.mxu0 0
      %753 = vmatpush1.bf16.msra.mxu0 0
      %754 = vmatprep.subr.bf16.mxu0 0
      %755 = vmatpush1.bf16.msra.mxu0 0
      %756 = vmatprep.subr.bf16.mxu0 0
      %757 = vmatpush1.bf16.msra.mxu0 0
      %758 = vmatprep.subr.bf16.mxu0 0
      %759 = vmatpush1.bf16.msra.mxu0 0
      %760 = vmatprep.subr.bf16.mxu0 0
      %761 = vmatpush1.bf16.msra.mxu0 0
      %762 = vmatprep.subr.bf16.mxu0 0
      %763 = vmatpush1.bf16.msra.mxu0 0
      %764 = vmatprep.subr.bf16.mxu0 0
      %765 = vmatpush1.bf16.msra.mxu0 0
      %766 = vmatprep.subr.bf16.mxu0 0
      %767 = vmatpush1.bf16.msra.mxu0 0
      %768 = vmatprep.subr.bf16.mxu0 0
      %769 = vmatpush1.bf16.msra.mxu0 0
      %770 = vmatprep.subr.bf16.mxu0 0
      %771 = vmatpush1.bf16.msra.mxu0 0
      %772 = vmatprep.subr.bf16.mxu0 0
      %773 = vmatpush1.bf16.msra.mxu0 0
      %774 = vmatprep.subr.bf16.mxu0 0
      %775 = vmatpush1.bf16.msra.mxu0 0
      %776 = vmatprep.mubr.bf16.mxu0 0
      %777 = vmatmul.mubr.bf16.gmra.mrb[0].mxu0 %v742
      %v778 = vpop.f32.mrb[0].mxu0
      %v779 = vadd.f32 0.0, %v778
      %v780 = vpop.f32.mrb[0].mxu0
      %v781 = vpop.f32.mrb[0].mxu0
      %v782 = vpop.f32.mrb[0].mxu0
      %783 = vdwg.mxu0
      %v784 = vadd.f32 %v712, %v779
      %v785 = vld [vmem:[%s650] sm:$0x2]
      %s786 = scalar_lea.vmem %s220, 128
      %v787 = vld [vmem:[%s786] sm:$0xf]
      %v788 = vld [vmem:[%s786 + $0x4] sm:$0xf]
      %v789 = vld [vmem:[%s786 + $0x8] sm:$0xf]
      %v790 = vld [vmem:[%s786 + $0xc] sm:$0xf]
      %v793 = vunpack.c.l.s4 1983009808
      %v794 = vunpack.c.0.s8 %v793
      %v795 = vlaneseq
      %v796 = vshrl.u32 %v795, 7
      %v797 = vsub.s32 %v794, %v796
      %v798 = vrot.slane %v785, %v797
      %v799 = vrot.slane %v798, 1
      %v804 = vunpack.c.l.b16 %v787
      %v805 = vunpack.c.l.b16 %v788
      %v806 = vunpack.c.l.b16 %v789
      %v807 = vunpack.c.l.b16 %v790
      %v808 = vpack.c.b16 %v805, %v804
      %v809 = vpack.c.b16 %v807, %v806
      %v813 = vsel %vm270, %v799, 0
      %815 = vmatprep.subr.bf16.mxu0 0
      %816 = vmatpush1.bf16.msra.mxu0 %v808
      %817 = vmatprep.subr.bf16.mxu0 0
      %818 = vmatpush1.bf16.msra.mxu0 %v809
      %819 = vmatprep.subr.bf16.mxu0 0
      %820 = vmatpush1.bf16.msra.mxu0 0
      %821 = vmatprep.subr.bf16.mxu0 0
      %822 = vmatpush1.bf16.msra.mxu0 0
      %823 = vmatprep.subr.bf16.mxu0 0
      %824 = vmatpush1.bf16.msra.mxu0 0
      %825 = vmatprep.subr.bf16.mxu0 0
      %826 = vmatpush1.bf16.msra.mxu0 0
      %827 = vmatprep.subr.bf16.mxu0 0
      %828 = vmatpush1.bf16.msra.mxu0 0
      %829 = vmatprep.subr.bf16.mxu0 0
      %830 = vmatpush1.bf16.msra.mxu0 0
      %831 = vmatprep.subr.bf16.mxu0 0
      %832 = vmatpush1.bf16.msra.mxu0 0
      %833 = vmatprep.subr.bf16.mxu0 0
      %834 = vmatpush1.bf16.msra.mxu0 0
      %835 = vmatprep.subr.bf16.mxu0 0
      %836 = vmatpush1.bf16.msra.mxu0 0
      %837 = vmatprep.subr.bf16.mxu0 0
      %838 = vmatpush1.bf16.msra.mxu0 0
      %839 = vmatprep.subr.bf16.mxu0 0
      %840 = vmatpush1.bf16.msra.mxu0 0
      %841 = vmatprep.subr.bf16.mxu0 0
      %842 = vmatpush1.bf16.msra.mxu0 0
      %843 = vmatprep.subr.bf16.mxu0 0
      %844 = vmatpush1.bf16.msra.mxu0 0
      %845 = vmatprep.subr.bf16.mxu0 0
      %846 = vmatpush1.bf16.msra.mxu0 0
      %847 = vmatprep.mubr.bf16.mxu0 0
      %848 = vmatmul.mubr.bf16.gmra.mrb[0].mxu0 %v813
      %v849 = vpop.f32.mrb[0].mxu0
      %v850 = vadd.f32 0.0, %v849
      %v851 = vpop.f32.mrb[0].mxu0
      %v852 = vpop.f32.mrb[0].mxu0
      %v853 = vpop.f32.mrb[0].mxu0
      %854 = vdwg.mxu0
      %v855 = vadd.f32 %v784, %v850
      %v856 = vadd.f32 %v855, %v234
      %857 = vst [vmem:[%s232] sm:$0x1] %v856
      %p858 = scmp.lt.s32.totalorder %s19, 1
      %s859 = scalar_select %p858, %s19, 1
      %p860 = scmp.lt.s32.totalorder %s20, 0
      %s861 = scalar_select %p860, %s20, 0
      %p862 = scmp.lt.s32.totalorder %s21, 0
      %s863 = scalar_select %p862, %s21, 0
      %s864 = sadd.s32 %s863, %s861
      %s865 = sadd.s32 %s864, %s859
      %s866 = scalar_lea.vmem %s3, %s865
      // Predicated region
      $region33: #{_lambda_.9} parent=31 // pred_check
        %p867 = pneg %p133
      $region34: #{_lambda_.9} parent=31 // pred_check_branch
        %869 = sbr.rel (%p867) target = $region36
      $region35: #{_lambda_.9} parent=31 // pred_region
        _
      $region36: #{_lambda_.9} parent=31 // pred_fallthru
        _
    $region32: #{_lambda_.9} parent=5 // pred_fallthru
      _
    %p870 = scmp.le.s32.totalorder 2, %s9
    // Predicated region
    $region37: #{_lambda_.9} parent=5 // pred_check
      %p871 = pneg %p870
    $region38: #{_lambda_.9} parent=5 // pred_check_branch
      %873 = sbr.rel (%p871) target = $region40
    $region39: #{_lambda_.9} parent=5 // pred_region
      %s874 = ssub.s32 %s9, 2
      // Predicated region
      $region41: #{_lambda_.9} parent=39 // pred_check
        %p875 = pneg %p139
      $region42: #{_lambda_.9} parent=39 // pred_check_branch
        %877 = sbr.rel (%p875) target = $region44
      $region43: #{_lambda_.9} parent=39 // pred_region
        %p878 = scmp.lt.s32.totalorder %s22, 1
        %s879 = scalar_select %p878, %s22, 1
        %p880 = scmp.lt.s32.totalorder %s23, 0
        %s881 = scalar_select %p880, %s23, 0
        %p882 = scmp.lt.s32.totalorder %s24, 0
        %s883 = scalar_select %p882, %s24, 0
        %s884 = sadd.s32 %s883, %s881
        %s885 = sadd.s32 %s884, %s879
        %s886 = scalar_lea.vmem %s3, %s885
      $region44: #{_lambda_.9} parent=39 // pred_fallthru
        _
    $region40: #{_lambda_.9} parent=5 // pred_fallthru
      _
  $region6: #{_lambda_.9} parent=0 // loop_footer
    %s13 = sadd.s32 1, %s9
  $region7: #{_lambda_.9} parent=0 // loop_footer_branch
    %8 = sbr.rel target = $region3
  $region8: #{_lambda_.9} parent=0 // loop_exit
    _

</llo_original>
